<compile_context>
chip_gen: v6e
topology: v6e:2x2x1
jax: 0.10.0
libtpu: 0.0.40
codegen_flags: <defaults>
</compile_context>

<pallas_src>
import functools

import jax
import jax.numpy as jnp
from jax.experimental import pallas as pl
from jax.experimental.pallas import tpu as pltpu

F_IN = 80      # lstm1 input features (fixed by the module)
F_PAD = 128    # zero-padded K for the layer-1 input projection
H1 = 256       # lstm1 hidden (per direction)
H2 = 128       # lstm2 hidden (per direction)
E_ATT = 100    # attention projection width
E_PAD = 128    # zero-padded attention width


# ----------------------------------------------------------------------------
# Fused whole-model kernel (no grid: single invocation, everything in VMEM)
# ----------------------------------------------------------------------------
def _lstm_cell(gates, c_prev, H):
    """PyTorch gate order i, f, g, o on an (R, 4H) slab (R may stack fwd+bwd)."""
    i = jax.nn.sigmoid(gates[:, 0:H])
    f = jax.nn.sigmoid(gates[:, H:2 * H])
    g = jnp.tanh(gates[:, 2 * H:3 * H])
    o = jax.nn.sigmoid(gates[:, 3 * H:4 * H])
    c = f * c_prev + i * g
    h = o * jnp.tanh(c)
    return h, c


def _lstmnet_kernel(T, B,
                    x_ref,
                    wih1_ref, whh1f_ref, whh1b_ref, b1_ref,
                    wih2_hbm, whh2f_hbm, b2_ref,
                    wha_hbm, bha_ref, w1_ref, b1a_ref,
                    out_ref,
                    gx1_scr, h1_scr, gx2_scr,
                    wih2_vmem, whh2f_vmem, wha_vmem, dma_sem):
    f32 = jnp.float32
    bf16 = jnp.bfloat16

    # ---- start HBM->VMEM DMA of layer-2 / attention weights -----------------
    # They are first needed only after the long, latency-bound layer-1
    # recurrence, so these transfers hide completely behind compute.
    cp_wih2 = pltpu.make_async_copy(wih2_hbm, wih2_vmem, dma_sem.at[0])
    cp_whh2 = pltpu.make_async_copy(whh2f_hbm, whh2f_vmem, dma_sem.at[1])
    cp_wha = pltpu.make_async_copy(wha_hbm, wha_vmem, dma_sem.at[2])
    cp_wih2.start()
    cp_whh2.start()
    cp_wha.start()

    # ---- layer-1 input projection: both directions in one bf16 MXU matmul ---
    # x_ref: (T*B, 128) zero-padded; wih1: (128, 8*H1) = [fwd i,f,g,o | bwd]
    gx1_scr[...] = (jnp.dot(x_ref[...].astype(bf16), wih1_ref[...],
                            preferred_element_type=f32) + b1_ref[...])

    # ---- layer-1 bidirectional recurrence (fully unrolled, static indices) --
    # fwd and bwd states are stacked on the sublane axis -> (2B, H1): the gate
    # nonlinearities run once per step on a half-full vreg slab instead of
    # twice on quarter-full slabs.
    h_fb = jnp.zeros((2 * B, H1), f32)
    c_fb = jnp.zeros((2 * B, H1), f32)
    hf_buf, hb_buf = [], []
    flush = max(1, 8 // B)            # flush full 8-sublane slabs to h1_scr
    for s in range(T):
        tb = T - 1 - s                # backward direction walks time in reverse
        gxf = gx1_scr[B * s:B * (s + 1), 0:4 * H1]
        gxb = gx1_scr[B * tb:B * (tb + 1), 4 * H1:8 * H1]
        if s == 0:
            # initial states are zero -> recurrent matmuls are identically 0
            g = jnp.concatenate([gxf, gxb], axis=0)
        else:
            h_bf = h_fb.astype(bf16)
            rec_f = jnp.dot(h_bf[0:B], whh1f_ref[...],
                            preferred_element_type=f32)
            rec_b = jnp.dot(h_bf[B:2 * B], whh1b_ref[...],
                            preferred_element_type=f32)
            g = jnp.concatenate([gxf + rec_f, gxb + rec_b], axis=0)
        h_fb, c_fb = _lstm_cell(g, c_fb, H1)
        hf_buf.append(h_fb[0:B])       # time index s
        hb_buf.append(h_fb[B:2 * B])   # time index tb
        if len(hf_buf) == flush or s == T - 1:
            n = len(hf_buf)
            t0 = s - n + 1             # first fwd time in the buffer
            h1_scr[B * t0:B * (s + 1), 0:H1] = jnp.concatenate(hf_buf, axis=0)
            tb0 = T - 1 - s            # smallest bwd time in the buffer
            h1_scr[B * tb0:B * (tb0 + n), H1:2 * H1] = jnp.concatenate(
                hb_buf[::-1], axis=0)
            hf_buf, hb_buf = [], []

    # ---- layer-2 input projection (both directions, one bf16 matmul) --------
    cp_wih2.wait()
    cp_whh2.wait()
    gx2_scr[...] = (jnp.dot(h1_scr[...].astype(bf16), wih2_vmem[...],
                            preferred_element_type=f32) + b2_ref[...])

    # ---- layer-2 forward recurrence (only the final hidden state is used) ---
    h2f = jnp.zeros((B, H2), f32)
    c2f = jnp.zeros((B, H2), f32)
    for s in range(T - 1):
        gx = gx2_scr[B * s:B * (s + 1), 0:4 * H2]
        if s == 0:
            g = gx
        else:
            g = gx + jnp.dot(h2f.astype(bf16), whh2f_vmem[...],
                             preferred_element_type=f32)
        h2f, c2f = _lstm_cell(g, c2f, H2)

    # ---- last step: layer-2 fwd final step fused with the single bwd step ---
    # x2[-1]'s backward half is the FIRST backward step from a zero state, so
    # its h_prev @ W_hh term is identically zero (whh2_bwd drops out).  Exact.
    gxf_last = gx2_scr[B * (T - 1):B * T, 0:4 * H2]
    gxb_last = gx2_scr[B * (T - 1):B * T, 4 * H2:8 * H2]
    if T > 1:
        gxf_last = gxf_last + jnp.dot(h2f.astype(bf16), whh2f_vmem[...],
                                      preferred_element_type=f32)
    g_last = jnp.concatenate([gxf_last, gxb_last], axis=0)      # (2B, 4*H2)
    c_last = jnp.concatenate([c2f, jnp.zeros((B, H2), f32)], axis=0)
    h_last, _ = _lstm_cell(g_last, c_last, H2)
    ht = jnp.concatenate([h_last[0:B], h_last[B:2 * B]], axis=1)  # (B, 2*H2)

    # ---- attention pooling (torch Softmax(dim=1) == softmax over batch) -----
    cp_wha.wait()
    ha = jnp.tanh(jnp.dot(ht.astype(bf16), wha_vmem[...],
                          preferred_element_type=f32) + bha_ref[...])  # (B,128)
    alp = jnp.sum(ha * w1_ref[...], axis=1, keepdims=True) + b1a_ref[...]
    m = jnp.max(alp, axis=0, keepdims=True)
    e = jnp.exp(alp - m)
    al = e / jnp.sum(e, axis=0, keepdims=True)                    # (B, 1)
    out_ref[...] = jnp.sum(al * ht, axis=0, keepdims=True)        # (1, 2*H2)


def lstmnet_forward(x, p):
    """x: (T, B, 80) float32, time-major (nn.LSTM default). Returns (1, 256)."""
    T, B, F = x.shape
    x_flat = jnp.pad(x.reshape(T * B, F), ((0, 0), (0, F_PAD - F)))
    kernel = functools.partial(_lstmnet_kernel, T, B)
    vmem = pl.BlockSpec(memory_space=pltpu.MemorySpace.VMEM)
    hbm = pl.BlockSpec(memory_space=pl.ANY)   # DMA'd manually inside the kernel
    return pl.pallas_call(
        kernel,
        out_shape=jax.ShapeDtypeStruct((1, 2 * H2), jnp.float32),
        in_specs=[vmem,                         # x
                  vmem, vmem, vmem, vmem,       # wih1, whh1f, whh1b, b1
                  hbm, hbm, vmem,               # wih2, whh2f (HBM), b2
                  hbm, vmem, vmem, vmem],       # wha (HBM), bha, w1, b1a
        out_specs=vmem,
        scratch_shapes=[
            pltpu.VMEM((T * B, 8 * H1), jnp.float32),    # layer-1 x-gates
            pltpu.VMEM((T * B, 2 * H1), jnp.float32),    # layer-1 outputs
            pltpu.VMEM((T * B, 8 * H2), jnp.float32),    # layer-2 x-gates
            pltpu.VMEM((2 * H1, 8 * H2), jnp.bfloat16),  # wih2 DMA landing
            pltpu.VMEM((H2, 4 * H2), jnp.bfloat16),      # whh2f DMA landing
            pltpu.VMEM((2 * H2, E_PAD), jnp.bfloat16),   # wha DMA landing
            pltpu.SemaphoreType.DMA((3,)),
        ],
    )(x_flat,
      p["wih1"], p["whh1f"], p["whh1b"], p["b1"],
      p["wih2"], p["whh2f"], p["b2"],
      p["wha"], p["bha"], p["w1"], p["b1a"])


# ----------------------------------------------------------------------------
# One-time parameter preprocessing (hoisted out of the forward pass)
# ----------------------------------------------------------------------------
def prepare_params(raw):
    """PyTorch-layout LSTM weights -> fused-kernel layout (bf16, padded)."""
    bf16 = jnp.bfloat16

    def dir_pack(w_ih, w_hh, b_ih, b_hh):
        return jnp.transpose(w_ih), jnp.transpose(w_hh), b_ih + b_hh

    wih1f, whh1f, bb1f = dir_pack(*raw["lstm1_f"])
    wih1b, whh1b, bb1b = dir_pack(*raw["lstm1_b"])
    wih2f, whh2f, bb2f = dir_pack(*raw["lstm2_f"])
    wih2b, _whh2b, bb2b = dir_pack(*raw["lstm2_b"])
    # _whh2b never reaches the output: only x2[-1] feeds the attention head and
    # its backward half is the first backward step from a zero state.

    wih1 = jnp.concatenate([wih1f, wih1b], axis=1)              # (80, 2048)
    wih1 = jnp.pad(wih1, ((0, F_PAD - F_IN), (0, 0)))           # (128, 2048)
    wha = jnp.pad(jnp.transpose(raw["fc_ha_w"]),                # (256, 128)
                  ((0, 0), (0, E_PAD - E_ATT)))
    bha = jnp.pad(raw["fc_ha_b"], (0, E_PAD - E_ATT)).reshape(1, E_PAD)
    w1 = jnp.pad(raw["fc_1_w"].reshape(E_ATT),
                 (0, E_PAD - E_ATT)).reshape(1, E_PAD)

    return {
        # bf16 weights (MXU-native); biases stay f32 and add to f32 accumulators
        "wih1": wih1.astype(bf16),                               # (128, 2048)
        "whh1f": whh1f.astype(bf16),                             # (256, 1024)
        "whh1b": whh1b.astype(bf16),                             # (256, 1024)
        "b1": jnp.concatenate([bb1f, bb1b]).reshape(1, 8 * H1),
        "wih2": jnp.concatenate([wih2f, wih2b], axis=1).astype(bf16),  # (512, 1024)
        "whh2f": whh2f.astype(bf16),                             # (128, 512)
        "b2": jnp.concatenate([bb2f, bb2b]).reshape(1, 8 * H2),
        "wha": wha.astype(bf16),                                 # (256, 128)
        "bha": bha,                                              # (1, 128)
        "w1": w1,                                                # (1, 128)
        "b1a": raw["fc_1_b"].reshape(1, 1),
    }


# ----------------------------------------------------------------------------
# Deterministic parameter init (PyTorch-style uniform(-1/sqrt(H), 1/sqrt(H)))
# ----------------------------------------------------------------------------
def init_params(key):
    keys = jax.random.split(key, 32)
    ki = iter(keys)

    def uni(shape, k):
        return jax.random.uniform(next(ki), shape, jnp.float32, -k, k)

    def lstm_dir_params(I, H):
        k = 1.0 / jnp.sqrt(H)
        return (uni((4 * H, I), k), uni((4 * H, H), k),
                uni((4 * H,), k), uni((4 * H,), k))

    return {
        "lstm1_f": lstm_dir_params(F_IN, H1),
        "lstm1_b": lstm_dir_params(F_IN, H1),
        "lstm2_f": lstm_dir_params(2 * H1, H2),
        "lstm2_b": lstm_dir_params(2 * H1, H2),
        "fc_ha_w": uni((E_ATT, 2 * H2), 1.0 / jnp.sqrt(2.0 * H2)),
        "fc_ha_b": uni((E_ATT,), 1.0 / jnp.sqrt(2.0 * H2)),
        "fc_1_w": uni((1, E_ATT), 1.0 / jnp.sqrt(1.0 * E_ATT)),
        "fc_1_b": uni((1,), 1.0 / jnp.sqrt(1.0 * E_ATT)),
    }


# ----------------------------------------------------------------------------
# Pure-JAX f32 reference (full bidirectional scans; correctness check)
# ----------------------------------------------------------------------------
def _lstm_dir_ref(x, w_ih, w_hh, b_ih, b_hh):
    H = w_hh.shape[1]
    B = x.shape[1]

    def step(carry, xt):
        h, c = carry
        g = xt @ w_ih.T + b_ih + h @ w_hh.T + b_hh
        i, f, gg, o = jnp.split(g, 4, axis=-1)
        c = jax.nn.sigmoid(f) * c + jax.nn.sigmoid(i) * jnp.tanh(gg)
        h = jax.nn.sigmoid(o) * jnp.tanh(c)
        return (h, c), h

    init = (jnp.zeros((B, H), jnp.float32), jnp.zeros((B, H), jnp.float32))
    _, hs = jax.lax.scan(step, init, x)
    return hs


def ref_forward(x, raw):
    def bil(xx, pf, pb):
        return jnp.concatenate([_lstm_dir_ref(xx, *pf),
                                _lstm_dir_ref(xx[::-1], *pb)[::-1]], axis=-1)

    x1 = bil(x, raw["lstm1_f"], raw["lstm1_b"])
    x2 = bil(x1, raw["lstm2_f"], raw["lstm2_b"])
    ht = x2[-1]                                            # (B, 256)
    ha = jnp.tanh(ht @ raw["fc_ha_w"].T + raw["fc_ha_b"])  # (B, 100)
    alp = ha @ raw["fc_1_w"].T + raw["fc_1_b"]             # (B, 1)
    al = jax.nn.softmax(alp, axis=0)                       # softmax over B (torch dim=1)
    return jnp.sum(al * ht, axis=0, keepdims=True)         # (1, 256)


if __name__ == "__main__":
    key = jax.random.PRNGKey(0)
    pkey, xkey = jax.random.split(key)
    raw = init_params(pkey)
    params = prepare_params(raw)

    T, B, F = 8, 2, F_IN   # seq=8, batch=2, feature dim fixed at 80 by the module
    x = jax.random.normal(xkey, (T, B, F), dtype=jnp.float32)

    out = jax.jit(lstmnet_forward)(x, params)
    out = jax.block_until_ready(out)

    ref = ref_forward(x, raw)
    assert out.shape == (1, 2 * H2), out.shape
    assert bool(jnp.all(jnp.isfinite(out)))
    # bf16 weights/LHS with f32 accumulation: observed error ~1e-3 vs f32 ref.
    assert bool(jnp.allclose(out, ref, atol=2e-2, rtol=2e-2)), (
        float(jnp.max(jnp.abs(out - ref))))
    print("KERNEL_OK")
</pallas_src>

<mosaic_0001>
module attributes {stable_mosaic.version = 11 : i64} {
  func.func @_lstmnet_kernel(%arg0: memref<16x128xf32, #tpu.memory_space<vmem>>, %arg1: memref<128x2048xbf16, #tpu.memory_space<vmem>>, %arg2: memref<256x1024xbf16, #tpu.memory_space<vmem>>, %arg3: memref<256x1024xbf16, #tpu.memory_space<vmem>>, %arg4: memref<1x2048xf32, #tpu.memory_space<vmem>>, %arg5: memref<512x1024xbf16, #tpu.memory_space<any>>, %arg6: memref<128x512xbf16, #tpu.memory_space<any>>, %arg7: memref<1x1024xf32, #tpu.memory_space<vmem>>, %arg8: memref<256x128xbf16, #tpu.memory_space<any>>, %arg9: memref<1x128xf32, #tpu.memory_space<vmem>>, %arg10: memref<1x128xf32, #tpu.memory_space<vmem>>, %arg11: memref<1x1xf32, #tpu.memory_space<vmem>>, %arg12: memref<1x256xf32, #tpu.memory_space<vmem>>, %arg13: memref<16x2048xf32, #tpu.memory_space<vmem>>, %arg14: memref<16x512xf32, #tpu.memory_space<vmem>>, %arg15: memref<16x1024xf32, #tpu.memory_space<vmem>>, %arg16: memref<512x1024xbf16, #tpu.memory_space<vmem>>, %arg17: memref<128x512xbf16, #tpu.memory_space<vmem>>, %arg18: memref<256x128xbf16, #tpu.memory_space<vmem>>, %arg19: memref<3x!tpu.dma_semaphore, #tpu.memory_space<semaphore_mem>>) attributes {dimension_semantics = [], scalar_prefetch = 0 : i64, scratch_operands = 7 : i64, tpu.core_type = #tpu.core_type<tc>} {
    %c0_i32 = arith.constant 0 : i32
    %0 = tpu.memref_slice %arg19[%c0_i32] : memref<3x!tpu.dma_semaphore, #tpu.memory_space<semaphore_mem>> -> memref<1x!tpu.dma_semaphore, #tpu.memory_space<semaphore_mem>>
    %1 = tpu.memref_squeeze %0 : memref<1x!tpu.dma_semaphore, #tpu.memory_space<semaphore_mem>> -> memref<!tpu.dma_semaphore, #tpu.memory_space<semaphore_mem>>
    tpu.enqueue_dma source(%arg5 : memref<512x1024xbf16, #tpu.memory_space<any>>) target(%arg16 : memref<512x1024xbf16, #tpu.memory_space<vmem>>) target_semaphore(%1 : memref<!tpu.dma_semaphore, #tpu.memory_space<semaphore_mem>>)
    %c1_i32 = arith.constant 1 : i32
    %2 = tpu.memref_slice %arg19[%c1_i32] : memref<3x!tpu.dma_semaphore, #tpu.memory_space<semaphore_mem>> -> memref<1x!tpu.dma_semaphore, #tpu.memory_space<semaphore_mem>>
    %3 = tpu.memref_squeeze %2 : memref<1x!tpu.dma_semaphore, #tpu.memory_space<semaphore_mem>> -> memref<!tpu.dma_semaphore, #tpu.memory_space<semaphore_mem>>
    tpu.enqueue_dma source(%arg6 : memref<128x512xbf16, #tpu.memory_space<any>>) target(%arg17 : memref<128x512xbf16, #tpu.memory_space<vmem>>) target_semaphore(%3 : memref<!tpu.dma_semaphore, #tpu.memory_space<semaphore_mem>>)
    %c2_i32 = arith.constant 2 : i32
    %4 = tpu.memref_slice %arg19[%c2_i32] : memref<3x!tpu.dma_semaphore, #tpu.memory_space<semaphore_mem>> -> memref<1x!tpu.dma_semaphore, #tpu.memory_space<semaphore_mem>>
    %5 = tpu.memref_squeeze %4 : memref<1x!tpu.dma_semaphore, #tpu.memory_space<semaphore_mem>> -> memref<!tpu.dma_semaphore, #tpu.memory_space<semaphore_mem>>
    tpu.enqueue_dma source(%arg8 : memref<256x128xbf16, #tpu.memory_space<any>>) target(%arg18 : memref<256x128xbf16, #tpu.memory_space<vmem>>) target_semaphore(%5 : memref<!tpu.dma_semaphore, #tpu.memory_space<semaphore_mem>>)
    %c0 = arith.constant 0 : index
    %c0_0 = arith.constant 0 : index
    %6 = vector.load %arg0[%c0, %c0_0] : memref<16x128xf32, #tpu.memory_space<vmem>>, vector<16x128xf32>
    %7 = arith.truncf %6 : vector<16x128xf32> to vector<16x128xbf16>
    %c0_1 = arith.constant 0 : index
    %c0_2 = arith.constant 0 : index
    %8 = vector.load %arg1[%c0_1, %c0_2] : memref<128x2048xbf16, #tpu.memory_space<vmem>>, vector<128x2048xbf16>
    %cst = arith.constant dense<0.000000e+00> : vector<16x2048xf32>
    %9 = tpu.matmul %7, %8, %cst {dimension_numbers = #tpu.dot_dimension_numbers<[1], [0], [0], [1], [0, 0, 1, 1], [], []>} : vector<16x128xbf16>, vector<128x2048xbf16>, vector<16x2048xf32> -> vector<16x2048xf32>
    %c0_3 = arith.constant 0 : index
    %c0_4 = arith.constant 0 : index
    %10 = vector.load %arg4[%c0_3, %c0_4] : memref<1x2048xf32, #tpu.memory_space<vmem>>, vector<1x2048xf32>
    %11 = vector.broadcast %10 : vector<1x2048xf32> to vector<16x2048xf32>
    %12 = arith.addf %9, %11 : vector<16x2048xf32>
    %c0_5 = arith.constant 0 : index
    %c0_6 = arith.constant 0 : index
    %13 = vector.load %arg13[%c0_5, %c0_6] : memref<16x2048xf32, #tpu.memory_space<vmem>>, vector<16x2048xf32>
    tpu.vector_store %arg13[%c0_5, %c0_6], %12 {strides = array<i32>} : memref<16x2048xf32, #tpu.memory_space<vmem>>, vector<16x2048xf32>,
    %cst_7 = arith.constant 0.000000e+00 : f32
    %14 = vector.broadcast %cst_7 : f32 to vector<4x256xf32>
    %c0_8 = arith.constant 0 : index
    %c0_9 = arith.constant 0 : index
    %15 = vector.load %arg13[%c0_8, %c0_9] : memref<16x2048xf32, #tpu.memory_space<vmem>>, vector<2x1024xf32>
    %c14 = arith.constant 14 : index
    %c1024 = arith.constant 1024 : index
    %16 = vector.load %arg13[%c14, %c1024] : memref<16x2048xf32, #tpu.memory_space<vmem>>, vector<2x1024xf32>
    %17 = tpu.concatenate %15, %16 in 0 : vector<2x1024xf32>, vector<2x1024xf32> -> vector<4x1024xf32>
    %18 = vector.extract_strided_slice %17 {offsets = [0, 0], sizes = [4, 256], strides = [1, 1]} : vector<4x1024xf32> to vector<4x256xf32>
    %19 = arith.negf %18 : vector<4x256xf32>
    %20 = math.exp %19 : vector<4x256xf32>
    %cst_10 = arith.constant 1.000000e+00 : f32
    %21 = vector.broadcast %cst_10 : f32 to vector<4x256xf32>
    %22 = arith.addf %21, %20 : vector<4x256xf32>
    %23 = arith.divf %21, %22 : vector<4x256xf32>
    %24 = vector.extract_strided_slice %17 {offsets = [0, 256], sizes = [4, 256], strides = [1, 1]} : vector<4x1024xf32> to vector<4x256xf32>
    %25 = arith.negf %24 : vector<4x256xf32>
    %26 = math.exp %25 : vector<4x256xf32>
    %cst_11 = arith.constant 1.000000e+00 : f32
    %27 = vector.broadcast %cst_11 : f32 to vector<4x256xf32>
    %28 = arith.addf %27, %26 : vector<4x256xf32>
    %29 = arith.divf %27, %28 : vector<4x256xf32>
    %30 = vector.extract_strided_slice %17 {offsets = [0, 512], sizes = [4, 256], strides = [1, 1]} : vector<4x1024xf32> to vector<4x256xf32>
    %31 = math.tanh %30 : vector<4x256xf32>
    %32 = vector.extract_strided_slice %17 {offsets = [0, 768], sizes = [4, 256], strides = [1, 1]} : vector<4x1024xf32> to vector<4x256xf32>
    %33 = arith.negf %32 : vector<4x256xf32>
    %34 = math.exp %33 : vector<4x256xf32>
    %cst_12 = arith.constant 1.000000e+00 : f32
    %35 = vector.broadcast %cst_12 : f32 to vector<4x256xf32>
    %36 = arith.addf %35, %34 : vector<4x256xf32>
    %37 = arith.divf %35, %36 : vector<4x256xf32>
    %38 = arith.mulf %29, %14 : vector<4x256xf32>
    %39 = arith.mulf %23, %31 : vector<4x256xf32>
    %40 = arith.addf %38, %39 : vector<4x256xf32>
    %41 = math.tanh %40 : vector<4x256xf32>
    %42 = arith.mulf %37, %41 : vector<4x256xf32>
    %43 = vector.extract_strided_slice %42 {offsets = [0, 0], sizes = [2, 256], strides = [1, 1]} : vector<4x256xf32> to vector<2x256xf32>
    %44 = vector.extract_strided_slice %42 {offsets = [2, 0], sizes = [2, 256], strides = [1, 1]} : vector<4x256xf32> to vector<2x256xf32>
    %c2 = arith.constant 2 : index
    %c0_13 = arith.constant 0 : index
    %45 = vector.load %arg13[%c2, %c0_13] : memref<16x2048xf32, #tpu.memory_space<vmem>>, vector<2x1024xf32>
    %c12 = arith.constant 12 : index
    %c1024_14 = arith.constant 1024 : index
    %46 = vector.load %arg13[%c12, %c1024_14] : memref<16x2048xf32, #tpu.memory_space<vmem>>, vector<2x1024xf32>
    %47 = arith.truncf %42 : vector<4x256xf32> to vector<4x256xbf16>
    %48 = vector.extract_strided_slice %47 {offsets = [0, 0], sizes = [2, 256], strides = [1, 1]} : vector<4x256xbf16> to vector<2x256xbf16>
    %c0_15 = arith.constant 0 : index
    %c0_16 = arith.constant 0 : index
    %49 = vector.load %arg2[%c0_15, %c0_16] : memref<256x1024xbf16, #tpu.memory_space<vmem>>, vector<256x1024xbf16>
    %cst_17 = arith.constant dense<0.000000e+00> : vector<2x1024xf32>
    %50 = tpu.matmul %48, %49, %cst_17 {dimension_numbers = #tpu.dot_dimension_numbers<[1], [0], [0], [1], [0, 0, 1, 1], [], []>} : vector<2x256xbf16>, vector<256x1024xbf16>, vector<2x1024xf32> -> vector<2x1024xf32>
    %51 = vector.extract_strided_slice %47 {offsets = [2, 0], sizes = [2, 256], strides = [1, 1]} : vector<4x256xbf16> to vector<2x256xbf16>
    %c0_18 = arith.constant 0 : index
    %c0_19 = arith.constant 0 : index
    %52 = vector.load %arg3[%c0_18, %c0_19] : memref<256x1024xbf16, #tpu.memory_space<vmem>>, vector<256x1024xbf16>
    %cst_20 = arith.constant dense<0.000000e+00> : vector<2x1024xf32>
    %53 = tpu.matmul %51, %52, %cst_20 {dimension_numbers = #tpu.dot_dimension_numbers<[1], [0], [0], [1], [0, 0, 1, 1], [], []>} : vector<2x256xbf16>, vector<256x1024xbf16>, vector<2x1024xf32> -> vector<2x1024xf32>
    %54 = arith.addf %45, %50 : vector<2x1024xf32>
    %55 = arith.addf %46, %53 : vector<2x1024xf32>
    %56 = tpu.concatenate %54, %55 in 0 : vector<2x1024xf32>, vector<2x1024xf32> -> vector<4x1024xf32>
    %57 = vector.extract_strided_slice %56 {offsets = [0, 0], sizes = [4, 256], strides = [1, 1]} : vector<4x1024xf32> to vector<4x256xf32>
    %58 = arith.negf %57 : vector<4x256xf32>
    %59 = math.exp %58 : vector<4x256xf32>
    %cst_21 = arith.constant 1.000000e+00 : f32
    %60 = vector.broadcast %cst_21 : f32 to vector<4x256xf32>
    %61 = arith.addf %60, %59 : vector<4x256xf32>
    %62 = arith.divf %60, %61 : vector<4x256xf32>
    %63 = vector.extract_strided_slice %56 {offsets = [0, 256], sizes = [4, 256], strides = [1, 1]} : vector<4x1024xf32> to vector<4x256xf32>
    %64 = arith.negf %63 : vector<4x256xf32>
    %65 = math.exp %64 : vector<4x256xf32>
    %cst_22 = arith.constant 1.000000e+00 : f32
    %66 = vector.broadcast %cst_22 : f32 to vector<4x256xf32>
    %67 = arith.addf %66, %65 : vector<4x256xf32>
    %68 = arith.divf %66, %67 : vector<4x256xf32>
    %69 = vector.extract_strided_slice %56 {offsets = [0, 512], sizes = [4, 256], strides = [1, 1]} : vector<4x1024xf32> to vector<4x256xf32>
    %70 = math.tanh %69 : vector<4x256xf32>
    %71 = vector.extract_strided_slice %56 {offsets = [0, 768], sizes = [4, 256], strides = [1, 1]} : vector<4x1024xf32> to vector<4x256xf32>
    %72 = arith.negf %71 : vector<4x256xf32>
    %73 = math.exp %72 : vector<4x256xf32>
    %cst_23 = arith.constant 1.000000e+00 : f32
    %74 = vector.broadcast %cst_23 : f32 to vector<4x256xf32>
    %75 = arith.addf %74, %73 : vector<4x256xf32>
    %76 = arith.divf %74, %75 : vector<4x256xf32>
    %77 = arith.mulf %68, %40 : vector<4x256xf32>
    %78 = arith.mulf %62, %70 : vector<4x256xf32>
    %79 = arith.addf %77, %78 : vector<4x256xf32>
    %80 = math.tanh %79 : vector<4x256xf32>
    %81 = arith.mulf %76, %80 : vector<4x256xf32>
    %82 = vector.extract_strided_slice %81 {offsets = [0, 0], sizes = [2, 256], strides = [1, 1]} : vector<4x256xf32> to vector<2x256xf32>
    %83 = vector.extract_strided_slice %81 {offsets = [2, 0], sizes = [2, 256], strides = [1, 1]} : vector<4x256xf32> to vector<2x256xf32>
    %c4 = arith.constant 4 : index
    %c0_24 = arith.constant 0 : index
    %84 = vector.load %arg13[%c4, %c0_24] : memref<16x2048xf32, #tpu.memory_space<vmem>>, vector<2x1024xf32>
    %c10 = arith.constant 10 : index
    %c1024_25 = arith.constant 1024 : index
    %85 = vector.load %arg13[%c10, %c1024_25] : memref<16x2048xf32, #tpu.memory_space<vmem>>, vector<2x1024xf32>
    %86 = arith.truncf %81 : vector<4x256xf32> to vector<4x256xbf16>
    %87 = vector.extract_strided_slice %86 {offsets = [0, 0], sizes = [2, 256], strides = [1, 1]} : vector<4x256xbf16> to vector<2x256xbf16>
    %c0_26 = arith.constant 0 : index
    %c0_27 = arith.constant 0 : index
    %88 = vector.load %arg2[%c0_26, %c0_27] : memref<256x1024xbf16, #tpu.memory_space<vmem>>, vector<256x1024xbf16>
    %cst_28 = arith.constant dense<0.000000e+00> : vector<2x1024xf32>
    %89 = tpu.matmul %87, %88, %cst_28 {dimension_numbers = #tpu.dot_dimension_numbers<[1], [0], [0], [1], [0, 0, 1, 1], [], []>} : vector<2x256xbf16>, vector<256x1024xbf16>, vector<2x1024xf32> -> vector<2x1024xf32>
    %90 = vector.extract_strided_slice %86 {offsets = [2, 0], sizes = [2, 256], strides = [1, 1]} : vector<4x256xbf16> to vector<2x256xbf16>
    %c0_29 = arith.constant 0 : index
    %c0_30 = arith.constant 0 : index
    %91 = vector.load %arg3[%c0_29, %c0_30] : memref<256x1024xbf16, #tpu.memory_space<vmem>>, vector<256x1024xbf16>
    %cst_31 = arith.constant dense<0.000000e+00> : vector<2x1024xf32>
    %92 = tpu.matmul %90, %91, %cst_31 {dimension_numbers = #tpu.dot_dimension_numbers<[1], [0], [0], [1], [0, 0, 1, 1], [], []>} : vector<2x256xbf16>, vector<256x1024xbf16>, vector<2x1024xf32> -> vector<2x1024xf32>
    %93 = arith.addf %84, %89 : vector<2x1024xf32>
    %94 = arith.addf %85, %92 : vector<2x1024xf32>
    %95 = tpu.concatenate %93, %94 in 0 : vector<2x1024xf32>, vector<2x1024xf32> -> vector<4x1024xf32>
    %96 = vector.extract_strided_slice %95 {offsets = [0, 0], sizes = [4, 256], strides = [1, 1]} : vector<4x1024xf32> to vector<4x256xf32>
    %97 = arith.negf %96 : vector<4x256xf32>
    %98 = math.exp %97 : vector<4x256xf32>
    %cst_32 = arith.constant 1.000000e+00 : f32
    %99 = vector.broadcast %cst_32 : f32 to vector<4x256xf32>
    %100 = arith.addf %99, %98 : vector<4x256xf32>
    %101 = arith.divf %99, %100 : vector<4x256xf32>
    %102 = vector.extract_strided_slice %95 {offsets = [0, 256], sizes = [4, 256], strides = [1, 1]} : vector<4x1024xf32> to vector<4x256xf32>
    %103 = arith.negf %102 : vector<4x256xf32>
    %104 = math.exp %103 : vector<4x256xf32>
    %cst_33 = arith.constant 1.000000e+00 : f32
    %105 = vector.broadcast %cst_33 : f32 to vector<4x256xf32>
    %106 = arith.addf %105, %104 : vector<4x256xf32>
    %107 = arith.divf %105, %106 : vector<4x256xf32>
    %108 = vector.extract_strided_slice %95 {offsets = [0, 512], sizes = [4, 256], strides = [1, 1]} : vector<4x1024xf32> to vector<4x256xf32>
    %109 = math.tanh %108 : vector<4x256xf32>
    %110 = vector.extract_strided_slice %95 {offsets = [0, 768], sizes = [4, 256], strides = [1, 1]} : vector<4x1024xf32> to vector<4x256xf32>
    %111 = arith.negf %110 : vector<4x256xf32>
    %112 = math.exp %111 : vector<4x256xf32>
    %cst_34 = arith.constant 1.000000e+00 : f32
    %113 = vector.broadcast %cst_34 : f32 to vector<4x256xf32>
    %114 = arith.addf %113, %112 : vector<4x256xf32>
    %115 = arith.divf %113, %114 : vector<4x256xf32>
    %116 = arith.mulf %107, %79 : vector<4x256xf32>
    %117 = arith.mulf %101, %109 : vector<4x256xf32>
    %118 = arith.addf %116, %117 : vector<4x256xf32>
    %119 = math.tanh %118 : vector<4x256xf32>
    %120 = arith.mulf %115, %119 : vector<4x256xf32>
    %121 = vector.extract_strided_slice %120 {offsets = [0, 0], sizes = [2, 256], strides = [1, 1]} : vector<4x256xf32> to vector<2x256xf32>
    %122 = vector.extract_strided_slice %120 {offsets = [2, 0], sizes = [2, 256], strides = [1, 1]} : vector<4x256xf32> to vector<2x256xf32>
    %c6 = arith.constant 6 : index
    %c0_35 = arith.constant 0 : index
    %123 = vector.load %arg13[%c6, %c0_35] : memref<16x2048xf32, #tpu.memory_space<vmem>>, vector<2x1024xf32>
    %c8 = arith.constant 8 : index
    %c1024_36 = arith.constant 1024 : index
    %124 = vector.load %arg13[%c8, %c1024_36] : memref<16x2048xf32, #tpu.memory_space<vmem>>, vector<2x1024xf32>
    %125 = arith.truncf %120 : vector<4x256xf32> to vector<4x256xbf16>
    %126 = vector.extract_strided_slice %125 {offsets = [0, 0], sizes = [2, 256], strides = [1, 1]} : vector<4x256xbf16> to vector<2x256xbf16>
    %c0_37 = arith.constant 0 : index
    %c0_38 = arith.constant 0 : index
    %127 = vector.load %arg2[%c0_37, %c0_38] : memref<256x1024xbf16, #tpu.memory_space<vmem>>, vector<256x1024xbf16>
    %cst_39 = arith.constant dense<0.000000e+00> : vector<2x1024xf32>
    %128 = tpu.matmul %126, %127, %cst_39 {dimension_numbers = #tpu.dot_dimension_numbers<[1], [0], [0], [1], [0, 0, 1, 1], [], []>} : vector<2x256xbf16>, vector<256x1024xbf16>, vector<2x1024xf32> -> vector<2x1024xf32>
    %129 = vector.extract_strided_slice %125 {offsets = [2, 0], sizes = [2, 256], strides = [1, 1]} : vector<4x256xbf16> to vector<2x256xbf16>
    %c0_40 = arith.constant 0 : index
    %c0_41 = arith.constant 0 : index
    %130 = vector.load %arg3[%c0_40, %c0_41] : memref<256x1024xbf16, #tpu.memory_space<vmem>>, vector<256x1024xbf16>
    %cst_42 = arith.constant dense<0.000000e+00> : vector<2x1024xf32>
    %131 = tpu.matmul %129, %130, %cst_42 {dimension_numbers = #tpu.dot_dimension_numbers<[1], [0], [0], [1], [0, 0, 1, 1], [], []>} : vector<2x256xbf16>, vector<256x1024xbf16>, vector<2x1024xf32> -> vector<2x1024xf32>
    %132 = arith.addf %123, %128 : vector<2x1024xf32>
    %133 = arith.addf %124, %131 : vector<2x1024xf32>
    %134 = tpu.concatenate %132, %133 in 0 : vector<2x1024xf32>, vector<2x1024xf32> -> vector<4x1024xf32>
    %135 = vector.extract_strided_slice %134 {offsets = [0, 0], sizes = [4, 256], strides = [1, 1]} : vector<4x1024xf32> to vector<4x256xf32>
    %136 = arith.negf %135 : vector<4x256xf32>
    %137 = math.exp %136 : vector<4x256xf32>
    %cst_43 = arith.constant 1.000000e+00 : f32
    %138 = vector.broadcast %cst_43 : f32 to vector<4x256xf32>
    %139 = arith.addf %138, %137 : vector<4x256xf32>
    %140 = arith.divf %138, %139 : vector<4x256xf32>
    %141 = vector.extract_strided_slice %134 {offsets = [0, 256], sizes = [4, 256], strides = [1, 1]} : vector<4x1024xf32> to vector<4x256xf32>
    %142 = arith.negf %141 : vector<4x256xf32>
    %143 = math.exp %142 : vector<4x256xf32>
    %cst_44 = arith.constant 1.000000e+00 : f32
    %144 = vector.broadcast %cst_44 : f32 to vector<4x256xf32>
    %145 = arith.addf %144, %143 : vector<4x256xf32>
    %146 = arith.divf %144, %145 : vector<4x256xf32>
    %147 = vector.extract_strided_slice %134 {offsets = [0, 512], sizes = [4, 256], strides = [1, 1]} : vector<4x1024xf32> to vector<4x256xf32>
    %148 = math.tanh %147 : vector<4x256xf32>
    %149 = vector.extract_strided_slice %134 {offsets = [0, 768], sizes = [4, 256], strides = [1, 1]} : vector<4x1024xf32> to vector<4x256xf32>
    %150 = arith.negf %149 : vector<4x256xf32>
    %151 = math.exp %150 : vector<4x256xf32>
    %cst_45 = arith.constant 1.000000e+00 : f32
    %152 = vector.broadcast %cst_45 : f32 to vector<4x256xf32>
    %153 = arith.addf %152, %151 : vector<4x256xf32>
    %154 = arith.divf %152, %153 : vector<4x256xf32>
    %155 = arith.mulf %146, %118 : vector<4x256xf32>
    %156 = arith.mulf %140, %148 : vector<4x256xf32>
    %157 = arith.addf %155, %156 : vector<4x256xf32>
    %158 = math.tanh %157 : vector<4x256xf32>
    %159 = arith.mulf %154, %158 : vector<4x256xf32>
    %160 = vector.extract_strided_slice %159 {offsets = [0, 0], sizes = [2, 256], strides = [1, 1]} : vector<4x256xf32> to vector<2x256xf32>
    %161 = vector.extract_strided_slice %159 {offsets = [2, 0], sizes = [2, 256], strides = [1, 1]} : vector<4x256xf32> to vector<2x256xf32>
    %162 = tpu.concatenate %43, %82, %121, %160 in 0 : vector<2x256xf32>, vector<2x256xf32>, vector<2x256xf32>, vector<2x256xf32> -> vector<8x256xf32>
    %c0_46 = arith.constant 0 : index
    %c0_47 = arith.constant 0 : index
    %163 = vector.load %arg14[%c0_46, %c0_47] : memref<16x512xf32, #tpu.memory_space<vmem>>, vector<8x256xf32>
    tpu.vector_store %arg14[%c0_46, %c0_47], %162 {strides = array<i32>} : memref<16x512xf32, #tpu.memory_space<vmem>>, vector<8x256xf32>,
    %164 = tpu.concatenate %161, %122, %83, %44 in 0 : vector<2x256xf32>, vector<2x256xf32>, vector<2x256xf32>, vector<2x256xf32> -> vector<8x256xf32>
    %c8_48 = arith.constant 8 : index
    %c256 = arith.constant 256 : index
    %165 = vector.load %arg14[%c8_48, %c256] : memref<16x512xf32, #tpu.memory_space<vmem>>, vector<8x256xf32>
    tpu.vector_store %arg14[%c8_48, %c256], %164 {strides = array<i32>} : memref<16x512xf32, #tpu.memory_space<vmem>>, vector<8x256xf32>,
    %c8_49 = arith.constant 8 : index
    %c0_50 = arith.constant 0 : index
    %166 = vector.load %arg13[%c8_49, %c0_50] : memref<16x2048xf32, #tpu.memory_space<vmem>>, vector<2x1024xf32>
    %c6_51 = arith.constant 6 : index
    %c1024_52 = arith.constant 1024 : index
    %167 = vector.load %arg13[%c6_51, %c1024_52] : memref<16x2048xf32, #tpu.memory_space<vmem>>, vector<2x1024xf32>
    %168 = arith.truncf %159 : vector<4x256xf32> to vector<4x256xbf16>
    %169 = vector.extract_strided_slice %168 {offsets = [0, 0], sizes = [2, 256], strides = [1, 1]} : vector<4x256xbf16> to vector<2x256xbf16>
    %c0_53 = arith.constant 0 : index
    %c0_54 = arith.constant 0 : index
    %170 = vector.load %arg2[%c0_53, %c0_54] : memref<256x1024xbf16, #tpu.memory_space<vmem>>, vector<256x1024xbf16>
    %cst_55 = arith.constant dense<0.000000e+00> : vector<2x1024xf32>
    %171 = tpu.matmul %169, %170, %cst_55 {dimension_numbers = #tpu.dot_dimension_numbers<[1], [0], [0], [1], [0, 0, 1, 1], [], []>} : vector<2x256xbf16>, vector<256x1024xbf16>, vector<2x1024xf32> -> vector<2x1024xf32>
    %172 = vector.extract_strided_slice %168 {offsets = [2, 0], sizes = [2, 256], strides = [1, 1]} : vector<4x256xbf16> to vector<2x256xbf16>
    %c0_56 = arith.constant 0 : index
    %c0_57 = arith.constant 0 : index
    %173 = vector.load %arg3[%c0_56, %c0_57] : memref<256x1024xbf16, #tpu.memory_space<vmem>>, vector<256x1024xbf16>
    %cst_58 = arith.constant dense<0.000000e+00> : vector<2x1024xf32>
    %174 = tpu.matmul %172, %173, %cst_58 {dimension_numbers = #tpu.dot_dimension_numbers<[1], [0], [0], [1], [0, 0, 1, 1], [], []>} : vector<2x256xbf16>, vector<256x1024xbf16>, vector<2x1024xf32> -> vector<2x1024xf32>
    %175 = arith.addf %166, %171 : vector<2x1024xf32>
    %176 = arith.addf %167, %174 : vector<2x1024xf32>
    %177 = tpu.concatenate %175, %176 in 0 : vector<2x1024xf32>, vector<2x1024xf32> -> vector<4x1024xf32>
    %178 = vector.extract_strided_slice %177 {offsets = [0, 0], sizes = [4, 256], strides = [1, 1]} : vector<4x1024xf32> to vector<4x256xf32>
    %179 = arith.negf %178 : vector<4x256xf32>
    %180 = math.exp %179 : vector<4x256xf32>
    %cst_59 = arith.constant 1.000000e+00 : f32
    %181 = vector.broadcast %cst_59 : f32 to vector<4x256xf32>
    %182 = arith.addf %181, %180 : vector<4x256xf32>
    %183 = arith.divf %181, %182 : vector<4x256xf32>
    %184 = vector.extract_strided_slice %177 {offsets = [0, 256], sizes = [4, 256], strides = [1, 1]} : vector<4x1024xf32> to vector<4x256xf32>
    %185 = arith.negf %184 : vector<4x256xf32>
    %186 = math.exp %185 : vector<4x256xf32>
    %cst_60 = arith.constant 1.000000e+00 : f32
    %187 = vector.broadcast %cst_60 : f32 to vector<4x256xf32>
    %188 = arith.addf %187, %186 : vector<4x256xf32>
    %189 = arith.divf %187, %188 : vector<4x256xf32>
    %190 = vector.extract_strided_slice %177 {offsets = [0, 512], sizes = [4, 256], strides = [1, 1]} : vector<4x1024xf32> to vector<4x256xf32>
    %191 = math.tanh %190 : vector<4x256xf32>
    %192 = vector.extract_strided_slice %177 {offsets = [0, 768], sizes = [4, 256], strides = [1, 1]} : vector<4x1024xf32> to vector<4x256xf32>
    %193 = arith.negf %192 : vector<4x256xf32>
    %194 = math.exp %193 : vector<4x256xf32>
    %cst_61 = arith.constant 1.000000e+00 : f32
    %195 = vector.broadcast %cst_61 : f32 to vector<4x256xf32>
    %196 = arith.addf %195, %194 : vector<4x256xf32>
    %197 = arith.divf %195, %196 : vector<4x256xf32>
    %198 = arith.mulf %189, %157 : vector<4x256xf32>
    %199 = arith.mulf %183, %191 : vector<4x256xf32>
    %200 = arith.addf %198, %199 : vector<4x256xf32>
    %201 = math.tanh %200 : vector<4x256xf32>
    %202 = arith.mulf %197, %201 : vector<4x256xf32>
    %203 = vector.extract_strided_slice %202 {offsets = [0, 0], sizes = [2, 256], strides = [1, 1]} : vector<4x256xf32> to vector<2x256xf32>
    %204 = vector.extract_strided_slice %202 {offsets = [2, 0], sizes = [2, 256], strides = [1, 1]} : vector<4x256xf32> to vector<2x256xf32>
    %c10_62 = arith.constant 10 : index
    %c0_63 = arith.constant 0 : index
    %205 = vector.load %arg13[%c10_62, %c0_63] : memref<16x2048xf32, #tpu.memory_space<vmem>>, vector<2x1024xf32>
    %c4_64 = arith.constant 4 : index
    %c1024_65 = arith.constant 1024 : index
    %206 = vector.load %arg13[%c4_64, %c1024_65] : memref<16x2048xf32, #tpu.memory_space<vmem>>, vector<2x1024xf32>
    %207 = arith.truncf %202 : vector<4x256xf32> to vector<4x256xbf16>
    %208 = vector.extract_strided_slice %207 {offsets = [0, 0], sizes = [2, 256], strides = [1, 1]} : vector<4x256xbf16> to vector<2x256xbf16>
    %c0_66 = arith.constant 0 : index
    %c0_67 = arith.constant 0 : index
    %209 = vector.load %arg2[%c0_66, %c0_67] : memref<256x1024xbf16, #tpu.memory_space<vmem>>, vector<256x1024xbf16>
    %cst_68 = arith.constant dense<0.000000e+00> : vector<2x1024xf32>
    %210 = tpu.matmul %208, %209, %cst_68 {dimension_numbers = #tpu.dot_dimension_numbers<[1], [0], [0], [1], [0, 0, 1, 1], [], []>} : vector<2x256xbf16>, vector<256x1024xbf16>, vector<2x1024xf32> -> vector<2x1024xf32>
    %211 = vector.extract_strided_slice %207 {offsets = [2, 0], sizes = [2, 256], strides = [1, 1]} : vector<4x256xbf16> to vector<2x256xbf16>
    %c0_69 = arith.constant 0 : index
    %c0_70 = arith.constant 0 : index
    %212 = vector.load %arg3[%c0_69, %c0_70] : memref<256x1024xbf16, #tpu.memory_space<vmem>>, vector<256x1024xbf16>
    %cst_71 = arith.constant dense<0.000000e+00> : vector<2x1024xf32>
    %213 = tpu.matmul %211, %212, %cst_71 {dimension_numbers = #tpu.dot_dimension_numbers<[1], [0], [0], [1], [0, 0, 1, 1], [], []>} : vector<2x256xbf16>, vector<256x1024xbf16>, vector<2x1024xf32> -> vector<2x1024xf32>
    %214 = arith.addf %205, %210 : vector<2x1024xf32>
    %215 = arith.addf %206, %213 : vector<2x1024xf32>
    %216 = tpu.concatenate %214, %215 in 0 : vector<2x1024xf32>, vector<2x1024xf32> -> vector<4x1024xf32>
    %217 = vector.extract_strided_slice %216 {offsets = [0, 0], sizes = [4, 256], strides = [1, 1]} : vector<4x1024xf32> to vector<4x256xf32>
    %218 = arith.negf %217 : vector<4x256xf32>
    %219 = math.exp %218 : vector<4x256xf32>
    %cst_72 = arith.constant 1.000000e+00 : f32
    %220 = vector.broadcast %cst_72 : f32 to vector<4x256xf32>
    %221 = arith.addf %220, %219 : vector<4x256xf32>
    %222 = arith.divf %220, %221 : vector<4x256xf32>
    %223 = vector.extract_strided_slice %216 {offsets = [0, 256], sizes = [4, 256], strides = [1, 1]} : vector<4x1024xf32> to vector<4x256xf32>
    %224 = arith.negf %223 : vector<4x256xf32>
    %225 = math.exp %224 : vector<4x256xf32>
    %cst_73 = arith.constant 1.000000e+00 : f32
    %226 = vector.broadcast %cst_73 : f32 to vector<4x256xf32>
    %227 = arith.addf %226, %225 : vector<4x256xf32>
    %228 = arith.divf %226, %227 : vector<4x256xf32>
    %229 = vector.extract_strided_slice %216 {offsets = [0, 512], sizes = [4, 256], strides = [1, 1]} : vector<4x1024xf32> to vector<4x256xf32>
    %230 = math.tanh %229 : vector<4x256xf32>
    %231 = vector.extract_strided_slice %216 {offsets = [0, 768], sizes = [4, 256], strides = [1, 1]} : vector<4x1024xf32> to vector<4x256xf32>
    %232 = arith.negf %231 : vector<4x256xf32>
    %233 = math.exp %232 : vector<4x256xf32>
    %cst_74 = arith.constant 1.000000e+00 : f32
    %234 = vector.broadcast %cst_74 : f32 to vector<4x256xf32>
    %235 = arith.addf %234, %233 : vector<4x256xf32>
    %236 = arith.divf %234, %235 : vector<4x256xf32>
    %237 = arith.mulf %228, %200 : vector<4x256xf32>
    %238 = arith.mulf %222, %230 : vector<4x256xf32>
    %239 = arith.addf %237, %238 : vector<4x256xf32>
    %240 = math.tanh %239 : vector<4x256xf32>
    %241 = arith.mulf %236, %240 : vector<4x256xf32>
    %242 = vector.extract_strided_slice %241 {offsets = [0, 0], sizes = [2, 256], strides = [1, 1]} : vector<4x256xf32> to vector<2x256xf32>
    %243 = vector.extract_strided_slice %241 {offsets = [2, 0], sizes = [2, 256], strides = [1, 1]} : vector<4x256xf32> to vector<2x256xf32>
    %c12_75 = arith.constant 12 : index
    %c0_76 = arith.constant 0 : index
    %244 = vector.load %arg13[%c12_75, %c0_76] : memref<16x2048xf32, #tpu.memory_space<vmem>>, vector<2x1024xf32>
    %c2_77 = arith.constant 2 : index
    %c1024_78 = arith.constant 1024 : index
    %245 = vector.load %arg13[%c2_77, %c1024_78] : memref<16x2048xf32, #tpu.memory_space<vmem>>, vector<2x1024xf32>
    %246 = arith.truncf %241 : vector<4x256xf32> to vector<4x256xbf16>
    %247 = vector.extract_strided_slice %246 {offsets = [0, 0], sizes = [2, 256], strides = [1, 1]} : vector<4x256xbf16> to vector<2x256xbf16>
    %c0_79 = arith.constant 0 : index
    %c0_80 = arith.constant 0 : index
    %248 = vector.load %arg2[%c0_79, %c0_80] : memref<256x1024xbf16, #tpu.memory_space<vmem>>, vector<256x1024xbf16>
    %cst_81 = arith.constant dense<0.000000e+00> : vector<2x1024xf32>
    %249 = tpu.matmul %247, %248, %cst_81 {dimension_numbers = #tpu.dot_dimension_numbers<[1], [0], [0], [1], [0, 0, 1, 1], [], []>} : vector<2x256xbf16>, vector<256x1024xbf16>, vector<2x1024xf32> -> vector<2x1024xf32>
    %250 = vector.extract_strided_slice %246 {offsets = [2, 0], sizes = [2, 256], strides = [1, 1]} : vector<4x256xbf16> to vector<2x256xbf16>
    %c0_82 = arith.constant 0 : index
    %c0_83 = arith.constant 0 : index
    %251 = vector.load %arg3[%c0_82, %c0_83] : memref<256x1024xbf16, #tpu.memory_space<vmem>>, vector<256x1024xbf16>
    %cst_84 = arith.constant dense<0.000000e+00> : vector<2x1024xf32>
    %252 = tpu.matmul %250, %251, %cst_84 {dimension_numbers = #tpu.dot_dimension_numbers<[1], [0], [0], [1], [0, 0, 1, 1], [], []>} : vector<2x256xbf16>, vector<256x1024xbf16>, vector<2x1024xf32> -> vector<2x1024xf32>
    %253 = arith.addf %244, %249 : vector<2x1024xf32>
    %254 = arith.addf %245, %252 : vector<2x1024xf32>
    %255 = tpu.concatenate %253, %254 in 0 : vector<2x1024xf32>, vector<2x1024xf32> -> vector<4x1024xf32>
    %256 = vector.extract_strided_slice %255 {offsets = [0, 0], sizes = [4, 256], strides = [1, 1]} : vector<4x1024xf32> to vector<4x256xf32>
    %257 = arith.negf %256 : vector<4x256xf32>
    %258 = math.exp %257 : vector<4x256xf32>
    %cst_85 = arith.constant 1.000000e+00 : f32
    %259 = vector.broadcast %cst_85 : f32 to vector<4x256xf32>
    %260 = arith.addf %259, %258 : vector<4x256xf32>
    %261 = arith.divf %259, %260 : vector<4x256xf32>
    %262 = vector.extract_strided_slice %255 {offsets = [0, 256], sizes = [4, 256], strides = [1, 1]} : vector<4x1024xf32> to vector<4x256xf32>
    %263 = arith.negf %262 : vector<4x256xf32>
    %264 = math.exp %263 : vector<4x256xf32>
    %cst_86 = arith.constant 1.000000e+00 : f32
    %265 = vector.broadcast %cst_86 : f32 to vector<4x256xf32>
    %266 = arith.addf %265, %264 : vector<4x256xf32>
    %267 = arith.divf %265, %266 : vector<4x256xf32>
    %268 = vector.extract_strided_slice %255 {offsets = [0, 512], sizes = [4, 256], strides = [1, 1]} : vector<4x1024xf32> to vector<4x256xf32>
    %269 = math.tanh %268 : vector<4x256xf32>
    %270 = vector.extract_strided_slice %255 {offsets = [0, 768], sizes = [4, 256], strides = [1, 1]} : vector<4x1024xf32> to vector<4x256xf32>
    %271 = arith.negf %270 : vector<4x256xf32>
    %272 = math.exp %271 : vector<4x256xf32>
    %cst_87 = arith.constant 1.000000e+00 : f32
    %273 = vector.broadcast %cst_87 : f32 to vector<4x256xf32>
    %274 = arith.addf %273, %272 : vector<4x256xf32>
    %275 = arith.divf %273, %274 : vector<4x256xf32>
    %276 = arith.mulf %267, %239 : vector<4x256xf32>
    %277 = arith.mulf %261, %269 : vector<4x256xf32>
    %278 = arith.addf %276, %277 : vector<4x256xf32>
    %279 = math.tanh %278 : vector<4x256xf32>
    %280 = arith.mulf %275, %279 : vector<4x256xf32>
    %281 = vector.extract_strided_slice %280 {offsets = [0, 0], sizes = [2, 256], strides = [1, 1]} : vector<4x256xf32> to vector<2x256xf32>
    %282 = vector.extract_strided_slice %280 {offsets = [2, 0], sizes = [2, 256], strides = [1, 1]} : vector<4x256xf32> to vector<2x256xf32>
    %c14_88 = arith.constant 14 : index
    %c0_89 = arith.constant 0 : index
    %283 = vector.load %arg13[%c14_88, %c0_89] : memref<16x2048xf32, #tpu.memory_space<vmem>>, vector<2x1024xf32>
    %c0_90 = arith.constant 0 : index
    %c1024_91 = arith.constant 1024 : index
    %284 = vector.load %arg13[%c0_90, %c1024_91] : memref<16x2048xf32, #tpu.memory_space<vmem>>, vector<2x1024xf32>
    %285 = arith.truncf %280 : vector<4x256xf32> to vector<4x256xbf16>
    %286 = vector.extract_strided_slice %285 {offsets = [0, 0], sizes = [2, 256], strides = [1, 1]} : vector<4x256xbf16> to vector<2x256xbf16>
    %c0_92 = arith.constant 0 : index
    %c0_93 = arith.constant 0 : index
    %287 = vector.load %arg2[%c0_92, %c0_93] : memref<256x1024xbf16, #tpu.memory_space<vmem>>, vector<256x1024xbf16>
    %cst_94 = arith.constant dense<0.000000e+00> : vector<2x1024xf32>
    %288 = tpu.matmul %286, %287, %cst_94 {dimension_numbers = #tpu.dot_dimension_numbers<[1], [0], [0], [1], [0, 0, 1, 1], [], []>} : vector<2x256xbf16>, vector<256x1024xbf16>, vector<2x1024xf32> -> vector<2x1024xf32>
    %289 = vector.extract_strided_slice %285 {offsets = [2, 0], sizes = [2, 256], strides = [1, 1]} : vector<4x256xbf16> to vector<2x256xbf16>
    %c0_95 = arith.constant 0 : index
    %c0_96 = arith.constant 0 : index
    %290 = vector.load %arg3[%c0_95, %c0_96] : memref<256x1024xbf16, #tpu.memory_space<vmem>>, vector<256x1024xbf16>
    %cst_97 = arith.constant dense<0.000000e+00> : vector<2x1024xf32>
    %291 = tpu.matmul %289, %290, %cst_97 {dimension_numbers = #tpu.dot_dimension_numbers<[1], [0], [0], [1], [0, 0, 1, 1], [], []>} : vector<2x256xbf16>, vector<256x1024xbf16>, vector<2x1024xf32> -> vector<2x1024xf32>
    %292 = arith.addf %283, %288 : vector<2x1024xf32>
    %293 = arith.addf %284, %291 : vector<2x1024xf32>
    %294 = tpu.concatenate %292, %293 in 0 : vector<2x1024xf32>, vector<2x1024xf32> -> vector<4x1024xf32>
    %295 = vector.extract_strided_slice %294 {offsets = [0, 0], sizes = [4, 256], strides = [1, 1]} : vector<4x1024xf32> to vector<4x256xf32>
    %296 = arith.negf %295 : vector<4x256xf32>
    %297 = math.exp %296 : vector<4x256xf32>
    %cst_98 = arith.constant 1.000000e+00 : f32
    %298 = vector.broadcast %cst_98 : f32 to vector<4x256xf32>
    %299 = arith.addf %298, %297 : vector<4x256xf32>
    %300 = arith.divf %298, %299 : vector<4x256xf32>
    %301 = vector.extract_strided_slice %294 {offsets = [0, 256], sizes = [4, 256], strides = [1, 1]} : vector<4x1024xf32> to vector<4x256xf32>
    %302 = arith.negf %301 : vector<4x256xf32>
    %303 = math.exp %302 : vector<4x256xf32>
    %cst_99 = arith.constant 1.000000e+00 : f32
    %304 = vector.broadcast %cst_99 : f32 to vector<4x256xf32>
    %305 = arith.addf %304, %303 : vector<4x256xf32>
    %306 = arith.divf %304, %305 : vector<4x256xf32>
    %307 = vector.extract_strided_slice %294 {offsets = [0, 512], sizes = [4, 256], strides = [1, 1]} : vector<4x1024xf32> to vector<4x256xf32>
    %308 = math.tanh %307 : vector<4x256xf32>
    %309 = vector.extract_strided_slice %294 {offsets = [0, 768], sizes = [4, 256], strides = [1, 1]} : vector<4x1024xf32> to vector<4x256xf32>
    %310 = arith.negf %309 : vector<4x256xf32>
    %311 = math.exp %310 : vector<4x256xf32>
    %cst_100 = arith.constant 1.000000e+00 : f32
    %312 = vector.broadcast %cst_100 : f32 to vector<4x256xf32>
    %313 = arith.addf %312, %311 : vector<4x256xf32>
    %314 = arith.divf %312, %313 : vector<4x256xf32>
    %315 = arith.mulf %306, %278 : vector<4x256xf32>
    %316 = arith.mulf %300, %308 : vector<4x256xf32>
    %317 = arith.addf %315, %316 : vector<4x256xf32>
    %318 = math.tanh %317 : vector<4x256xf32>
    %319 = arith.mulf %314, %318 : vector<4x256xf32>
    %320 = vector.extract_strided_slice %319 {offsets = [0, 0], sizes = [2, 256], strides = [1, 1]} : vector<4x256xf32> to vector<2x256xf32>
    %321 = vector.extract_strided_slice %319 {offsets = [2, 0], sizes = [2, 256], strides = [1, 1]} : vector<4x256xf32> to vector<2x256xf32>
    %322 = tpu.concatenate %203, %242, %281, %320 in 0 : vector<2x256xf32>, vector<2x256xf32>, vector<2x256xf32>, vector<2x256xf32> -> vector<8x256xf32>
    %c8_101 = arith.constant 8 : index
    %c0_102 = arith.constant 0 : index
    %323 = vector.load %arg14[%c8_101, %c0_102] : memref<16x512xf32, #tpu.memory_space<vmem>>, vector<8x256xf32>
    tpu.vector_store %arg14[%c8_101, %c0_102], %322 {strides = array<i32>} : memref<16x512xf32, #tpu.memory_space<vmem>>, vector<8x256xf32>,
    %324 = tpu.concatenate %321, %282, %243, %204 in 0 : vector<2x256xf32>, vector<2x256xf32>, vector<2x256xf32>, vector<2x256xf32> -> vector<8x256xf32>
    %c0_103 = arith.constant 0 : index
    %c256_104 = arith.constant 256 : index
    %325 = vector.load %arg14[%c0_103, %c256_104] : memref<16x512xf32, #tpu.memory_space<vmem>>, vector<8x256xf32>
    tpu.vector_store %arg14[%c0_103, %c256_104], %324 {strides = array<i32>} : memref<16x512xf32, #tpu.memory_space<vmem>>, vector<8x256xf32>,
    %c0_i32_105 = arith.constant 0 : i32
    %326 = tpu.memref_slice %arg19[%c0_i32_105] : memref<3x!tpu.dma_semaphore, #tpu.memory_space<semaphore_mem>> -> memref<1x!tpu.dma_semaphore, #tpu.memory_space<semaphore_mem>>
    %327 = tpu.memref_squeeze %326 : memref<1x!tpu.dma_semaphore, #tpu.memory_space<semaphore_mem>> -> memref<!tpu.dma_semaphore, #tpu.memory_space<semaphore_mem>>
    tpu.wait_dma2 semaphore(%327 : memref<!tpu.dma_semaphore, #tpu.memory_space<semaphore_mem>>) src(%arg5 : memref<512x1024xbf16, #tpu.memory_space<any>>) dst(%arg16 : memref<512x1024xbf16, #tpu.memory_space<vmem>>)
    %c1_i32_106 = arith.constant 1 : i32
    %328 = tpu.memref_slice %arg19[%c1_i32_106] : memref<3x!tpu.dma_semaphore, #tpu.memory_space<semaphore_mem>> -> memref<1x!tpu.dma_semaphore, #tpu.memory_space<semaphore_mem>>
    %329 = tpu.memref_squeeze %328 : memref<1x!tpu.dma_semaphore, #tpu.memory_space<semaphore_mem>> -> memref<!tpu.dma_semaphore, #tpu.memory_space<semaphore_mem>>
    tpu.wait_dma2 semaphore(%329 : memref<!tpu.dma_semaphore, #tpu.memory_space<semaphore_mem>>) src(%arg6 : memref<128x512xbf16, #tpu.memory_space<any>>) dst(%arg17 : memref<128x512xbf16, #tpu.memory_space<vmem>>)
    %c0_107 = arith.constant 0 : index
    %c0_108 = arith.constant 0 : index
    %330 = vector.load %arg14[%c0_107, %c0_108] : memref<16x512xf32, #tpu.memory_space<vmem>>, vector<16x512xf32>
    %331 = arith.truncf %330 : vector<16x512xf32> to vector<16x512xbf16>
    %c0_109 = arith.constant 0 : index
    %c0_110 = arith.constant 0 : index
    %332 = vector.load %arg16[%c0_109, %c0_110] : memref<512x1024xbf16, #tpu.memory_space<vmem>>, vector<512x1024xbf16>
    %cst_111 = arith.constant dense<0.000000e+00> : vector<16x1024xf32>
    %333 = tpu.matmul %331, %332, %cst_111 {dimension_numbers = #tpu.dot_dimension_numbers<[1], [0], [0], [1], [0, 0, 1, 1], [], []>} : vector<16x512xbf16>, vector<512x1024xbf16>, vector<16x1024xf32> -> vector<16x1024xf32>
    %c0_112 = arith.constant 0 : index
    %c0_113 = arith.constant 0 : index
    %334 = vector.load %arg7[%c0_112, %c0_113] : memref<1x1024xf32, #tpu.memory_space<vmem>>, vector<1x1024xf32>
    %335 = vector.broadcast %334 : vector<1x1024xf32> to vector<16x1024xf32>
    %336 = arith.addf %333, %335 : vector<16x1024xf32>
    %c0_114 = arith.constant 0 : index
    %c0_115 = arith.constant 0 : index
    %337 = vector.load %arg15[%c0_114, %c0_115] : memref<16x1024xf32, #tpu.memory_space<vmem>>, vector<16x1024xf32>
    tpu.vector_store %arg15[%c0_114, %c0_115], %336 {strides = array<i32>} : memref<16x1024xf32, #tpu.memory_space<vmem>>, vector<16x1024xf32>,
    %cst_116 = arith.constant 0.000000e+00 : f32
    %338 = vector.broadcast %cst_116 : f32 to vector<2x128xf32>
    %c0_117 = arith.constant 0 : index
    %c0_118 = arith.constant 0 : index
    %339 = vector.load %arg15[%c0_117, %c0_118] : memref<16x1024xf32, #tpu.memory_space<vmem>>, vector<2x512xf32>
    %340 = vector.extract_strided_slice %339 {offsets = [0, 0], sizes = [2, 128], strides = [1, 1]} : vector<2x512xf32> to vector<2x128xf32>
    %341 = arith.negf %340 : vector<2x128xf32>
    %342 = math.exp %341 : vector<2x128xf32>
    %cst_119 = arith.constant 1.000000e+00 : f32
    %343 = vector.broadcast %cst_119 : f32 to vector<2x128xf32>
    %344 = arith.addf %343, %342 : vector<2x128xf32>
    %345 = arith.divf %343, %344 : vector<2x128xf32>
    %346 = vector.extract_strided_slice %339 {offsets = [0, 128], sizes = [2, 128], strides = [1, 1]} : vector<2x512xf32> to vector<2x128xf32>
    %347 = arith.negf %346 : vector<2x128xf32>
    %348 = math.exp %347 : vector<2x128xf32>
    %cst_120 = arith.constant 1.000000e+00 : f32
    %349 = vector.broadcast %cst_120 : f32 to vector<2x128xf32>
    %350 = arith.addf %349, %348 : vector<2x128xf32>
    %351 = arith.divf %349, %350 : vector<2x128xf32>
    %352 = vector.extract_strided_slice %339 {offsets = [0, 256], sizes = [2, 128], strides = [1, 1]} : vector<2x512xf32> to vector<2x128xf32>
    %353 = math.tanh %352 : vector<2x128xf32>
    %354 = vector.extract_strided_slice %339 {offsets = [0, 384], sizes = [2, 128], strides = [1, 1]} : vector<2x512xf32> to vector<2x128xf32>
    %355 = arith.negf %354 : vector<2x128xf32>
    %356 = math.exp %355 : vector<2x128xf32>
    %cst_121 = arith.constant 1.000000e+00 : f32
    %357 = vector.broadcast %cst_121 : f32 to vector<2x128xf32>
    %358 = arith.addf %357, %356 : vector<2x128xf32>
    %359 = arith.divf %357, %358 : vector<2x128xf32>
    %360 = arith.mulf %351, %338 : vector<2x128xf32>
    %361 = arith.mulf %345, %353 : vector<2x128xf32>
    %362 = arith.addf %360, %361 : vector<2x128xf32>
    %363 = math.tanh %362 : vector<2x128xf32>
    %364 = arith.mulf %359, %363 : vector<2x128xf32>
    %c2_122 = arith.constant 2 : index
    %c0_123 = arith.constant 0 : index
    %365 = vector.load %arg15[%c2_122, %c0_123] : memref<16x1024xf32, #tpu.memory_space<vmem>>, vector<2x512xf32>
    %366 = arith.truncf %364 : vector<2x128xf32> to vector<2x128xbf16>
    %c0_124 = arith.constant 0 : index
    %c0_125 = arith.constant 0 : index
    %367 = vector.load %arg17[%c0_124, %c0_125] : memref<128x512xbf16, #tpu.memory_space<vmem>>, vector<128x512xbf16>
    %cst_126 = arith.constant dense<0.000000e+00> : vector<2x512xf32>
    %368 = tpu.matmul %366, %367, %cst_126 {dimension_numbers = #tpu.dot_dimension_numbers<[1], [0], [0], [1], [0, 0, 1, 1], [], []>} : vector<2x128xbf16>, vector<128x512xbf16>, vector<2x512xf32> -> vector<2x512xf32>
    %369 = arith.addf %365, %368 : vector<2x512xf32>
    %370 = vector.extract_strided_slice %369 {offsets = [0, 0], sizes = [2, 128], strides = [1, 1]} : vector<2x512xf32> to vector<2x128xf32>
    %371 = arith.negf %370 : vector<2x128xf32>
    %372 = math.exp %371 : vector<2x128xf32>
    %cst_127 = arith.constant 1.000000e+00 : f32
    %373 = vector.broadcast %cst_127 : f32 to vector<2x128xf32>
    %374 = arith.addf %373, %372 : vector<2x128xf32>
    %375 = arith.divf %373, %374 : vector<2x128xf32>
    %376 = vector.extract_strided_slice %369 {offsets = [0, 128], sizes = [2, 128], strides = [1, 1]} : vector<2x512xf32> to vector<2x128xf32>
    %377 = arith.negf %376 : vector<2x128xf32>
    %378 = math.exp %377 : vector<2x128xf32>
    %cst_128 = arith.constant 1.000000e+00 : f32
    %379 = vector.broadcast %cst_128 : f32 to vector<2x128xf32>
    %380 = arith.addf %379, %378 : vector<2x128xf32>
    %381 = arith.divf %379, %380 : vector<2x128xf32>
    %382 = vector.extract_strided_slice %369 {offsets = [0, 256], sizes = [2, 128], strides = [1, 1]} : vector<2x512xf32> to vector<2x128xf32>
    %383 = math.tanh %382 : vector<2x128xf32>
    %384 = vector.extract_strided_slice %369 {offsets = [0, 384], sizes = [2, 128], strides = [1, 1]} : vector<2x512xf32> to vector<2x128xf32>
    %385 = arith.negf %384 : vector<2x128xf32>
    %386 = math.exp %385 : vector<2x128xf32>
    %cst_129 = arith.constant 1.000000e+00 : f32
    %387 = vector.broadcast %cst_129 : f32 to vector<2x128xf32>
    %388 = arith.addf %387, %386 : vector<2x128xf32>
    %389 = arith.divf %387, %388 : vector<2x128xf32>
    %390 = arith.mulf %381, %362 : vector<2x128xf32>
    %391 = arith.mulf %375, %383 : vector<2x128xf32>
    %392 = arith.addf %390, %391 : vector<2x128xf32>
    %393 = math.tanh %392 : vector<2x128xf32>
    %394 = arith.mulf %389, %393 : vector<2x128xf32>
    %c4_130 = arith.constant 4 : index
    %c0_131 = arith.constant 0 : index
    %395 = vector.load %arg15[%c4_130, %c0_131] : memref<16x1024xf32, #tpu.memory_space<vmem>>, vector<2x512xf32>
    %396 = arith.truncf %394 : vector<2x128xf32> to vector<2x128xbf16>
    %c0_132 = arith.constant 0 : index
    %c0_133 = arith.constant 0 : index
    %397 = vector.load %arg17[%c0_132, %c0_133] : memref<128x512xbf16, #tpu.memory_space<vmem>>, vector<128x512xbf16>
    %cst_134 = arith.constant dense<0.000000e+00> : vector<2x512xf32>
    %398 = tpu.matmul %396, %397, %cst_134 {dimension_numbers = #tpu.dot_dimension_numbers<[1], [0], [0], [1], [0, 0, 1, 1], [], []>} : vector<2x128xbf16>, vector<128x512xbf16>, vector<2x512xf32> -> vector<2x512xf32>
    %399 = arith.addf %395, %398 : vector<2x512xf32>
    %400 = vector.extract_strided_slice %399 {offsets = [0, 0], sizes = [2, 128], strides = [1, 1]} : vector<2x512xf32> to vector<2x128xf32>
    %401 = arith.negf %400 : vector<2x128xf32>
    %402 = math.exp %401 : vector<2x128xf32>
    %cst_135 = arith.constant 1.000000e+00 : f32
    %403 = vector.broadcast %cst_135 : f32 to vector<2x128xf32>
    %404 = arith.addf %403, %402 : vector<2x128xf32>
    %405 = arith.divf %403, %404 : vector<2x128xf32>
    %406 = vector.extract_strided_slice %399 {offsets = [0, 128], sizes = [2, 128], strides = [1, 1]} : vector<2x512xf32> to vector<2x128xf32>
    %407 = arith.negf %406 : vector<2x128xf32>
    %408 = math.exp %407 : vector<2x128xf32>
    %cst_136 = arith.constant 1.000000e+00 : f32
    %409 = vector.broadcast %cst_136 : f32 to vector<2x128xf32>
    %410 = arith.addf %409, %408 : vector<2x128xf32>
    %411 = arith.divf %409, %410 : vector<2x128xf32>
    %412 = vector.extract_strided_slice %399 {offsets = [0, 256], sizes = [2, 128], strides = [1, 1]} : vector<2x512xf32> to vector<2x128xf32>
    %413 = math.tanh %412 : vector<2x128xf32>
    %414 = vector.extract_strided_slice %399 {offsets = [0, 384], sizes = [2, 128], strides = [1, 1]} : vector<2x512xf32> to vector<2x128xf32>
    %415 = arith.negf %414 : vector<2x128xf32>
    %416 = math.exp %415 : vector<2x128xf32>
    %cst_137 = arith.constant 1.000000e+00 : f32
    %417 = vector.broadcast %cst_137 : f32 to vector<2x128xf32>
    %418 = arith.addf %417, %416 : vector<2x128xf32>
    %419 = arith.divf %417, %418 : vector<2x128xf32>
    %420 = arith.mulf %411, %392 : vector<2x128xf32>
    %421 = arith.mulf %405, %413 : vector<2x128xf32>
    %422 = arith.addf %420, %421 : vector<2x128xf32>
    %423 = math.tanh %422 : vector<2x128xf32>
    %424 = arith.mulf %419, %423 : vector<2x128xf32>
    %c6_138 = arith.constant 6 : index
    %c0_139 = arith.constant 0 : index
    %425 = vector.load %arg15[%c6_138, %c0_139] : memref<16x1024xf32, #tpu.memory_space<vmem>>, vector<2x512xf32>
    %426 = arith.truncf %424 : vector<2x128xf32> to vector<2x128xbf16>
    %c0_140 = arith.constant 0 : index
    %c0_141 = arith.constant 0 : index
    %427 = vector.load %arg17[%c0_140, %c0_141] : memref<128x512xbf16, #tpu.memory_space<vmem>>, vector<128x512xbf16>
    %cst_142 = arith.constant dense<0.000000e+00> : vector<2x512xf32>
    %428 = tpu.matmul %426, %427, %cst_142 {dimension_numbers = #tpu.dot_dimension_numbers<[1], [0], [0], [1], [0, 0, 1, 1], [], []>} : vector<2x128xbf16>, vector<128x512xbf16>, vector<2x512xf32> -> vector<2x512xf32>
    %429 = arith.addf %425, %428 : vector<2x512xf32>
    %430 = vector.extract_strided_slice %429 {offsets = [0, 0], sizes = [2, 128], strides = [1, 1]} : vector<2x512xf32> to vector<2x128xf32>
    %431 = arith.negf %430 : vector<2x128xf32>
    %432 = math.exp %431 : vector<2x128xf32>
    %cst_143 = arith.constant 1.000000e+00 : f32
    %433 = vector.broadcast %cst_143 : f32 to vector<2x128xf32>
    %434 = arith.addf %433, %432 : vector<2x128xf32>
    %435 = arith.divf %433, %434 : vector<2x128xf32>
    %436 = vector.extract_strided_slice %429 {offsets = [0, 128], sizes = [2, 128], strides = [1, 1]} : vector<2x512xf32> to vector<2x128xf32>
    %437 = arith.negf %436 : vector<2x128xf32>
    %438 = math.exp %437 : vector<2x128xf32>
    %cst_144 = arith.constant 1.000000e+00 : f32
    %439 = vector.broadcast %cst_144 : f32 to vector<2x128xf32>
    %440 = arith.addf %439, %438 : vector<2x128xf32>
    %441 = arith.divf %439, %440 : vector<2x128xf32>
    %442 = vector.extract_strided_slice %429 {offsets = [0, 256], sizes = [2, 128], strides = [1, 1]} : vector<2x512xf32> to vector<2x128xf32>
    %443 = math.tanh %442 : vector<2x128xf32>
    %444 = vector.extract_strided_slice %429 {offsets = [0, 384], sizes = [2, 128], strides = [1, 1]} : vector<2x512xf32> to vector<2x128xf32>
    %445 = arith.negf %444 : vector<2x128xf32>
    %446 = math.exp %445 : vector<2x128xf32>
    %cst_145 = arith.constant 1.000000e+00 : f32
    %447 = vector.broadcast %cst_145 : f32 to vector<2x128xf32>
    %448 = arith.addf %447, %446 : vector<2x128xf32>
    %449 = arith.divf %447, %448 : vector<2x128xf32>
    %450 = arith.mulf %441, %422 : vector<2x128xf32>
    %451 = arith.mulf %435, %443 : vector<2x128xf32>
    %452 = arith.addf %450, %451 : vector<2x128xf32>
    %453 = math.tanh %452 : vector<2x128xf32>
    %454 = arith.mulf %449, %453 : vector<2x128xf32>
    %c8_146 = arith.constant 8 : index
    %c0_147 = arith.constant 0 : index
    %455 = vector.load %arg15[%c8_146, %c0_147] : memref<16x1024xf32, #tpu.memory_space<vmem>>, vector<2x512xf32>
    %456 = arith.truncf %454 : vector<2x128xf32> to vector<2x128xbf16>
    %c0_148 = arith.constant 0 : index
    %c0_149 = arith.constant 0 : index
    %457 = vector.load %arg17[%c0_148, %c0_149] : memref<128x512xbf16, #tpu.memory_space<vmem>>, vector<128x512xbf16>
    %cst_150 = arith.constant dense<0.000000e+00> : vector<2x512xf32>
    %458 = tpu.matmul %456, %457, %cst_150 {dimension_numbers = #tpu.dot_dimension_numbers<[1], [0], [0], [1], [0, 0, 1, 1], [], []>} : vector<2x128xbf16>, vector<128x512xbf16>, vector<2x512xf32> -> vector<2x512xf32>
    %459 = arith.addf %455, %458 : vector<2x512xf32>
    %460 = vector.extract_strided_slice %459 {offsets = [0, 0], sizes = [2, 128], strides = [1, 1]} : vector<2x512xf32> to vector<2x128xf32>
    %461 = arith.negf %460 : vector<2x128xf32>
    %462 = math.exp %461 : vector<2x128xf32>
    %cst_151 = arith.constant 1.000000e+00 : f32
    %463 = vector.broadcast %cst_151 : f32 to vector<2x128xf32>
    %464 = arith.addf %463, %462 : vector<2x128xf32>
    %465 = arith.divf %463, %464 : vector<2x128xf32>
    %466 = vector.extract_strided_slice %459 {offsets = [0, 128], sizes = [2, 128], strides = [1, 1]} : vector<2x512xf32> to vector<2x128xf32>
    %467 = arith.negf %466 : vector<2x128xf32>
    %468 = math.exp %467 : vector<2x128xf32>
    %cst_152 = arith.constant 1.000000e+00 : f32
    %469 = vector.broadcast %cst_152 : f32 to vector<2x128xf32>
    %470 = arith.addf %469, %468 : vector<2x128xf32>
    %471 = arith.divf %469, %470 : vector<2x128xf32>
    %472 = vector.extract_strided_slice %459 {offsets = [0, 256], sizes = [2, 128], strides = [1, 1]} : vector<2x512xf32> to vector<2x128xf32>
    %473 = math.tanh %472 : vector<2x128xf32>
    %474 = vector.extract_strided_slice %459 {offsets = [0, 384], sizes = [2, 128], strides = [1, 1]} : vector<2x512xf32> to vector<2x128xf32>
    %475 = arith.negf %474 : vector<2x128xf32>
    %476 = math.exp %475 : vector<2x128xf32>
    %cst_153 = arith.constant 1.000000e+00 : f32
    %477 = vector.broadcast %cst_153 : f32 to vector<2x128xf32>
    %478 = arith.addf %477, %476 : vector<2x128xf32>
    %479 = arith.divf %477, %478 : vector<2x128xf32>
    %480 = arith.mulf %471, %452 : vector<2x128xf32>
    %481 = arith.mulf %465, %473 : vector<2x128xf32>
    %482 = arith.addf %480, %481 : vector<2x128xf32>
    %483 = math.tanh %482 : vector<2x128xf32>
    %484 = arith.mulf %479, %483 : vector<2x128xf32>
    %c10_154 = arith.constant 10 : index
    %c0_155 = arith.constant 0 : index
    %485 = vector.load %arg15[%c10_154, %c0_155] : memref<16x1024xf32, #tpu.memory_space<vmem>>, vector<2x512xf32>
    %486 = arith.truncf %484 : vector<2x128xf32> to vector<2x128xbf16>
    %c0_156 = arith.constant 0 : index
    %c0_157 = arith.constant 0 : index
    %487 = vector.load %arg17[%c0_156, %c0_157] : memref<128x512xbf16, #tpu.memory_space<vmem>>, vector<128x512xbf16>
    %cst_158 = arith.constant dense<0.000000e+00> : vector<2x512xf32>
    %488 = tpu.matmul %486, %487, %cst_158 {dimension_numbers = #tpu.dot_dimension_numbers<[1], [0], [0], [1], [0, 0, 1, 1], [], []>} : vector<2x128xbf16>, vector<128x512xbf16>, vector<2x512xf32> -> vector<2x512xf32>
    %489 = arith.addf %485, %488 : vector<2x512xf32>
    %490 = vector.extract_strided_slice %489 {offsets = [0, 0], sizes = [2, 128], strides = [1, 1]} : vector<2x512xf32> to vector<2x128xf32>
    %491 = arith.negf %490 : vector<2x128xf32>
    %492 = math.exp %491 : vector<2x128xf32>
    %cst_159 = arith.constant 1.000000e+00 : f32
    %493 = vector.broadcast %cst_159 : f32 to vector<2x128xf32>
    %494 = arith.addf %493, %492 : vector<2x128xf32>
    %495 = arith.divf %493, %494 : vector<2x128xf32>
    %496 = vector.extract_strided_slice %489 {offsets = [0, 128], sizes = [2, 128], strides = [1, 1]} : vector<2x512xf32> to vector<2x128xf32>
    %497 = arith.negf %496 : vector<2x128xf32>
    %498 = math.exp %497 : vector<2x128xf32>
    %cst_160 = arith.constant 1.000000e+00 : f32
    %499 = vector.broadcast %cst_160 : f32 to vector<2x128xf32>
    %500 = arith.addf %499, %498 : vector<2x128xf32>
    %501 = arith.divf %499, %500 : vector<2x128xf32>
    %502 = vector.extract_strided_slice %489 {offsets = [0, 256], sizes = [2, 128], strides = [1, 1]} : vector<2x512xf32> to vector<2x128xf32>
    %503 = math.tanh %502 : vector<2x128xf32>
    %504 = vector.extract_strided_slice %489 {offsets = [0, 384], sizes = [2, 128], strides = [1, 1]} : vector<2x512xf32> to vector<2x128xf32>
    %505 = arith.negf %504 : vector<2x128xf32>
    %506 = math.exp %505 : vector<2x128xf32>
    %cst_161 = arith.constant 1.000000e+00 : f32
    %507 = vector.broadcast %cst_161 : f32 to vector<2x128xf32>
    %508 = arith.addf %507, %506 : vector<2x128xf32>
    %509 = arith.divf %507, %508 : vector<2x128xf32>
    %510 = arith.mulf %501, %482 : vector<2x128xf32>
    %511 = arith.mulf %495, %503 : vector<2x128xf32>
    %512 = arith.addf %510, %511 : vector<2x128xf32>
    %513 = math.tanh %512 : vector<2x128xf32>
    %514 = arith.mulf %509, %513 : vector<2x128xf32>
    %c12_162 = arith.constant 12 : index
    %c0_163 = arith.constant 0 : index
    %515 = vector.load %arg15[%c12_162, %c0_163] : memref<16x1024xf32, #tpu.memory_space<vmem>>, vector<2x512xf32>
    %516 = arith.truncf %514 : vector<2x128xf32> to vector<2x128xbf16>
    %c0_164 = arith.constant 0 : index
    %c0_165 = arith.constant 0 : index
    %517 = vector.load %arg17[%c0_164, %c0_165] : memref<128x512xbf16, #tpu.memory_space<vmem>>, vector<128x512xbf16>
    %cst_166 = arith.constant dense<0.000000e+00> : vector<2x512xf32>
    %518 = tpu.matmul %516, %517, %cst_166 {dimension_numbers = #tpu.dot_dimension_numbers<[1], [0], [0], [1], [0, 0, 1, 1], [], []>} : vector<2x128xbf16>, vector<128x512xbf16>, vector<2x512xf32> -> vector<2x512xf32>
    %519 = arith.addf %515, %518 : vector<2x512xf32>
    %520 = vector.extract_strided_slice %519 {offsets = [0, 0], sizes = [2, 128], strides = [1, 1]} : vector<2x512xf32> to vector<2x128xf32>
    %521 = arith.negf %520 : vector<2x128xf32>
    %522 = math.exp %521 : vector<2x128xf32>
    %cst_167 = arith.constant 1.000000e+00 : f32
    %523 = vector.broadcast %cst_167 : f32 to vector<2x128xf32>
    %524 = arith.addf %523, %522 : vector<2x128xf32>
    %525 = arith.divf %523, %524 : vector<2x128xf32>
    %526 = vector.extract_strided_slice %519 {offsets = [0, 128], sizes = [2, 128], strides = [1, 1]} : vector<2x512xf32> to vector<2x128xf32>
    %527 = arith.negf %526 : vector<2x128xf32>
    %528 = math.exp %527 : vector<2x128xf32>
    %cst_168 = arith.constant 1.000000e+00 : f32
    %529 = vector.broadcast %cst_168 : f32 to vector<2x128xf32>
    %530 = arith.addf %529, %528 : vector<2x128xf32>
    %531 = arith.divf %529, %530 : vector<2x128xf32>
    %532 = vector.extract_strided_slice %519 {offsets = [0, 256], sizes = [2, 128], strides = [1, 1]} : vector<2x512xf32> to vector<2x128xf32>
    %533 = math.tanh %532 : vector<2x128xf32>
    %534 = vector.extract_strided_slice %519 {offsets = [0, 384], sizes = [2, 128], strides = [1, 1]} : vector<2x512xf32> to vector<2x128xf32>
    %535 = arith.negf %534 : vector<2x128xf32>
    %536 = math.exp %535 : vector<2x128xf32>
    %cst_169 = arith.constant 1.000000e+00 : f32
    %537 = vector.broadcast %cst_169 : f32 to vector<2x128xf32>
    %538 = arith.addf %537, %536 : vector<2x128xf32>
    %539 = arith.divf %537, %538 : vector<2x128xf32>
    %540 = arith.mulf %531, %512 : vector<2x128xf32>
    %541 = arith.mulf %525, %533 : vector<2x128xf32>
    %542 = arith.addf %540, %541 : vector<2x128xf32>
    %543 = math.tanh %542 : vector<2x128xf32>
    %544 = arith.mulf %539, %543 : vector<2x128xf32>
    %c14_170 = arith.constant 14 : index
    %c0_171 = arith.constant 0 : index
    %545 = vector.load %arg15[%c14_170, %c0_171] : memref<16x1024xf32, #tpu.memory_space<vmem>>, vector<2x512xf32>
    %c14_172 = arith.constant 14 : index
    %c512 = arith.constant 512 : index
    %546 = vector.load %arg15[%c14_172, %c512] : memref<16x1024xf32, #tpu.memory_space<vmem>>, vector<2x512xf32>
    %547 = arith.truncf %544 : vector<2x128xf32> to vector<2x128xbf16>
    %c0_173 = arith.constant 0 : index
    %c0_174 = arith.constant 0 : index
    %548 = vector.load %arg17[%c0_173, %c0_174] : memref<128x512xbf16, #tpu.memory_space<vmem>>, vector<128x512xbf16>
    %cst_175 = arith.constant dense<0.000000e+00> : vector<2x512xf32>
    %549 = tpu.matmul %547, %548, %cst_175 {dimension_numbers = #tpu.dot_dimension_numbers<[1], [0], [0], [1], [0, 0, 1, 1], [], []>} : vector<2x128xbf16>, vector<128x512xbf16>, vector<2x512xf32> -> vector<2x512xf32>
    %550 = arith.addf %545, %549 : vector<2x512xf32>
    %551 = tpu.concatenate %550, %546 in 0 : vector<2x512xf32>, vector<2x512xf32> -> vector<4x512xf32>
    %cst_176 = arith.constant 0.000000e+00 : f32
    %552 = vector.broadcast %cst_176 : f32 to vector<2x128xf32>
    %553 = tpu.concatenate %542, %552 in 0 : vector<2x128xf32>, vector<2x128xf32> -> vector<4x128xf32>
    %554 = vector.extract_strided_slice %551 {offsets = [0, 0], sizes = [4, 128], strides = [1, 1]} : vector<4x512xf32> to vector<4x128xf32>
    %555 = arith.negf %554 : vector<4x128xf32>
    %556 = math.exp %555 : vector<4x128xf32>
    %cst_177 = arith.constant 1.000000e+00 : f32
    %557 = vector.broadcast %cst_177 : f32 to vector<4x128xf32>
    %558 = arith.addf %557, %556 : vector<4x128xf32>
    %559 = arith.divf %557, %558 : vector<4x128xf32>
    %560 = vector.extract_strided_slice %551 {offsets = [0, 128], sizes = [4, 128], strides = [1, 1]} : vector<4x512xf32> to vector<4x128xf32>
    %561 = arith.negf %560 : vector<4x128xf32>
    %562 = math.exp %561 : vector<4x128xf32>
    %cst_178 = arith.constant 1.000000e+00 : f32
    %563 = vector.broadcast %cst_178 : f32 to vector<4x128xf32>
    %564 = arith.addf %563, %562 : vector<4x128xf32>
    %565 = arith.divf %563, %564 : vector<4x128xf32>
    %566 = vector.extract_strided_slice %551 {offsets = [0, 256], sizes = [4, 128], strides = [1, 1]} : vector<4x512xf32> to vector<4x128xf32>
    %567 = math.tanh %566 : vector<4x128xf32>
    %568 = vector.extract_strided_slice %551 {offsets = [0, 384], sizes = [4, 128], strides = [1, 1]} : vector<4x512xf32> to vector<4x128xf32>
    %569 = arith.negf %568 : vector<4x128xf32>
    %570 = math.exp %569 : vector<4x128xf32>
    %cst_179 = arith.constant 1.000000e+00 : f32
    %571 = vector.broadcast %cst_179 : f32 to vector<4x128xf32>
    %572 = arith.addf %571, %570 : vector<4x128xf32>
    %573 = arith.divf %571, %572 : vector<4x128xf32>
    %574 = arith.mulf %565, %553 : vector<4x128xf32>
    %575 = arith.mulf %559, %567 : vector<4x128xf32>
    %576 = arith.addf %574, %575 : vector<4x128xf32>
    %577 = math.tanh %576 : vector<4x128xf32>
    %578 = arith.mulf %573, %577 : vector<4x128xf32>
    %579 = vector.extract_strided_slice %578 {offsets = [0, 0], sizes = [2, 128], strides = [1, 1]} : vector<4x128xf32> to vector<2x128xf32>
    %580 = vector.extract_strided_slice %578 {offsets = [2, 0], sizes = [2, 128], strides = [1, 1]} : vector<4x128xf32> to vector<2x128xf32>
    %581 = tpu.concatenate %579, %580 in 1 : vector<2x128xf32>, vector<2x128xf32> -> vector<2x256xf32>
    %c2_i32_180 = arith.constant 2 : i32
    %582 = tpu.memref_slice %arg19[%c2_i32_180] : memref<3x!tpu.dma_semaphore, #tpu.memory_space<semaphore_mem>> -> memref<1x!tpu.dma_semaphore, #tpu.memory_space<semaphore_mem>>
    %583 = tpu.memref_squeeze %582 : memref<1x!tpu.dma_semaphore, #tpu.memory_space<semaphore_mem>> -> memref<!tpu.dma_semaphore, #tpu.memory_space<semaphore_mem>>
    tpu.wait_dma2 semaphore(%583 : memref<!tpu.dma_semaphore, #tpu.memory_space<semaphore_mem>>) src(%arg8 : memref<256x128xbf16, #tpu.memory_space<any>>) dst(%arg18 : memref<256x128xbf16, #tpu.memory_space<vmem>>)
    %584 = arith.truncf %581 : vector<2x256xf32> to vector<2x256xbf16>
    %c0_181 = arith.constant 0 : index
    %c0_182 = arith.constant 0 : index
    %585 = vector.load %arg18[%c0_181, %c0_182] : memref<256x128xbf16, #tpu.memory_space<vmem>>, vector<256x128xbf16>
    %cst_183 = arith.constant dense<0.000000e+00> : vector<2x128xf32>
    %586 = tpu.matmul %584, %585, %cst_183 {dimension_numbers = #tpu.dot_dimension_numbers<[1], [0], [0], [1], [0, 0, 1, 1], [], []>} : vector<2x256xbf16>, vector<256x128xbf16>, vector<2x128xf32> -> vector<2x128xf32>
    %c0_184 = arith.constant 0 : index
    %c0_185 = arith.constant 0 : index
    %587 = vector.load %arg9[%c0_184, %c0_185] : memref<1x128xf32, #tpu.memory_space<vmem>>, vector<1x128xf32>
    %588 = vector.broadcast %587 : vector<1x128xf32> to vector<2x128xf32>
    %589 = arith.addf %586, %588 : vector<2x128xf32>
    %590 = math.tanh %589 : vector<2x128xf32>
    %c0_186 = arith.constant 0 : index
    %c0_187 = arith.constant 0 : index
    %591 = vector.load %arg10[%c0_186, %c0_187] : memref<1x128xf32, #tpu.memory_space<vmem>>, vector<1x128xf32>
    %592 = vector.broadcast %591 : vector<1x128xf32> to vector<2x128xf32>
    %593 = arith.mulf %590, %592 : vector<2x128xf32>
    %cst_188 = arith.constant dense<0.000000e+00> : vector<2xf32>
    %594 = vector.multi_reduction <add>, %593, %cst_188 [1] : vector<2x128xf32> to vector<2xf32>
    %595 = vector.shape_cast %594 : vector<2xf32> to vector<2x1xf32>
    %c0_189 = arith.constant 0 : index
    %c0_190 = arith.constant 0 : index
    %596 = vector.load %arg11[%c0_189, %c0_190] : memref<1x1xf32, #tpu.memory_space<vmem>>, vector<1x1xf32>
    %597 = vector.broadcast %596 : vector<1x1xf32> to vector<2x1xf32>
    %598 = arith.addf %595, %597 : vector<2x1xf32>
    %cst_191 = arith.constant dense<0xFF800000> : vector<1xf32>
    %599 = vector.multi_reduction <maximumf>, %598, %cst_191 [0] : vector<2x1xf32> to vector<1xf32>
    %600 = vector.shape_cast %599 : vector<1xf32> to vector<1x1xf32>
    %601 = vector.broadcast %600 : vector<1x1xf32> to vector<2x1xf32>
    %602 = arith.subf %598, %601 : vector<2x1xf32>
    %603 = math.exp %602 : vector<2x1xf32>
    %cst_192 = arith.constant dense<0.000000e+00> : vector<1xf32>
    %604 = vector.multi_reduction <add>, %603, %cst_192 [0] : vector<2x1xf32> to vector<1xf32>
    %605 = vector.shape_cast %604 : vector<1xf32> to vector<1x1xf32>
    %606 = vector.broadcast %605 : vector<1x1xf32> to vector<2x1xf32>
    %607 = arith.divf %603, %606 : vector<2x1xf32>
    %608 = vector.broadcast %607 : vector<2x1xf32> to vector<2x256xf32>
    %609 = arith.mulf %608, %581 : vector<2x256xf32>
    %cst_193 = arith.constant dense<0.000000e+00> : vector<256xf32>
    %610 = vector.multi_reduction <add>, %609, %cst_193 [0] : vector<2x256xf32> to vector<256xf32>
    %611 = vector.shape_cast %610 : vector<256xf32> to vector<1x256xf32>
    %c0_194 = arith.constant 0 : index
    %c0_195 = arith.constant 0 : index
    %612 = vector.load %arg12[%c0_194, %c0_195] : memref<1x256xf32, #tpu.memory_space<vmem>>, vector<1x256xf32>
    tpu.vector_store %arg12[%c0_194, %c0_195], %611 {strides = array<i32>} : memref<1x256xf32, #tpu.memory_space<vmem>>, vector<1x256xf32>,
    return
  }
}

</mosaic_0001>

<llo_original>
// kernel: lstmnet_forward.1
$region0: #{lstmnet_forward.1}
  #allocation0 [shape = 'u32[]', space=smem, size = 0x4, offset = 0x4, fixed_abs, tag = 'smem constant byte address 0x4 - core index']
  #allocation1 [shape = 'u32[144,128]{1,0:T(1,128)}', space=vmem, size = 0x12000, scoped, tag = 'internal scratch']
  #allocation2 [shape = 'f32[16,2048]{1,0:T(8,128)}', space=vmem, size = 0x20000, scoped, tag = 'scratch operand']
  #allocation3 [shape = 'f32[16,512]{1,0:T(8,128)}', space=vmem, size = 0x8000, scoped, tag = 'scratch operand']
  #allocation4 [shape = 'f32[16,1024]{1,0:T(8,128)}', space=vmem, size = 0x10000, scoped, tag = 'scratch operand']
  #allocation5 [shape = 'bf16[512,1024]{1,0:T(8,128)(2,1)}', space=vmem, size = 0x100000, scoped, tag = 'scratch operand']
  #allocation6 [shape = 'bf16[128,512]{1,0:T(8,128)(2,1)}', space=vmem, size = 0x20000, scoped, tag = 'scratch operand']
  #allocation7 [shape = 'bf16[256,128]{1,0:T(8,128)(2,1)}', space=vmem, size = 0x10000, scoped, tag = 'scratch operand']
  #allocation8 [shape = 's32[3]{0}', space=sflag, size = 0xc, scoped, tag = 'scratch operand']
  #allocation9 [shape = 'f32[1,1]{1,0:T(1,128)S(1)}', space=vmem, size = 0x200, scoped, tag = 'scoped memory for lstmnet_forward.1']
  #allocation17 [shape = 's32[]', space=sflag, size = 0x4, offset = 0, fixed_abs, tag = 'sflag constant byte address 0x0 - dummy sync flag']
  #allocation18 [shape = 's32[]', space=sflag, size = 0x4, offset = 0, fixed_abs, tag = 'sflag constant byte address 0x0 - dummy sync flag']
  #allocation19 [shape = 'u32[]', space=smem, size = 0x4, offset = 0x44, fixed_abs, tag = 'smem constant byte address 0x44 - assertion arg 0']
  #allocation20 [shape = 'u32[]', space=smem, size = 0x4, offset = 0x48, fixed_abs, tag = 'smem constant byte address 0x48 - assertion arg 1']
  #allocation21 [shape = 's32[]', space=sflag, size = 0x4, offset = 0, fixed_abs, tag = 'sflag constant byte address 0x0 - dummy sync flag']
  #allocation22 [shape = 's32[]', space=sflag, size = 0x4, offset = 0, fixed_abs, tag = 'sflag constant byte address 0x0 - dummy sync flag']
  #allocation23 [shape = 's32[]', space=sflag, size = 0x4, offset = 0, fixed_abs, tag = 'sflag constant byte address 0x0 - dummy sync flag']
  #allocation24 [shape = 's32[]', space=sflag, size = 0x4, offset = 0, fixed_abs, tag = 'sflag constant byte address 0x0 - dummy sync flag']
  %s0 = inlined_call_operand.vmem [shape: f32[16,128], index: 0, kind: input, shape index: {}]
  %s1 = inlined_call_operand.hbm [shape: bf16[128,2048], index: 1, kind: input, shape index: {}]
  %s2 = inlined_call_operand.hbm [shape: bf16[256,1024], index: 2, kind: input, shape index: {}]
  %s3 = inlined_call_operand.hbm [shape: bf16[256,1024], index: 3, kind: input, shape index: {}]
  %s4 = inlined_call_operand.vmem [shape: f32[1,2048], index: 4, kind: input, shape index: {}]
  %s5 = inlined_call_operand.hbm [shape: bf16[512,1024], index: 5, kind: input, shape index: {}]
  %s6 = inlined_call_operand.hbm [shape: bf16[128,512], index: 6, kind: input, shape index: {}]
  %s7 = inlined_call_operand.vmem [shape: f32[1,1024], index: 7, kind: input, shape index: {}]
  %s8 = inlined_call_operand.hbm [shape: bf16[256,128], index: 8, kind: input, shape index: {}]
  %s9 = inlined_call_operand.vmem [shape: f32[1,128], index: 9, kind: input, shape index: {}]
  %s10 = inlined_call_operand.vmem [shape: f32[1,128], index: 10, kind: input, shape index: {}]
  %s11 = inlined_call_operand.<no memory space> [shape: f32[1,1], index: 11, kind: input, shape index: {}]
  %s12 = inlined_call_operand.hbm [shape: f32[1,256], index: 12, kind: output, shape index: {}]
  %s13 = sld [smem:[#allocation0]]
  $region70: #{lstmnet_forward.1} parent=0
    _
  %s15 = ssub.s32 1, %s13
  %s16 = scalar_select 0, %s15, %s13
  %v17 = vstv %s11
  %18 = vst [vmem:[#allocation9] sm:$0x1] %v17
  $region1: #{lstmnet_forward.1} parent=0
    #allocation10 [shape = 'u8[524288]{0}', space=vmem, size = 0x80000, scoped, tag = 'input window, operand 1, single buffered']
    #allocation11 [shape = 's32[1]{0}', space=sflag, size = 0x4, scoped, tag = 'scoped memory for lstmnet_forward.1']
    #allocation12 [shape = 's32[1]{0}', space=sflag, size = 0x4, scoped, tag = 'scoped memory for lstmnet_forward.1']
    #allocation13 [shape = 'u8[524288]{0}', space=vmem, size = 0x80000, scoped, tag = 'input window, operand 2, single buffered']
    #allocation14 [shape = 's32[1]{0}', space=sflag, size = 0x4, scoped, tag = 'scoped memory for lstmnet_forward.1']
    #allocation15 [shape = 'u8[524288]{0}', space=vmem, size = 0x80000, scoped, tag = 'input window, operand 3, single buffered']
    #allocation16 [shape = 'u8[1024]{0}', space=vmem, size = 0x400, scoped, tag = 'output window, operand 0, single buffered']
    %19 = vsyncpa [#allocation11], 0
    %20 = vsyncpa [#allocation14], 0
    %21 = vsyncpa [#allocation12], 0
    // Predicated region
    $region2: #{lstmnet_forward.1} parent=1 // pred_check
      _
    $region3: #{lstmnet_forward.1} parent=1 // pred_check_branch
      %23 = sbr.rel (0) target = $region5
    $region4: #{lstmnet_forward.1} parent=1 // pred_region
      _
    $region5: #{lstmnet_forward.1} parent=1 // pred_fallthru
      _
    // Predicated region
    $region6: #{lstmnet_forward.1} parent=1 // pred_check
      _
    $region7: #{lstmnet_forward.1} parent=1 // pred_check_branch
      %25 = sbr.rel (0) target = $region9
    $region8: #{lstmnet_forward.1} parent=1 // pred_region
      %s27 = ssub.s32 16384, 16384
      %28 = vsyncadd [#allocation11], %s27
      %s29 = sshll.u32 [#allocation10], 4
      %s30 = int_to_ptr.vmem [resolvable:$true] %s29
      %35 = dma.hbm_to_vmem [thread:$0]  %s1, 16384, %s30, [#allocation11], 1024, 1024, 64
    $region9: #{lstmnet_forward.1} parent=1 // pred_fallthru
      _
    // Predicated region
    $region10: #{lstmnet_forward.1} parent=1 // pred_check
      _
    $region11: #{lstmnet_forward.1} parent=1 // pred_check_branch
      %37 = sbr.rel (0) target = $region13
    $region12: #{lstmnet_forward.1} parent=1 // pred_region
      %s39 = ssub.s32 16384, 16384
      %40 = vsyncadd [#allocation14], %s39
      %s41 = sshll.u32 [#allocation13], 4
      %s42 = int_to_ptr.vmem [resolvable:$true] %s41
      %47 = dma.hbm_to_vmem [thread:$0]  %s2, 16384, %s42, [#allocation14], 512, 512, 32
    $region13: #{lstmnet_forward.1} parent=1 // pred_fallthru
      _
    // Predicated region
    $region14: #{lstmnet_forward.1} parent=1 // pred_check
      _
    $region15: #{lstmnet_forward.1} parent=1 // pred_check_branch
      %49 = sbr.rel (0) target = $region17
    $region16: #{lstmnet_forward.1} parent=1 // pred_region
      %s51 = ssub.s32 16384, 16384
      %52 = vsyncadd [#allocation14], %s51
      %s53 = sshll.u32 [#allocation15], 4
      %s54 = int_to_ptr.vmem [resolvable:$true] %s53
      %59 = dma.hbm_to_vmem [thread:$0]  %s3, 16384, %s54, [#allocation14], 512, 512, 32
    $region17: #{lstmnet_forward.1} parent=1 // pred_fallthru
      _
    // Predicated region
    $region18: #{lstmnet_forward.1} parent=1 // pred_check
      _
    $region19: #{lstmnet_forward.1} parent=1 // pred_check_branch
      %61 = sbr.rel (0) target = $region21
    $region20: #{lstmnet_forward.1} parent=1 // pred_region
      _
    $region21: #{lstmnet_forward.1} parent=1 // pred_fallthru
      _
    // Predicated region
    $region22: #{lstmnet_forward.1} parent=1 // pred_check
      _
    $region23: #{lstmnet_forward.1} parent=1 // pred_check_branch
      %63 = sbr.rel (0) target = $region25
    $region24: #{lstmnet_forward.1} parent=1 // pred_region
      _
    $region25: #{lstmnet_forward.1} parent=1 // pred_fallthru
      _
    // Predicated region
    $region26: #{lstmnet_forward.1} parent=1 // pred_check
      _
    $region27: #{lstmnet_forward.1} parent=1 // pred_check_branch
      %65 = sbr.rel (0) target = $region29
    $region28: #{lstmnet_forward.1} parent=1 // pred_region
      _
    $region29: #{lstmnet_forward.1} parent=1 // pred_fallthru
      _
    // Predicated region
    $region30: #{lstmnet_forward.1} parent=1 // pred_check
      _
    $region31: #{lstmnet_forward.1} parent=1 // pred_check_branch
      %67 = sbr.rel (0) target = $region33
    $region32: #{lstmnet_forward.1} parent=1 // pred_region
      _
    $region33: #{lstmnet_forward.1} parent=1 // pred_fallthru
      _
    // Predicated region
    $region34: #{lstmnet_forward.1} parent=1 // pred_check
      _
    $region35: #{lstmnet_forward.1} parent=1 // pred_check_branch
      %69 = sbr.rel (0) target = $region37
    $region36: #{lstmnet_forward.1} parent=1 // pred_region
      _
    $region37: #{lstmnet_forward.1} parent=1 // pred_fallthru
      _
    // Predicated region
    $region38: #{lstmnet_forward.1} parent=1 // pred_check
      _
    $region39: #{lstmnet_forward.1} parent=1 // pred_check_branch
      %71 = sbr.rel (0) target = $region41
    $region40: #{lstmnet_forward.1} parent=1 // pred_region
      %72 = dma.done [#allocation11], 16384
    $region41: #{lstmnet_forward.1} parent=1 // pred_fallthru
      _
    // Predicated region
    $region42: #{lstmnet_forward.1} parent=1 // pred_check
      _
    $region43: #{lstmnet_forward.1} parent=1 // pred_check_branch
      %74 = sbr.rel (0) target = $region45
    $region44: #{lstmnet_forward.1} parent=1 // pred_region
      %75 = dma.done [#allocation14], 16384
    $region45: #{lstmnet_forward.1} parent=1 // pred_fallthru
      _
    // Predicated region
    $region46: #{lstmnet_forward.1} parent=1 // pred_check
      _
    $region47: #{lstmnet_forward.1} parent=1 // pred_check_branch
      %77 = sbr.rel (0) target = $region49
    $region48: #{lstmnet_forward.1} parent=1 // pred_region
      %78 = dma.done [#allocation14], 16384
    $region49: #{lstmnet_forward.1} parent=1 // pred_fallthru
      _
    // Predicated region
    $region50: #{lstmnet_forward.1} parent=1 // pred_check
      _
    $region51: #{lstmnet_forward.1} parent=1 // pred_check_branch
      %81 = sbr.rel target = $region53
    $region52: #{lstmnet_forward.1} parent=1 // pred_region
      %82 = sst [smem:[#allocation19]] [#allocation18]
      %83 = sst [smem:[#allocation20]] [#allocation17]
    $region53: #{lstmnet_forward.1} parent=1 // pred_fallthru
      _
    %85 = shalt.err (0)
    %s87 = sshll.u32 [#allocation5], 4
    %s88 = int_to_ptr.vmem [resolvable:$true] %s87
    %90 = dma.hbm_to_vmem [thread:$0]  %s5, 32768, %s88, [#allocation8]
    %s91 = scalar_lea.sflag [#allocation8], 1
    // Predicated region
    $region54: #{lstmnet_forward.1} parent=1 // pred_check
      _
    $region55: #{lstmnet_forward.1} parent=1 // pred_check_branch
      %93 = sbr.rel target = $region57
    $region56: #{lstmnet_forward.1} parent=1 // pred_region
      %94 = sst [smem:[#allocation19]] [#allocation22]
      %95 = sst [smem:[#allocation20]] [#allocation21]
    $region57: #{lstmnet_forward.1} parent=1 // pred_fallthru
      _
    %97 = shalt.err (0)
    %s99 = sshll.u32 [#allocation6], 4
    %s100 = int_to_ptr.vmem [resolvable:$true] %s99
    %102 = dma.hbm_to_vmem [thread:$0]  %s6, 4096, %s100, %s91
    %s103 = scalar_lea.sflag [#allocation8], 2
    // Predicated region
    $region58: #{lstmnet_forward.1} parent=1 // pred_check
      _
    $region59: #{lstmnet_forward.1} parent=1 // pred_check_branch
      %105 = sbr.rel target = $region61
    $region60: #{lstmnet_forward.1} parent=1 // pred_region
      %106 = sst [smem:[#allocation19]] [#allocation24]
      %107 = sst [smem:[#allocation20]] [#allocation23]
    $region61: #{lstmnet_forward.1} parent=1 // pred_fallthru
      _
    %109 = shalt.err (0)
    %s111 = sshll.u32 [#allocation7], 4
    %s112 = int_to_ptr.vmem [resolvable:$true] %s111
    %114 = dma.hbm_to_vmem [thread:$0]  %s8, 2048, %s112, %s103
    %v115 = vld [vmem:[%s0] sm:$0xff]
    %v116 = vld [vmem:[%s0 + $0x8] sm:$0xff]
    %v117 = vpack.c.bf16 %v116, %v115
    %v118 = vld [vmem:[#allocation10] sm:$0xff]
    %v119 = vld [vmem:[#allocation10 + $0x8] sm:$0xff]
    %v120 = vld [vmem:[#allocation10 + $0x10] sm:$0xff]
    %v121 = vld [vmem:[#allocation10 + $0x18] sm:$0xff]
    %v122 = vld [vmem:[#allocation10 + $0x20] sm:$0xff]
    %v123 = vld [vmem:[#allocation10 + $0x28] sm:$0xff]
    %v124 = vld [vmem:[#allocation10 + $0x30] sm:$0xff]
    %v125 = vld [vmem:[#allocation10 + $0x38] sm:$0xff]
    %v126 = vld [vmem:[#allocation10 + $0x40] sm:$0xff]
    %v127 = vld [vmem:[#allocation10 + $0x48] sm:$0xff]
    %v128 = vld [vmem:[#allocation10 + $0x50] sm:$0xff]
    %v129 = vld [vmem:[#allocation10 + $0x58] sm:$0xff]
    %v130 = vld [vmem:[#allocation10 + $0x60] sm:$0xff]
    %v131 = vld [vmem:[#allocation10 + $0x68] sm:$0xff]
    %v132 = vld [vmem:[#allocation10 + $0x70] sm:$0xff]
    %v133 = vld [vmem:[#allocation10 + $0x78] sm:$0xff]
    %v134 = vld [vmem:[#allocation10 + $0x80] sm:$0xff]
    %v135 = vld [vmem:[#allocation10 + $0x88] sm:$0xff]
    %v136 = vld [vmem:[#allocation10 + $0x90] sm:$0xff]
    %v137 = vld [vmem:[#allocation10 + $0x98] sm:$0xff]
    %v138 = vld [vmem:[#allocation10 + $0xa0] sm:$0xff]
    %v139 = vld [vmem:[#allocation10 + $0xa8] sm:$0xff]
    %v140 = vld [vmem:[#allocation10 + $0xb0] sm:$0xff]
    %v141 = vld [vmem:[#allocation10 + $0xb8] sm:$0xff]
    %v142 = vld [vmem:[#allocation10 + $0xc0] sm:$0xff]
    %v143 = vld [vmem:[#allocation10 + $0xc8] sm:$0xff]
    %v144 = vld [vmem:[#allocation10 + $0xd0] sm:$0xff]
    %v145 = vld [vmem:[#allocation10 + $0xd8] sm:$0xff]
    %v146 = vld [vmem:[#allocation10 + $0xe0] sm:$0xff]
    %v147 = vld [vmem:[#allocation10 + $0xe8] sm:$0xff]
    %v148 = vld [vmem:[#allocation10 + $0xf0] sm:$0xff]
    %v149 = vld [vmem:[#allocation10 + $0xf8] sm:$0xff]
    %v150 = vld [vmem:[#allocation10 + $0x100] sm:$0xff]
    %v151 = vld [vmem:[#allocation10 + $0x108] sm:$0xff]
    %v152 = vld [vmem:[#allocation10 + $0x110] sm:$0xff]
    %v153 = vld [vmem:[#allocation10 + $0x118] sm:$0xff]
    %v154 = vld [vmem:[#allocation10 + $0x120] sm:$0xff]
    %v155 = vld [vmem:[#allocation10 + $0x128] sm:$0xff]
    %v156 = vld [vmem:[#allocation10 + $0x130] sm:$0xff]
    %v157 = vld [vmem:[#allocation10 + $0x138] sm:$0xff]
    %v158 = vld [vmem:[#allocation10 + $0x140] sm:$0xff]
    %v159 = vld [vmem:[#allocation10 + $0x148] sm:$0xff]
    %v160 = vld [vmem:[#allocation10 + $0x150] sm:$0xff]
    %v161 = vld [vmem:[#allocation10 + $0x158] sm:$0xff]
    %v162 = vld [vmem:[#allocation10 + $0x160] sm:$0xff]
    %v163 = vld [vmem:[#allocation10 + $0x168] sm:$0xff]
    %v164 = vld [vmem:[#allocation10 + $0x170] sm:$0xff]
    %v165 = vld [vmem:[#allocation10 + $0x178] sm:$0xff]
    %v166 = vld [vmem:[#allocation10 + $0x180] sm:$0xff]
    %v167 = vld [vmem:[#allocation10 + $0x188] sm:$0xff]
    %v168 = vld [vmem:[#allocation10 + $0x190] sm:$0xff]
    %v169 = vld [vmem:[#allocation10 + $0x198] sm:$0xff]
    %v170 = vld [vmem:[#allocation10 + $0x1a0] sm:$0xff]
    %v171 = vld [vmem:[#allocation10 + $0x1a8] sm:$0xff]
    %v172 = vld [vmem:[#allocation10 + $0x1b0] sm:$0xff]
    %v173 = vld [vmem:[#allocation10 + $0x1b8] sm:$0xff]
    %v174 = vld [vmem:[#allocation10 + $0x1c0] sm:$0xff]
    %v175 = vld [vmem:[#allocation10 + $0x1c8] sm:$0xff]
    %v176 = vld [vmem:[#allocation10 + $0x1d0] sm:$0xff]
    %v177 = vld [vmem:[#allocation10 + $0x1d8] sm:$0xff]
    %v178 = vld [vmem:[#allocation10 + $0x1e0] sm:$0xff]
    %v179 = vld [vmem:[#allocation10 + $0x1e8] sm:$0xff]
    %v180 = vld [vmem:[#allocation10 + $0x1f0] sm:$0xff]
    %v181 = vld [vmem:[#allocation10 + $0x1f8] sm:$0xff]
    %v182 = vld [vmem:[#allocation10 + $0x200] sm:$0xff]
    %v183 = vld [vmem:[#allocation10 + $0x208] sm:$0xff]
    %v184 = vld [vmem:[#allocation10 + $0x210] sm:$0xff]
    %v185 = vld [vmem:[#allocation10 + $0x218] sm:$0xff]
    %v186 = vld [vmem:[#allocation10 + $0x220] sm:$0xff]
    %v187 = vld [vmem:[#allocation10 + $0x228] sm:$0xff]
    %v188 = vld [vmem:[#allocation10 + $0x230] sm:$0xff]
    %v189 = vld [vmem:[#allocation10 + $0x238] sm:$0xff]
    %v190 = vld [vmem:[#allocation10 + $0x240] sm:$0xff]
    %v191 = vld [vmem:[#allocation10 + $0x248] sm:$0xff]
    %v192 = vld [vmem:[#allocation10 + $0x250] sm:$0xff]
    %v193 = vld [vmem:[#allocation10 + $0x258] sm:$0xff]
    %v194 = vld [vmem:[#allocation10 + $0x260] sm:$0xff]
    %v195 = vld [vmem:[#allocation10 + $0x268] sm:$0xff]
    %v196 = vld [vmem:[#allocation10 + $0x270] sm:$0xff]
    %v197 = vld [vmem:[#allocation10 + $0x278] sm:$0xff]
    %v198 = vld [vmem:[#allocation10 + $0x280] sm:$0xff]
    %v199 = vld [vmem:[#allocation10 + $0x288] sm:$0xff]
    %v200 = vld [vmem:[#allocation10 + $0x290] sm:$0xff]
    %v201 = vld [vmem:[#allocation10 + $0x298] sm:$0xff]
    %v202 = vld [vmem:[#allocation10 + $0x2a0] sm:$0xff]
    %v203 = vld [vmem:[#allocation10 + $0x2a8] sm:$0xff]
    %v204 = vld [vmem:[#allocation10 + $0x2b0] sm:$0xff]
    %v205 = vld [vmem:[#allocation10 + $0x2b8] sm:$0xff]
    %v206 = vld [vmem:[#allocation10 + $0x2c0] sm:$0xff]
    %v207 = vld [vmem:[#allocation10 + $0x2c8] sm:$0xff]
    %v208 = vld [vmem:[#allocation10 + $0x2d0] sm:$0xff]
    %v209 = vld [vmem:[#allocation10 + $0x2d8] sm:$0xff]
    %v210 = vld [vmem:[#allocation10 + $0x2e0] sm:$0xff]
    %v211 = vld [vmem:[#allocation10 + $0x2e8] sm:$0xff]
    %v212 = vld [vmem:[#allocation10 + $0x2f0] sm:$0xff]
    %v213 = vld [vmem:[#allocation10 + $0x2f8] sm:$0xff]
    %v214 = vld [vmem:[#allocation10 + $0x300] sm:$0xff]
    %v215 = vld [vmem:[#allocation10 + $0x308] sm:$0xff]
    %v216 = vld [vmem:[#allocation10 + $0x310] sm:$0xff]
    %v217 = vld [vmem:[#allocation10 + $0x318] sm:$0xff]
    %v218 = vld [vmem:[#allocation10 + $0x320] sm:$0xff]
    %v219 = vld [vmem:[#allocation10 + $0x328] sm:$0xff]
    %v220 = vld [vmem:[#allocation10 + $0x330] sm:$0xff]
    %v221 = vld [vmem:[#allocation10 + $0x338] sm:$0xff]
    %v222 = vld [vmem:[#allocation10 + $0x340] sm:$0xff]
    %v223 = vld [vmem:[#allocation10 + $0x348] sm:$0xff]
    %v224 = vld [vmem:[#allocation10 + $0x350] sm:$0xff]
    %v225 = vld [vmem:[#allocation10 + $0x358] sm:$0xff]
    %v226 = vld [vmem:[#allocation10 + $0x360] sm:$0xff]
    %v227 = vld [vmem:[#allocation10 + $0x368] sm:$0xff]
    %v228 = vld [vmem:[#allocation10 + $0x370] sm:$0xff]
    %v229 = vld [vmem:[#allocation10 + $0x378] sm:$0xff]
    %v230 = vld [vmem:[#allocation10 + $0x380] sm:$0xff]
    %v231 = vld [vmem:[#allocation10 + $0x388] sm:$0xff]
    %v232 = vld [vmem:[#allocation10 + $0x390] sm:$0xff]
    %v233 = vld [vmem:[#allocation10 + $0x398] sm:$0xff]
    %v234 = vld [vmem:[#allocation10 + $0x3a0] sm:$0xff]
    %v235 = vld [vmem:[#allocation10 + $0x3a8] sm:$0xff]
    %v236 = vld [vmem:[#allocation10 + $0x3b0] sm:$0xff]
    %v237 = vld [vmem:[#allocation10 + $0x3b8] sm:$0xff]
    %v238 = vld [vmem:[#allocation10 + $0x3c0] sm:$0xff]
    %v239 = vld [vmem:[#allocation10 + $0x3c8] sm:$0xff]
    %v240 = vld [vmem:[#allocation10 + $0x3d0] sm:$0xff]
    %v241 = vld [vmem:[#allocation10 + $0x3d8] sm:$0xff]
    %v242 = vld [vmem:[#allocation10 + $0x3e0] sm:$0xff]
    %v243 = vld [vmem:[#allocation10 + $0x3e8] sm:$0xff]
    %v244 = vld [vmem:[#allocation10 + $0x3f0] sm:$0xff]
    %v245 = vld [vmem:[#allocation10 + $0x3f8] sm:$0xff]
    %v246 = vld [vmem:[%s4] sm:$0xff]
    %v247 = vld [vmem:[%s4 + $0x8] sm:$0xff]
    %v250 = vlaneseq
    %v251 = vshrl.u32 %v250, 7
    %v252 = vsub.s32 0, %v251
    %v253 = vrot.slane %v246, %v252
    %v254 = vlaneseq
    %v255 = vshrl.u32 %v254, 7
    %v256 = vsub.s32 1, %v255
    %v257 = vrot.slane %v246, %v256
    %v258 = vlaneseq
    %v259 = vshrl.u32 %v258, 7
    %v260 = vsub.s32 2, %v259
    %v261 = vrot.slane %v246, %v260
    %v262 = vlaneseq
    %v263 = vshrl.u32 %v262, 7
    %v264 = vsub.s32 3, %v263
    %v265 = vrot.slane %v246, %v264
    %v266 = vlaneseq
    %v267 = vshrl.u32 %v266, 7
    %v268 = vsub.s32 4, %v267
    %v269 = vrot.slane %v246, %v268
    %v270 = vlaneseq
    %v271 = vshrl.u32 %v270, 7
    %v272 = vsub.s32 5, %v271
    %v273 = vrot.slane %v246, %v272
    %v274 = vlaneseq
    %v275 = vshrl.u32 %v274, 7
    %v276 = vsub.s32 6, %v275
    %v277 = vrot.slane %v246, %v276
    %v278 = vlaneseq
    %v279 = vshrl.u32 %v278, 7
    %v280 = vsub.s32 7, %v279
    %v281 = vrot.slane %v246, %v280
    %v282 = vlaneseq
    %v283 = vshrl.u32 %v282, 7
    %v284 = vsub.s32 0, %v283
    %v285 = vrot.slane %v247, %v284
    %v286 = vlaneseq
    %v287 = vshrl.u32 %v286, 7
    %v288 = vsub.s32 1, %v287
    %v289 = vrot.slane %v247, %v288
    %v290 = vlaneseq
    %v291 = vshrl.u32 %v290, 7
    %v292 = vsub.s32 2, %v291
    %v293 = vrot.slane %v247, %v292
    %v294 = vlaneseq
    %v295 = vshrl.u32 %v294, 7
    %v296 = vsub.s32 3, %v295
    %v297 = vrot.slane %v247, %v296
    %v298 = vlaneseq
    %v299 = vshrl.u32 %v298, 7
    %v300 = vsub.s32 4, %v299
    %v301 = vrot.slane %v247, %v300
    %v302 = vlaneseq
    %v303 = vshrl.u32 %v302, 7
    %v304 = vsub.s32 5, %v303
    %v305 = vrot.slane %v247, %v304
    %v306 = vlaneseq
    %v307 = vshrl.u32 %v306, 7
    %v308 = vsub.s32 6, %v307
    %v309 = vrot.slane %v247, %v308
    %v310 = vlaneseq
    %v311 = vshrl.u32 %v310, 7
    %v312 = vsub.s32 7, %v311
    %v313 = vrot.slane %v247, %v312
    %v458 = vunpack.c.l.b16 %v118
    %v459 = vunpack.c.h.b16 %v118
    %v460 = vunpack.c.l.b16 %v119
    %v461 = vunpack.c.h.b16 %v119
    %v462 = vunpack.c.l.b16 %v120
    %v463 = vunpack.c.h.b16 %v120
    %v464 = vunpack.c.l.b16 %v121
    %v465 = vunpack.c.h.b16 %v121
    %v466 = vunpack.c.l.b16 %v122
    %v467 = vunpack.c.h.b16 %v122
    %v468 = vunpack.c.l.b16 %v123
    %v469 = vunpack.c.h.b16 %v123
    %v470 = vunpack.c.l.b16 %v124
    %v471 = vunpack.c.h.b16 %v124
    %v472 = vunpack.c.l.b16 %v125
    %v473 = vunpack.c.h.b16 %v125
    %v474 = vunpack.c.l.b16 %v126
    %v475 = vunpack.c.h.b16 %v126
    %v476 = vunpack.c.l.b16 %v127
    %v477 = vunpack.c.h.b16 %v127
    %v478 = vunpack.c.l.b16 %v128
    %v479 = vunpack.c.h.b16 %v128
    %v480 = vunpack.c.l.b16 %v129
    %v481 = vunpack.c.h.b16 %v129
    %v482 = vunpack.c.l.b16 %v130
    %v483 = vunpack.c.h.b16 %v130
    %v484 = vunpack.c.l.b16 %v131
    %v485 = vunpack.c.h.b16 %v131
    %v486 = vunpack.c.l.b16 %v132
    %v487 = vunpack.c.h.b16 %v132
    %v488 = vunpack.c.l.b16 %v133
    %v489 = vunpack.c.h.b16 %v133
    %v490 = vunpack.c.l.b16 %v134
    %v491 = vunpack.c.h.b16 %v134
    %v492 = vunpack.c.l.b16 %v135
    %v493 = vunpack.c.h.b16 %v135
    %v494 = vunpack.c.l.b16 %v136
    %v495 = vunpack.c.h.b16 %v136
    %v496 = vunpack.c.l.b16 %v137
    %v497 = vunpack.c.h.b16 %v137
    %v498 = vunpack.c.l.b16 %v138
    %v499 = vunpack.c.h.b16 %v138
    %v500 = vunpack.c.l.b16 %v139
    %v501 = vunpack.c.h.b16 %v139
    %v502 = vunpack.c.l.b16 %v140
    %v503 = vunpack.c.h.b16 %v140
    %v504 = vunpack.c.l.b16 %v141
    %v505 = vunpack.c.h.b16 %v141
    %v506 = vunpack.c.l.b16 %v142
    %v507 = vunpack.c.h.b16 %v142
    %v508 = vunpack.c.l.b16 %v143
    %v509 = vunpack.c.h.b16 %v143
    %v510 = vunpack.c.l.b16 %v144
    %v511 = vunpack.c.h.b16 %v144
    %v512 = vunpack.c.l.b16 %v145
    %v513 = vunpack.c.h.b16 %v145
    %v514 = vunpack.c.l.b16 %v146
    %v515 = vunpack.c.h.b16 %v146
    %v516 = vunpack.c.l.b16 %v147
    %v517 = vunpack.c.h.b16 %v147
    %v518 = vunpack.c.l.b16 %v148
    %v519 = vunpack.c.h.b16 %v148
    %v520 = vunpack.c.l.b16 %v149
    %v521 = vunpack.c.h.b16 %v149
    %v522 = vunpack.c.l.b16 %v150
    %v523 = vunpack.c.h.b16 %v150
    %v524 = vunpack.c.l.b16 %v151
    %v525 = vunpack.c.h.b16 %v151
    %v526 = vunpack.c.l.b16 %v152
    %v527 = vunpack.c.h.b16 %v152
    %v528 = vunpack.c.l.b16 %v153
    %v529 = vunpack.c.h.b16 %v153
    %v530 = vunpack.c.l.b16 %v154
    %v531 = vunpack.c.h.b16 %v154
    %v532 = vunpack.c.l.b16 %v155
    %v533 = vunpack.c.h.b16 %v155
    %v534 = vunpack.c.l.b16 %v156
    %v535 = vunpack.c.h.b16 %v156
    %v536 = vunpack.c.l.b16 %v157
    %v537 = vunpack.c.h.b16 %v157
    %v538 = vunpack.c.l.b16 %v158
    %v539 = vunpack.c.h.b16 %v158
    %v540 = vunpack.c.l.b16 %v159
    %v541 = vunpack.c.h.b16 %v159
    %v542 = vunpack.c.l.b16 %v160
    %v543 = vunpack.c.h.b16 %v160
    %v544 = vunpack.c.l.b16 %v161
    %v545 = vunpack.c.h.b16 %v161
    %v546 = vunpack.c.l.b16 %v162
    %v547 = vunpack.c.h.b16 %v162
    %v548 = vunpack.c.l.b16 %v163
    %v549 = vunpack.c.h.b16 %v163
    %v550 = vunpack.c.l.b16 %v164
    %v551 = vunpack.c.h.b16 %v164
    %v552 = vunpack.c.l.b16 %v165
    %v553 = vunpack.c.h.b16 %v165
    %v554 = vunpack.c.l.b16 %v166
    %v555 = vunpack.c.h.b16 %v166
    %v556 = vunpack.c.l.b16 %v167
    %v557 = vunpack.c.h.b16 %v167
    %v558 = vunpack.c.l.b16 %v168
    %v559 = vunpack.c.h.b16 %v168
    %v560 = vunpack.c.l.b16 %v169
    %v561 = vunpack.c.h.b16 %v169
    %v562 = vunpack.c.l.b16 %v170
    %v563 = vunpack.c.h.b16 %v170
    %v564 = vunpack.c.l.b16 %v171
    %v565 = vunpack.c.h.b16 %v171
    %v566 = vunpack.c.l.b16 %v172
    %v567 = vunpack.c.h.b16 %v172
    %v568 = vunpack.c.l.b16 %v173
    %v569 = vunpack.c.h.b16 %v173
    %v570 = vunpack.c.l.b16 %v174
    %v571 = vunpack.c.h.b16 %v174
    %v572 = vunpack.c.l.b16 %v175
    %v573 = vunpack.c.h.b16 %v175
    %v574 = vunpack.c.l.b16 %v176
    %v575 = vunpack.c.h.b16 %v176
    %v576 = vunpack.c.l.b16 %v177
    %v577 = vunpack.c.h.b16 %v177
    %v578 = vunpack.c.l.b16 %v178
    %v579 = vunpack.c.h.b16 %v178
    %v580 = vunpack.c.l.b16 %v179
    %v581 = vunpack.c.h.b16 %v179
    %v582 = vunpack.c.l.b16 %v180
    %v583 = vunpack.c.h.b16 %v180
    %v584 = vunpack.c.l.b16 %v181
    %v585 = vunpack.c.h.b16 %v181
    %v586 = vunpack.c.l.b16 %v182
    %v587 = vunpack.c.h.b16 %v182
    %v588 = vunpack.c.l.b16 %v183
    %v589 = vunpack.c.h.b16 %v183
    %v590 = vunpack.c.l.b16 %v184
    %v591 = vunpack.c.h.b16 %v184
    %v592 = vunpack.c.l.b16 %v185
    %v593 = vunpack.c.h.b16 %v185
    %v594 = vunpack.c.l.b16 %v186
    %v595 = vunpack.c.h.b16 %v186
    %v596 = vunpack.c.l.b16 %v187
    %v597 = vunpack.c.h.b16 %v187
    %v598 = vunpack.c.l.b16 %v188
    %v599 = vunpack.c.h.b16 %v188
    %v600 = vunpack.c.l.b16 %v189
    %v601 = vunpack.c.h.b16 %v189
    %v602 = vunpack.c.l.b16 %v190
    %v603 = vunpack.c.h.b16 %v190
    %v604 = vunpack.c.l.b16 %v191
    %v605 = vunpack.c.h.b16 %v191
    %v606 = vunpack.c.l.b16 %v192
    %v607 = vunpack.c.h.b16 %v192
    %v608 = vunpack.c.l.b16 %v193
    %v609 = vunpack.c.h.b16 %v193
    %v610 = vunpack.c.l.b16 %v194
    %v611 = vunpack.c.h.b16 %v194
    %v612 = vunpack.c.l.b16 %v195
    %v613 = vunpack.c.h.b16 %v195
    %v614 = vunpack.c.l.b16 %v196
    %v615 = vunpack.c.h.b16 %v196
    %v616 = vunpack.c.l.b16 %v197
    %v617 = vunpack.c.h.b16 %v197
    %v618 = vunpack.c.l.b16 %v198
    %v619 = vunpack.c.h.b16 %v198
    %v620 = vunpack.c.l.b16 %v199
    %v621 = vunpack.c.h.b16 %v199
    %v622 = vunpack.c.l.b16 %v200
    %v623 = vunpack.c.h.b16 %v200
    %v624 = vunpack.c.l.b16 %v201
    %v625 = vunpack.c.h.b16 %v201
    %v626 = vunpack.c.l.b16 %v202
    %v627 = vunpack.c.h.b16 %v202
    %v628 = vunpack.c.l.b16 %v203
    %v629 = vunpack.c.h.b16 %v203
    %v630 = vunpack.c.l.b16 %v204
    %v631 = vunpack.c.h.b16 %v204
    %v632 = vunpack.c.l.b16 %v205
    %v633 = vunpack.c.h.b16 %v205
    %v634 = vunpack.c.l.b16 %v206
    %v635 = vunpack.c.h.b16 %v206
    %v636 = vunpack.c.l.b16 %v207
    %v637 = vunpack.c.h.b16 %v207
    %v638 = vunpack.c.l.b16 %v208
    %v639 = vunpack.c.h.b16 %v208
    %v640 = vunpack.c.l.b16 %v209
    %v641 = vunpack.c.h.b16 %v209
    %v642 = vunpack.c.l.b16 %v210
    %v643 = vunpack.c.h.b16 %v210
    %v644 = vunpack.c.l.b16 %v211
    %v645 = vunpack.c.h.b16 %v211
    %v646 = vunpack.c.l.b16 %v212
    %v647 = vunpack.c.h.b16 %v212
    %v648 = vunpack.c.l.b16 %v213
    %v649 = vunpack.c.h.b16 %v213
    %v650 = vunpack.c.l.b16 %v214
    %v651 = vunpack.c.h.b16 %v214
    %v652 = vunpack.c.l.b16 %v215
    %v653 = vunpack.c.h.b16 %v215
    %v654 = vunpack.c.l.b16 %v216
    %v655 = vunpack.c.h.b16 %v216
    %v656 = vunpack.c.l.b16 %v217
    %v657 = vunpack.c.h.b16 %v217
    %v658 = vunpack.c.l.b16 %v218
    %v659 = vunpack.c.h.b16 %v218
    %v660 = vunpack.c.l.b16 %v219
    %v661 = vunpack.c.h.b16 %v219
    %v662 = vunpack.c.l.b16 %v220
    %v663 = vunpack.c.h.b16 %v220
    %v664 = vunpack.c.l.b16 %v221
    %v665 = vunpack.c.h.b16 %v221
    %v666 = vunpack.c.l.b16 %v222
    %v667 = vunpack.c.h.b16 %v222
    %v668 = vunpack.c.l.b16 %v223
    %v669 = vunpack.c.h.b16 %v223
    %v670 = vunpack.c.l.b16 %v224
    %v671 = vunpack.c.h.b16 %v224
    %v672 = vunpack.c.l.b16 %v225
    %v673 = vunpack.c.h.b16 %v225
    %v674 = vunpack.c.l.b16 %v226
    %v675 = vunpack.c.h.b16 %v226
    %v676 = vunpack.c.l.b16 %v227
    %v677 = vunpack.c.h.b16 %v227
    %v678 = vunpack.c.l.b16 %v228
    %v679 = vunpack.c.h.b16 %v228
    %v680 = vunpack.c.l.b16 %v229
    %v681 = vunpack.c.h.b16 %v229
    %v682 = vunpack.c.l.b16 %v230
    %v683 = vunpack.c.h.b16 %v230
    %v684 = vunpack.c.l.b16 %v231
    %v685 = vunpack.c.h.b16 %v231
    %v686 = vunpack.c.l.b16 %v232
    %v687 = vunpack.c.h.b16 %v232
    %v688 = vunpack.c.l.b16 %v233
    %v689 = vunpack.c.h.b16 %v233
    %v690 = vunpack.c.l.b16 %v234
    %v691 = vunpack.c.h.b16 %v234
    %v692 = vunpack.c.l.b16 %v235
    %v693 = vunpack.c.h.b16 %v235
    %v694 = vunpack.c.l.b16 %v236
    %v695 = vunpack.c.h.b16 %v236
    %v696 = vunpack.c.l.b16 %v237
    %v697 = vunpack.c.h.b16 %v237
    %v698 = vunpack.c.l.b16 %v238
    %v699 = vunpack.c.h.b16 %v238
    %v700 = vunpack.c.l.b16 %v239
    %v701 = vunpack.c.h.b16 %v239
    %v702 = vunpack.c.l.b16 %v240
    %v703 = vunpack.c.h.b16 %v240
    %v704 = vunpack.c.l.b16 %v241
    %v705 = vunpack.c.h.b16 %v241
    %v706 = vunpack.c.l.b16 %v242
    %v707 = vunpack.c.h.b16 %v242
    %v708 = vunpack.c.l.b16 %v243
    %v709 = vunpack.c.h.b16 %v243
    %v710 = vunpack.c.l.b16 %v244
    %v711 = vunpack.c.h.b16 %v244
    %v712 = vunpack.c.l.b16 %v245
    %v713 = vunpack.c.h.b16 %v245
    %v714 = vpack.c.b16 %v474, %v458
    %v715 = vpack.c.b16 %v475, %v459
    %v716 = vpack.c.b16 %v476, %v460
    %v717 = vpack.c.b16 %v477, %v461
    %v718 = vpack.c.b16 %v478, %v462
    %v719 = vpack.c.b16 %v479, %v463
    %v720 = vpack.c.b16 %v480, %v464
    %v721 = vpack.c.b16 %v481, %v465
    %v722 = vpack.c.b16 %v482, %v466
    %v723 = vpack.c.b16 %v483, %v467
    %v724 = vpack.c.b16 %v484, %v468
    %v725 = vpack.c.b16 %v485, %v469
    %v726 = vpack.c.b16 %v486, %v470
    %v727 = vpack.c.b16 %v487, %v471
    %v728 = vpack.c.b16 %v488, %v472
    %v729 = vpack.c.b16 %v489, %v473
    %v730 = vpack.c.b16 %v506, %v490
    %v731 = vpack.c.b16 %v507, %v491
    %v732 = vpack.c.b16 %v508, %v492
    %v733 = vpack.c.b16 %v509, %v493
    %v734 = vpack.c.b16 %v510, %v494
    %v735 = vpack.c.b16 %v511, %v495
    %v736 = vpack.c.b16 %v512, %v496
    %v737 = vpack.c.b16 %v513, %v497
    %v738 = vpack.c.b16 %v514, %v498
    %v739 = vpack.c.b16 %v515, %v499
    %v740 = vpack.c.b16 %v516, %v500
    %v741 = vpack.c.b16 %v517, %v501
    %v742 = vpack.c.b16 %v518, %v502
    %v743 = vpack.c.b16 %v519, %v503
    %v744 = vpack.c.b16 %v520, %v504
    %v745 = vpack.c.b16 %v521, %v505
    %v746 = vpack.c.b16 %v538, %v522
    %v747 = vpack.c.b16 %v539, %v523
    %v748 = vpack.c.b16 %v540, %v524
    %v749 = vpack.c.b16 %v541, %v525
    %v750 = vpack.c.b16 %v542, %v526
    %v751 = vpack.c.b16 %v543, %v527
    %v752 = vpack.c.b16 %v544, %v528
    %v753 = vpack.c.b16 %v545, %v529
    %v754 = vpack.c.b16 %v546, %v530
    %v755 = vpack.c.b16 %v547, %v531
    %v756 = vpack.c.b16 %v548, %v532
    %v757 = vpack.c.b16 %v549, %v533
    %v758 = vpack.c.b16 %v550, %v534
    %v759 = vpack.c.b16 %v551, %v535
    %v760 = vpack.c.b16 %v552, %v536
    %v761 = vpack.c.b16 %v553, %v537
    %v762 = vpack.c.b16 %v570, %v554
    %v763 = vpack.c.b16 %v571, %v555
    %v764 = vpack.c.b16 %v572, %v556
    %v765 = vpack.c.b16 %v573, %v557
    %v766 = vpack.c.b16 %v574, %v558
    %v767 = vpack.c.b16 %v575, %v559
    %v768 = vpack.c.b16 %v576, %v560
    %v769 = vpack.c.b16 %v577, %v561
    %v770 = vpack.c.b16 %v578, %v562
    %v771 = vpack.c.b16 %v579, %v563
    %v772 = vpack.c.b16 %v580, %v564
    %v773 = vpack.c.b16 %v581, %v565
    %v774 = vpack.c.b16 %v582, %v566
    %v775 = vpack.c.b16 %v583, %v567
    %v776 = vpack.c.b16 %v584, %v568
    %v777 = vpack.c.b16 %v585, %v569
    %v778 = vpack.c.b16 %v602, %v586
    %v779 = vpack.c.b16 %v603, %v587
    %v780 = vpack.c.b16 %v604, %v588
    %v781 = vpack.c.b16 %v605, %v589
    %v782 = vpack.c.b16 %v606, %v590
    %v783 = vpack.c.b16 %v607, %v591
    %v784 = vpack.c.b16 %v608, %v592
    %v785 = vpack.c.b16 %v609, %v593
    %v786 = vpack.c.b16 %v610, %v594
    %v787 = vpack.c.b16 %v611, %v595
    %v788 = vpack.c.b16 %v612, %v596
    %v789 = vpack.c.b16 %v613, %v597
    %v790 = vpack.c.b16 %v614, %v598
    %v791 = vpack.c.b16 %v615, %v599
    %v792 = vpack.c.b16 %v616, %v600
    %v793 = vpack.c.b16 %v617, %v601
    %v794 = vpack.c.b16 %v634, %v618
    %v795 = vpack.c.b16 %v635, %v619
    %v796 = vpack.c.b16 %v636, %v620
    %v797 = vpack.c.b16 %v637, %v621
    %v798 = vpack.c.b16 %v638, %v622
    %v799 = vpack.c.b16 %v639, %v623
    %v800 = vpack.c.b16 %v640, %v624
    %v801 = vpack.c.b16 %v641, %v625
    %v802 = vpack.c.b16 %v642, %v626
    %v803 = vpack.c.b16 %v643, %v627
    %v804 = vpack.c.b16 %v644, %v628
    %v805 = vpack.c.b16 %v645, %v629
    %v806 = vpack.c.b16 %v646, %v630
    %v807 = vpack.c.b16 %v647, %v631
    %v808 = vpack.c.b16 %v648, %v632
    %v809 = vpack.c.b16 %v649, %v633
    %v810 = vpack.c.b16 %v666, %v650
    %v811 = vpack.c.b16 %v667, %v651
    %v812 = vpack.c.b16 %v668, %v652
    %v813 = vpack.c.b16 %v669, %v653
    %v814 = vpack.c.b16 %v670, %v654
    %v815 = vpack.c.b16 %v671, %v655
    %v816 = vpack.c.b16 %v672, %v656
    %v817 = vpack.c.b16 %v673, %v657
    %v818 = vpack.c.b16 %v674, %v658
    %v819 = vpack.c.b16 %v675, %v659
    %v820 = vpack.c.b16 %v676, %v660
    %v821 = vpack.c.b16 %v677, %v661
    %v822 = vpack.c.b16 %v678, %v662
    %v823 = vpack.c.b16 %v679, %v663
    %v824 = vpack.c.b16 %v680, %v664
    %v825 = vpack.c.b16 %v681, %v665
    %v826 = vpack.c.b16 %v698, %v682
    %v827 = vpack.c.b16 %v699, %v683
    %v828 = vpack.c.b16 %v700, %v684
    %v829 = vpack.c.b16 %v701, %v685
    %v830 = vpack.c.b16 %v702, %v686
    %v831 = vpack.c.b16 %v703, %v687
    %v832 = vpack.c.b16 %v704, %v688
    %v833 = vpack.c.b16 %v705, %v689
    %v834 = vpack.c.b16 %v706, %v690
    %v835 = vpack.c.b16 %v707, %v691
    %v836 = vpack.c.b16 %v708, %v692
    %v837 = vpack.c.b16 %v709, %v693
    %v838 = vpack.c.b16 %v710, %v694
    %v839 = vpack.c.b16 %v711, %v695
    %v840 = vpack.c.b16 %v712, %v696
    %v841 = vpack.c.b16 %v713, %v697
    %970 = vmatprep.subr.bf16.mxu0 %v827
    %971 = vmatpush1.bf16.msra.mxu0 %v826
    %972 = vmatprep.subr.bf16.mxu0 %v811
    %973 = vmatpush1.bf16.msra.mxu0 %v810
    %974 = vmatprep.subr.bf16.mxu0 %v795
    %975 = vmatpush1.bf16.msra.mxu0 %v794
    %976 = vmatprep.subr.bf16.mxu0 %v779
    %977 = vmatpush1.bf16.msra.mxu0 %v778
    %978 = vmatprep.subr.bf16.mxu0 %v763
    %979 = vmatpush1.bf16.msra.mxu0 %v762
    %980 = vmatprep.subr.bf16.mxu0 %v747
    %981 = vmatpush1.bf16.msra.mxu0 %v746
    %982 = vmatprep.subr.bf16.mxu0 %v731
    %983 = vmatpush1.bf16.msra.mxu0 %v730
    %984 = vmatprep.subr.bf16.mxu0 %v715
    %985 = vmatpush1.bf16.msra.mxu0 %v714
    %986 = vmatprep.subr.bf16.mxu0 0
    %987 = vmatpush2.bf16.msra.mxu0 0
    %988 = vmatprep.subr.bf16.mxu0 0
    %989 = vmatpush2.bf16.msra.mxu0 0
    %990 = vmatprep.subr.bf16.mxu0 0
    %991 = vmatpush2.bf16.msra.mxu0 0
    %992 = vmatprep.subr.bf16.mxu0 0
    %993 = vmatpush2.bf16.msra.mxu0 0
    %994 = vmatprep.subr.bf16.mxu0 0
    %995 = vmatpush2.bf16.msra.mxu0 0
    %996 = vmatprep.subr.bf16.mxu0 0
    %997 = vmatpush2.bf16.msra.mxu0 0
    %998 = vmatprep.subr.bf16.mxu0 0
    %999 = vmatpush2.bf16.msra.mxu0 0
    %1000 = vmatprep.subr.bf16.mxu0 0
    %1001 = vmatpush2.bf16.msra.mxu0 0
    %1002 = vmatprep.mubr.bf16.mxu0 0
    %1003 = vmatmul.mubr.bf16.gmra.mxu0 %v117
    %v1004 = vpop.f32.mrf.mxu0
    %v1005 = vadd.f32 %v253, %v1004
    %v1006 = vpop.f32.mrf.mxu0
    %v1007 = vadd.f32 %v257, %v1006
    %v1008 = vpop.f32.mrf.mxu0
    %v1009 = vadd.f32 %v253, %v1008
    %v1010 = vpop.f32.mrf.mxu0
    %v1011 = vadd.f32 %v257, %v1010
    %1012 = vdwg.mxu0
    %1013 = vmatprep.subr.bf16.mxu0 %v829
    %1014 = vmatpush1.bf16.msra.mxu0 %v828
    %1015 = vmatprep.subr.bf16.mxu0 %v813
    %1016 = vmatpush1.bf16.msra.mxu0 %v812
    %1017 = vmatprep.subr.bf16.mxu0 %v797
    %1018 = vmatpush1.bf16.msra.mxu0 %v796
    %1019 = vmatprep.subr.bf16.mxu0 %v781
    %1020 = vmatpush1.bf16.msra.mxu0 %v780
    %1021 = vmatprep.subr.bf16.mxu0 %v765
    %1022 = vmatpush1.bf16.msra.mxu0 %v764
    %1023 = vmatprep.subr.bf16.mxu0 %v749
    %1024 = vmatpush1.bf16.msra.mxu0 %v748
    %1025 = vmatprep.subr.bf16.mxu0 %v733
    %1026 = vmatpush1.bf16.msra.mxu0 %v732
    %1027 = vmatprep.subr.bf16.mxu0 %v717
    %1028 = vmatpush1.bf16.msra.mxu0 %v716
    %1029 = vmatprep.subr.bf16.mxu0 0
    %1030 = vmatpush2.bf16.msra.mxu0 0
    %1031 = vmatprep.subr.bf16.mxu0 0
    %1032 = vmatpush2.bf16.msra.mxu0 0
    %1033 = vmatprep.subr.bf16.mxu0 0
    %1034 = vmatpush2.bf16.msra.mxu0 0
    %1035 = vmatprep.subr.bf16.mxu0 0
    %1036 = vmatpush2.bf16.msra.mxu0 0
    %1037 = vmatprep.subr.bf16.mxu0 0
    %1038 = vmatpush2.bf16.msra.mxu0 0
    %1039 = vmatprep.subr.bf16.mxu0 0
    %1040 = vmatpush2.bf16.msra.mxu0 0
    %1041 = vmatprep.subr.bf16.mxu0 0
    %1042 = vmatpush2.bf16.msra.mxu0 0
    %1043 = vmatprep.subr.bf16.mxu0 0
    %1044 = vmatpush2.bf16.msra.mxu0 0
    %1045 = vmatprep.mubr.bf16.mxu0 0
    %1046 = vmatmul.mubr.bf16.gmra.mxu0 %v117
    %v1047 = vpop.f32.mrf.mxu0
    %v1048 = vadd.f32 %v261, %v1047
    %v1049 = vpop.f32.mrf.mxu0
    %v1050 = vadd.f32 %v265, %v1049
    %v1051 = vpop.f32.mrf.mxu0
    %v1052 = vadd.f32 %v261, %v1051
    %v1053 = vpop.f32.mrf.mxu0
    %v1054 = vadd.f32 %v265, %v1053
    %1055 = vdwg.mxu0
    %1056 = vmatprep.subr.bf16.mxu0 %v831
    %1057 = vmatpush1.bf16.msra.mxu0 %v830
    %1058 = vmatprep.subr.bf16.mxu0 %v815
    %1059 = vmatpush1.bf16.msra.mxu0 %v814
    %1060 = vmatprep.subr.bf16.mxu0 %v799
    %1061 = vmatpush1.bf16.msra.mxu0 %v798
    %1062 = vmatprep.subr.bf16.mxu0 %v783
    %1063 = vmatpush1.bf16.msra.mxu0 %v782
    %1064 = vmatprep.subr.bf16.mxu0 %v767
    %1065 = vmatpush1.bf16.msra.mxu0 %v766
    %1066 = vmatprep.subr.bf16.mxu0 %v751
    %1067 = vmatpush1.bf16.msra.mxu0 %v750
    %1068 = vmatprep.subr.bf16.mxu0 %v735
    %1069 = vmatpush1.bf16.msra.mxu0 %v734
    %1070 = vmatprep.subr.bf16.mxu0 %v719
    %1071 = vmatpush1.bf16.msra.mxu0 %v718
    %1072 = vmatprep.subr.bf16.mxu0 0
    %1073 = vmatpush2.bf16.msra.mxu0 0
    %1074 = vmatprep.subr.bf16.mxu0 0
    %1075 = vmatpush2.bf16.msra.mxu0 0
    %1076 = vmatprep.subr.bf16.mxu0 0
    %1077 = vmatpush2.bf16.msra.mxu0 0
    %1078 = vmatprep.subr.bf16.mxu0 0
    %1079 = vmatpush2.bf16.msra.mxu0 0
    %1080 = vmatprep.subr.bf16.mxu0 0
    %1081 = vmatpush2.bf16.msra.mxu0 0
    %1082 = vmatprep.subr.bf16.mxu0 0
    %1083 = vmatpush2.bf16.msra.mxu0 0
    %1084 = vmatprep.subr.bf16.mxu0 0
    %1085 = vmatpush2.bf16.msra.mxu0 0
    %1086 = vmatprep.subr.bf16.mxu0 0
    %1087 = vmatpush2.bf16.msra.mxu0 0
    %1088 = vmatprep.mubr.bf16.mxu0 0
    %1089 = vmatmul.mubr.bf16.gmra.mxu0 %v117
    %v1090 = vpop.f32.mrf.mxu0
    %v1091 = vadd.f32 %v269, %v1090
    %v1092 = vpop.f32.mrf.mxu0
    %v1093 = vadd.f32 %v273, %v1092
    %v1094 = vpop.f32.mrf.mxu0
    %v1095 = vadd.f32 %v269, %v1094
    %v1096 = vpop.f32.mrf.mxu0
    %v1097 = vadd.f32 %v273, %v1096
    %1098 = vdwg.mxu0
    %1099 = vmatprep.subr.bf16.mxu0 %v833
    %1100 = vmatpush1.bf16.msra.mxu0 %v832
    %1101 = vmatprep.subr.bf16.mxu0 %v817
    %1102 = vmatpush1.bf16.msra.mxu0 %v816
    %1103 = vmatprep.subr.bf16.mxu0 %v801
    %1104 = vmatpush1.bf16.msra.mxu0 %v800
    %1105 = vmatprep.subr.bf16.mxu0 %v785
    %1106 = vmatpush1.bf16.msra.mxu0 %v784
    %1107 = vmatprep.subr.bf16.mxu0 %v769
    %1108 = vmatpush1.bf16.msra.mxu0 %v768
    %1109 = vmatprep.subr.bf16.mxu0 %v753
    %1110 = vmatpush1.bf16.msra.mxu0 %v752
    %1111 = vmatprep.subr.bf16.mxu0 %v737
    %1112 = vmatpush1.bf16.msra.mxu0 %v736
    %1113 = vmatprep.subr.bf16.mxu0 %v721
    %1114 = vmatpush1.bf16.msra.mxu0 %v720
    %1115 = vmatprep.subr.bf16.mxu0 0
    %1116 = vmatpush2.bf16.msra.mxu0 0
    %1117 = vmatprep.subr.bf16.mxu0 0
    %1118 = vmatpush2.bf16.msra.mxu0 0
    %1119 = vmatprep.subr.bf16.mxu0 0
    %1120 = vmatpush2.bf16.msra.mxu0 0
    %1121 = vmatprep.subr.bf16.mxu0 0
    %1122 = vmatpush2.bf16.msra.mxu0 0
    %1123 = vmatprep.subr.bf16.mxu0 0
    %1124 = vmatpush2.bf16.msra.mxu0 0
    %1125 = vmatprep.subr.bf16.mxu0 0
    %1126 = vmatpush2.bf16.msra.mxu0 0
    %1127 = vmatprep.subr.bf16.mxu0 0
    %1128 = vmatpush2.bf16.msra.mxu0 0
    %1129 = vmatprep.subr.bf16.mxu0 0
    %1130 = vmatpush2.bf16.msra.mxu0 0
    %1131 = vmatprep.mubr.bf16.mxu0 0
    %1132 = vmatmul.mubr.bf16.gmra.mxu0 %v117
    %v1133 = vpop.f32.mrf.mxu0
    %v1134 = vadd.f32 %v277, %v1133
    %v1135 = vpop.f32.mrf.mxu0
    %v1136 = vadd.f32 %v281, %v1135
    %v1137 = vpop.f32.mrf.mxu0
    %v1138 = vadd.f32 %v277, %v1137
    %v1139 = vpop.f32.mrf.mxu0
    %v1140 = vadd.f32 %v281, %v1139
    %1141 = vdwg.mxu0
    %1142 = vmatprep.subr.bf16.mxu0 %v835
    %1143 = vmatpush1.bf16.msra.mxu0 %v834
    %1144 = vmatprep.subr.bf16.mxu0 %v819
    %1145 = vmatpush1.bf16.msra.mxu0 %v818
    %1146 = vmatprep.subr.bf16.mxu0 %v803
    %1147 = vmatpush1.bf16.msra.mxu0 %v802
    %1148 = vmatprep.subr.bf16.mxu0 %v787
    %1149 = vmatpush1.bf16.msra.mxu0 %v786
    %1150 = vmatprep.subr.bf16.mxu0 %v771
    %1151 = vmatpush1.bf16.msra.mxu0 %v770
    %1152 = vmatprep.subr.bf16.mxu0 %v755
    %1153 = vmatpush1.bf16.msra.mxu0 %v754
    %1154 = vmatprep.subr.bf16.mxu0 %v739
    %1155 = vmatpush1.bf16.msra.mxu0 %v738
    %1156 = vmatprep.subr.bf16.mxu0 %v723
    %1157 = vmatpush1.bf16.msra.mxu0 %v722
    %1158 = vmatprep.subr.bf16.mxu0 0
    %1159 = vmatpush2.bf16.msra.mxu0 0
    %1160 = vmatprep.subr.bf16.mxu0 0
    %1161 = vmatpush2.bf16.msra.mxu0 0
    %1162 = vmatprep.subr.bf16.mxu0 0
    %1163 = vmatpush2.bf16.msra.mxu0 0
    %1164 = vmatprep.subr.bf16.mxu0 0
    %1165 = vmatpush2.bf16.msra.mxu0 0
    %1166 = vmatprep.subr.bf16.mxu0 0
    %1167 = vmatpush2.bf16.msra.mxu0 0
    %1168 = vmatprep.subr.bf16.mxu0 0
    %1169 = vmatpush2.bf16.msra.mxu0 0
    %1170 = vmatprep.subr.bf16.mxu0 0
    %1171 = vmatpush2.bf16.msra.mxu0 0
    %1172 = vmatprep.subr.bf16.mxu0 0
    %1173 = vmatpush2.bf16.msra.mxu0 0
    %1174 = vmatprep.mubr.bf16.mxu0 0
    %1175 = vmatmul.mubr.bf16.gmra.mxu0 %v117
    %v1176 = vpop.f32.mrf.mxu0
    %v1177 = vadd.f32 %v285, %v1176
    %v1178 = vpop.f32.mrf.mxu0
    %v1179 = vadd.f32 %v289, %v1178
    %v1180 = vpop.f32.mrf.mxu0
    %v1181 = vadd.f32 %v285, %v1180
    %v1182 = vpop.f32.mrf.mxu0
    %v1183 = vadd.f32 %v289, %v1182
    %1184 = vdwg.mxu0
    %1185 = vmatprep.subr.bf16.mxu0 %v837
    %1186 = vmatpush1.bf16.msra.mxu0 %v836
    %1187 = vmatprep.subr.bf16.mxu0 %v821
    %1188 = vmatpush1.bf16.msra.mxu0 %v820
    %1189 = vmatprep.subr.bf16.mxu0 %v805
    %1190 = vmatpush1.bf16.msra.mxu0 %v804
    %1191 = vmatprep.subr.bf16.mxu0 %v789
    %1192 = vmatpush1.bf16.msra.mxu0 %v788
    %1193 = vmatprep.subr.bf16.mxu0 %v773
    %1194 = vmatpush1.bf16.msra.mxu0 %v772
    %1195 = vmatprep.subr.bf16.mxu0 %v757
    %1196 = vmatpush1.bf16.msra.mxu0 %v756
    %1197 = vmatprep.subr.bf16.mxu0 %v741
    %1198 = vmatpush1.bf16.msra.mxu0 %v740
    %1199 = vmatprep.subr.bf16.mxu0 %v725
    %1200 = vmatpush1.bf16.msra.mxu0 %v724
    %1201 = vmatprep.subr.bf16.mxu0 0
    %1202 = vmatpush2.bf16.msra.mxu0 0
    %1203 = vmatprep.subr.bf16.mxu0 0
    %1204 = vmatpush2.bf16.msra.mxu0 0
    %1205 = vmatprep.subr.bf16.mxu0 0
    %1206 = vmatpush2.bf16.msra.mxu0 0
    %1207 = vmatprep.subr.bf16.mxu0 0
    %1208 = vmatpush2.bf16.msra.mxu0 0
    %1209 = vmatprep.subr.bf16.mxu0 0
    %1210 = vmatpush2.bf16.msra.mxu0 0
    %1211 = vmatprep.subr.bf16.mxu0 0
    %1212 = vmatpush2.bf16.msra.mxu0 0
    %1213 = vmatprep.subr.bf16.mxu0 0
    %1214 = vmatpush2.bf16.msra.mxu0 0
    %1215 = vmatprep.subr.bf16.mxu0 0
    %1216 = vmatpush2.bf16.msra.mxu0 0
    %1217 = vmatprep.mubr.bf16.mxu0 0
    %1218 = vmatmul.mubr.bf16.gmra.mxu0 %v117
    %v1219 = vpop.f32.mrf.mxu0
    %v1220 = vadd.f32 %v293, %v1219
    %v1221 = vpop.f32.mrf.mxu0
    %v1222 = vadd.f32 %v297, %v1221
    %v1223 = vpop.f32.mrf.mxu0
    %v1224 = vadd.f32 %v293, %v1223
    %v1225 = vpop.f32.mrf.mxu0
    %v1226 = vadd.f32 %v297, %v1225
    %1227 = vdwg.mxu0
    %1228 = vmatprep.subr.bf16.mxu0 %v839
    %1229 = vmatpush1.bf16.msra.mxu0 %v838
    %1230 = vmatprep.subr.bf16.mxu0 %v823
    %1231 = vmatpush1.bf16.msra.mxu0 %v822
    %1232 = vmatprep.subr.bf16.mxu0 %v807
    %1233 = vmatpush1.bf16.msra.mxu0 %v806
    %1234 = vmatprep.subr.bf16.mxu0 %v791
    %1235 = vmatpush1.bf16.msra.mxu0 %v790
    %1236 = vmatprep.subr.bf16.mxu0 %v775
    %1237 = vmatpush1.bf16.msra.mxu0 %v774
    %1238 = vmatprep.subr.bf16.mxu0 %v759
    %1239 = vmatpush1.bf16.msra.mxu0 %v758
    %1240 = vmatprep.subr.bf16.mxu0 %v743
    %1241 = vmatpush1.bf16.msra.mxu0 %v742
    %1242 = vmatprep.subr.bf16.mxu0 %v727
    %1243 = vmatpush1.bf16.msra.mxu0 %v726
    %1244 = vmatprep.subr.bf16.mxu0 0
    %1245 = vmatpush2.bf16.msra.mxu0 0
    %1246 = vmatprep.subr.bf16.mxu0 0
    %1247 = vmatpush2.bf16.msra.mxu0 0
    %1248 = vmatprep.subr.bf16.mxu0 0
    %1249 = vmatpush2.bf16.msra.mxu0 0
    %1250 = vmatprep.subr.bf16.mxu0 0
    %1251 = vmatpush2.bf16.msra.mxu0 0
    %1252 = vmatprep.subr.bf16.mxu0 0
    %1253 = vmatpush2.bf16.msra.mxu0 0
    %1254 = vmatprep.subr.bf16.mxu0 0
    %1255 = vmatpush2.bf16.msra.mxu0 0
    %1256 = vmatprep.subr.bf16.mxu0 0
    %1257 = vmatpush2.bf16.msra.mxu0 0
    %1258 = vmatprep.subr.bf16.mxu0 0
    %1259 = vmatpush2.bf16.msra.mxu0 0
    %1260 = vmatprep.mubr.bf16.mxu0 0
    %1261 = vmatmul.mubr.bf16.gmra.mxu0 %v117
    %v1262 = vpop.f32.mrf.mxu0
    %v1263 = vadd.f32 %v301, %v1262
    %v1264 = vpop.f32.mrf.mxu0
    %v1265 = vadd.f32 %v305, %v1264
    %v1266 = vpop.f32.mrf.mxu0
    %v1267 = vadd.f32 %v301, %v1266
    %v1268 = vpop.f32.mrf.mxu0
    %v1269 = vadd.f32 %v305, %v1268
    %1270 = vdwg.mxu0
    %1271 = vmatprep.subr.bf16.mxu0 %v841
    %1272 = vmatpush1.bf16.msra.mxu0 %v840
    %1273 = vmatprep.subr.bf16.mxu0 %v825
    %1274 = vmatpush1.bf16.msra.mxu0 %v824
    %1275 = vmatprep.subr.bf16.mxu0 %v809
    %1276 = vmatpush1.bf16.msra.mxu0 %v808
    %1277 = vmatprep.subr.bf16.mxu0 %v793
    %1278 = vmatpush1.bf16.msra.mxu0 %v792
    %1279 = vmatprep.subr.bf16.mxu0 %v777
    %1280 = vmatpush1.bf16.msra.mxu0 %v776
    %1281 = vmatprep.subr.bf16.mxu0 %v761
    %1282 = vmatpush1.bf16.msra.mxu0 %v760
    %1283 = vmatprep.subr.bf16.mxu0 %v745
    %1284 = vmatpush1.bf16.msra.mxu0 %v744
    %1285 = vmatprep.subr.bf16.mxu0 %v729
    %1286 = vmatpush1.bf16.msra.mxu0 %v728
    %1287 = vmatprep.subr.bf16.mxu0 0
    %1288 = vmatpush2.bf16.msra.mxu0 0
    %1289 = vmatprep.subr.bf16.mxu0 0
    %1290 = vmatpush2.bf16.msra.mxu0 0
    %1291 = vmatprep.subr.bf16.mxu0 0
    %1292 = vmatpush2.bf16.msra.mxu0 0
    %1293 = vmatprep.subr.bf16.mxu0 0
    %1294 = vmatpush2.bf16.msra.mxu0 0
    %1295 = vmatprep.subr.bf16.mxu0 0
    %1296 = vmatpush2.bf16.msra.mxu0 0
    %1297 = vmatprep.subr.bf16.mxu0 0
    %1298 = vmatpush2.bf16.msra.mxu0 0
    %1299 = vmatprep.subr.bf16.mxu0 0
    %1300 = vmatpush2.bf16.msra.mxu0 0
    %1301 = vmatprep.subr.bf16.mxu0 0
    %1302 = vmatpush2.bf16.msra.mxu0 0
    %1303 = vmatprep.mubr.bf16.mxu0 0
    %1304 = vmatmul.mubr.bf16.gmra.mxu0 %v117
    %v1305 = vpop.f32.mrf.mxu0
    %v1306 = vadd.f32 %v309, %v1305
    %v1307 = vpop.f32.mrf.mxu0
    %v1308 = vadd.f32 %v313, %v1307
    %v1309 = vpop.f32.mrf.mxu0
    %v1310 = vadd.f32 %v309, %v1309
    %v1311 = vpop.f32.mrf.mxu0
    %v1312 = vadd.f32 %v313, %v1311
    %1313 = vdwg.mxu0
    %1314 = vst [vmem:[#allocation2] sm:$0xff] %v1005
    %1315 = vst [vmem:[#allocation2 + $0x8] sm:$0xff] %v1007
    %1316 = vst [vmem:[#allocation2 + $0x10] sm:$0xff] %v1048
    %1317 = vst [vmem:[#allocation2 + $0x18] sm:$0xff] %v1050
    %1318 = vst [vmem:[#allocation2 + $0x20] sm:$0xff] %v1091
    %1319 = vst [vmem:[#allocation2 + $0x28] sm:$0xff] %v1093
    %1320 = vst [vmem:[#allocation2 + $0x30] sm:$0xff] %v1134
    %1321 = vst [vmem:[#allocation2 + $0x38] sm:$0xff] %v1136
    %1322 = vst [vmem:[#allocation2 + $0x40] sm:$0xff] %v1177
    %1323 = vst [vmem:[#allocation2 + $0x48] sm:$0xff] %v1179
    %1324 = vst [vmem:[#allocation2 + $0x50] sm:$0xff] %v1220
    %1325 = vst [vmem:[#allocation2 + $0x58] sm:$0xff] %v1222
    %1326 = vst [vmem:[#allocation2 + $0x60] sm:$0xff] %v1263
    %1327 = vst [vmem:[#allocation2 + $0x68] sm:$0xff] %v1265
    %1328 = vst [vmem:[#allocation2 + $0x70] sm:$0xff] %v1306
    %1329 = vst [vmem:[#allocation2 + $0x78] sm:$0xff] %v1308
    %1330 = vst [vmem:[#allocation2 + $0x80] sm:$0xff] %v1009
    %1331 = vst [vmem:[#allocation2 + $0x88] sm:$0xff] %v1011
    %1332 = vst [vmem:[#allocation2 + $0x90] sm:$0xff] %v1052
    %1333 = vst [vmem:[#allocation2 + $0x98] sm:$0xff] %v1054
    %1334 = vst [vmem:[#allocation2 + $0xa0] sm:$0xff] %v1095
    %1335 = vst [vmem:[#allocation2 + $0xa8] sm:$0xff] %v1097
    %1336 = vst [vmem:[#allocation2 + $0xb0] sm:$0xff] %v1138
    %1337 = vst [vmem:[#allocation2 + $0xb8] sm:$0xff] %v1140
    %1338 = vst [vmem:[#allocation2 + $0xc0] sm:$0xff] %v1181
    %1339 = vst [vmem:[#allocation2 + $0xc8] sm:$0xff] %v1183
    %1340 = vst [vmem:[#allocation2 + $0xd0] sm:$0xff] %v1224
    %1341 = vst [vmem:[#allocation2 + $0xd8] sm:$0xff] %v1226
    %1342 = vst [vmem:[#allocation2 + $0xe0] sm:$0xff] %v1267
    %1343 = vst [vmem:[#allocation2 + $0xe8] sm:$0xff] %v1269
    %1344 = vst [vmem:[#allocation2 + $0xf0] sm:$0xff] %v1310
    %1345 = vst [vmem:[#allocation2 + $0xf8] sm:$0xff] %v1312
    %v1346 = vld [vmem:[#allocation2] sm:$0x3]
    %v1347 = vld [vmem:[#allocation2 + $0x8] sm:$0x3]
    %v1348 = vld [vmem:[#allocation2 + $0x10] sm:$0x3]
    %v1349 = vld [vmem:[#allocation2 + $0x18] sm:$0x3]
    %v1350 = vld [vmem:[#allocation2 + $0x20] sm:$0x3]
    %v1351 = vld [vmem:[#allocation2 + $0x28] sm:$0x3]
    %v1352 = vld [vmem:[#allocation2 + $0x30] sm:$0x3]
    %v1353 = vld [vmem:[#allocation2 + $0x38] sm:$0x3]
    %v1354 = vld [vmem:[#allocation2 + $0xc0] sm:$0xc0]
    %v1355 = vld [vmem:[#allocation2 + $0xc8] sm:$0xc0]
    %v1356 = vld [vmem:[#allocation2 + $0xd0] sm:$0xc0]
    %v1357 = vld [vmem:[#allocation2 + $0xd8] sm:$0xc0]
    %v1358 = vld [vmem:[#allocation2 + $0xe0] sm:$0xc0]
    %v1359 = vld [vmem:[#allocation2 + $0xe8] sm:$0xc0]
    %v1360 = vld [vmem:[#allocation2 + $0xf0] sm:$0xc0]
    %v1361 = vld [vmem:[#allocation2 + $0xf8] sm:$0xc0]
    %v1370 = vrot.slane %v1354, 4
    %v1371 = vrot.slane %v1355, 4
    %v1372 = vrot.slane %v1356, 4
    %v1373 = vrot.slane %v1357, 4
    %v1374 = vrot.slane %v1358, 4
    %v1375 = vrot.slane %v1359, 4
    %v1376 = vrot.slane %v1360, 4
    %v1377 = vrot.slane %v1361, 4
    %vm1386 = vcmask 1041408
    %v1387 = vsel %vm1386, %v1346, %v1370
    %v1388 = vsel %vm1386, %v1347, %v1371
    %v1389 = vsel %vm1386, %v1348, %v1372
    %v1390 = vsel %vm1386, %v1349, %v1373
    %v1391 = vsel %vm1386, %v1350, %v1374
    %v1392 = vsel %vm1386, %v1351, %v1375
    %v1393 = vsel %vm1386, %v1352, %v1376
    %v1394 = vsel %vm1386, %v1353, %v1377
    %v1395 = vxor.u32 %v1387, 2147483648
    %v1396 = vxor.u32 %v1388, 2147483648
    %v1397 = vmul.f32 %v1395, 1.442695
    %v1398 = vpow.pop %v1397
    %v1399 = vmul.f32 %v1396, 1.442695
    %v1400 = vpow.pop %v1399
    %v1401 = vadd.f32 %v1398, 1.0
    %v1402 = vadd.f32 %v1400, 1.0
    %v1403 = vrcp.pop %v1401
    %v1404 = vmul.f32 1.0, %v1403
    %v1405 = vrcp.pop %v1402
    %v1406 = vmul.f32 1.0, %v1405
    %v1407 = vxor.u32 %v1389, 2147483648
    %v1408 = vxor.u32 %v1390, 2147483648
    %v1409 = vmul.f32 %v1407, 1.442695
    %v1410 = vpow.pop %v1409
    %v1411 = vmul.f32 %v1408, 1.442695
    %v1412 = vpow.pop %v1411
    %v1413 = vadd.f32 %v1410, 1.0
    %v1414 = vadd.f32 %v1412, 1.0
    %v1415 = vrcp.pop %v1413
    %v1416 = vmul.f32 1.0, %v1415
    %v1417 = vrcp.pop %v1414
    %v1418 = vmul.f32 1.0, %v1417
    %v1419 = vtanh.pop %v1391
    %v1420 = vtanh.pop %v1392
    %v1421 = vxor.u32 %v1393, 2147483648
    %v1422 = vxor.u32 %v1394, 2147483648
    %v1423 = vmul.f32 %v1421, 1.442695
    %v1424 = vpow.pop %v1423
    %v1425 = vmul.f32 %v1422, 1.442695
    %v1426 = vpow.pop %v1425
    %v1427 = vadd.f32 %v1424, 1.0
    %v1428 = vadd.f32 %v1426, 1.0
    %v1429 = vrcp.pop %v1427
    %v1430 = vmul.f32 1.0, %v1429
    %v1431 = vrcp.pop %v1428
    %v1432 = vmul.f32 1.0, %v1431
    %v1433 = vmul.f32 %v1416, 0.0
    %v1434 = vmul.f32 %v1418, 0.0
    %v1435 = vmul.f32 %v1404, %v1419
    %v1436 = vmul.f32 %v1406, %v1420
    %v1437 = vadd.f32 %v1433, %v1435
    %v1438 = vadd.f32 %v1434, %v1436
    %v1439 = vtanh.pop %v1437
    %v1440 = vtanh.pop %v1438
    %v1441 = vmul.f32 %v1430, %v1439
    %v1442 = vmul.f32 %v1432, %v1440
    %v1443 = vld [vmem:[#allocation2] sm:$0xc]
    %v1444 = vld [vmem:[#allocation2 + $0x8] sm:$0xc]
    %v1445 = vld [vmem:[#allocation2 + $0x10] sm:$0xc]
    %v1446 = vld [vmem:[#allocation2 + $0x18] sm:$0xc]
    %v1447 = vld [vmem:[#allocation2 + $0x20] sm:$0xc]
    %v1448 = vld [vmem:[#allocation2 + $0x28] sm:$0xc]
    %v1449 = vld [vmem:[#allocation2 + $0x30] sm:$0xc]
    %v1450 = vld [vmem:[#allocation2 + $0x38] sm:$0xc]
    %v1451 = vld [vmem:[#allocation2 + $0xc0] sm:$0x30]
    %v1452 = vld [vmem:[#allocation2 + $0xc8] sm:$0x30]
    %v1453 = vld [vmem:[#allocation2 + $0xd0] sm:$0x30]
    %v1454 = vld [vmem:[#allocation2 + $0xd8] sm:$0x30]
    %v1455 = vld [vmem:[#allocation2 + $0xe0] sm:$0x30]
    %v1456 = vld [vmem:[#allocation2 + $0xe8] sm:$0x30]
    %v1457 = vld [vmem:[#allocation2 + $0xf0] sm:$0x30]
    %v1458 = vld [vmem:[#allocation2 + $0xf8] sm:$0x30]
    %v1459 = vpack.c.bf16 %v1441, %v1441
    %v1460 = vpack.c.bf16 %v1442, %v1442
    %v1461 = vld [vmem:[#allocation13] sm:$0xff]
    %v1462 = vld [vmem:[#allocation13 + $0x8] sm:$0xff]
    %v1463 = vld [vmem:[#allocation13 + $0x10] sm:$0xff]
    %v1464 = vld [vmem:[#allocation13 + $0x18] sm:$0xff]
    %v1465 = vld [vmem:[#allocation13 + $0x20] sm:$0xff]
    %v1466 = vld [vmem:[#allocation13 + $0x28] sm:$0xff]
    %v1467 = vld [vmem:[#allocation13 + $0x30] sm:$0xff]
    %v1468 = vld [vmem:[#allocation13 + $0x38] sm:$0xff]
    %v1469 = vld [vmem:[#allocation13 + $0x40] sm:$0xff]
    %v1470 = vld [vmem:[#allocation13 + $0x48] sm:$0xff]
    %v1471 = vld [vmem:[#allocation13 + $0x50] sm:$0xff]
    %v1472 = vld [vmem:[#allocation13 + $0x58] sm:$0xff]
    %v1473 = vld [vmem:[#allocation13 + $0x60] sm:$0xff]
    %v1474 = vld [vmem:[#allocation13 + $0x68] sm:$0xff]
    %v1475 = vld [vmem:[#allocation13 + $0x70] sm:$0xff]
    %v1476 = vld [vmem:[#allocation13 + $0x78] sm:$0xff]
    %v1477 = vld [vmem:[#allocation13 + $0x80] sm:$0xff]
    %v1478 = vld [vmem:[#allocation13 + $0x88] sm:$0xff]
    %v1479 = vld [vmem:[#allocation13 + $0x90] sm:$0xff]
    %v1480 = vld [vmem:[#allocation13 + $0x98] sm:$0xff]
    %v1481 = vld [vmem:[#allocation13 + $0xa0] sm:$0xff]
    %v1482 = vld [vmem:[#allocation13 + $0xa8] sm:$0xff]
    %v1483 = vld [vmem:[#allocation13 + $0xb0] sm:$0xff]
    %v1484 = vld [vmem:[#allocation13 + $0xb8] sm:$0xff]
    %v1485 = vld [vmem:[#allocation13 + $0xc0] sm:$0xff]
    %v1486 = vld [vmem:[#allocation13 + $0xc8] sm:$0xff]
    %v1487 = vld [vmem:[#allocation13 + $0xd0] sm:$0xff]
    %v1488 = vld [vmem:[#allocation13 + $0xd8] sm:$0xff]
    %v1489 = vld [vmem:[#allocation13 + $0xe0] sm:$0xff]
    %v1490 = vld [vmem:[#allocation13 + $0xe8] sm:$0xff]
    %v1491 = vld [vmem:[#allocation13 + $0xf0] sm:$0xff]
    %v1492 = vld [vmem:[#allocation13 + $0xf8] sm:$0xff]
    %v1493 = vld [vmem:[#allocation13 + $0x100] sm:$0xff]
    %v1494 = vld [vmem:[#allocation13 + $0x108] sm:$0xff]
    %v1495 = vld [vmem:[#allocation13 + $0x110] sm:$0xff]
    %v1496 = vld [vmem:[#allocation13 + $0x118] sm:$0xff]
    %v1497 = vld [vmem:[#allocation13 + $0x120] sm:$0xff]
    %v1498 = vld [vmem:[#allocation13 + $0x128] sm:$0xff]
    %v1499 = vld [vmem:[#allocation13 + $0x130] sm:$0xff]
    %v1500 = vld [vmem:[#allocation13 + $0x138] sm:$0xff]
    %v1501 = vld [vmem:[#allocation13 + $0x140] sm:$0xff]
    %v1502 = vld [vmem:[#allocation13 + $0x148] sm:$0xff]
    %v1503 = vld [vmem:[#allocation13 + $0x150] sm:$0xff]
    %v1504 = vld [vmem:[#allocation13 + $0x158] sm:$0xff]
    %v1505 = vld [vmem:[#allocation13 + $0x160] sm:$0xff]
    %v1506 = vld [vmem:[#allocation13 + $0x168] sm:$0xff]
    %v1507 = vld [vmem:[#allocation13 + $0x170] sm:$0xff]
    %v1508 = vld [vmem:[#allocation13 + $0x178] sm:$0xff]
    %v1509 = vld [vmem:[#allocation13 + $0x180] sm:$0xff]
    %v1510 = vld [vmem:[#allocation13 + $0x188] sm:$0xff]
    %v1511 = vld [vmem:[#allocation13 + $0x190] sm:$0xff]
    %v1512 = vld [vmem:[#allocation13 + $0x198] sm:$0xff]
    %v1513 = vld [vmem:[#allocation13 + $0x1a0] sm:$0xff]
    %v1514 = vld [vmem:[#allocation13 + $0x1a8] sm:$0xff]
    %v1515 = vld [vmem:[#allocation13 + $0x1b0] sm:$0xff]
    %v1516 = vld [vmem:[#allocation13 + $0x1b8] sm:$0xff]
    %v1517 = vld [vmem:[#allocation13 + $0x1c0] sm:$0xff]
    %v1518 = vld [vmem:[#allocation13 + $0x1c8] sm:$0xff]
    %v1519 = vld [vmem:[#allocation13 + $0x1d0] sm:$0xff]
    %v1520 = vld [vmem:[#allocation13 + $0x1d8] sm:$0xff]
    %v1521 = vld [vmem:[#allocation13 + $0x1e0] sm:$0xff]
    %v1522 = vld [vmem:[#allocation13 + $0x1e8] sm:$0xff]
    %v1523 = vld [vmem:[#allocation13 + $0x1f0] sm:$0xff]
    %v1524 = vld [vmem:[#allocation13 + $0x1f8] sm:$0xff]
    %v1525 = vld [vmem:[#allocation13 + $0x200] sm:$0xff]
    %v1526 = vld [vmem:[#allocation13 + $0x208] sm:$0xff]
    %v1527 = vld [vmem:[#allocation13 + $0x210] sm:$0xff]
    %v1528 = vld [vmem:[#allocation13 + $0x218] sm:$0xff]
    %v1529 = vld [vmem:[#allocation13 + $0x220] sm:$0xff]
    %v1530 = vld [vmem:[#allocation13 + $0x228] sm:$0xff]
    %v1531 = vld [vmem:[#allocation13 + $0x230] sm:$0xff]
    %v1532 = vld [vmem:[#allocation13 + $0x238] sm:$0xff]
    %v1533 = vld [vmem:[#allocation13 + $0x240] sm:$0xff]
    %v1534 = vld [vmem:[#allocation13 + $0x248] sm:$0xff]
    %v1535 = vld [vmem:[#allocation13 + $0x250] sm:$0xff]
    %v1536 = vld [vmem:[#allocation13 + $0x258] sm:$0xff]
    %v1537 = vld [vmem:[#allocation13 + $0x260] sm:$0xff]
    %v1538 = vld [vmem:[#allocation13 + $0x268] sm:$0xff]
    %v1539 = vld [vmem:[#allocation13 + $0x270] sm:$0xff]
    %v1540 = vld [vmem:[#allocation13 + $0x278] sm:$0xff]
    %v1541 = vld [vmem:[#allocation13 + $0x280] sm:$0xff]
    %v1542 = vld [vmem:[#allocation13 + $0x288] sm:$0xff]
    %v1543 = vld [vmem:[#allocation13 + $0x290] sm:$0xff]
    %v1544 = vld [vmem:[#allocation13 + $0x298] sm:$0xff]
    %v1545 = vld [vmem:[#allocation13 + $0x2a0] sm:$0xff]
    %v1546 = vld [vmem:[#allocation13 + $0x2a8] sm:$0xff]
    %v1547 = vld [vmem:[#allocation13 + $0x2b0] sm:$0xff]
    %v1548 = vld [vmem:[#allocation13 + $0x2b8] sm:$0xff]
    %v1549 = vld [vmem:[#allocation13 + $0x2c0] sm:$0xff]
    %v1550 = vld [vmem:[#allocation13 + $0x2c8] sm:$0xff]
    %v1551 = vld [vmem:[#allocation13 + $0x2d0] sm:$0xff]
    %v1552 = vld [vmem:[#allocation13 + $0x2d8] sm:$0xff]
    %v1553 = vld [vmem:[#allocation13 + $0x2e0] sm:$0xff]
    %v1554 = vld [vmem:[#allocation13 + $0x2e8] sm:$0xff]
    %v1555 = vld [vmem:[#allocation13 + $0x2f0] sm:$0xff]
    %v1556 = vld [vmem:[#allocation13 + $0x2f8] sm:$0xff]
    %v1557 = vld [vmem:[#allocation13 + $0x300] sm:$0xff]
    %v1558 = vld [vmem:[#allocation13 + $0x308] sm:$0xff]
    %v1559 = vld [vmem:[#allocation13 + $0x310] sm:$0xff]
    %v1560 = vld [vmem:[#allocation13 + $0x318] sm:$0xff]
    %v1561 = vld [vmem:[#allocation13 + $0x320] sm:$0xff]
    %v1562 = vld [vmem:[#allocation13 + $0x328] sm:$0xff]
    %v1563 = vld [vmem:[#allocation13 + $0x330] sm:$0xff]
    %v1564 = vld [vmem:[#allocation13 + $0x338] sm:$0xff]
    %v1565 = vld [vmem:[#allocation13 + $0x340] sm:$0xff]
    %v1566 = vld [vmem:[#allocation13 + $0x348] sm:$0xff]
    %v1567 = vld [vmem:[#allocation13 + $0x350] sm:$0xff]
    %v1568 = vld [vmem:[#allocation13 + $0x358] sm:$0xff]
    %v1569 = vld [vmem:[#allocation13 + $0x360] sm:$0xff]
    %v1570 = vld [vmem:[#allocation13 + $0x368] sm:$0xff]
    %v1571 = vld [vmem:[#allocation13 + $0x370] sm:$0xff]
    %v1572 = vld [vmem:[#allocation13 + $0x378] sm:$0xff]
    %v1573 = vld [vmem:[#allocation13 + $0x380] sm:$0xff]
    %v1574 = vld [vmem:[#allocation13 + $0x388] sm:$0xff]
    %v1575 = vld [vmem:[#allocation13 + $0x390] sm:$0xff]
    %v1576 = vld [vmem:[#allocation13 + $0x398] sm:$0xff]
    %v1577 = vld [vmem:[#allocation13 + $0x3a0] sm:$0xff]
    %v1578 = vld [vmem:[#allocation13 + $0x3a8] sm:$0xff]
    %v1579 = vld [vmem:[#allocation13 + $0x3b0] sm:$0xff]
    %v1580 = vld [vmem:[#allocation13 + $0x3b8] sm:$0xff]
    %v1581 = vld [vmem:[#allocation13 + $0x3c0] sm:$0xff]
    %v1582 = vld [vmem:[#allocation13 + $0x3c8] sm:$0xff]
    %v1583 = vld [vmem:[#allocation13 + $0x3d0] sm:$0xff]
    %v1584 = vld [vmem:[#allocation13 + $0x3d8] sm:$0xff]
    %v1585 = vld [vmem:[#allocation13 + $0x3e0] sm:$0xff]
    %v1586 = vld [vmem:[#allocation13 + $0x3e8] sm:$0xff]
    %v1587 = vld [vmem:[#allocation13 + $0x3f0] sm:$0xff]
    %v1588 = vld [vmem:[#allocation13 + $0x3f8] sm:$0xff]
    %v1717 = vunpack.c.l.b16 %v1461
    %v1718 = vunpack.c.h.b16 %v1461
    %v1719 = vunpack.c.l.b16 %v1462
    %v1720 = vunpack.c.h.b16 %v1462
    %v1721 = vunpack.c.l.b16 %v1463
    %v1722 = vunpack.c.h.b16 %v1463
    %v1723 = vunpack.c.l.b16 %v1464
    %v1724 = vunpack.c.h.b16 %v1464
    %v1725 = vunpack.c.l.b16 %v1465
    %v1726 = vunpack.c.h.b16 %v1465
    %v1727 = vunpack.c.l.b16 %v1466
    %v1728 = vunpack.c.h.b16 %v1466
    %v1729 = vunpack.c.l.b16 %v1467
    %v1730 = vunpack.c.h.b16 %v1467
    %v1731 = vunpack.c.l.b16 %v1468
    %v1732 = vunpack.c.h.b16 %v1468
    %v1733 = vunpack.c.l.b16 %v1469
    %v1734 = vunpack.c.h.b16 %v1469
    %v1735 = vunpack.c.l.b16 %v1470
    %v1736 = vunpack.c.h.b16 %v1470
    %v1737 = vunpack.c.l.b16 %v1471
    %v1738 = vunpack.c.h.b16 %v1471
    %v1739 = vunpack.c.l.b16 %v1472
    %v1740 = vunpack.c.h.b16 %v1472
    %v1741 = vunpack.c.l.b16 %v1473
    %v1742 = vunpack.c.h.b16 %v1473
    %v1743 = vunpack.c.l.b16 %v1474
    %v1744 = vunpack.c.h.b16 %v1474
    %v1745 = vunpack.c.l.b16 %v1475
    %v1746 = vunpack.c.h.b16 %v1475
    %v1747 = vunpack.c.l.b16 %v1476
    %v1748 = vunpack.c.h.b16 %v1476
    %v1749 = vunpack.c.l.b16 %v1477
    %v1750 = vunpack.c.h.b16 %v1477
    %v1751 = vunpack.c.l.b16 %v1478
    %v1752 = vunpack.c.h.b16 %v1478
    %v1753 = vunpack.c.l.b16 %v1479
    %v1754 = vunpack.c.h.b16 %v1479
    %v1755 = vunpack.c.l.b16 %v1480
    %v1756 = vunpack.c.h.b16 %v1480
    %v1757 = vunpack.c.l.b16 %v1481
    %v1758 = vunpack.c.h.b16 %v1481
    %v1759 = vunpack.c.l.b16 %v1482
    %v1760 = vunpack.c.h.b16 %v1482
    %v1761 = vunpack.c.l.b16 %v1483
    %v1762 = vunpack.c.h.b16 %v1483
    %v1763 = vunpack.c.l.b16 %v1484
    %v1764 = vunpack.c.h.b16 %v1484
    %v1765 = vunpack.c.l.b16 %v1485
    %v1766 = vunpack.c.h.b16 %v1485
    %v1767 = vunpack.c.l.b16 %v1486
    %v1768 = vunpack.c.h.b16 %v1486
    %v1769 = vunpack.c.l.b16 %v1487
    %v1770 = vunpack.c.h.b16 %v1487
    %v1771 = vunpack.c.l.b16 %v1488
    %v1772 = vunpack.c.h.b16 %v1488
    %v1773 = vunpack.c.l.b16 %v1489
    %v1774 = vunpack.c.h.b16 %v1489
    %v1775 = vunpack.c.l.b16 %v1490
    %v1776 = vunpack.c.h.b16 %v1490
    %v1777 = vunpack.c.l.b16 %v1491
    %v1778 = vunpack.c.h.b16 %v1491
    %v1779 = vunpack.c.l.b16 %v1492
    %v1780 = vunpack.c.h.b16 %v1492
    %v1781 = vunpack.c.l.b16 %v1493
    %v1782 = vunpack.c.h.b16 %v1493
    %v1783 = vunpack.c.l.b16 %v1494
    %v1784 = vunpack.c.h.b16 %v1494
    %v1785 = vunpack.c.l.b16 %v1495
    %v1786 = vunpack.c.h.b16 %v1495
    %v1787 = vunpack.c.l.b16 %v1496
    %v1788 = vunpack.c.h.b16 %v1496
    %v1789 = vunpack.c.l.b16 %v1497
    %v1790 = vunpack.c.h.b16 %v1497
    %v1791 = vunpack.c.l.b16 %v1498
    %v1792 = vunpack.c.h.b16 %v1498
    %v1793 = vunpack.c.l.b16 %v1499
    %v1794 = vunpack.c.h.b16 %v1499
    %v1795 = vunpack.c.l.b16 %v1500
    %v1796 = vunpack.c.h.b16 %v1500
    %v1797 = vunpack.c.l.b16 %v1501
    %v1798 = vunpack.c.h.b16 %v1501
    %v1799 = vunpack.c.l.b16 %v1502
    %v1800 = vunpack.c.h.b16 %v1502
    %v1801 = vunpack.c.l.b16 %v1503
    %v1802 = vunpack.c.h.b16 %v1503
    %v1803 = vunpack.c.l.b16 %v1504
    %v1804 = vunpack.c.h.b16 %v1504
    %v1805 = vunpack.c.l.b16 %v1505
    %v1806 = vunpack.c.h.b16 %v1505
    %v1807 = vunpack.c.l.b16 %v1506
    %v1808 = vunpack.c.h.b16 %v1506
    %v1809 = vunpack.c.l.b16 %v1507
    %v1810 = vunpack.c.h.b16 %v1507
    %v1811 = vunpack.c.l.b16 %v1508
    %v1812 = vunpack.c.h.b16 %v1508
    %v1813 = vunpack.c.l.b16 %v1509
    %v1814 = vunpack.c.h.b16 %v1509
    %v1815 = vunpack.c.l.b16 %v1510
    %v1816 = vunpack.c.h.b16 %v1510
    %v1817 = vunpack.c.l.b16 %v1511
    %v1818 = vunpack.c.h.b16 %v1511
    %v1819 = vunpack.c.l.b16 %v1512
    %v1820 = vunpack.c.h.b16 %v1512
    %v1821 = vunpack.c.l.b16 %v1513
    %v1822 = vunpack.c.h.b16 %v1513
    %v1823 = vunpack.c.l.b16 %v1514
    %v1824 = vunpack.c.h.b16 %v1514
    %v1825 = vunpack.c.l.b16 %v1515
    %v1826 = vunpack.c.h.b16 %v1515
    %v1827 = vunpack.c.l.b16 %v1516
    %v1828 = vunpack.c.h.b16 %v1516
    %v1829 = vunpack.c.l.b16 %v1517
    %v1830 = vunpack.c.h.b16 %v1517
    %v1831 = vunpack.c.l.b16 %v1518
    %v1832 = vunpack.c.h.b16 %v1518
    %v1833 = vunpack.c.l.b16 %v1519
    %v1834 = vunpack.c.h.b16 %v1519
    %v1835 = vunpack.c.l.b16 %v1520
    %v1836 = vunpack.c.h.b16 %v1520
    %v1837 = vunpack.c.l.b16 %v1521
    %v1838 = vunpack.c.h.b16 %v1521
    %v1839 = vunpack.c.l.b16 %v1522
    %v1840 = vunpack.c.h.b16 %v1522
    %v1841 = vunpack.c.l.b16 %v1523
    %v1842 = vunpack.c.h.b16 %v1523
    %v1843 = vunpack.c.l.b16 %v1524
    %v1844 = vunpack.c.h.b16 %v1524
    %v1845 = vunpack.c.l.b16 %v1525
    %v1846 = vunpack.c.h.b16 %v1525
    %v1847 = vunpack.c.l.b16 %v1526
    %v1848 = vunpack.c.h.b16 %v1526
    %v1849 = vunpack.c.l.b16 %v1527
    %v1850 = vunpack.c.h.b16 %v1527
    %v1851 = vunpack.c.l.b16 %v1528
    %v1852 = vunpack.c.h.b16 %v1528
    %v1853 = vunpack.c.l.b16 %v1529
    %v1854 = vunpack.c.h.b16 %v1529
    %v1855 = vunpack.c.l.b16 %v1530
    %v1856 = vunpack.c.h.b16 %v1530
    %v1857 = vunpack.c.l.b16 %v1531
    %v1858 = vunpack.c.h.b16 %v1531
    %v1859 = vunpack.c.l.b16 %v1532
    %v1860 = vunpack.c.h.b16 %v1532
    %v1861 = vunpack.c.l.b16 %v1533
    %v1862 = vunpack.c.h.b16 %v1533
    %v1863 = vunpack.c.l.b16 %v1534
    %v1864 = vunpack.c.h.b16 %v1534
    %v1865 = vunpack.c.l.b16 %v1535
    %v1866 = vunpack.c.h.b16 %v1535
    %v1867 = vunpack.c.l.b16 %v1536
    %v1868 = vunpack.c.h.b16 %v1536
    %v1869 = vunpack.c.l.b16 %v1537
    %v1870 = vunpack.c.h.b16 %v1537
    %v1871 = vunpack.c.l.b16 %v1538
    %v1872 = vunpack.c.h.b16 %v1538
    %v1873 = vunpack.c.l.b16 %v1539
    %v1874 = vunpack.c.h.b16 %v1539
    %v1875 = vunpack.c.l.b16 %v1540
    %v1876 = vunpack.c.h.b16 %v1540
    %v1877 = vunpack.c.l.b16 %v1541
    %v1878 = vunpack.c.h.b16 %v1541
    %v1879 = vunpack.c.l.b16 %v1542
    %v1880 = vunpack.c.h.b16 %v1542
    %v1881 = vunpack.c.l.b16 %v1543
    %v1882 = vunpack.c.h.b16 %v1543
    %v1883 = vunpack.c.l.b16 %v1544
    %v1884 = vunpack.c.h.b16 %v1544
    %v1885 = vunpack.c.l.b16 %v1545
    %v1886 = vunpack.c.h.b16 %v1545
    %v1887 = vunpack.c.l.b16 %v1546
    %v1888 = vunpack.c.h.b16 %v1546
    %v1889 = vunpack.c.l.b16 %v1547
    %v1890 = vunpack.c.h.b16 %v1547
    %v1891 = vunpack.c.l.b16 %v1548
    %v1892 = vunpack.c.h.b16 %v1548
    %v1893 = vunpack.c.l.b16 %v1549
    %v1894 = vunpack.c.h.b16 %v1549
    %v1895 = vunpack.c.l.b16 %v1550
    %v1896 = vunpack.c.h.b16 %v1550
    %v1897 = vunpack.c.l.b16 %v1551
    %v1898 = vunpack.c.h.b16 %v1551
    %v1899 = vunpack.c.l.b16 %v1552
    %v1900 = vunpack.c.h.b16 %v1552
    %v1901 = vunpack.c.l.b16 %v1553
    %v1902 = vunpack.c.h.b16 %v1553
    %v1903 = vunpack.c.l.b16 %v1554
    %v1904 = vunpack.c.h.b16 %v1554
    %v1905 = vunpack.c.l.b16 %v1555
    %v1906 = vunpack.c.h.b16 %v1555
    %v1907 = vunpack.c.l.b16 %v1556
    %v1908 = vunpack.c.h.b16 %v1556
    %v1909 = vunpack.c.l.b16 %v1557
    %v1910 = vunpack.c.h.b16 %v1557
    %v1911 = vunpack.c.l.b16 %v1558
    %v1912 = vunpack.c.h.b16 %v1558
    %v1913 = vunpack.c.l.b16 %v1559
    %v1914 = vunpack.c.h.b16 %v1559
    %v1915 = vunpack.c.l.b16 %v1560
    %v1916 = vunpack.c.h.b16 %v1560
    %v1917 = vunpack.c.l.b16 %v1561
    %v1918 = vunpack.c.h.b16 %v1561
    %v1919 = vunpack.c.l.b16 %v1562
    %v1920 = vunpack.c.h.b16 %v1562
    %v1921 = vunpack.c.l.b16 %v1563
    %v1922 = vunpack.c.h.b16 %v1563
    %v1923 = vunpack.c.l.b16 %v1564
    %v1924 = vunpack.c.h.b16 %v1564
    %v1925 = vunpack.c.l.b16 %v1565
    %v1926 = vunpack.c.h.b16 %v1565
    %v1927 = vunpack.c.l.b16 %v1566
    %v1928 = vunpack.c.h.b16 %v1566
    %v1929 = vunpack.c.l.b16 %v1567
    %v1930 = vunpack.c.h.b16 %v1567
    %v1931 = vunpack.c.l.b16 %v1568
    %v1932 = vunpack.c.h.b16 %v1568
    %v1933 = vunpack.c.l.b16 %v1569
    %v1934 = vunpack.c.h.b16 %v1569
    %v1935 = vunpack.c.l.b16 %v1570
    %v1936 = vunpack.c.h.b16 %v1570
    %v1937 = vunpack.c.l.b16 %v1571
    %v1938 = vunpack.c.h.b16 %v1571
    %v1939 = vunpack.c.l.b16 %v1572
    %v1940 = vunpack.c.h.b16 %v1572
    %v1941 = vunpack.c.l.b16 %v1573
    %v1942 = vunpack.c.h.b16 %v1573
    %v1943 = vunpack.c.l.b16 %v1574
    %v1944 = vunpack.c.h.b16 %v1574
    %v1945 = vunpack.c.l.b16 %v1575
    %v1946 = vunpack.c.h.b16 %v1575
    %v1947 = vunpack.c.l.b16 %v1576
    %v1948 = vunpack.c.h.b16 %v1576
    %v1949 = vunpack.c.l.b16 %v1577
    %v1950 = vunpack.c.h.b16 %v1577
    %v1951 = vunpack.c.l.b16 %v1578
    %v1952 = vunpack.c.h.b16 %v1578
    %v1953 = vunpack.c.l.b16 %v1579
    %v1954 = vunpack.c.h.b16 %v1579
    %v1955 = vunpack.c.l.b16 %v1580
    %v1956 = vunpack.c.h.b16 %v1580
    %v1957 = vunpack.c.l.b16 %v1581
    %v1958 = vunpack.c.h.b16 %v1581
    %v1959 = vunpack.c.l.b16 %v1582
    %v1960 = vunpack.c.h.b16 %v1582
    %v1961 = vunpack.c.l.b16 %v1583
    %v1962 = vunpack.c.h.b16 %v1583
    %v1963 = vunpack.c.l.b16 %v1584
    %v1964 = vunpack.c.h.b16 %v1584
    %v1965 = vunpack.c.l.b16 %v1585
    %v1966 = vunpack.c.h.b16 %v1585
    %v1967 = vunpack.c.l.b16 %v1586
    %v1968 = vunpack.c.h.b16 %v1586
    %v1969 = vunpack.c.l.b16 %v1587
    %v1970 = vunpack.c.h.b16 %v1587
    %v1971 = vunpack.c.l.b16 %v1588
    %v1972 = vunpack.c.h.b16 %v1588
    %v1973 = vpack.c.b16 %v1725, %v1717
    %v1974 = vpack.c.b16 %v1726, %v1718
    %v1975 = vpack.c.b16 %v1727, %v1719
    %v1976 = vpack.c.b16 %v1728, %v1720
    %v1977 = vpack.c.b16 %v1729, %v1721
    %v1978 = vpack.c.b16 %v1730, %v1722
    %v1979 = vpack.c.b16 %v1731, %v1723
    %v1980 = vpack.c.b16 %v1732, %v1724
    %v1981 = vpack.c.b16 %v1741, %v1733
    %v1982 = vpack.c.b16 %v1742, %v1734
    %v1983 = vpack.c.b16 %v1743, %v1735
    %v1984 = vpack.c.b16 %v1744, %v1736
    %v1985 = vpack.c.b16 %v1745, %v1737
    %v1986 = vpack.c.b16 %v1746, %v1738
    %v1987 = vpack.c.b16 %v1747, %v1739
    %v1988 = vpack.c.b16 %v1748, %v1740
    %v1989 = vpack.c.b16 %v1757, %v1749
    %v1990 = vpack.c.b16 %v1758, %v1750
    %v1991 = vpack.c.b16 %v1759, %v1751
    %v1992 = vpack.c.b16 %v1760, %v1752
    %v1993 = vpack.c.b16 %v1761, %v1753
    %v1994 = vpack.c.b16 %v1762, %v1754
    %v1995 = vpack.c.b16 %v1763, %v1755
    %v1996 = vpack.c.b16 %v1764, %v1756
    %v1997 = vpack.c.b16 %v1773, %v1765
    %v1998 = vpack.c.b16 %v1774, %v1766
    %v1999 = vpack.c.b16 %v1775, %v1767
    %v2000 = vpack.c.b16 %v1776, %v1768
    %v2001 = vpack.c.b16 %v1777, %v1769
    %v2002 = vpack.c.b16 %v1778, %v1770
    %v2003 = vpack.c.b16 %v1779, %v1771
    %v2004 = vpack.c.b16 %v1780, %v1772
    %v2005 = vpack.c.b16 %v1789, %v1781
    %v2006 = vpack.c.b16 %v1790, %v1782
    %v2007 = vpack.c.b16 %v1791, %v1783
    %v2008 = vpack.c.b16 %v1792, %v1784
    %v2009 = vpack.c.b16 %v1793, %v1785
    %v2010 = vpack.c.b16 %v1794, %v1786
    %v2011 = vpack.c.b16 %v1795, %v1787
    %v2012 = vpack.c.b16 %v1796, %v1788
    %v2013 = vpack.c.b16 %v1805, %v1797
    %v2014 = vpack.c.b16 %v1806, %v1798
    %v2015 = vpack.c.b16 %v1807, %v1799
    %v2016 = vpack.c.b16 %v1808, %v1800
    %v2017 = vpack.c.b16 %v1809, %v1801
    %v2018 = vpack.c.b16 %v1810, %v1802
    %v2019 = vpack.c.b16 %v1811, %v1803
    %v2020 = vpack.c.b16 %v1812, %v1804
    %v2021 = vpack.c.b16 %v1821, %v1813
    %v2022 = vpack.c.b16 %v1822, %v1814
    %v2023 = vpack.c.b16 %v1823, %v1815
    %v2024 = vpack.c.b16 %v1824, %v1816
    %v2025 = vpack.c.b16 %v1825, %v1817
    %v2026 = vpack.c.b16 %v1826, %v1818
    %v2027 = vpack.c.b16 %v1827, %v1819
    %v2028 = vpack.c.b16 %v1828, %v1820
    %v2029 = vpack.c.b16 %v1837, %v1829
    %v2030 = vpack.c.b16 %v1838, %v1830
    %v2031 = vpack.c.b16 %v1839, %v1831
    %v2032 = vpack.c.b16 %v1840, %v1832
    %v2033 = vpack.c.b16 %v1841, %v1833
    %v2034 = vpack.c.b16 %v1842, %v1834
    %v2035 = vpack.c.b16 %v1843, %v1835
    %v2036 = vpack.c.b16 %v1844, %v1836
    %v2037 = vpack.c.b16 %v1853, %v1845
    %v2038 = vpack.c.b16 %v1854, %v1846
    %v2039 = vpack.c.b16 %v1855, %v1847
    %v2040 = vpack.c.b16 %v1856, %v1848
    %v2041 = vpack.c.b16 %v1857, %v1849
    %v2042 = vpack.c.b16 %v1858, %v1850
    %v2043 = vpack.c.b16 %v1859, %v1851
    %v2044 = vpack.c.b16 %v1860, %v1852
    %v2045 = vpack.c.b16 %v1869, %v1861
    %v2046 = vpack.c.b16 %v1870, %v1862
    %v2047 = vpack.c.b16 %v1871, %v1863
    %v2048 = vpack.c.b16 %v1872, %v1864
    %v2049 = vpack.c.b16 %v1873, %v1865
    %v2050 = vpack.c.b16 %v1874, %v1866
    %v2051 = vpack.c.b16 %v1875, %v1867
    %v2052 = vpack.c.b16 %v1876, %v1868
    %v2053 = vpack.c.b16 %v1885, %v1877
    %v2054 = vpack.c.b16 %v1886, %v1878
    %v2055 = vpack.c.b16 %v1887, %v1879
    %v2056 = vpack.c.b16 %v1888, %v1880
    %v2057 = vpack.c.b16 %v1889, %v1881
    %v2058 = vpack.c.b16 %v1890, %v1882
    %v2059 = vpack.c.b16 %v1891, %v1883
    %v2060 = vpack.c.b16 %v1892, %v1884
    %v2061 = vpack.c.b16 %v1901, %v1893
    %v2062 = vpack.c.b16 %v1902, %v1894
    %v2063 = vpack.c.b16 %v1903, %v1895
    %v2064 = vpack.c.b16 %v1904, %v1896
    %v2065 = vpack.c.b16 %v1905, %v1897
    %v2066 = vpack.c.b16 %v1906, %v1898
    %v2067 = vpack.c.b16 %v1907, %v1899
    %v2068 = vpack.c.b16 %v1908, %v1900
    %v2069 = vpack.c.b16 %v1917, %v1909
    %v2070 = vpack.c.b16 %v1918, %v1910
    %v2071 = vpack.c.b16 %v1919, %v1911
    %v2072 = vpack.c.b16 %v1920, %v1912
    %v2073 = vpack.c.b16 %v1921, %v1913
    %v2074 = vpack.c.b16 %v1922, %v1914
    %v2075 = vpack.c.b16 %v1923, %v1915
    %v2076 = vpack.c.b16 %v1924, %v1916
    %v2077 = vpack.c.b16 %v1933, %v1925
    %v2078 = vpack.c.b16 %v1934, %v1926
    %v2079 = vpack.c.b16 %v1935, %v1927
    %v2080 = vpack.c.b16 %v1936, %v1928
    %v2081 = vpack.c.b16 %v1937, %v1929
    %v2082 = vpack.c.b16 %v1938, %v1930
    %v2083 = vpack.c.b16 %v1939, %v1931
    %v2084 = vpack.c.b16 %v1940, %v1932
    %v2085 = vpack.c.b16 %v1949, %v1941
    %v2086 = vpack.c.b16 %v1950, %v1942
    %v2087 = vpack.c.b16 %v1951, %v1943
    %v2088 = vpack.c.b16 %v1952, %v1944
    %v2089 = vpack.c.b16 %v1953, %v1945
    %v2090 = vpack.c.b16 %v1954, %v1946
    %v2091 = vpack.c.b16 %v1955, %v1947
    %v2092 = vpack.c.b16 %v1956, %v1948
    %v2093 = vpack.c.b16 %v1965, %v1957
    %v2094 = vpack.c.b16 %v1966, %v1958
    %v2095 = vpack.c.b16 %v1967, %v1959
    %v2096 = vpack.c.b16 %v1968, %v1960
    %v2097 = vpack.c.b16 %v1969, %v1961
    %v2098 = vpack.c.b16 %v1970, %v1962
    %v2099 = vpack.c.b16 %v1971, %v1963
    %v2100 = vpack.c.b16 %v1972, %v1964
    %2229 = vmatprep.subr.bf16.mxu0 %v2030
    %2230 = vmatpush1.bf16.msra.mxu0 %v2029
    %2231 = vmatprep.subr.bf16.mxu0 %v2022
    %2232 = vmatpush1.bf16.msra.mxu0 %v2021
    %2233 = vmatprep.subr.bf16.mxu0 %v2014
    %2234 = vmatpush1.bf16.msra.mxu0 %v2013
    %2235 = vmatprep.subr.bf16.mxu0 %v2006
    %2236 = vmatpush1.bf16.msra.mxu0 %v2005
    %2237 = vmatprep.subr.bf16.mxu0 %v1998
    %2238 = vmatpush1.bf16.msra.mxu0 %v1997
    %2239 = vmatprep.subr.bf16.mxu0 %v1990
    %2240 = vmatpush1.bf16.msra.mxu0 %v1989
    %2241 = vmatprep.subr.bf16.mxu0 %v1982
    %2242 = vmatpush1.bf16.msra.mxu0 %v1981
    %2243 = vmatprep.subr.bf16.mxu0 %v1974
    %2244 = vmatpush1.bf16.msra.mxu0 %v1973
    %2245 = vmatprep.subr.bf16.mxu0 %v2094
    %2246 = vmatpush2.bf16.msra.mxu0 %v2093
    %2247 = vmatprep.subr.bf16.mxu0 %v2086
    %2248 = vmatpush2.bf16.msra.mxu0 %v2085
    %2249 = vmatprep.subr.bf16.mxu0 %v2078
    %2250 = vmatpush2.bf16.msra.mxu0 %v2077
    %2251 = vmatprep.subr.bf16.mxu0 %v2070
    %2252 = vmatpush2.bf16.msra.mxu0 %v2069
    %2253 = vmatprep.subr.bf16.mxu0 %v2062
    %2254 = vmatpush2.bf16.msra.mxu0 %v2061
    %2255 = vmatprep.subr.bf16.mxu0 %v2054
    %2256 = vmatpush2.bf16.msra.mxu0 %v2053
    %2257 = vmatprep.subr.bf16.mxu0 %v2046
    %2258 = vmatpush2.bf16.msra.mxu0 %v2045
    %2259 = vmatprep.subr.bf16.mxu0 %v2038
    %2260 = vmatpush2.bf16.msra.mxu0 %v2037
    %2261 = vmatprep.mubr.bf16.mxu0 %v1460
    %2262 = vmatmul.mubr.bf16.gmra.mxu0 %v1459
    %v2263 = vpop.f32.mrf.mxu0
    %v2264 = vadd.f32 0.0, %v2263
    %v2265 = vpop.f32.mrf.mxu0
    %v2266 = vadd.f32 0.0, %v2265
    %v2267 = vpop.f32.mrf.mxu0
    %v2268 = vpop.f32.mrf.mxu0
    %2269 = vdwg.mxu0
    %2270 = vmatprep.subr.bf16.mxu0 %v2032
    %2271 = vmatpush1.bf16.msra.mxu0 %v2031
    %2272 = vmatprep.subr.bf16.mxu0 %v2024
    %2273 = vmatpush1.bf16.msra.mxu0 %v2023
    %2274 = vmatprep.subr.bf16.mxu0 %v2016
    %2275 = vmatpush1.bf16.msra.mxu0 %v2015
    %2276 = vmatprep.subr.bf16.mxu0 %v2008
    %2277 = vmatpush1.bf16.msra.mxu0 %v2007
    %2278 = vmatprep.subr.bf16.mxu0 %v2000
    %2279 = vmatpush1.bf16.msra.mxu0 %v1999
    %2280 = vmatprep.subr.bf16.mxu0 %v1992
    %2281 = vmatpush1.bf16.msra.mxu0 %v1991
    %2282 = vmatprep.subr.bf16.mxu0 %v1984
    %2283 = vmatpush1.bf16.msra.mxu0 %v1983
    %2284 = vmatprep.subr.bf16.mxu0 %v1976
    %2285 = vmatpush1.bf16.msra.mxu0 %v1975
    %2286 = vmatprep.subr.bf16.mxu0 %v2096
    %2287 = vmatpush2.bf16.msra.mxu0 %v2095
    %2288 = vmatprep.subr.bf16.mxu0 %v2088
    %2289 = vmatpush2.bf16.msra.mxu0 %v2087
    %2290 = vmatprep.subr.bf16.mxu0 %v2080
    %2291 = vmatpush2.bf16.msra.mxu0 %v2079
    %2292 = vmatprep.subr.bf16.mxu0 %v2072
    %2293 = vmatpush2.bf16.msra.mxu0 %v2071
    %2294 = vmatprep.subr.bf16.mxu0 %v2064
    %2295 = vmatpush2.bf16.msra.mxu0 %v2063
    %2296 = vmatprep.subr.bf16.mxu0 %v2056
    %2297 = vmatpush2.bf16.msra.mxu0 %v2055
    %2298 = vmatprep.subr.bf16.mxu0 %v2048
    %2299 = vmatpush2.bf16.msra.mxu0 %v2047
    %2300 = vmatprep.subr.bf16.mxu0 %v2040
    %2301 = vmatpush2.bf16.msra.mxu0 %v2039
    %2302 = vmatprep.mubr.bf16.mxu0 %v1460
    %2303 = vmatmul.mubr.bf16.gmra.mxu0 %v1459
    %v2304 = vpop.f32.mrf.mxu0
    %v2305 = vadd.f32 0.0, %v2304
    %v2306 = vpop.f32.mrf.mxu0
    %v2307 = vadd.f32 0.0, %v2306
    %v2308 = vpop.f32.mrf.mxu0
    %v2309 = vpop.f32.mrf.mxu0
    %2310 = vdwg.mxu0
    %2311 = vmatprep.subr.bf16.mxu0 %v2034
    %2312 = vmatpush1.bf16.msra.mxu0 %v2033
    %2313 = vmatprep.subr.bf16.mxu0 %v2026
    %2314 = vmatpush1.bf16.msra.mxu0 %v2025
    %2315 = vmatprep.subr.bf16.mxu0 %v2018
    %2316 = vmatpush1.bf16.msra.mxu0 %v2017
    %2317 = vmatprep.subr.bf16.mxu0 %v2010
    %2318 = vmatpush1.bf16.msra.mxu0 %v2009
    %2319 = vmatprep.subr.bf16.mxu0 %v2002
    %2320 = vmatpush1.bf16.msra.mxu0 %v2001
    %2321 = vmatprep.subr.bf16.mxu0 %v1994
    %2322 = vmatpush1.bf16.msra.mxu0 %v1993
    %2323 = vmatprep.subr.bf16.mxu0 %v1986
    %2324 = vmatpush1.bf16.msra.mxu0 %v1985
    %2325 = vmatprep.subr.bf16.mxu0 %v1978
    %2326 = vmatpush1.bf16.msra.mxu0 %v1977
    %2327 = vmatprep.subr.bf16.mxu0 %v2098
    %2328 = vmatpush2.bf16.msra.mxu0 %v2097
    %2329 = vmatprep.subr.bf16.mxu0 %v2090
    %2330 = vmatpush2.bf16.msra.mxu0 %v2089
    %2331 = vmatprep.subr.bf16.mxu0 %v2082
    %2332 = vmatpush2.bf16.msra.mxu0 %v2081
    %2333 = vmatprep.subr.bf16.mxu0 %v2074
    %2334 = vmatpush2.bf16.msra.mxu0 %v2073
    %2335 = vmatprep.subr.bf16.mxu0 %v2066
    %2336 = vmatpush2.bf16.msra.mxu0 %v2065
    %2337 = vmatprep.subr.bf16.mxu0 %v2058
    %2338 = vmatpush2.bf16.msra.mxu0 %v2057
    %2339 = vmatprep.subr.bf16.mxu0 %v2050
    %2340 = vmatpush2.bf16.msra.mxu0 %v2049
    %2341 = vmatprep.subr.bf16.mxu0 %v2042
    %2342 = vmatpush2.bf16.msra.mxu0 %v2041
    %2343 = vmatprep.mubr.bf16.mxu0 %v1460
    %2344 = vmatmul.mubr.bf16.gmra.mxu0 %v1459
    %v2345 = vpop.f32.mrf.mxu0
    %v2346 = vadd.f32 0.0, %v2345
    %v2347 = vpop.f32.mrf.mxu0
    %v2348 = vadd.f32 0.0, %v2347
    %v2349 = vpop.f32.mrf.mxu0
    %v2350 = vpop.f32.mrf.mxu0
    %2351 = vdwg.mxu0
    %2352 = vmatprep.subr.bf16.mxu0 %v2036
    %2353 = vmatpush1.bf16.msra.mxu0 %v2035
    %2354 = vmatprep.subr.bf16.mxu0 %v2028
    %2355 = vmatpush1.bf16.msra.mxu0 %v2027
    %2356 = vmatprep.subr.bf16.mxu0 %v2020
    %2357 = vmatpush1.bf16.msra.mxu0 %v2019
    %2358 = vmatprep.subr.bf16.mxu0 %v2012
    %2359 = vmatpush1.bf16.msra.mxu0 %v2011
    %2360 = vmatprep.subr.bf16.mxu0 %v2004
    %2361 = vmatpush1.bf16.msra.mxu0 %v2003
    %2362 = vmatprep.subr.bf16.mxu0 %v1996
    %2363 = vmatpush1.bf16.msra.mxu0 %v1995
    %2364 = vmatprep.subr.bf16.mxu0 %v1988
    %2365 = vmatpush1.bf16.msra.mxu0 %v1987
    %2366 = vmatprep.subr.bf16.mxu0 %v1980
    %2367 = vmatpush1.bf16.msra.mxu0 %v1979
    %2368 = vmatprep.subr.bf16.mxu0 %v2100
    %2369 = vmatpush2.bf16.msra.mxu0 %v2099
    %2370 = vmatprep.subr.bf16.mxu0 %v2092
    %2371 = vmatpush2.bf16.msra.mxu0 %v2091
    %2372 = vmatprep.subr.bf16.mxu0 %v2084
    %2373 = vmatpush2.bf16.msra.mxu0 %v2083
    %2374 = vmatprep.subr.bf16.mxu0 %v2076
    %2375 = vmatpush2.bf16.msra.mxu0 %v2075
    %2376 = vmatprep.subr.bf16.mxu0 %v2068
    %2377 = vmatpush2.bf16.msra.mxu0 %v2067
    %2378 = vmatprep.subr.bf16.mxu0 %v2060
    %2379 = vmatpush2.bf16.msra.mxu0 %v2059
    %2380 = vmatprep.subr.bf16.mxu0 %v2052
    %2381 = vmatpush2.bf16.msra.mxu0 %v2051
    %2382 = vmatprep.subr.bf16.mxu0 %v2044
    %2383 = vmatpush2.bf16.msra.mxu0 %v2043
    %2384 = vmatprep.mubr.bf16.mxu0 %v1460
    %2385 = vmatmul.mubr.bf16.gmra.mxu0 %v1459
    %v2386 = vpop.f32.mrf.mxu0
    %v2387 = vadd.f32 0.0, %v2386
    %v2388 = vpop.f32.mrf.mxu0
    %v2389 = vadd.f32 0.0, %v2388
    %v2390 = vpop.f32.mrf.mxu0
    %v2391 = vpop.f32.mrf.mxu0
    %2392 = vdwg.mxu0
    %v2393 = vld [vmem:[#allocation15] sm:$0xff]
    %v2394 = vld [vmem:[#allocation15 + $0x8] sm:$0xff]
    %v2395 = vld [vmem:[#allocation15 + $0x10] sm:$0xff]
    %v2396 = vld [vmem:[#allocation15 + $0x18] sm:$0xff]
    %v2397 = vld [vmem:[#allocation15 + $0x20] sm:$0xff]
    %v2398 = vld [vmem:[#allocation15 + $0x28] sm:$0xff]
    %v2399 = vld [vmem:[#allocation15 + $0x30] sm:$0xff]
    %v2400 = vld [vmem:[#allocation15 + $0x38] sm:$0xff]
    %v2401 = vld [vmem:[#allocation15 + $0x40] sm:$0xff]
    %v2402 = vld [vmem:[#allocation15 + $0x48] sm:$0xff]
    %v2403 = vld [vmem:[#allocation15 + $0x50] sm:$0xff]
    %v2404 = vld [vmem:[#allocation15 + $0x58] sm:$0xff]
    %v2405 = vld [vmem:[#allocation15 + $0x60] sm:$0xff]
    %v2406 = vld [vmem:[#allocation15 + $0x68] sm:$0xff]
    %v2407 = vld [vmem:[#allocation15 + $0x70] sm:$0xff]
    %v2408 = vld [vmem:[#allocation15 + $0x78] sm:$0xff]
    %v2409 = vld [vmem:[#allocation15 + $0x80] sm:$0xff]
    %v2410 = vld [vmem:[#allocation15 + $0x88] sm:$0xff]
    %v2411 = vld [vmem:[#allocation15 + $0x90] sm:$0xff]
    %v2412 = vld [vmem:[#allocation15 + $0x98] sm:$0xff]
    %v2413 = vld [vmem:[#allocation15 + $0xa0] sm:$0xff]
    %v2414 = vld [vmem:[#allocation15 + $0xa8] sm:$0xff]
    %v2415 = vld [vmem:[#allocation15 + $0xb0] sm:$0xff]
    %v2416 = vld [vmem:[#allocation15 + $0xb8] sm:$0xff]
    %v2417 = vld [vmem:[#allocation15 + $0xc0] sm:$0xff]
    %v2418 = vld [vmem:[#allocation15 + $0xc8] sm:$0xff]
    %v2419 = vld [vmem:[#allocation15 + $0xd0] sm:$0xff]
    %v2420 = vld [vmem:[#allocation15 + $0xd8] sm:$0xff]
    %v2421 = vld [vmem:[#allocation15 + $0xe0] sm:$0xff]
    %v2422 = vld [vmem:[#allocation15 + $0xe8] sm:$0xff]
    %v2423 = vld [vmem:[#allocation15 + $0xf0] sm:$0xff]
    %v2424 = vld [vmem:[#allocation15 + $0xf8] sm:$0xff]
    %v2425 = vld [vmem:[#allocation15 + $0x100] sm:$0xff]
    %v2426 = vld [vmem:[#allocation15 + $0x108] sm:$0xff]
    %v2427 = vld [vmem:[#allocation15 + $0x110] sm:$0xff]
    %v2428 = vld [vmem:[#allocation15 + $0x118] sm:$0xff]
    %v2429 = vld [vmem:[#allocation15 + $0x120] sm:$0xff]
    %v2430 = vld [vmem:[#allocation15 + $0x128] sm:$0xff]
    %v2431 = vld [vmem:[#allocation15 + $0x130] sm:$0xff]
    %v2432 = vld [vmem:[#allocation15 + $0x138] sm:$0xff]
    %v2433 = vld [vmem:[#allocation15 + $0x140] sm:$0xff]
    %v2434 = vld [vmem:[#allocation15 + $0x148] sm:$0xff]
    %v2435 = vld [vmem:[#allocation15 + $0x150] sm:$0xff]
    %v2436 = vld [vmem:[#allocation15 + $0x158] sm:$0xff]
    %v2437 = vld [vmem:[#allocation15 + $0x160] sm:$0xff]
    %v2438 = vld [vmem:[#allocation15 + $0x168] sm:$0xff]
    %v2439 = vld [vmem:[#allocation15 + $0x170] sm:$0xff]
    %v2440 = vld [vmem:[#allocation15 + $0x178] sm:$0xff]
    %v2441 = vld [vmem:[#allocation15 + $0x180] sm:$0xff]
    %v2442 = vld [vmem:[#allocation15 + $0x188] sm:$0xff]
    %v2443 = vld [vmem:[#allocation15 + $0x190] sm:$0xff]
    %v2444 = vld [vmem:[#allocation15 + $0x198] sm:$0xff]
    %v2445 = vld [vmem:[#allocation15 + $0x1a0] sm:$0xff]
    %v2446 = vld [vmem:[#allocation15 + $0x1a8] sm:$0xff]
    %v2447 = vld [vmem:[#allocation15 + $0x1b0] sm:$0xff]
    %v2448 = vld [vmem:[#allocation15 + $0x1b8] sm:$0xff]
    %v2449 = vld [vmem:[#allocation15 + $0x1c0] sm:$0xff]
    %v2450 = vld [vmem:[#allocation15 + $0x1c8] sm:$0xff]
    %v2451 = vld [vmem:[#allocation15 + $0x1d0] sm:$0xff]
    %v2452 = vld [vmem:[#allocation15 + $0x1d8] sm:$0xff]
    %v2453 = vld [vmem:[#allocation15 + $0x1e0] sm:$0xff]
    %v2454 = vld [vmem:[#allocation15 + $0x1e8] sm:$0xff]
    %v2455 = vld [vmem:[#allocation15 + $0x1f0] sm:$0xff]
    %v2456 = vld [vmem:[#allocation15 + $0x1f8] sm:$0xff]
    %v2457 = vld [vmem:[#allocation15 + $0x200] sm:$0xff]
    %v2458 = vld [vmem:[#allocation15 + $0x208] sm:$0xff]
    %v2459 = vld [vmem:[#allocation15 + $0x210] sm:$0xff]
    %v2460 = vld [vmem:[#allocation15 + $0x218] sm:$0xff]
    %v2461 = vld [vmem:[#allocation15 + $0x220] sm:$0xff]
    %v2462 = vld [vmem:[#allocation15 + $0x228] sm:$0xff]
    %v2463 = vld [vmem:[#allocation15 + $0x230] sm:$0xff]
    %v2464 = vld [vmem:[#allocation15 + $0x238] sm:$0xff]
    %v2465 = vld [vmem:[#allocation15 + $0x240] sm:$0xff]
    %v2466 = vld [vmem:[#allocation15 + $0x248] sm:$0xff]
    %v2467 = vld [vmem:[#allocation15 + $0x250] sm:$0xff]
    %v2468 = vld [vmem:[#allocation15 + $0x258] sm:$0xff]
    %v2469 = vld [vmem:[#allocation15 + $0x260] sm:$0xff]
    %v2470 = vld [vmem:[#allocation15 + $0x268] sm:$0xff]
    %v2471 = vld [vmem:[#allocation15 + $0x270] sm:$0xff]
    %v2472 = vld [vmem:[#allocation15 + $0x278] sm:$0xff]
    %v2473 = vld [vmem:[#allocation15 + $0x280] sm:$0xff]
    %v2474 = vld [vmem:[#allocation15 + $0x288] sm:$0xff]
    %v2475 = vld [vmem:[#allocation15 + $0x290] sm:$0xff]
    %v2476 = vld [vmem:[#allocation15 + $0x298] sm:$0xff]
    %v2477 = vld [vmem:[#allocation15 + $0x2a0] sm:$0xff]
    %v2478 = vld [vmem:[#allocation15 + $0x2a8] sm:$0xff]
    %v2479 = vld [vmem:[#allocation15 + $0x2b0] sm:$0xff]
    %v2480 = vld [vmem:[#allocation15 + $0x2b8] sm:$0xff]
    %v2481 = vld [vmem:[#allocation15 + $0x2c0] sm:$0xff]
    %v2482 = vld [vmem:[#allocation15 + $0x2c8] sm:$0xff]
    %v2483 = vld [vmem:[#allocation15 + $0x2d0] sm:$0xff]
    %v2484 = vld [vmem:[#allocation15 + $0x2d8] sm:$0xff]
    %v2485 = vld [vmem:[#allocation15 + $0x2e0] sm:$0xff]
    %v2486 = vld [vmem:[#allocation15 + $0x2e8] sm:$0xff]
    %v2487 = vld [vmem:[#allocation15 + $0x2f0] sm:$0xff]
    %v2488 = vld [vmem:[#allocation15 + $0x2f8] sm:$0xff]
    %v2489 = vld [vmem:[#allocation15 + $0x300] sm:$0xff]
    %v2490 = vld [vmem:[#allocation15 + $0x308] sm:$0xff]
    %v2491 = vld [vmem:[#allocation15 + $0x310] sm:$0xff]
    %v2492 = vld [vmem:[#allocation15 + $0x318] sm:$0xff]
    %v2493 = vld [vmem:[#allocation15 + $0x320] sm:$0xff]
    %v2494 = vld [vmem:[#allocation15 + $0x328] sm:$0xff]
    %v2495 = vld [vmem:[#allocation15 + $0x330] sm:$0xff]
    %v2496 = vld [vmem:[#allocation15 + $0x338] sm:$0xff]
    %v2497 = vld [vmem:[#allocation15 + $0x340] sm:$0xff]
    %v2498 = vld [vmem:[#allocation15 + $0x348] sm:$0xff]
    %v2499 = vld [vmem:[#allocation15 + $0x350] sm:$0xff]
    %v2500 = vld [vmem:[#allocation15 + $0x358] sm:$0xff]
    %v2501 = vld [vmem:[#allocation15 + $0x360] sm:$0xff]
    %v2502 = vld [vmem:[#allocation15 + $0x368] sm:$0xff]
    %v2503 = vld [vmem:[#allocation15 + $0x370] sm:$0xff]
    %v2504 = vld [vmem:[#allocation15 + $0x378] sm:$0xff]
    %v2505 = vld [vmem:[#allocation15 + $0x380] sm:$0xff]
    %v2506 = vld [vmem:[#allocation15 + $0x388] sm:$0xff]
    %v2507 = vld [vmem:[#allocation15 + $0x390] sm:$0xff]
    %v2508 = vld [vmem:[#allocation15 + $0x398] sm:$0xff]
    %v2509 = vld [vmem:[#allocation15 + $0x3a0] sm:$0xff]
    %v2510 = vld [vmem:[#allocation15 + $0x3a8] sm:$0xff]
    %v2511 = vld [vmem:[#allocation15 + $0x3b0] sm:$0xff]
    %v2512 = vld [vmem:[#allocation15 + $0x3b8] sm:$0xff]
    %v2513 = vld [vmem:[#allocation15 + $0x3c0] sm:$0xff]
    %v2514 = vld [vmem:[#allocation15 + $0x3c8] sm:$0xff]
    %v2515 = vld [vmem:[#allocation15 + $0x3d0] sm:$0xff]
    %v2516 = vld [vmem:[#allocation15 + $0x3d8] sm:$0xff]
    %v2517 = vld [vmem:[#allocation15 + $0x3e0] sm:$0xff]
    %v2518 = vld [vmem:[#allocation15 + $0x3e8] sm:$0xff]
    %v2519 = vld [vmem:[#allocation15 + $0x3f0] sm:$0xff]
    %v2520 = vld [vmem:[#allocation15 + $0x3f8] sm:$0xff]
    %v2523 = vrot.slane %v1459, 1
    %v2524 = vrot.slane %v1460, 1
    %v2655 = vunpack.c.l.b16 %v2393
    %v2656 = vunpack.c.h.b16 %v2393
    %v2657 = vunpack.c.l.b16 %v2394
    %v2658 = vunpack.c.h.b16 %v2394
    %v2659 = vunpack.c.l.b16 %v2395
    %v2660 = vunpack.c.h.b16 %v2395
    %v2661 = vunpack.c.l.b16 %v2396
    %v2662 = vunpack.c.h.b16 %v2396
    %v2663 = vunpack.c.l.b16 %v2397
    %v2664 = vunpack.c.h.b16 %v2397
    %v2665 = vunpack.c.l.b16 %v2398
    %v2666 = vunpack.c.h.b16 %v2398
    %v2667 = vunpack.c.l.b16 %v2399
    %v2668 = vunpack.c.h.b16 %v2399
    %v2669 = vunpack.c.l.b16 %v2400
    %v2670 = vunpack.c.h.b16 %v2400
    %v2671 = vunpack.c.l.b16 %v2401
    %v2672 = vunpack.c.h.b16 %v2401
    %v2673 = vunpack.c.l.b16 %v2402
    %v2674 = vunpack.c.h.b16 %v2402
    %v2675 = vunpack.c.l.b16 %v2403
    %v2676 = vunpack.c.h.b16 %v2403
    %v2677 = vunpack.c.l.b16 %v2404
    %v2678 = vunpack.c.h.b16 %v2404
    %v2679 = vunpack.c.l.b16 %v2405
    %v2680 = vunpack.c.h.b16 %v2405
    %v2681 = vunpack.c.l.b16 %v2406
    %v2682 = vunpack.c.h.b16 %v2406
    %v2683 = vunpack.c.l.b16 %v2407
    %v2684 = vunpack.c.h.b16 %v2407
    %v2685 = vunpack.c.l.b16 %v2408
    %v2686 = vunpack.c.h.b16 %v2408
    %v2687 = vunpack.c.l.b16 %v2409
    %v2688 = vunpack.c.h.b16 %v2409
    %v2689 = vunpack.c.l.b16 %v2410
    %v2690 = vunpack.c.h.b16 %v2410
    %v2691 = vunpack.c.l.b16 %v2411
    %v2692 = vunpack.c.h.b16 %v2411
    %v2693 = vunpack.c.l.b16 %v2412
    %v2694 = vunpack.c.h.b16 %v2412
    %v2695 = vunpack.c.l.b16 %v2413
    %v2696 = vunpack.c.h.b16 %v2413
    %v2697 = vunpack.c.l.b16 %v2414
    %v2698 = vunpack.c.h.b16 %v2414
    %v2699 = vunpack.c.l.b16 %v2415
    %v2700 = vunpack.c.h.b16 %v2415
    %v2701 = vunpack.c.l.b16 %v2416
    %v2702 = vunpack.c.h.b16 %v2416
    %v2703 = vunpack.c.l.b16 %v2417
    %v2704 = vunpack.c.h.b16 %v2417
    %v2705 = vunpack.c.l.b16 %v2418
    %v2706 = vunpack.c.h.b16 %v2418
    %v2707 = vunpack.c.l.b16 %v2419
    %v2708 = vunpack.c.h.b16 %v2419
    %v2709 = vunpack.c.l.b16 %v2420
    %v2710 = vunpack.c.h.b16 %v2420
    %v2711 = vunpack.c.l.b16 %v2421
    %v2712 = vunpack.c.h.b16 %v2421
    %v2713 = vunpack.c.l.b16 %v2422
    %v2714 = vunpack.c.h.b16 %v2422
    %v2715 = vunpack.c.l.b16 %v2423
    %v2716 = vunpack.c.h.b16 %v2423
    %v2717 = vunpack.c.l.b16 %v2424
    %v2718 = vunpack.c.h.b16 %v2424
    %v2719 = vunpack.c.l.b16 %v2425
    %v2720 = vunpack.c.h.b16 %v2425
    %v2721 = vunpack.c.l.b16 %v2426
    %v2722 = vunpack.c.h.b16 %v2426
    %v2723 = vunpack.c.l.b16 %v2427
    %v2724 = vunpack.c.h.b16 %v2427
    %v2725 = vunpack.c.l.b16 %v2428
    %v2726 = vunpack.c.h.b16 %v2428
    %v2727 = vunpack.c.l.b16 %v2429
    %v2728 = vunpack.c.h.b16 %v2429
    %v2729 = vunpack.c.l.b16 %v2430
    %v2730 = vunpack.c.h.b16 %v2430
    %v2731 = vunpack.c.l.b16 %v2431
    %v2732 = vunpack.c.h.b16 %v2431
    %v2733 = vunpack.c.l.b16 %v2432
    %v2734 = vunpack.c.h.b16 %v2432
    %v2735 = vunpack.c.l.b16 %v2433
    %v2736 = vunpack.c.h.b16 %v2433
    %v2737 = vunpack.c.l.b16 %v2434
    %v2738 = vunpack.c.h.b16 %v2434
    %v2739 = vunpack.c.l.b16 %v2435
    %v2740 = vunpack.c.h.b16 %v2435
    %v2741 = vunpack.c.l.b16 %v2436
    %v2742 = vunpack.c.h.b16 %v2436
    %v2743 = vunpack.c.l.b16 %v2437
    %v2744 = vunpack.c.h.b16 %v2437
    %v2745 = vunpack.c.l.b16 %v2438
    %v2746 = vunpack.c.h.b16 %v2438
    %v2747 = vunpack.c.l.b16 %v2439
    %v2748 = vunpack.c.h.b16 %v2439
    %v2749 = vunpack.c.l.b16 %v2440
    %v2750 = vunpack.c.h.b16 %v2440
    %v2751 = vunpack.c.l.b16 %v2441
    %v2752 = vunpack.c.h.b16 %v2441
    %v2753 = vunpack.c.l.b16 %v2442
    %v2754 = vunpack.c.h.b16 %v2442
    %v2755 = vunpack.c.l.b16 %v2443
    %v2756 = vunpack.c.h.b16 %v2443
    %v2757 = vunpack.c.l.b16 %v2444
    %v2758 = vunpack.c.h.b16 %v2444
    %v2759 = vunpack.c.l.b16 %v2445
    %v2760 = vunpack.c.h.b16 %v2445
    %v2761 = vunpack.c.l.b16 %v2446
    %v2762 = vunpack.c.h.b16 %v2446
    %v2763 = vunpack.c.l.b16 %v2447
    %v2764 = vunpack.c.h.b16 %v2447
    %v2765 = vunpack.c.l.b16 %v2448
    %v2766 = vunpack.c.h.b16 %v2448
    %v2767 = vunpack.c.l.b16 %v2449
    %v2768 = vunpack.c.h.b16 %v2449
    %v2769 = vunpack.c.l.b16 %v2450
    %v2770 = vunpack.c.h.b16 %v2450
    %v2771 = vunpack.c.l.b16 %v2451
    %v2772 = vunpack.c.h.b16 %v2451
    %v2773 = vunpack.c.l.b16 %v2452
    %v2774 = vunpack.c.h.b16 %v2452
    %v2775 = vunpack.c.l.b16 %v2453
    %v2776 = vunpack.c.h.b16 %v2453
    %v2777 = vunpack.c.l.b16 %v2454
    %v2778 = vunpack.c.h.b16 %v2454
    %v2779 = vunpack.c.l.b16 %v2455
    %v2780 = vunpack.c.h.b16 %v2455
    %v2781 = vunpack.c.l.b16 %v2456
    %v2782 = vunpack.c.h.b16 %v2456
    %v2783 = vunpack.c.l.b16 %v2457
    %v2784 = vunpack.c.h.b16 %v2457
    %v2785 = vunpack.c.l.b16 %v2458
    %v2786 = vunpack.c.h.b16 %v2458
    %v2787 = vunpack.c.l.b16 %v2459
    %v2788 = vunpack.c.h.b16 %v2459
    %v2789 = vunpack.c.l.b16 %v2460
    %v2790 = vunpack.c.h.b16 %v2460
    %v2791 = vunpack.c.l.b16 %v2461
    %v2792 = vunpack.c.h.b16 %v2461
    %v2793 = vunpack.c.l.b16 %v2462
    %v2794 = vunpack.c.h.b16 %v2462
    %v2795 = vunpack.c.l.b16 %v2463
    %v2796 = vunpack.c.h.b16 %v2463
    %v2797 = vunpack.c.l.b16 %v2464
    %v2798 = vunpack.c.h.b16 %v2464
    %v2799 = vunpack.c.l.b16 %v2465
    %v2800 = vunpack.c.h.b16 %v2465
    %v2801 = vunpack.c.l.b16 %v2466
    %v2802 = vunpack.c.h.b16 %v2466
    %v2803 = vunpack.c.l.b16 %v2467
    %v2804 = vunpack.c.h.b16 %v2467
    %v2805 = vunpack.c.l.b16 %v2468
    %v2806 = vunpack.c.h.b16 %v2468
    %v2807 = vunpack.c.l.b16 %v2469
    %v2808 = vunpack.c.h.b16 %v2469
    %v2809 = vunpack.c.l.b16 %v2470
    %v2810 = vunpack.c.h.b16 %v2470
    %v2811 = vunpack.c.l.b16 %v2471
    %v2812 = vunpack.c.h.b16 %v2471
    %v2813 = vunpack.c.l.b16 %v2472
    %v2814 = vunpack.c.h.b16 %v2472
    %v2815 = vunpack.c.l.b16 %v2473
    %v2816 = vunpack.c.h.b16 %v2473
    %v2817 = vunpack.c.l.b16 %v2474
    %v2818 = vunpack.c.h.b16 %v2474
    %v2819 = vunpack.c.l.b16 %v2475
    %v2820 = vunpack.c.h.b16 %v2475
    %v2821 = vunpack.c.l.b16 %v2476
    %v2822 = vunpack.c.h.b16 %v2476
    %v2823 = vunpack.c.l.b16 %v2477
    %v2824 = vunpack.c.h.b16 %v2477
    %v2825 = vunpack.c.l.b16 %v2478
    %v2826 = vunpack.c.h.b16 %v2478
    %v2827 = vunpack.c.l.b16 %v2479
    %v2828 = vunpack.c.h.b16 %v2479
    %v2829 = vunpack.c.l.b16 %v2480
    %v2830 = vunpack.c.h.b16 %v2480
    %v2831 = vunpack.c.l.b16 %v2481
    %v2832 = vunpack.c.h.b16 %v2481
    %v2833 = vunpack.c.l.b16 %v2482
    %v2834 = vunpack.c.h.b16 %v2482
    %v2835 = vunpack.c.l.b16 %v2483
    %v2836 = vunpack.c.h.b16 %v2483
    %v2837 = vunpack.c.l.b16 %v2484
    %v2838 = vunpack.c.h.b16 %v2484
    %v2839 = vunpack.c.l.b16 %v2485
    %v2840 = vunpack.c.h.b16 %v2485
    %v2841 = vunpack.c.l.b16 %v2486
    %v2842 = vunpack.c.h.b16 %v2486
    %v2843 = vunpack.c.l.b16 %v2487
    %v2844 = vunpack.c.h.b16 %v2487
    %v2845 = vunpack.c.l.b16 %v2488
    %v2846 = vunpack.c.h.b16 %v2488
    %v2847 = vunpack.c.l.b16 %v2489
    %v2848 = vunpack.c.h.b16 %v2489
    %v2849 = vunpack.c.l.b16 %v2490
    %v2850 = vunpack.c.h.b16 %v2490
    %v2851 = vunpack.c.l.b16 %v2491
    %v2852 = vunpack.c.h.b16 %v2491
    %v2853 = vunpack.c.l.b16 %v2492
    %v2854 = vunpack.c.h.b16 %v2492
    %v2855 = vunpack.c.l.b16 %v2493
    %v2856 = vunpack.c.h.b16 %v2493
    %v2857 = vunpack.c.l.b16 %v2494
    %v2858 = vunpack.c.h.b16 %v2494
    %v2859 = vunpack.c.l.b16 %v2495
    %v2860 = vunpack.c.h.b16 %v2495
    %v2861 = vunpack.c.l.b16 %v2496
    %v2862 = vunpack.c.h.b16 %v2496
    %v2863 = vunpack.c.l.b16 %v2497
    %v2864 = vunpack.c.h.b16 %v2497
    %v2865 = vunpack.c.l.b16 %v2498
    %v2866 = vunpack.c.h.b16 %v2498
    %v2867 = vunpack.c.l.b16 %v2499
    %v2868 = vunpack.c.h.b16 %v2499
    %v2869 = vunpack.c.l.b16 %v2500
    %v2870 = vunpack.c.h.b16 %v2500
    %v2871 = vunpack.c.l.b16 %v2501
    %v2872 = vunpack.c.h.b16 %v2501
    %v2873 = vunpack.c.l.b16 %v2502
    %v2874 = vunpack.c.h.b16 %v2502
    %v2875 = vunpack.c.l.b16 %v2503
    %v2876 = vunpack.c.h.b16 %v2503
    %v2877 = vunpack.c.l.b16 %v2504
    %v2878 = vunpack.c.h.b16 %v2504
    %v2879 = vunpack.c.l.b16 %v2505
    %v2880 = vunpack.c.h.b16 %v2505
    %v2881 = vunpack.c.l.b16 %v2506
    %v2882 = vunpack.c.h.b16 %v2506
    %v2883 = vunpack.c.l.b16 %v2507
    %v2884 = vunpack.c.h.b16 %v2507
    %v2885 = vunpack.c.l.b16 %v2508
    %v2886 = vunpack.c.h.b16 %v2508
    %v2887 = vunpack.c.l.b16 %v2509
    %v2888 = vunpack.c.h.b16 %v2509
    %v2889 = vunpack.c.l.b16 %v2510
    %v2890 = vunpack.c.h.b16 %v2510
    %v2891 = vunpack.c.l.b16 %v2511
    %v2892 = vunpack.c.h.b16 %v2511
    %v2893 = vunpack.c.l.b16 %v2512
    %v2894 = vunpack.c.h.b16 %v2512
    %v2895 = vunpack.c.l.b16 %v2513
    %v2896 = vunpack.c.h.b16 %v2513
    %v2897 = vunpack.c.l.b16 %v2514
    %v2898 = vunpack.c.h.b16 %v2514
    %v2899 = vunpack.c.l.b16 %v2515
    %v2900 = vunpack.c.h.b16 %v2515
    %v2901 = vunpack.c.l.b16 %v2516
    %v2902 = vunpack.c.h.b16 %v2516
    %v2903 = vunpack.c.l.b16 %v2517
    %v2904 = vunpack.c.h.b16 %v2517
    %v2905 = vunpack.c.l.b16 %v2518
    %v2906 = vunpack.c.h.b16 %v2518
    %v2907 = vunpack.c.l.b16 %v2519
    %v2908 = vunpack.c.h.b16 %v2519
    %v2909 = vunpack.c.l.b16 %v2520
    %v2910 = vunpack.c.h.b16 %v2520
    %v2911 = vpack.c.b16 %v2663, %v2655
    %v2912 = vpack.c.b16 %v2664, %v2656
    %v2913 = vpack.c.b16 %v2665, %v2657
    %v2914 = vpack.c.b16 %v2666, %v2658
    %v2915 = vpack.c.b16 %v2667, %v2659
    %v2916 = vpack.c.b16 %v2668, %v2660
    %v2917 = vpack.c.b16 %v2669, %v2661
    %v2918 = vpack.c.b16 %v2670, %v2662
    %v2919 = vpack.c.b16 %v2679, %v2671
    %v2920 = vpack.c.b16 %v2680, %v2672
    %v2921 = vpack.c.b16 %v2681, %v2673
    %v2922 = vpack.c.b16 %v2682, %v2674
    %v2923 = vpack.c.b16 %v2683, %v2675
    %v2924 = vpack.c.b16 %v2684, %v2676
    %v2925 = vpack.c.b16 %v2685, %v2677
    %v2926 = vpack.c.b16 %v2686, %v2678
    %v2927 = vpack.c.b16 %v2695, %v2687
    %v2928 = vpack.c.b16 %v2696, %v2688
    %v2929 = vpack.c.b16 %v2697, %v2689
    %v2930 = vpack.c.b16 %v2698, %v2690
    %v2931 = vpack.c.b16 %v2699, %v2691
    %v2932 = vpack.c.b16 %v2700, %v2692
    %v2933 = vpack.c.b16 %v2701, %v2693
    %v2934 = vpack.c.b16 %v2702, %v2694
    %v2935 = vpack.c.b16 %v2711, %v2703
    %v2936 = vpack.c.b16 %v2712, %v2704
    %v2937 = vpack.c.b16 %v2713, %v2705
    %v2938 = vpack.c.b16 %v2714, %v2706
    %v2939 = vpack.c.b16 %v2715, %v2707
    %v2940 = vpack.c.b16 %v2716, %v2708
    %v2941 = vpack.c.b16 %v2717, %v2709
    %v2942 = vpack.c.b16 %v2718, %v2710
    %v2943 = vpack.c.b16 %v2727, %v2719
    %v2944 = vpack.c.b16 %v2728, %v2720
    %v2945 = vpack.c.b16 %v2729, %v2721
    %v2946 = vpack.c.b16 %v2730, %v2722
    %v2947 = vpack.c.b16 %v2731, %v2723
    %v2948 = vpack.c.b16 %v2732, %v2724
    %v2949 = vpack.c.b16 %v2733, %v2725
    %v2950 = vpack.c.b16 %v2734, %v2726
    %v2951 = vpack.c.b16 %v2743, %v2735
    %v2952 = vpack.c.b16 %v2744, %v2736
    %v2953 = vpack.c.b16 %v2745, %v2737
    %v2954 = vpack.c.b16 %v2746, %v2738
    %v2955 = vpack.c.b16 %v2747, %v2739
    %v2956 = vpack.c.b16 %v2748, %v2740
    %v2957 = vpack.c.b16 %v2749, %v2741
    %v2958 = vpack.c.b16 %v2750, %v2742
    %v2959 = vpack.c.b16 %v2759, %v2751
    %v2960 = vpack.c.b16 %v2760, %v2752
    %v2961 = vpack.c.b16 %v2761, %v2753
    %v2962 = vpack.c.b16 %v2762, %v2754
    %v2963 = vpack.c.b16 %v2763, %v2755
    %v2964 = vpack.c.b16 %v2764, %v2756
    %v2965 = vpack.c.b16 %v2765, %v2757
    %v2966 = vpack.c.b16 %v2766, %v2758
    %v2967 = vpack.c.b16 %v2775, %v2767
    %v2968 = vpack.c.b16 %v2776, %v2768
    %v2969 = vpack.c.b16 %v2777, %v2769
    %v2970 = vpack.c.b16 %v2778, %v2770
    %v2971 = vpack.c.b16 %v2779, %v2771
    %v2972 = vpack.c.b16 %v2780, %v2772
    %v2973 = vpack.c.b16 %v2781, %v2773
    %v2974 = vpack.c.b16 %v2782, %v2774
    %v2975 = vpack.c.b16 %v2791, %v2783
    %v2976 = vpack.c.b16 %v2792, %v2784
    %v2977 = vpack.c.b16 %v2793, %v2785
    %v2978 = vpack.c.b16 %v2794, %v2786
    %v2979 = vpack.c.b16 %v2795, %v2787
    %v2980 = vpack.c.b16 %v2796, %v2788
    %v2981 = vpack.c.b16 %v2797, %v2789
    %v2982 = vpack.c.b16 %v2798, %v2790
    %v2983 = vpack.c.b16 %v2807, %v2799
    %v2984 = vpack.c.b16 %v2808, %v2800
    %v2985 = vpack.c.b16 %v2809, %v2801
    %v2986 = vpack.c.b16 %v2810, %v2802
    %v2987 = vpack.c.b16 %v2811, %v2803
    %v2988 = vpack.c.b16 %v2812, %v2804
    %v2989 = vpack.c.b16 %v2813, %v2805
    %v2990 = vpack.c.b16 %v2814, %v2806
    %v2991 = vpack.c.b16 %v2823, %v2815
    %v2992 = vpack.c.b16 %v2824, %v2816
    %v2993 = vpack.c.b16 %v2825, %v2817
    %v2994 = vpack.c.b16 %v2826, %v2818
    %v2995 = vpack.c.b16 %v2827, %v2819
    %v2996 = vpack.c.b16 %v2828, %v2820
    %v2997 = vpack.c.b16 %v2829, %v2821
    %v2998 = vpack.c.b16 %v2830, %v2822
    %v2999 = vpack.c.b16 %v2839, %v2831
    %v3000 = vpack.c.b16 %v2840, %v2832
    %v3001 = vpack.c.b16 %v2841, %v2833
    %v3002 = vpack.c.b16 %v2842, %v2834
    %v3003 = vpack.c.b16 %v2843, %v2835
    %v3004 = vpack.c.b16 %v2844, %v2836
    %v3005 = vpack.c.b16 %v2845, %v2837
    %v3006 = vpack.c.b16 %v2846, %v2838
    %v3007 = vpack.c.b16 %v2855, %v2847
    %v3008 = vpack.c.b16 %v2856, %v2848
    %v3009 = vpack.c.b16 %v2857, %v2849
    %v3010 = vpack.c.b16 %v2858, %v2850
    %v3011 = vpack.c.b16 %v2859, %v2851
    %v3012 = vpack.c.b16 %v2860, %v2852
    %v3013 = vpack.c.b16 %v2861, %v2853
    %v3014 = vpack.c.b16 %v2862, %v2854
    %v3015 = vpack.c.b16 %v2871, %v2863
    %v3016 = vpack.c.b16 %v2872, %v2864
    %v3017 = vpack.c.b16 %v2873, %v2865
    %v3018 = vpack.c.b16 %v2874, %v2866
    %v3019 = vpack.c.b16 %v2875, %v2867
    %v3020 = vpack.c.b16 %v2876, %v2868
    %v3021 = vpack.c.b16 %v2877, %v2869
    %v3022 = vpack.c.b16 %v2878, %v2870
    %v3023 = vpack.c.b16 %v2887, %v2879
    %v3024 = vpack.c.b16 %v2888, %v2880
    %v3025 = vpack.c.b16 %v2889, %v2881
    %v3026 = vpack.c.b16 %v2890, %v2882
    %v3027 = vpack.c.b16 %v2891, %v2883
    %v3028 = vpack.c.b16 %v2892, %v2884
    %v3029 = vpack.c.b16 %v2893, %v2885
    %v3030 = vpack.c.b16 %v2894, %v2886
    %v3031 = vpack.c.b16 %v2903, %v2895
    %v3032 = vpack.c.b16 %v2904, %v2896
    %v3033 = vpack.c.b16 %v2905, %v2897
    %v3034 = vpack.c.b16 %v2906, %v2898
    %v3035 = vpack.c.b16 %v2907, %v2899
    %v3036 = vpack.c.b16 %v2908, %v2900
    %v3037 = vpack.c.b16 %v2909, %v2901
    %v3038 = vpack.c.b16 %v2910, %v2902
    %3167 = vmatprep.subr.bf16.mxu0 %v2968
    %3168 = vmatpush1.bf16.msra.mxu0 %v2967
    %3169 = vmatprep.subr.bf16.mxu0 %v2960
    %3170 = vmatpush1.bf16.msra.mxu0 %v2959
    %3171 = vmatprep.subr.bf16.mxu0 %v2952
    %3172 = vmatpush1.bf16.msra.mxu0 %v2951
    %3173 = vmatprep.subr.bf16.mxu0 %v2944
    %3174 = vmatpush1.bf16.msra.mxu0 %v2943
    %3175 = vmatprep.subr.bf16.mxu0 %v2936
    %3176 = vmatpush1.bf16.msra.mxu0 %v2935
    %3177 = vmatprep.subr.bf16.mxu0 %v2928
    %3178 = vmatpush1.bf16.msra.mxu0 %v2927
    %3179 = vmatprep.subr.bf16.mxu0 %v2920
    %3180 = vmatpush1.bf16.msra.mxu0 %v2919
    %3181 = vmatprep.subr.bf16.mxu0 %v2912
    %3182 = vmatpush1.bf16.msra.mxu0 %v2911
    %3183 = vmatprep.subr.bf16.mxu0 %v3032
    %3184 = vmatpush2.bf16.msra.mxu0 %v3031
    %3185 = vmatprep.subr.bf16.mxu0 %v3024
    %3186 = vmatpush2.bf16.msra.mxu0 %v3023
    %3187 = vmatprep.subr.bf16.mxu0 %v3016
    %3188 = vmatpush2.bf16.msra.mxu0 %v3015
    %3189 = vmatprep.subr.bf16.mxu0 %v3008
    %3190 = vmatpush2.bf16.msra.mxu0 %v3007
    %3191 = vmatprep.subr.bf16.mxu0 %v3000
    %3192 = vmatpush2.bf16.msra.mxu0 %v2999
    %3193 = vmatprep.subr.bf16.mxu0 %v2992
    %3194 = vmatpush2.bf16.msra.mxu0 %v2991
    %3195 = vmatprep.subr.bf16.mxu0 %v2984
    %3196 = vmatpush2.bf16.msra.mxu0 %v2983
    %3197 = vmatprep.subr.bf16.mxu0 %v2976
    %3198 = vmatpush2.bf16.msra.mxu0 %v2975
    %3199 = vmatprep.mubr.bf16.mxu0 %v2524
    %3200 = vmatmul.mubr.bf16.gmra.mxu0 %v2523
    %v3201 = vpop.f32.mrf.mxu0
    %v3202 = vadd.f32 0.0, %v3201
    %v3203 = vpop.f32.mrf.mxu0
    %v3204 = vadd.f32 0.0, %v3203
    %v3205 = vpop.f32.mrf.mxu0
    %v3206 = vpop.f32.mrf.mxu0
    %3207 = vdwg.mxu0
    %3208 = vmatprep.subr.bf16.mxu0 %v2970
    %3209 = vmatpush1.bf16.msra.mxu0 %v2969
    %3210 = vmatprep.subr.bf16.mxu0 %v2962
    %3211 = vmatpush1.bf16.msra.mxu0 %v2961
    %3212 = vmatprep.subr.bf16.mxu0 %v2954
    %3213 = vmatpush1.bf16.msra.mxu0 %v2953
    %3214 = vmatprep.subr.bf16.mxu0 %v2946
    %3215 = vmatpush1.bf16.msra.mxu0 %v2945
    %3216 = vmatprep.subr.bf16.mxu0 %v2938
    %3217 = vmatpush1.bf16.msra.mxu0 %v2937
    %3218 = vmatprep.subr.bf16.mxu0 %v2930
    %3219 = vmatpush1.bf16.msra.mxu0 %v2929
    %3220 = vmatprep.subr.bf16.mxu0 %v2922
    %3221 = vmatpush1.bf16.msra.mxu0 %v2921
    %3222 = vmatprep.subr.bf16.mxu0 %v2914
    %3223 = vmatpush1.bf16.msra.mxu0 %v2913
    %3224 = vmatprep.subr.bf16.mxu0 %v3034
    %3225 = vmatpush2.bf16.msra.mxu0 %v3033
    %3226 = vmatprep.subr.bf16.mxu0 %v3026
    %3227 = vmatpush2.bf16.msra.mxu0 %v3025
    %3228 = vmatprep.subr.bf16.mxu0 %v3018
    %3229 = vmatpush2.bf16.msra.mxu0 %v3017
    %3230 = vmatprep.subr.bf16.mxu0 %v3010
    %3231 = vmatpush2.bf16.msra.mxu0 %v3009
    %3232 = vmatprep.subr.bf16.mxu0 %v3002
    %3233 = vmatpush2.bf16.msra.mxu0 %v3001
    %3234 = vmatprep.subr.bf16.mxu0 %v2994
    %3235 = vmatpush2.bf16.msra.mxu0 %v2993
    %3236 = vmatprep.subr.bf16.mxu0 %v2986
    %3237 = vmatpush2.bf16.msra.mxu0 %v2985
    %3238 = vmatprep.subr.bf16.mxu0 %v2978
    %3239 = vmatpush2.bf16.msra.mxu0 %v2977
    %3240 = vmatprep.mubr.bf16.mxu0 %v2524
    %3241 = vmatmul.mubr.bf16.gmra.mxu0 %v2523
    %v3242 = vpop.f32.mrf.mxu0
    %v3243 = vadd.f32 0.0, %v3242
    %v3244 = vpop.f32.mrf.mxu0
    %v3245 = vadd.f32 0.0, %v3244
    %v3246 = vpop.f32.mrf.mxu0
    %v3247 = vpop.f32.mrf.mxu0
    %3248 = vdwg.mxu0
    %3249 = vmatprep.subr.bf16.mxu0 %v2972
    %3250 = vmatpush1.bf16.msra.mxu0 %v2971
    %3251 = vmatprep.subr.bf16.mxu0 %v2964
    %3252 = vmatpush1.bf16.msra.mxu0 %v2963
    %3253 = vmatprep.subr.bf16.mxu0 %v2956
    %3254 = vmatpush1.bf16.msra.mxu0 %v2955
    %3255 = vmatprep.subr.bf16.mxu0 %v2948
    %3256 = vmatpush1.bf16.msra.mxu0 %v2947
    %3257 = vmatprep.subr.bf16.mxu0 %v2940
    %3258 = vmatpush1.bf16.msra.mxu0 %v2939
    %3259 = vmatprep.subr.bf16.mxu0 %v2932
    %3260 = vmatpush1.bf16.msra.mxu0 %v2931
    %3261 = vmatprep.subr.bf16.mxu0 %v2924
    %3262 = vmatpush1.bf16.msra.mxu0 %v2923
    %3263 = vmatprep.subr.bf16.mxu0 %v2916
    %3264 = vmatpush1.bf16.msra.mxu0 %v2915
    %3265 = vmatprep.subr.bf16.mxu0 %v3036
    %3266 = vmatpush2.bf16.msra.mxu0 %v3035
    %3267 = vmatprep.subr.bf16.mxu0 %v3028
    %3268 = vmatpush2.bf16.msra.mxu0 %v3027
    %3269 = vmatprep.subr.bf16.mxu0 %v3020
    %3270 = vmatpush2.bf16.msra.mxu0 %v3019
    %3271 = vmatprep.subr.bf16.mxu0 %v3012
    %3272 = vmatpush2.bf16.msra.mxu0 %v3011
    %3273 = vmatprep.subr.bf16.mxu0 %v3004
    %3274 = vmatpush2.bf16.msra.mxu0 %v3003
    %3275 = vmatprep.subr.bf16.mxu0 %v2996
    %3276 = vmatpush2.bf16.msra.mxu0 %v2995
    %3277 = vmatprep.subr.bf16.mxu0 %v2988
    %3278 = vmatpush2.bf16.msra.mxu0 %v2987
    %3279 = vmatprep.subr.bf16.mxu0 %v2980
    %3280 = vmatpush2.bf16.msra.mxu0 %v2979
    %3281 = vmatprep.mubr.bf16.mxu0 %v2524
    %3282 = vmatmul.mubr.bf16.gmra.mxu0 %v2523
    %v3283 = vpop.f32.mrf.mxu0
    %v3284 = vadd.f32 0.0, %v3283
    %v3285 = vpop.f32.mrf.mxu0
    %v3286 = vadd.f32 0.0, %v3285
    %v3287 = vpop.f32.mrf.mxu0
    %v3288 = vpop.f32.mrf.mxu0
    %3289 = vdwg.mxu0
    %3290 = vmatprep.subr.bf16.mxu0 %v2974
    %3291 = vmatpush1.bf16.msra.mxu0 %v2973
    %3292 = vmatprep.subr.bf16.mxu0 %v2966
    %3293 = vmatpush1.bf16.msra.mxu0 %v2965
    %3294 = vmatprep.subr.bf16.mxu0 %v2958
    %3295 = vmatpush1.bf16.msra.mxu0 %v2957
    %3296 = vmatprep.subr.bf16.mxu0 %v2950
    %3297 = vmatpush1.bf16.msra.mxu0 %v2949
    %3298 = vmatprep.subr.bf16.mxu0 %v2942
    %3299 = vmatpush1.bf16.msra.mxu0 %v2941
    %3300 = vmatprep.subr.bf16.mxu0 %v2934
    %3301 = vmatpush1.bf16.msra.mxu0 %v2933
    %3302 = vmatprep.subr.bf16.mxu0 %v2926
    %3303 = vmatpush1.bf16.msra.mxu0 %v2925
    %3304 = vmatprep.subr.bf16.mxu0 %v2918
    %3305 = vmatpush1.bf16.msra.mxu0 %v2917
    %3306 = vmatprep.subr.bf16.mxu0 %v3038
    %3307 = vmatpush2.bf16.msra.mxu0 %v3037
    %3308 = vmatprep.subr.bf16.mxu0 %v3030
    %3309 = vmatpush2.bf16.msra.mxu0 %v3029
    %3310 = vmatprep.subr.bf16.mxu0 %v3022
    %3311 = vmatpush2.bf16.msra.mxu0 %v3021
    %3312 = vmatprep.subr.bf16.mxu0 %v3014
    %3313 = vmatpush2.bf16.msra.mxu0 %v3013
    %3314 = vmatprep.subr.bf16.mxu0 %v3006
    %3315 = vmatpush2.bf16.msra.mxu0 %v3005
    %3316 = vmatprep.subr.bf16.mxu0 %v2998
    %3317 = vmatpush2.bf16.msra.mxu0 %v2997
    %3318 = vmatprep.subr.bf16.mxu0 %v2990
    %3319 = vmatpush2.bf16.msra.mxu0 %v2989
    %3320 = vmatprep.subr.bf16.mxu0 %v2982
    %3321 = vmatpush2.bf16.msra.mxu0 %v2981
    %3322 = vmatprep.mubr.bf16.mxu0 %v2524
    %3323 = vmatmul.mubr.bf16.gmra.mxu0 %v2523
    %v3324 = vpop.f32.mrf.mxu0
    %v3325 = vadd.f32 0.0, %v3324
    %v3326 = vpop.f32.mrf.mxu0
    %v3327 = vadd.f32 0.0, %v3326
    %v3328 = vpop.f32.mrf.mxu0
    %v3329 = vpop.f32.mrf.mxu0
    %3330 = vdwg.mxu0
    %v3339 = vrot.slane %v2264, 6
    %v3340 = vrot.slane %v2266, 6
    %v3341 = vrot.slane %v2305, 6
    %v3342 = vrot.slane %v2307, 6
    %v3343 = vrot.slane %v2346, 6
    %v3344 = vrot.slane %v2348, 6
    %v3345 = vrot.slane %v2387, 6
    %v3346 = vrot.slane %v2389, 6
    %v3355 = vadd.f32 %v1443, %v3339
    %v3356 = vadd.f32 %v1444, %v3340
    %v3357 = vadd.f32 %v1445, %v3341
    %v3358 = vadd.f32 %v1446, %v3342
    %v3359 = vadd.f32 %v1447, %v3343
    %v3360 = vadd.f32 %v1448, %v3344
    %v3361 = vadd.f32 %v1449, %v3345
    %v3362 = vadd.f32 %v1450, %v3346
    %v3371 = vrot.slane %v3202, 4
    %v3372 = vrot.slane %v3204, 4
    %v3373 = vrot.slane %v3243, 4
    %v3374 = vrot.slane %v3245, 4
    %v3375 = vrot.slane %v3284, 4
    %v3376 = vrot.slane %v3286, 4
    %v3377 = vrot.slane %v3325, 4
    %v3378 = vrot.slane %v3327, 4
    %v3387 = vadd.f32 %v1451, %v3371
    %v3388 = vadd.f32 %v1452, %v3372
    %v3389 = vadd.f32 %v1453, %v3373
    %v3390 = vadd.f32 %v1454, %v3374
    %v3391 = vadd.f32 %v1455, %v3375
    %v3392 = vadd.f32 %v1456, %v3376
    %v3393 = vadd.f32 %v1457, %v3377
    %v3394 = vadd.f32 %v1458, %v3378
    %v3403 = vrot.slane %v3355, 2
    %v3404 = vrot.slane %v3356, 2
    %v3405 = vrot.slane %v3357, 2
    %v3406 = vrot.slane %v3358, 2
    %v3407 = vrot.slane %v3359, 2
    %v3408 = vrot.slane %v3360, 2
    %v3409 = vrot.slane %v3361, 2
    %v3410 = vrot.slane %v3362, 2
    %v3427 = vrot.slane %v3387, 2
    %v3428 = vrot.slane %v3388, 2
    %v3429 = vrot.slane %v3389, 2
    %v3430 = vrot.slane %v3390, 2
    %v3431 = vrot.slane %v3391, 2
    %v3432 = vrot.slane %v3392, 2
    %v3433 = vrot.slane %v3393, 2
    %v3434 = vrot.slane %v3394, 2
    %v3443 = vsel %vm1386, %v3403, %v3427
    %v3444 = vsel %vm1386, %v3404, %v3428
    %v3445 = vsel %vm1386, %v3405, %v3429
    %v3446 = vsel %vm1386, %v3406, %v3430
    %v3447 = vsel %vm1386, %v3407, %v3431
    %v3448 = vsel %vm1386, %v3408, %v3432
    %v3449 = vsel %vm1386, %v3409, %v3433
    %v3450 = vsel %vm1386, %v3410, %v3434
    %v3451 = vxor.u32 %v3443, 2147483648
    %v3452 = vxor.u32 %v3444, 2147483648
    %v3453 = vmul.f32 %v3451, 1.442695
    %v3454 = vpow.pop %v3453
    %v3455 = vmul.f32 %v3452, 1.442695
    %v3456 = vpow.pop %v3455
    %v3457 = vadd.f32 %v3454, 1.0
    %v3458 = vadd.f32 %v3456, 1.0
    %v3459 = vrcp.pop %v3457
    %v3460 = vmul.f32 1.0, %v3459
    %v3461 = vrcp.pop %v3458
    %v3462 = vmul.f32 1.0, %v3461
    %v3463 = vxor.u32 %v3445, 2147483648
    %v3464 = vxor.u32 %v3446, 2147483648
    %v3465 = vmul.f32 %v3463, 1.442695
    %v3466 = vpow.pop %v3465
    %v3467 = vmul.f32 %v3464, 1.442695
    %v3468 = vpow.pop %v3467
    %v3469 = vadd.f32 %v3466, 1.0
    %v3470 = vadd.f32 %v3468, 1.0
    %v3471 = vrcp.pop %v3469
    %v3472 = vmul.f32 1.0, %v3471
    %v3473 = vrcp.pop %v3470
    %v3474 = vmul.f32 1.0, %v3473
    %v3475 = vtanh.pop %v3447
    %v3476 = vtanh.pop %v3448
    %v3477 = vxor.u32 %v3449, 2147483648
    %v3478 = vxor.u32 %v3450, 2147483648
    %v3479 = vmul.f32 %v3477, 1.442695
    %v3480 = vpow.pop %v3479
    %v3481 = vmul.f32 %v3478, 1.442695
    %v3482 = vpow.pop %v3481
    %v3483 = vadd.f32 %v3480, 1.0
    %v3484 = vadd.f32 %v3482, 1.0
    %v3485 = vrcp.pop %v3483
    %v3486 = vmul.f32 1.0, %v3485
    %v3487 = vrcp.pop %v3484
    %v3488 = vmul.f32 1.0, %v3487
    %v3489 = vmul.f32 %v3472, %v1437
    %v3490 = vmul.f32 %v3474, %v1438
    %v3491 = vmul.f32 %v3460, %v3475
    %v3492 = vmul.f32 %v3462, %v3476
    %v3493 = vadd.f32 %v3489, %v3491
    %v3494 = vadd.f32 %v3490, %v3492
    %v3495 = vtanh.pop %v3493
    %v3496 = vtanh.pop %v3494
    %v3497 = vmul.f32 %v3486, %v3495
    %v3498 = vmul.f32 %v3488, %v3496
    %v3499 = vld [vmem:[#allocation2] sm:$0x30]
    %v3500 = vld [vmem:[#allocation2 + $0x8] sm:$0x30]
    %v3501 = vld [vmem:[#allocation2 + $0x10] sm:$0x30]
    %v3502 = vld [vmem:[#allocation2 + $0x18] sm:$0x30]
    %v3503 = vld [vmem:[#allocation2 + $0x20] sm:$0x30]
    %v3504 = vld [vmem:[#allocation2 + $0x28] sm:$0x30]
    %v3505 = vld [vmem:[#allocation2 + $0x30] sm:$0x30]
    %v3506 = vld [vmem:[#allocation2 + $0x38] sm:$0x30]
    %v3507 = vld [vmem:[#allocation2 + $0xc0] sm:$0xc]
    %v3508 = vld [vmem:[#allocation2 + $0xc8] sm:$0xc]
    %v3509 = vld [vmem:[#allocation2 + $0xd0] sm:$0xc]
    %v3510 = vld [vmem:[#allocation2 + $0xd8] sm:$0xc]
    %v3511 = vld [vmem:[#allocation2 + $0xe0] sm:$0xc]
    %v3512 = vld [vmem:[#allocation2 + $0xe8] sm:$0xc]
    %v3513 = vld [vmem:[#allocation2 + $0xf0] sm:$0xc]
    %v3514 = vld [vmem:[#allocation2 + $0xf8] sm:$0xc]
    %v3515 = vpack.c.bf16 %v3497, %v3497
    %v3516 = vpack.c.bf16 %v3498, %v3498
    %3517 = vmatprep.subr.bf16.mxu0 %v2030
    %3518 = vmatpush1.bf16.msra.mxu0 %v2029
    %3519 = vmatprep.subr.bf16.mxu0 %v2022
    %3520 = vmatpush1.bf16.msra.mxu0 %v2021
    %3521 = vmatprep.subr.bf16.mxu0 %v2014
    %3522 = vmatpush1.bf16.msra.mxu0 %v2013
    %3523 = vmatprep.subr.bf16.mxu0 %v2006
    %3524 = vmatpush1.bf16.msra.mxu0 %v2005
    %3525 = vmatprep.subr.bf16.mxu0 %v1998
    %3526 = vmatpush1.bf16.msra.mxu0 %v1997
    %3527 = vmatprep.subr.bf16.mxu0 %v1990
    %3528 = vmatpush1.bf16.msra.mxu0 %v1989
    %3529 = vmatprep.subr.bf16.mxu0 %v1982
    %3530 = vmatpush1.bf16.msra.mxu0 %v1981
    %3531 = vmatprep.subr.bf16.mxu0 %v1974
    %3532 = vmatpush1.bf16.msra.mxu0 %v1973
    %3533 = vmatprep.subr.bf16.mxu0 %v2094
    %3534 = vmatpush2.bf16.msra.mxu0 %v2093
    %3535 = vmatprep.subr.bf16.mxu0 %v2086
    %3536 = vmatpush2.bf16.msra.mxu0 %v2085
    %3537 = vmatprep.subr.bf16.mxu0 %v2078
    %3538 = vmatpush2.bf16.msra.mxu0 %v2077
    %3539 = vmatprep.subr.bf16.mxu0 %v2070
    %3540 = vmatpush2.bf16.msra.mxu0 %v2069
    %3541 = vmatprep.subr.bf16.mxu0 %v2062
    %3542 = vmatpush2.bf16.msra.mxu0 %v2061
    %3543 = vmatprep.subr.bf16.mxu0 %v2054
    %3544 = vmatpush2.bf16.msra.mxu0 %v2053
    %3545 = vmatprep.subr.bf16.mxu0 %v2046
    %3546 = vmatpush2.bf16.msra.mxu0 %v2045
    %3547 = vmatprep.subr.bf16.mxu0 %v2038
    %3548 = vmatpush2.bf16.msra.mxu0 %v2037
    %3549 = vmatprep.mubr.bf16.mxu0 %v3516
    %3550 = vmatmul.mubr.bf16.gmra.mxu0 %v3515
    %v3551 = vpop.f32.mrf.mxu0
    %v3552 = vadd.f32 0.0, %v3551
    %v3553 = vpop.f32.mrf.mxu0
    %v3554 = vadd.f32 0.0, %v3553
    %v3555 = vpop.f32.mrf.mxu0
    %v3556 = vpop.f32.mrf.mxu0
    %3557 = vdwg.mxu0
    %3558 = vmatprep.subr.bf16.mxu0 %v2032
    %3559 = vmatpush1.bf16.msra.mxu0 %v2031
    %3560 = vmatprep.subr.bf16.mxu0 %v2024
    %3561 = vmatpush1.bf16.msra.mxu0 %v2023
    %3562 = vmatprep.subr.bf16.mxu0 %v2016
    %3563 = vmatpush1.bf16.msra.mxu0 %v2015
    %3564 = vmatprep.subr.bf16.mxu0 %v2008
    %3565 = vmatpush1.bf16.msra.mxu0 %v2007
    %3566 = vmatprep.subr.bf16.mxu0 %v2000
    %3567 = vmatpush1.bf16.msra.mxu0 %v1999
    %3568 = vmatprep.subr.bf16.mxu0 %v1992
    %3569 = vmatpush1.bf16.msra.mxu0 %v1991
    %3570 = vmatprep.subr.bf16.mxu0 %v1984
    %3571 = vmatpush1.bf16.msra.mxu0 %v1983
    %3572 = vmatprep.subr.bf16.mxu0 %v1976
    %3573 = vmatpush1.bf16.msra.mxu0 %v1975
    %3574 = vmatprep.subr.bf16.mxu0 %v2096
    %3575 = vmatpush2.bf16.msra.mxu0 %v2095
    %3576 = vmatprep.subr.bf16.mxu0 %v2088
    %3577 = vmatpush2.bf16.msra.mxu0 %v2087
    %3578 = vmatprep.subr.bf16.mxu0 %v2080
    %3579 = vmatpush2.bf16.msra.mxu0 %v2079
    %3580 = vmatprep.subr.bf16.mxu0 %v2072
    %3581 = vmatpush2.bf16.msra.mxu0 %v2071
    %3582 = vmatprep.subr.bf16.mxu0 %v2064
    %3583 = vmatpush2.bf16.msra.mxu0 %v2063
    %3584 = vmatprep.subr.bf16.mxu0 %v2056
    %3585 = vmatpush2.bf16.msra.mxu0 %v2055
    %3586 = vmatprep.subr.bf16.mxu0 %v2048
    %3587 = vmatpush2.bf16.msra.mxu0 %v2047
    %3588 = vmatprep.subr.bf16.mxu0 %v2040
    %3589 = vmatpush2.bf16.msra.mxu0 %v2039
    %3590 = vmatprep.mubr.bf16.mxu0 %v3516
    %3591 = vmatmul.mubr.bf16.gmra.mxu0 %v3515
    %v3592 = vpop.f32.mrf.mxu0
    %v3593 = vadd.f32 0.0, %v3592
    %v3594 = vpop.f32.mrf.mxu0
    %v3595 = vadd.f32 0.0, %v3594
    %v3596 = vpop.f32.mrf.mxu0
    %v3597 = vpop.f32.mrf.mxu0
    %3598 = vdwg.mxu0
    %3599 = vmatprep.subr.bf16.mxu0 %v2034
    %3600 = vmatpush1.bf16.msra.mxu0 %v2033
    %3601 = vmatprep.subr.bf16.mxu0 %v2026
    %3602 = vmatpush1.bf16.msra.mxu0 %v2025
    %3603 = vmatprep.subr.bf16.mxu0 %v2018
    %3604 = vmatpush1.bf16.msra.mxu0 %v2017
    %3605 = vmatprep.subr.bf16.mxu0 %v2010
    %3606 = vmatpush1.bf16.msra.mxu0 %v2009
    %3607 = vmatprep.subr.bf16.mxu0 %v2002
    %3608 = vmatpush1.bf16.msra.mxu0 %v2001
    %3609 = vmatprep.subr.bf16.mxu0 %v1994
    %3610 = vmatpush1.bf16.msra.mxu0 %v1993
    %3611 = vmatprep.subr.bf16.mxu0 %v1986
    %3612 = vmatpush1.bf16.msra.mxu0 %v1985
    %3613 = vmatprep.subr.bf16.mxu0 %v1978
    %3614 = vmatpush1.bf16.msra.mxu0 %v1977
    %3615 = vmatprep.subr.bf16.mxu0 %v2098
    %3616 = vmatpush2.bf16.msra.mxu0 %v2097
    %3617 = vmatprep.subr.bf16.mxu0 %v2090
    %3618 = vmatpush2.bf16.msra.mxu0 %v2089
    %3619 = vmatprep.subr.bf16.mxu0 %v2082
    %3620 = vmatpush2.bf16.msra.mxu0 %v2081
    %3621 = vmatprep.subr.bf16.mxu0 %v2074
    %3622 = vmatpush2.bf16.msra.mxu0 %v2073
    %3623 = vmatprep.subr.bf16.mxu0 %v2066
    %3624 = vmatpush2.bf16.msra.mxu0 %v2065
    %3625 = vmatprep.subr.bf16.mxu0 %v2058
    %3626 = vmatpush2.bf16.msra.mxu0 %v2057
    %3627 = vmatprep.subr.bf16.mxu0 %v2050
    %3628 = vmatpush2.bf16.msra.mxu0 %v2049
    %3629 = vmatprep.subr.bf16.mxu0 %v2042
    %3630 = vmatpush2.bf16.msra.mxu0 %v2041
    %3631 = vmatprep.mubr.bf16.mxu0 %v3516
    %3632 = vmatmul.mubr.bf16.gmra.mxu0 %v3515
    %v3633 = vpop.f32.mrf.mxu0
    %v3634 = vadd.f32 0.0, %v3633
    %v3635 = vpop.f32.mrf.mxu0
    %v3636 = vadd.f32 0.0, %v3635
    %v3637 = vpop.f32.mrf.mxu0
    %v3638 = vpop.f32.mrf.mxu0
    %3639 = vdwg.mxu0
    %3640 = vmatprep.subr.bf16.mxu0 %v2036
    %3641 = vmatpush1.bf16.msra.mxu0 %v2035
    %3642 = vmatprep.subr.bf16.mxu0 %v2028
    %3643 = vmatpush1.bf16.msra.mxu0 %v2027
    %3644 = vmatprep.subr.bf16.mxu0 %v2020
    %3645 = vmatpush1.bf16.msra.mxu0 %v2019
    %3646 = vmatprep.subr.bf16.mxu0 %v2012
    %3647 = vmatpush1.bf16.msra.mxu0 %v2011
    %3648 = vmatprep.subr.bf16.mxu0 %v2004
    %3649 = vmatpush1.bf16.msra.mxu0 %v2003
    %3650 = vmatprep.subr.bf16.mxu0 %v1996
    %3651 = vmatpush1.bf16.msra.mxu0 %v1995
    %3652 = vmatprep.subr.bf16.mxu0 %v1988
    %3653 = vmatpush1.bf16.msra.mxu0 %v1987
    %3654 = vmatprep.subr.bf16.mxu0 %v1980
    %3655 = vmatpush1.bf16.msra.mxu0 %v1979
    %3656 = vmatprep.subr.bf16.mxu0 %v2100
    %3657 = vmatpush2.bf16.msra.mxu0 %v2099
    %3658 = vmatprep.subr.bf16.mxu0 %v2092
    %3659 = vmatpush2.bf16.msra.mxu0 %v2091
    %3660 = vmatprep.subr.bf16.mxu0 %v2084
    %3661 = vmatpush2.bf16.msra.mxu0 %v2083
    %3662 = vmatprep.subr.bf16.mxu0 %v2076
    %3663 = vmatpush2.bf16.msra.mxu0 %v2075
    %3664 = vmatprep.subr.bf16.mxu0 %v2068
    %3665 = vmatpush2.bf16.msra.mxu0 %v2067
    %3666 = vmatprep.subr.bf16.mxu0 %v2060
    %3667 = vmatpush2.bf16.msra.mxu0 %v2059
    %3668 = vmatprep.subr.bf16.mxu0 %v2052
    %3669 = vmatpush2.bf16.msra.mxu0 %v2051
    %3670 = vmatprep.subr.bf16.mxu0 %v2044
    %3671 = vmatpush2.bf16.msra.mxu0 %v2043
    %3672 = vmatprep.mubr.bf16.mxu0 %v3516
    %3673 = vmatmul.mubr.bf16.gmra.mxu0 %v3515
    %v3674 = vpop.f32.mrf.mxu0
    %v3675 = vadd.f32 0.0, %v3674
    %v3676 = vpop.f32.mrf.mxu0
    %v3677 = vadd.f32 0.0, %v3676
    %v3678 = vpop.f32.mrf.mxu0
    %v3679 = vpop.f32.mrf.mxu0
    %3680 = vdwg.mxu0
    %v3683 = vrot.slane %v3515, 1
    %v3684 = vrot.slane %v3516, 1
    %3687 = vmatprep.subr.bf16.mxu0 %v2968
    %3688 = vmatpush1.bf16.msra.mxu0 %v2967
    %3689 = vmatprep.subr.bf16.mxu0 %v2960
    %3690 = vmatpush1.bf16.msra.mxu0 %v2959
    %3691 = vmatprep.subr.bf16.mxu0 %v2952
    %3692 = vmatpush1.bf16.msra.mxu0 %v2951
    %3693 = vmatprep.subr.bf16.mxu0 %v2944
    %3694 = vmatpush1.bf16.msra.mxu0 %v2943
    %3695 = vmatprep.subr.bf16.mxu0 %v2936
    %3696 = vmatpush1.bf16.msra.mxu0 %v2935
    %3697 = vmatprep.subr.bf16.mxu0 %v2928
    %3698 = vmatpush1.bf16.msra.mxu0 %v2927
    %3699 = vmatprep.subr.bf16.mxu0 %v2920
    %3700 = vmatpush1.bf16.msra.mxu0 %v2919
    %3701 = vmatprep.subr.bf16.mxu0 %v2912
    %3702 = vmatpush1.bf16.msra.mxu0 %v2911
    %3703 = vmatprep.subr.bf16.mxu0 %v3032
    %3704 = vmatpush2.bf16.msra.mxu0 %v3031
    %3705 = vmatprep.subr.bf16.mxu0 %v3024
    %3706 = vmatpush2.bf16.msra.mxu0 %v3023
    %3707 = vmatprep.subr.bf16.mxu0 %v3016
    %3708 = vmatpush2.bf16.msra.mxu0 %v3015
    %3709 = vmatprep.subr.bf16.mxu0 %v3008
    %3710 = vmatpush2.bf16.msra.mxu0 %v3007
    %3711 = vmatprep.subr.bf16.mxu0 %v3000
    %3712 = vmatpush2.bf16.msra.mxu0 %v2999
    %3713 = vmatprep.subr.bf16.mxu0 %v2992
    %3714 = vmatpush2.bf16.msra.mxu0 %v2991
    %3715 = vmatprep.subr.bf16.mxu0 %v2984
    %3716 = vmatpush2.bf16.msra.mxu0 %v2983
    %3717 = vmatprep.subr.bf16.mxu0 %v2976
    %3718 = vmatpush2.bf16.msra.mxu0 %v2975
    %3719 = vmatprep.mubr.bf16.mxu0 %v3684
    %3720 = vmatmul.mubr.bf16.gmra.mxu0 %v3683
    %v3721 = vpop.f32.mrf.mxu0
    %v3722 = vadd.f32 0.0, %v3721
    %v3723 = vpop.f32.mrf.mxu0
    %v3724 = vadd.f32 0.0, %v3723
    %v3725 = vpop.f32.mrf.mxu0
    %v3726 = vpop.f32.mrf.mxu0
    %3727 = vdwg.mxu0
    %3728 = vmatprep.subr.bf16.mxu0 %v2970
    %3729 = vmatpush1.bf16.msra.mxu0 %v2969
    %3730 = vmatprep.subr.bf16.mxu0 %v2962
    %3731 = vmatpush1.bf16.msra.mxu0 %v2961
    %3732 = vmatprep.subr.bf16.mxu0 %v2954
    %3733 = vmatpush1.bf16.msra.mxu0 %v2953
    %3734 = vmatprep.subr.bf16.mxu0 %v2946
    %3735 = vmatpush1.bf16.msra.mxu0 %v2945
    %3736 = vmatprep.subr.bf16.mxu0 %v2938
    %3737 = vmatpush1.bf16.msra.mxu0 %v2937
    %3738 = vmatprep.subr.bf16.mxu0 %v2930
    %3739 = vmatpush1.bf16.msra.mxu0 %v2929
    %3740 = vmatprep.subr.bf16.mxu0 %v2922
    %3741 = vmatpush1.bf16.msra.mxu0 %v2921
    %3742 = vmatprep.subr.bf16.mxu0 %v2914
    %3743 = vmatpush1.bf16.msra.mxu0 %v2913
    %3744 = vmatprep.subr.bf16.mxu0 %v3034
    %3745 = vmatpush2.bf16.msra.mxu0 %v3033
    %3746 = vmatprep.subr.bf16.mxu0 %v3026
    %3747 = vmatpush2.bf16.msra.mxu0 %v3025
    %3748 = vmatprep.subr.bf16.mxu0 %v3018
    %3749 = vmatpush2.bf16.msra.mxu0 %v3017
    %3750 = vmatprep.subr.bf16.mxu0 %v3010
    %3751 = vmatpush2.bf16.msra.mxu0 %v3009
    %3752 = vmatprep.subr.bf16.mxu0 %v3002
    %3753 = vmatpush2.bf16.msra.mxu0 %v3001
    %3754 = vmatprep.subr.bf16.mxu0 %v2994
    %3755 = vmatpush2.bf16.msra.mxu0 %v2993
    %3756 = vmatprep.subr.bf16.mxu0 %v2986
    %3757 = vmatpush2.bf16.msra.mxu0 %v2985
    %3758 = vmatprep.subr.bf16.mxu0 %v2978
    %3759 = vmatpush2.bf16.msra.mxu0 %v2977
    %3760 = vmatprep.mubr.bf16.mxu0 %v3684
    %3761 = vmatmul.mubr.bf16.gmra.mxu0 %v3683
    %v3762 = vpop.f32.mrf.mxu0
    %v3763 = vadd.f32 0.0, %v3762
    %v3764 = vpop.f32.mrf.mxu0
    %v3765 = vadd.f32 0.0, %v3764
    %v3766 = vpop.f32.mrf.mxu0
    %v3767 = vpop.f32.mrf.mxu0
    %3768 = vdwg.mxu0
    %3769 = vmatprep.subr.bf16.mxu0 %v2972
    %3770 = vmatpush1.bf16.msra.mxu0 %v2971
    %3771 = vmatprep.subr.bf16.mxu0 %v2964
    %3772 = vmatpush1.bf16.msra.mxu0 %v2963
    %3773 = vmatprep.subr.bf16.mxu0 %v2956
    %3774 = vmatpush1.bf16.msra.mxu0 %v2955
    %3775 = vmatprep.subr.bf16.mxu0 %v2948
    %3776 = vmatpush1.bf16.msra.mxu0 %v2947
    %3777 = vmatprep.subr.bf16.mxu0 %v2940
    %3778 = vmatpush1.bf16.msra.mxu0 %v2939
    %3779 = vmatprep.subr.bf16.mxu0 %v2932
    %3780 = vmatpush1.bf16.msra.mxu0 %v2931
    %3781 = vmatprep.subr.bf16.mxu0 %v2924
    %3782 = vmatpush1.bf16.msra.mxu0 %v2923
    %3783 = vmatprep.subr.bf16.mxu0 %v2916
    %3784 = vmatpush1.bf16.msra.mxu0 %v2915
    %3785 = vmatprep.subr.bf16.mxu0 %v3036
    %3786 = vmatpush2.bf16.msra.mxu0 %v3035
    %3787 = vmatprep.subr.bf16.mxu0 %v3028
    %3788 = vmatpush2.bf16.msra.mxu0 %v3027
    %3789 = vmatprep.subr.bf16.mxu0 %v3020
    %3790 = vmatpush2.bf16.msra.mxu0 %v3019
    %3791 = vmatprep.subr.bf16.mxu0 %v3012
    %3792 = vmatpush2.bf16.msra.mxu0 %v3011
    %3793 = vmatprep.subr.bf16.mxu0 %v3004
    %3794 = vmatpush2.bf16.msra.mxu0 %v3003
    %3795 = vmatprep.subr.bf16.mxu0 %v2996
    %3796 = vmatpush2.bf16.msra.mxu0 %v2995
    %3797 = vmatprep.subr.bf16.mxu0 %v2988
    %3798 = vmatpush2.bf16.msra.mxu0 %v2987
    %3799 = vmatprep.subr.bf16.mxu0 %v2980
    %3800 = vmatpush2.bf16.msra.mxu0 %v2979
    %3801 = vmatprep.mubr.bf16.mxu0 %v3684
    %3802 = vmatmul.mubr.bf16.gmra.mxu0 %v3683
    %v3803 = vpop.f32.mrf.mxu0
    %v3804 = vadd.f32 0.0, %v3803
    %v3805 = vpop.f32.mrf.mxu0
    %v3806 = vadd.f32 0.0, %v3805
    %v3807 = vpop.f32.mrf.mxu0
    %v3808 = vpop.f32.mrf.mxu0
    %3809 = vdwg.mxu0
    %3810 = vmatprep.subr.bf16.mxu0 %v2974
    %3811 = vmatpush1.bf16.msra.mxu0 %v2973
    %3812 = vmatprep.subr.bf16.mxu0 %v2966
    %3813 = vmatpush1.bf16.msra.mxu0 %v2965
    %3814 = vmatprep.subr.bf16.mxu0 %v2958
    %3815 = vmatpush1.bf16.msra.mxu0 %v2957
    %3816 = vmatprep.subr.bf16.mxu0 %v2950
    %3817 = vmatpush1.bf16.msra.mxu0 %v2949
    %3818 = vmatprep.subr.bf16.mxu0 %v2942
    %3819 = vmatpush1.bf16.msra.mxu0 %v2941
    %3820 = vmatprep.subr.bf16.mxu0 %v2934
    %3821 = vmatpush1.bf16.msra.mxu0 %v2933
    %3822 = vmatprep.subr.bf16.mxu0 %v2926
    %3823 = vmatpush1.bf16.msra.mxu0 %v2925
    %3824 = vmatprep.subr.bf16.mxu0 %v2918
    %3825 = vmatpush1.bf16.msra.mxu0 %v2917
    %3826 = vmatprep.subr.bf16.mxu0 %v3038
    %3827 = vmatpush2.bf16.msra.mxu0 %v3037
    %3828 = vmatprep.subr.bf16.mxu0 %v3030
    %3829 = vmatpush2.bf16.msra.mxu0 %v3029
    %3830 = vmatprep.subr.bf16.mxu0 %v3022
    %3831 = vmatpush2.bf16.msra.mxu0 %v3021
    %3832 = vmatprep.subr.bf16.mxu0 %v3014
    %3833 = vmatpush2.bf16.msra.mxu0 %v3013
    %3834 = vmatprep.subr.bf16.mxu0 %v3006
    %3835 = vmatpush2.bf16.msra.mxu0 %v3005
    %3836 = vmatprep.subr.bf16.mxu0 %v2998
    %3837 = vmatpush2.bf16.msra.mxu0 %v2997
    %3838 = vmatprep.subr.bf16.mxu0 %v2990
    %3839 = vmatpush2.bf16.msra.mxu0 %v2989
    %3840 = vmatprep.subr.bf16.mxu0 %v2982
    %3841 = vmatpush2.bf16.msra.mxu0 %v2981
    %3842 = vmatprep.mubr.bf16.mxu0 %v3684
    %3843 = vmatmul.mubr.bf16.gmra.mxu0 %v3683
    %v3844 = vpop.f32.mrf.mxu0
    %v3845 = vadd.f32 0.0, %v3844
    %v3846 = vpop.f32.mrf.mxu0
    %v3847 = vadd.f32 0.0, %v3846
    %v3848 = vpop.f32.mrf.mxu0
    %v3849 = vpop.f32.mrf.mxu0
    %3850 = vdwg.mxu0
    %v3859 = vrot.slane %v3552, 4
    %v3860 = vrot.slane %v3554, 4
    %v3861 = vrot.slane %v3593, 4
    %v3862 = vrot.slane %v3595, 4
    %v3863 = vrot.slane %v3634, 4
    %v3864 = vrot.slane %v3636, 4
    %v3865 = vrot.slane %v3675, 4
    %v3866 = vrot.slane %v3677, 4
    %v3875 = vadd.f32 %v3499, %v3859
    %v3876 = vadd.f32 %v3500, %v3860
    %v3877 = vadd.f32 %v3501, %v3861
    %v3878 = vadd.f32 %v3502, %v3862
    %v3879 = vadd.f32 %v3503, %v3863
    %v3880 = vadd.f32 %v3504, %v3864
    %v3881 = vadd.f32 %v3505, %v3865
    %v3882 = vadd.f32 %v3506, %v3866
    %v3891 = vrot.slane %v3722, 6
    %v3892 = vrot.slane %v3724, 6
    %v3893 = vrot.slane %v3763, 6
    %v3894 = vrot.slane %v3765, 6
    %v3895 = vrot.slane %v3804, 6
    %v3896 = vrot.slane %v3806, 6
    %v3897 = vrot.slane %v3845, 6
    %v3898 = vrot.slane %v3847, 6
    %v3907 = vadd.f32 %v3507, %v3891
    %v3908 = vadd.f32 %v3508, %v3892
    %v3909 = vadd.f32 %v3509, %v3893
    %v3910 = vadd.f32 %v3510, %v3894
    %v3911 = vadd.f32 %v3511, %v3895
    %v3912 = vadd.f32 %v3512, %v3896
    %v3913 = vadd.f32 %v3513, %v3897
    %v3914 = vadd.f32 %v3514, %v3898
    %v3923 = vrot.slane %v3875, 4
    %v3924 = vrot.slane %v3876, 4
    %v3925 = vrot.slane %v3877, 4
    %v3926 = vrot.slane %v3878, 4
    %v3927 = vrot.slane %v3879, 4
    %v3928 = vrot.slane %v3880, 4
    %v3929 = vrot.slane %v3881, 4
    %v3930 = vrot.slane %v3882, 4
    %v3939 = vsel %vm1386, %v3923, %v3907
    %v3940 = vsel %vm1386, %v3924, %v3908
    %v3941 = vsel %vm1386, %v3925, %v3909
    %v3942 = vsel %vm1386, %v3926, %v3910
    %v3943 = vsel %vm1386, %v3927, %v3911
    %v3944 = vsel %vm1386, %v3928, %v3912
    %v3945 = vsel %vm1386, %v3929, %v3913
    %v3946 = vsel %vm1386, %v3930, %v3914
    %v3947 = vxor.u32 %v3939, 2147483648
    %v3948 = vxor.u32 %v3940, 2147483648
    %v3949 = vmul.f32 %v3947, 1.442695
    %v3950 = vpow.pop %v3949
    %v3951 = vmul.f32 %v3948, 1.442695
    %v3952 = vpow.pop %v3951
    %v3953 = vadd.f32 %v3950, 1.0
    %v3954 = vadd.f32 %v3952, 1.0
    %v3955 = vrcp.pop %v3953
    %v3956 = vmul.f32 1.0, %v3955
    %v3957 = vrcp.pop %v3954
    %v3958 = vmul.f32 1.0, %v3957
    %v3959 = vxor.u32 %v3941, 2147483648
    %v3960 = vxor.u32 %v3942, 2147483648
    %v3961 = vmul.f32 %v3959, 1.442695
    %v3962 = vpow.pop %v3961
    %v3963 = vmul.f32 %v3960, 1.442695
    %v3964 = vpow.pop %v3963
    %v3965 = vadd.f32 %v3962, 1.0
    %v3966 = vadd.f32 %v3964, 1.0
    %v3967 = vrcp.pop %v3965
    %v3968 = vmul.f32 1.0, %v3967
    %v3969 = vrcp.pop %v3966
    %v3970 = vmul.f32 1.0, %v3969
    %v3971 = vtanh.pop %v3943
    %v3972 = vtanh.pop %v3944
    %v3973 = vxor.u32 %v3945, 2147483648
    %v3974 = vxor.u32 %v3946, 2147483648
    %v3975 = vmul.f32 %v3973, 1.442695
    %v3976 = vpow.pop %v3975
    %v3977 = vmul.f32 %v3974, 1.442695
    %v3978 = vpow.pop %v3977
    %v3979 = vadd.f32 %v3976, 1.0
    %v3980 = vadd.f32 %v3978, 1.0
    %v3981 = vrcp.pop %v3979
    %v3982 = vmul.f32 1.0, %v3981
    %v3983 = vrcp.pop %v3980
    %v3984 = vmul.f32 1.0, %v3983
    %v3985 = vmul.f32 %v3968, %v3493
    %v3986 = vmul.f32 %v3970, %v3494
    %v3987 = vmul.f32 %v3956, %v3971
    %v3988 = vmul.f32 %v3958, %v3972
    %v3989 = vadd.f32 %v3985, %v3987
    %v3990 = vadd.f32 %v3986, %v3988
    %v3991 = vtanh.pop %v3989
    %v3992 = vtanh.pop %v3990
    %v3993 = vmul.f32 %v3982, %v3991
    %v3994 = vmul.f32 %v3984, %v3992
    %v3995 = vld [vmem:[#allocation2] sm:$0xc0]
    %v3996 = vld [vmem:[#allocation2 + $0x8] sm:$0xc0]
    %v3997 = vld [vmem:[#allocation2 + $0x10] sm:$0xc0]
    %v3998 = vld [vmem:[#allocation2 + $0x18] sm:$0xc0]
    %v3999 = vld [vmem:[#allocation2 + $0x20] sm:$0xc0]
    %v4000 = vld [vmem:[#allocation2 + $0x28] sm:$0xc0]
    %v4001 = vld [vmem:[#allocation2 + $0x30] sm:$0xc0]
    %v4002 = vld [vmem:[#allocation2 + $0x38] sm:$0xc0]
    %v4003 = vld [vmem:[#allocation2 + $0xc0] sm:$0x3]
    %v4004 = vld [vmem:[#allocation2 + $0xc8] sm:$0x3]
    %v4005 = vld [vmem:[#allocation2 + $0xd0] sm:$0x3]
    %v4006 = vld [vmem:[#allocation2 + $0xd8] sm:$0x3]
    %v4007 = vld [vmem:[#allocation2 + $0xe0] sm:$0x3]
    %v4008 = vld [vmem:[#allocation2 + $0xe8] sm:$0x3]
    %v4009 = vld [vmem:[#allocation2 + $0xf0] sm:$0x3]
    %v4010 = vld [vmem:[#allocation2 + $0xf8] sm:$0x3]
    %v4011 = vpack.c.bf16 %v3993, %v3993
    %v4012 = vpack.c.bf16 %v3994, %v3994
    %4013 = vmatprep.subr.bf16.mxu0 %v2030
    %4014 = vmatpush1.bf16.msra.mxu0 %v2029
    %4015 = vmatprep.subr.bf16.mxu0 %v2022
    %4016 = vmatpush1.bf16.msra.mxu0 %v2021
    %4017 = vmatprep.subr.bf16.mxu0 %v2014
    %4018 = vmatpush1.bf16.msra.mxu0 %v2013
    %4019 = vmatprep.subr.bf16.mxu0 %v2006
    %4020 = vmatpush1.bf16.msra.mxu0 %v2005
    %4021 = vmatprep.subr.bf16.mxu0 %v1998
    %4022 = vmatpush1.bf16.msra.mxu0 %v1997
    %4023 = vmatprep.subr.bf16.mxu0 %v1990
    %4024 = vmatpush1.bf16.msra.mxu0 %v1989
    %4025 = vmatprep.subr.bf16.mxu0 %v1982
    %4026 = vmatpush1.bf16.msra.mxu0 %v1981
    %4027 = vmatprep.subr.bf16.mxu0 %v1974
    %4028 = vmatpush1.bf16.msra.mxu0 %v1973
    %4029 = vmatprep.subr.bf16.mxu0 %v2094
    %4030 = vmatpush2.bf16.msra.mxu0 %v2093
    %4031 = vmatprep.subr.bf16.mxu0 %v2086
    %4032 = vmatpush2.bf16.msra.mxu0 %v2085
    %4033 = vmatprep.subr.bf16.mxu0 %v2078
    %4034 = vmatpush2.bf16.msra.mxu0 %v2077
    %4035 = vmatprep.subr.bf16.mxu0 %v2070
    %4036 = vmatpush2.bf16.msra.mxu0 %v2069
    %4037 = vmatprep.subr.bf16.mxu0 %v2062
    %4038 = vmatpush2.bf16.msra.mxu0 %v2061
    %4039 = vmatprep.subr.bf16.mxu0 %v2054
    %4040 = vmatpush2.bf16.msra.mxu0 %v2053
    %4041 = vmatprep.subr.bf16.mxu0 %v2046
    %4042 = vmatpush2.bf16.msra.mxu0 %v2045
    %4043 = vmatprep.subr.bf16.mxu0 %v2038
    %4044 = vmatpush2.bf16.msra.mxu0 %v2037
    %4045 = vmatprep.mubr.bf16.mxu0 %v4012
    %4046 = vmatmul.mubr.bf16.gmra.mxu0 %v4011
    %v4047 = vpop.f32.mrf.mxu0
    %v4048 = vadd.f32 0.0, %v4047
    %v4049 = vpop.f32.mrf.mxu0
    %v4050 = vadd.f32 0.0, %v4049
    %v4051 = vpop.f32.mrf.mxu0
    %v4052 = vpop.f32.mrf.mxu0
    %4053 = vdwg.mxu0
    %4054 = vmatprep.subr.bf16.mxu0 %v2032
    %4055 = vmatpush1.bf16.msra.mxu0 %v2031
    %4056 = vmatprep.subr.bf16.mxu0 %v2024
    %4057 = vmatpush1.bf16.msra.mxu0 %v2023
    %4058 = vmatprep.subr.bf16.mxu0 %v2016
    %4059 = vmatpush1.bf16.msra.mxu0 %v2015
    %4060 = vmatprep.subr.bf16.mxu0 %v2008
    %4061 = vmatpush1.bf16.msra.mxu0 %v2007
    %4062 = vmatprep.subr.bf16.mxu0 %v2000
    %4063 = vmatpush1.bf16.msra.mxu0 %v1999
    %4064 = vmatprep.subr.bf16.mxu0 %v1992
    %4065 = vmatpush1.bf16.msra.mxu0 %v1991
    %4066 = vmatprep.subr.bf16.mxu0 %v1984
    %4067 = vmatpush1.bf16.msra.mxu0 %v1983
    %4068 = vmatprep.subr.bf16.mxu0 %v1976
    %4069 = vmatpush1.bf16.msra.mxu0 %v1975
    %4070 = vmatprep.subr.bf16.mxu0 %v2096
    %4071 = vmatpush2.bf16.msra.mxu0 %v2095
    %4072 = vmatprep.subr.bf16.mxu0 %v2088
    %4073 = vmatpush2.bf16.msra.mxu0 %v2087
    %4074 = vmatprep.subr.bf16.mxu0 %v2080
    %4075 = vmatpush2.bf16.msra.mxu0 %v2079
    %4076 = vmatprep.subr.bf16.mxu0 %v2072
    %4077 = vmatpush2.bf16.msra.mxu0 %v2071
    %4078 = vmatprep.subr.bf16.mxu0 %v2064
    %4079 = vmatpush2.bf16.msra.mxu0 %v2063
    %4080 = vmatprep.subr.bf16.mxu0 %v2056
    %4081 = vmatpush2.bf16.msra.mxu0 %v2055
    %4082 = vmatprep.subr.bf16.mxu0 %v2048
    %4083 = vmatpush2.bf16.msra.mxu0 %v2047
    %4084 = vmatprep.subr.bf16.mxu0 %v2040
    %4085 = vmatpush2.bf16.msra.mxu0 %v2039
    %4086 = vmatprep.mubr.bf16.mxu0 %v4012
    %4087 = vmatmul.mubr.bf16.gmra.mxu0 %v4011
    %v4088 = vpop.f32.mrf.mxu0
    %v4089 = vadd.f32 0.0, %v4088
    %v4090 = vpop.f32.mrf.mxu0
    %v4091 = vadd.f32 0.0, %v4090
    %v4092 = vpop.f32.mrf.mxu0
    %v4093 = vpop.f32.mrf.mxu0
    %4094 = vdwg.mxu0
    %4095 = vmatprep.subr.bf16.mxu0 %v2034
    %4096 = vmatpush1.bf16.msra.mxu0 %v2033
    %4097 = vmatprep.subr.bf16.mxu0 %v2026
    %4098 = vmatpush1.bf16.msra.mxu0 %v2025
    %4099 = vmatprep.subr.bf16.mxu0 %v2018
    %4100 = vmatpush1.bf16.msra.mxu0 %v2017
    %4101 = vmatprep.subr.bf16.mxu0 %v2010
    %4102 = vmatpush1.bf16.msra.mxu0 %v2009
    %4103 = vmatprep.subr.bf16.mxu0 %v2002
    %4104 = vmatpush1.bf16.msra.mxu0 %v2001
    %4105 = vmatprep.subr.bf16.mxu0 %v1994
    %4106 = vmatpush1.bf16.msra.mxu0 %v1993
    %4107 = vmatprep.subr.bf16.mxu0 %v1986
    %4108 = vmatpush1.bf16.msra.mxu0 %v1985
    %4109 = vmatprep.subr.bf16.mxu0 %v1978
    %4110 = vmatpush1.bf16.msra.mxu0 %v1977
    %4111 = vmatprep.subr.bf16.mxu0 %v2098
    %4112 = vmatpush2.bf16.msra.mxu0 %v2097
    %4113 = vmatprep.subr.bf16.mxu0 %v2090
    %4114 = vmatpush2.bf16.msra.mxu0 %v2089
    %4115 = vmatprep.subr.bf16.mxu0 %v2082
    %4116 = vmatpush2.bf16.msra.mxu0 %v2081
    %4117 = vmatprep.subr.bf16.mxu0 %v2074
    %4118 = vmatpush2.bf16.msra.mxu0 %v2073
    %4119 = vmatprep.subr.bf16.mxu0 %v2066
    %4120 = vmatpush2.bf16.msra.mxu0 %v2065
    %4121 = vmatprep.subr.bf16.mxu0 %v2058
    %4122 = vmatpush2.bf16.msra.mxu0 %v2057
    %4123 = vmatprep.subr.bf16.mxu0 %v2050
    %4124 = vmatpush2.bf16.msra.mxu0 %v2049
    %4125 = vmatprep.subr.bf16.mxu0 %v2042
    %4126 = vmatpush2.bf16.msra.mxu0 %v2041
    %4127 = vmatprep.mubr.bf16.mxu0 %v4012
    %4128 = vmatmul.mubr.bf16.gmra.mxu0 %v4011
    %v4129 = vpop.f32.mrf.mxu0
    %v4130 = vadd.f32 0.0, %v4129
    %v4131 = vpop.f32.mrf.mxu0
    %v4132 = vadd.f32 0.0, %v4131
    %v4133 = vpop.f32.mrf.mxu0
    %v4134 = vpop.f32.mrf.mxu0
    %4135 = vdwg.mxu0
    %4136 = vmatprep.subr.bf16.mxu0 %v2036
    %4137 = vmatpush1.bf16.msra.mxu0 %v2035
    %4138 = vmatprep.subr.bf16.mxu0 %v2028
    %4139 = vmatpush1.bf16.msra.mxu0 %v2027
    %4140 = vmatprep.subr.bf16.mxu0 %v2020
    %4141 = vmatpush1.bf16.msra.mxu0 %v2019
    %4142 = vmatprep.subr.bf16.mxu0 %v2012
    %4143 = vmatpush1.bf16.msra.mxu0 %v2011
    %4144 = vmatprep.subr.bf16.mxu0 %v2004
    %4145 = vmatpush1.bf16.msra.mxu0 %v2003
    %4146 = vmatprep.subr.bf16.mxu0 %v1996
    %4147 = vmatpush1.bf16.msra.mxu0 %v1995
    %4148 = vmatprep.subr.bf16.mxu0 %v1988
    %4149 = vmatpush1.bf16.msra.mxu0 %v1987
    %4150 = vmatprep.subr.bf16.mxu0 %v1980
    %4151 = vmatpush1.bf16.msra.mxu0 %v1979
    %4152 = vmatprep.subr.bf16.mxu0 %v2100
    %4153 = vmatpush2.bf16.msra.mxu0 %v2099
    %4154 = vmatprep.subr.bf16.mxu0 %v2092
    %4155 = vmatpush2.bf16.msra.mxu0 %v2091
    %4156 = vmatprep.subr.bf16.mxu0 %v2084
    %4157 = vmatpush2.bf16.msra.mxu0 %v2083
    %4158 = vmatprep.subr.bf16.mxu0 %v2076
    %4159 = vmatpush2.bf16.msra.mxu0 %v2075
    %4160 = vmatprep.subr.bf16.mxu0 %v2068
    %4161 = vmatpush2.bf16.msra.mxu0 %v2067
    %4162 = vmatprep.subr.bf16.mxu0 %v2060
    %4163 = vmatpush2.bf16.msra.mxu0 %v2059
    %4164 = vmatprep.subr.bf16.mxu0 %v2052
    %4165 = vmatpush2.bf16.msra.mxu0 %v2051
    %4166 = vmatprep.subr.bf16.mxu0 %v2044
    %4167 = vmatpush2.bf16.msra.mxu0 %v2043
    %4168 = vmatprep.mubr.bf16.mxu0 %v4012
    %4169 = vmatmul.mubr.bf16.gmra.mxu0 %v4011
    %v4170 = vpop.f32.mrf.mxu0
    %v4171 = vadd.f32 0.0, %v4170
    %v4172 = vpop.f32.mrf.mxu0
    %v4173 = vadd.f32 0.0, %v4172
    %v4174 = vpop.f32.mrf.mxu0
    %v4175 = vpop.f32.mrf.mxu0
    %4176 = vdwg.mxu0
    %v4179 = vrot.slane %v4011, 1
    %v4180 = vrot.slane %v4012, 1
    %4183 = vmatprep.subr.bf16.mxu0 %v2968
    %4184 = vmatpush1.bf16.msra.mxu0 %v2967
    %4185 = vmatprep.subr.bf16.mxu0 %v2960
    %4186 = vmatpush1.bf16.msra.mxu0 %v2959
    %4187 = vmatprep.subr.bf16.mxu0 %v2952
    %4188 = vmatpush1.bf16.msra.mxu0 %v2951
    %4189 = vmatprep.subr.bf16.mxu0 %v2944
    %4190 = vmatpush1.bf16.msra.mxu0 %v2943
    %4191 = vmatprep.subr.bf16.mxu0 %v2936
    %4192 = vmatpush1.bf16.msra.mxu0 %v2935
    %4193 = vmatprep.subr.bf16.mxu0 %v2928
    %4194 = vmatpush1.bf16.msra.mxu0 %v2927
    %4195 = vmatprep.subr.bf16.mxu0 %v2920
    %4196 = vmatpush1.bf16.msra.mxu0 %v2919
    %4197 = vmatprep.subr.bf16.mxu0 %v2912
    %4198 = vmatpush1.bf16.msra.mxu0 %v2911
    %4199 = vmatprep.subr.bf16.mxu0 %v3032
    %4200 = vmatpush2.bf16.msra.mxu0 %v3031
    %4201 = vmatprep.subr.bf16.mxu0 %v3024
    %4202 = vmatpush2.bf16.msra.mxu0 %v3023
    %4203 = vmatprep.subr.bf16.mxu0 %v3016
    %4204 = vmatpush2.bf16.msra.mxu0 %v3015
    %4205 = vmatprep.subr.bf16.mxu0 %v3008
    %4206 = vmatpush2.bf16.msra.mxu0 %v3007
    %4207 = vmatprep.subr.bf16.mxu0 %v3000
    %4208 = vmatpush2.bf16.msra.mxu0 %v2999
    %4209 = vmatprep.subr.bf16.mxu0 %v2992
    %4210 = vmatpush2.bf16.msra.mxu0 %v2991
    %4211 = vmatprep.subr.bf16.mxu0 %v2984
    %4212 = vmatpush2.bf16.msra.mxu0 %v2983
    %4213 = vmatprep.subr.bf16.mxu0 %v2976
    %4214 = vmatpush2.bf16.msra.mxu0 %v2975
    %4215 = vmatprep.mubr.bf16.mxu0 %v4180
    %4216 = vmatmul.mubr.bf16.gmra.mxu0 %v4179
    %v4217 = vpop.f32.mrf.mxu0
    %v4218 = vadd.f32 0.0, %v4217
    %v4219 = vpop.f32.mrf.mxu0
    %v4220 = vadd.f32 0.0, %v4219
    %v4221 = vpop.f32.mrf.mxu0
    %v4222 = vpop.f32.mrf.mxu0
    %4223 = vdwg.mxu0
    %4224 = vmatprep.subr.bf16.mxu0 %v2970
    %4225 = vmatpush1.bf16.msra.mxu0 %v2969
    %4226 = vmatprep.subr.bf16.mxu0 %v2962
    %4227 = vmatpush1.bf16.msra.mxu0 %v2961
    %4228 = vmatprep.subr.bf16.mxu0 %v2954
    %4229 = vmatpush1.bf16.msra.mxu0 %v2953
    %4230 = vmatprep.subr.bf16.mxu0 %v2946
    %4231 = vmatpush1.bf16.msra.mxu0 %v2945
    %4232 = vmatprep.subr.bf16.mxu0 %v2938
    %4233 = vmatpush1.bf16.msra.mxu0 %v2937
    %4234 = vmatprep.subr.bf16.mxu0 %v2930
    %4235 = vmatpush1.bf16.msra.mxu0 %v2929
    %4236 = vmatprep.subr.bf16.mxu0 %v2922
    %4237 = vmatpush1.bf16.msra.mxu0 %v2921
    %4238 = vmatprep.subr.bf16.mxu0 %v2914
    %4239 = vmatpush1.bf16.msra.mxu0 %v2913
    %4240 = vmatprep.subr.bf16.mxu0 %v3034
    %4241 = vmatpush2.bf16.msra.mxu0 %v3033
    %4242 = vmatprep.subr.bf16.mxu0 %v3026
    %4243 = vmatpush2.bf16.msra.mxu0 %v3025
    %4244 = vmatprep.subr.bf16.mxu0 %v3018
    %4245 = vmatpush2.bf16.msra.mxu0 %v3017
    %4246 = vmatprep.subr.bf16.mxu0 %v3010
    %4247 = vmatpush2.bf16.msra.mxu0 %v3009
    %4248 = vmatprep.subr.bf16.mxu0 %v3002
    %4249 = vmatpush2.bf16.msra.mxu0 %v3001
    %4250 = vmatprep.subr.bf16.mxu0 %v2994
    %4251 = vmatpush2.bf16.msra.mxu0 %v2993
    %4252 = vmatprep.subr.bf16.mxu0 %v2986
    %4253 = vmatpush2.bf16.msra.mxu0 %v2985
    %4254 = vmatprep.subr.bf16.mxu0 %v2978
    %4255 = vmatpush2.bf16.msra.mxu0 %v2977
    %4256 = vmatprep.mubr.bf16.mxu0 %v4180
    %4257 = vmatmul.mubr.bf16.gmra.mxu0 %v4179
    %v4258 = vpop.f32.mrf.mxu0
    %v4259 = vadd.f32 0.0, %v4258
    %v4260 = vpop.f32.mrf.mxu0
    %v4261 = vadd.f32 0.0, %v4260
    %v4262 = vpop.f32.mrf.mxu0
    %v4263 = vpop.f32.mrf.mxu0
    %4264 = vdwg.mxu0
    %4265 = vmatprep.subr.bf16.mxu0 %v2972
    %4266 = vmatpush1.bf16.msra.mxu0 %v2971
    %4267 = vmatprep.subr.bf16.mxu0 %v2964
    %4268 = vmatpush1.bf16.msra.mxu0 %v2963
    %4269 = vmatprep.subr.bf16.mxu0 %v2956
    %4270 = vmatpush1.bf16.msra.mxu0 %v2955
    %4271 = vmatprep.subr.bf16.mxu0 %v2948
    %4272 = vmatpush1.bf16.msra.mxu0 %v2947
    %4273 = vmatprep.subr.bf16.mxu0 %v2940
    %4274 = vmatpush1.bf16.msra.mxu0 %v2939
    %4275 = vmatprep.subr.bf16.mxu0 %v2932
    %4276 = vmatpush1.bf16.msra.mxu0 %v2931
    %4277 = vmatprep.subr.bf16.mxu0 %v2924
    %4278 = vmatpush1.bf16.msra.mxu0 %v2923
    %4279 = vmatprep.subr.bf16.mxu0 %v2916
    %4280 = vmatpush1.bf16.msra.mxu0 %v2915
    %4281 = vmatprep.subr.bf16.mxu0 %v3036
    %4282 = vmatpush2.bf16.msra.mxu0 %v3035
    %4283 = vmatprep.subr.bf16.mxu0 %v3028
    %4284 = vmatpush2.bf16.msra.mxu0 %v3027
    %4285 = vmatprep.subr.bf16.mxu0 %v3020
    %4286 = vmatpush2.bf16.msra.mxu0 %v3019
    %4287 = vmatprep.subr.bf16.mxu0 %v3012
    %4288 = vmatpush2.bf16.msra.mxu0 %v3011
    %4289 = vmatprep.subr.bf16.mxu0 %v3004
    %4290 = vmatpush2.bf16.msra.mxu0 %v3003
    %4291 = vmatprep.subr.bf16.mxu0 %v2996
    %4292 = vmatpush2.bf16.msra.mxu0 %v2995
    %4293 = vmatprep.subr.bf16.mxu0 %v2988
    %4294 = vmatpush2.bf16.msra.mxu0 %v2987
    %4295 = vmatprep.subr.bf16.mxu0 %v2980
    %4296 = vmatpush2.bf16.msra.mxu0 %v2979
    %4297 = vmatprep.mubr.bf16.mxu0 %v4180
    %4298 = vmatmul.mubr.bf16.gmra.mxu0 %v4179
    %v4299 = vpop.f32.mrf.mxu0
    %v4300 = vadd.f32 0.0, %v4299
    %v4301 = vpop.f32.mrf.mxu0
    %v4302 = vadd.f32 0.0, %v4301
    %v4303 = vpop.f32.mrf.mxu0
    %v4304 = vpop.f32.mrf.mxu0
    %4305 = vdwg.mxu0
    %4306 = vmatprep.subr.bf16.mxu0 %v2974
    %4307 = vmatpush1.bf16.msra.mxu0 %v2973
    %4308 = vmatprep.subr.bf16.mxu0 %v2966
    %4309 = vmatpush1.bf16.msra.mxu0 %v2965
    %4310 = vmatprep.subr.bf16.mxu0 %v2958
    %4311 = vmatpush1.bf16.msra.mxu0 %v2957
    %4312 = vmatprep.subr.bf16.mxu0 %v2950
    %4313 = vmatpush1.bf16.msra.mxu0 %v2949
    %4314 = vmatprep.subr.bf16.mxu0 %v2942
    %4315 = vmatpush1.bf16.msra.mxu0 %v2941
    %4316 = vmatprep.subr.bf16.mxu0 %v2934
    %4317 = vmatpush1.bf16.msra.mxu0 %v2933
    %4318 = vmatprep.subr.bf16.mxu0 %v2926
    %4319 = vmatpush1.bf16.msra.mxu0 %v2925
    %4320 = vmatprep.subr.bf16.mxu0 %v2918
    %4321 = vmatpush1.bf16.msra.mxu0 %v2917
    %4322 = vmatprep.subr.bf16.mxu0 %v3038
    %4323 = vmatpush2.bf16.msra.mxu0 %v3037
    %4324 = vmatprep.subr.bf16.mxu0 %v3030
    %4325 = vmatpush2.bf16.msra.mxu0 %v3029
    %4326 = vmatprep.subr.bf16.mxu0 %v3022
    %4327 = vmatpush2.bf16.msra.mxu0 %v3021
    %4328 = vmatprep.subr.bf16.mxu0 %v3014
    %4329 = vmatpush2.bf16.msra.mxu0 %v3013
    %4330 = vmatprep.subr.bf16.mxu0 %v3006
    %4331 = vmatpush2.bf16.msra.mxu0 %v3005
    %4332 = vmatprep.subr.bf16.mxu0 %v2998
    %4333 = vmatpush2.bf16.msra.mxu0 %v2997
    %4334 = vmatprep.subr.bf16.mxu0 %v2990
    %4335 = vmatpush2.bf16.msra.mxu0 %v2989
    %4336 = vmatprep.subr.bf16.mxu0 %v2982
    %4337 = vmatpush2.bf16.msra.mxu0 %v2981
    %4338 = vmatprep.mubr.bf16.mxu0 %v4180
    %4339 = vmatmul.mubr.bf16.gmra.mxu0 %v4179
    %v4340 = vpop.f32.mrf.mxu0
    %v4341 = vadd.f32 0.0, %v4340
    %v4342 = vpop.f32.mrf.mxu0
    %v4343 = vadd.f32 0.0, %v4342
    %v4344 = vpop.f32.mrf.mxu0
    %v4345 = vpop.f32.mrf.mxu0
    %4346 = vdwg.mxu0
    %v4355 = vrot.slane %v4048, 2
    %v4356 = vrot.slane %v4050, 2
    %v4357 = vrot.slane %v4089, 2
    %v4358 = vrot.slane %v4091, 2
    %v4359 = vrot.slane %v4130, 2
    %v4360 = vrot.slane %v4132, 2
    %v4361 = vrot.slane %v4171, 2
    %v4362 = vrot.slane %v4173, 2
    %v4371 = vadd.f32 %v3995, %v4355
    %v4372 = vadd.f32 %v3996, %v4356
    %v4373 = vadd.f32 %v3997, %v4357
    %v4374 = vadd.f32 %v3998, %v4358
    %v4375 = vadd.f32 %v3999, %v4359
    %v4376 = vadd.f32 %v4000, %v4360
    %v4377 = vadd.f32 %v4001, %v4361
    %v4378 = vadd.f32 %v4002, %v4362
    %v4379 = vadd.f32 %v4003, %v4218
    %v4380 = vadd.f32 %v4004, %v4220
    %v4381 = vadd.f32 %v4005, %v4259
    %v4382 = vadd.f32 %v4006, %v4261
    %v4383 = vadd.f32 %v4007, %v4300
    %v4384 = vadd.f32 %v4008, %v4302
    %v4385 = vadd.f32 %v4009, %v4341
    %v4386 = vadd.f32 %v4010, %v4343
    %v4395 = vrot.slane %v4371, 6
    %v4396 = vrot.slane %v4372, 6
    %v4397 = vrot.slane %v4373, 6
    %v4398 = vrot.slane %v4374, 6
    %v4399 = vrot.slane %v4375, 6
    %v4400 = vrot.slane %v4376, 6
    %v4401 = vrot.slane %v4377, 6
    %v4402 = vrot.slane %v4378, 6
    %v4419 = vrot.slane %v4379, 6
    %v4420 = vrot.slane %v4380, 6
    %v4421 = vrot.slane %v4381, 6
    %v4422 = vrot.slane %v4382, 6
    %v4423 = vrot.slane %v4383, 6
    %v4424 = vrot.slane %v4384, 6
    %v4425 = vrot.slane %v4385, 6
    %v4426 = vrot.slane %v4386, 6
    %v4435 = vsel %vm1386, %v4395, %v4419
    %v4436 = vsel %vm1386, %v4396, %v4420
    %v4437 = vsel %vm1386, %v4397, %v4421
    %v4438 = vsel %vm1386, %v4398, %v4422
    %v4439 = vsel %vm1386, %v4399, %v4423
    %v4440 = vsel %vm1386, %v4400, %v4424
    %v4441 = vsel %vm1386, %v4401, %v4425
    %v4442 = vsel %vm1386, %v4402, %v4426
    %v4443 = vxor.u32 %v4435, 2147483648
    %v4444 = vxor.u32 %v4436, 2147483648
    %v4445 = vmul.f32 %v4443, 1.442695
    %v4446 = vpow.pop %v4445
    %v4447 = vmul.f32 %v4444, 1.442695
    %v4448 = vpow.pop %v4447
    %v4449 = vadd.f32 %v4446, 1.0
    %v4450 = vadd.f32 %v4448, 1.0
    %v4451 = vrcp.pop %v4449
    %v4452 = vmul.f32 1.0, %v4451
    %v4453 = vrcp.pop %v4450
    %v4454 = vmul.f32 1.0, %v4453
    %v4455 = vxor.u32 %v4437, 2147483648
    %v4456 = vxor.u32 %v4438, 2147483648
    %v4457 = vmul.f32 %v4455, 1.442695
    %v4458 = vpow.pop %v4457
    %v4459 = vmul.f32 %v4456, 1.442695
    %v4460 = vpow.pop %v4459
    %v4461 = vadd.f32 %v4458, 1.0
    %v4462 = vadd.f32 %v4460, 1.0
    %v4463 = vrcp.pop %v4461
    %v4464 = vmul.f32 1.0, %v4463
    %v4465 = vrcp.pop %v4462
    %v4466 = vmul.f32 1.0, %v4465
    %v4467 = vtanh.pop %v4439
    %v4468 = vtanh.pop %v4440
    %v4469 = vxor.u32 %v4441, 2147483648
    %v4470 = vxor.u32 %v4442, 2147483648
    %v4471 = vmul.f32 %v4469, 1.442695
    %v4472 = vpow.pop %v4471
    %v4473 = vmul.f32 %v4470, 1.442695
    %v4474 = vpow.pop %v4473
    %v4475 = vadd.f32 %v4472, 1.0
    %v4476 = vadd.f32 %v4474, 1.0
    %v4477 = vrcp.pop %v4475
    %v4478 = vmul.f32 1.0, %v4477
    %v4479 = vrcp.pop %v4476
    %v4480 = vmul.f32 1.0, %v4479
    %v4481 = vmul.f32 %v4464, %v3989
    %v4482 = vmul.f32 %v4466, %v3990
    %v4483 = vmul.f32 %v4452, %v4467
    %v4484 = vmul.f32 %v4454, %v4468
    %v4485 = vadd.f32 %v4481, %v4483
    %v4486 = vadd.f32 %v4482, %v4484
    %v4487 = vtanh.pop %v4485
    %v4488 = vtanh.pop %v4486
    %v4489 = vmul.f32 %v4478, %v4487
    %v4490 = vmul.f32 %v4480, %v4488
    %v4493 = vrot.slane %v3497, 6
    %v4494 = vrot.slane %v3498, 6
    %v4499 = vrot.slane %v3993, 4
    %v4500 = vrot.slane %v3994, 4
    %v4505 = vrot.slane %v4489, 2
    %v4506 = vrot.slane %v4490, 2
    %v4509 = vsel %vm1386, %v1441, %v4493
    %v4510 = vsel %vm1386, %v1442, %v4494
    %vm4511 = vcmask 1043456
    %v4512 = vsel %vm4511, %v4509, %v4499
    %v4513 = vsel %vm4511, %v4510, %v4500
    %vm4514 = vcmask 1045504
    %v4515 = vsel %vm4514, %v4512, %v4505
    %v4516 = vsel %vm4514, %v4513, %v4506
    %4517 = vst [vmem:[#allocation3] sm:$0xff] %v4515
    %4518 = vst [vmem:[#allocation3 + $0x8] sm:$0xff] %v4516
    %v4521 = vrot.slane %v1441, 4
    %v4522 = vrot.slane %v1442, 4
    %v4525 = vsel %vm1386, %v4505, %v3993
    %v4526 = vsel %vm1386, %v4506, %v3994
    %v4527 = vsel %vm4511, %v4525, %v4493
    %v4528 = vsel %vm4511, %v4526, %v4494
    %v4529 = vsel %vm4514, %v4527, %v4521
    %v4530 = vsel %vm4514, %v4528, %v4522
    %4531 = vst [vmem:[#allocation3 + $0x30] sm:$0xff] %v4529
    %4532 = vst [vmem:[#allocation3 + $0x38] sm:$0xff] %v4530
    %v4533 = vld [vmem:[#allocation2 + $0x80] sm:$0x3]
    %v4534 = vld [vmem:[#allocation2 + $0x88] sm:$0x3]
    %v4535 = vld [vmem:[#allocation2 + $0x90] sm:$0x3]
    %v4536 = vld [vmem:[#allocation2 + $0x98] sm:$0x3]
    %v4537 = vld [vmem:[#allocation2 + $0xa0] sm:$0x3]
    %v4538 = vld [vmem:[#allocation2 + $0xa8] sm:$0x3]
    %v4539 = vld [vmem:[#allocation2 + $0xb0] sm:$0x3]
    %v4540 = vld [vmem:[#allocation2 + $0xb8] sm:$0x3]
    %v4541 = vld [vmem:[#allocation2 + $0x40] sm:$0xc0]
    %v4542 = vld [vmem:[#allocation2 + $0x48] sm:$0xc0]
    %v4543 = vld [vmem:[#allocation2 + $0x50] sm:$0xc0]
    %v4544 = vld [vmem:[#allocation2 + $0x58] sm:$0xc0]
    %v4545 = vld [vmem:[#allocation2 + $0x60] sm:$0xc0]
    %v4546 = vld [vmem:[#allocation2 + $0x68] sm:$0xc0]
    %v4547 = vld [vmem:[#allocation2 + $0x70] sm:$0xc0]
    %v4548 = vld [vmem:[#allocation2 + $0x78] sm:$0xc0]
    %v4549 = vpack.c.bf16 %v4489, %v4489
    %v4550 = vpack.c.bf16 %v4490, %v4490
    %v4551 = vld [vmem:[#allocation13] sm:$0xff]
    %v4552 = vld [vmem:[#allocation13 + $0x8] sm:$0xff]
    %v4553 = vld [vmem:[#allocation13 + $0x10] sm:$0xff]
    %v4554 = vld [vmem:[#allocation13 + $0x18] sm:$0xff]
    %v4555 = vld [vmem:[#allocation13 + $0x20] sm:$0xff]
    %v4556 = vld [vmem:[#allocation13 + $0x28] sm:$0xff]
    %v4557 = vld [vmem:[#allocation13 + $0x30] sm:$0xff]
    %v4558 = vld [vmem:[#allocation13 + $0x38] sm:$0xff]
    %v4559 = vld [vmem:[#allocation13 + $0x40] sm:$0xff]
    %v4560 = vld [vmem:[#allocation13 + $0x48] sm:$0xff]
    %v4561 = vld [vmem:[#allocation13 + $0x50] sm:$0xff]
    %v4562 = vld [vmem:[#allocation13 + $0x58] sm:$0xff]
    %v4563 = vld [vmem:[#allocation13 + $0x60] sm:$0xff]
    %v4564 = vld [vmem:[#allocation13 + $0x68] sm:$0xff]
    %v4565 = vld [vmem:[#allocation13 + $0x70] sm:$0xff]
    %v4566 = vld [vmem:[#allocation13 + $0x78] sm:$0xff]
    %v4567 = vld [vmem:[#allocation13 + $0x80] sm:$0xff]
    %v4568 = vld [vmem:[#allocation13 + $0x88] sm:$0xff]
    %v4569 = vld [vmem:[#allocation13 + $0x90] sm:$0xff]
    %v4570 = vld [vmem:[#allocation13 + $0x98] sm:$0xff]
    %v4571 = vld [vmem:[#allocation13 + $0xa0] sm:$0xff]
    %v4572 = vld [vmem:[#allocation13 + $0xa8] sm:$0xff]
    %v4573 = vld [vmem:[#allocation13 + $0xb0] sm:$0xff]
    %v4574 = vld [vmem:[#allocation13 + $0xb8] sm:$0xff]
    %v4575 = vld [vmem:[#allocation13 + $0xc0] sm:$0xff]
    %v4576 = vld [vmem:[#allocation13 + $0xc8] sm:$0xff]
    %v4577 = vld [vmem:[#allocation13 + $0xd0] sm:$0xff]
    %v4578 = vld [vmem:[#allocation13 + $0xd8] sm:$0xff]
    %v4579 = vld [vmem:[#allocation13 + $0xe0] sm:$0xff]
    %v4580 = vld [vmem:[#allocation13 + $0xe8] sm:$0xff]
    %v4581 = vld [vmem:[#allocation13 + $0xf0] sm:$0xff]
    %v4582 = vld [vmem:[#allocation13 + $0xf8] sm:$0xff]
    %v4583 = vld [vmem:[#allocation13 + $0x100] sm:$0xff]
    %v4584 = vld [vmem:[#allocation13 + $0x108] sm:$0xff]
    %v4585 = vld [vmem:[#allocation13 + $0x110] sm:$0xff]
    %v4586 = vld [vmem:[#allocation13 + $0x118] sm:$0xff]
    %v4587 = vld [vmem:[#allocation13 + $0x120] sm:$0xff]
    %v4588 = vld [vmem:[#allocation13 + $0x128] sm:$0xff]
    %v4589 = vld [vmem:[#allocation13 + $0x130] sm:$0xff]
    %v4590 = vld [vmem:[#allocation13 + $0x138] sm:$0xff]
    %v4591 = vld [vmem:[#allocation13 + $0x140] sm:$0xff]
    %v4592 = vld [vmem:[#allocation13 + $0x148] sm:$0xff]
    %v4593 = vld [vmem:[#allocation13 + $0x150] sm:$0xff]
    %v4594 = vld [vmem:[#allocation13 + $0x158] sm:$0xff]
    %v4595 = vld [vmem:[#allocation13 + $0x160] sm:$0xff]
    %v4596 = vld [vmem:[#allocation13 + $0x168] sm:$0xff]
    %v4597 = vld [vmem:[#allocation13 + $0x170] sm:$0xff]
    %v4598 = vld [vmem:[#allocation13 + $0x178] sm:$0xff]
    %v4599 = vld [vmem:[#allocation13 + $0x180] sm:$0xff]
    %v4600 = vld [vmem:[#allocation13 + $0x188] sm:$0xff]
    %v4601 = vld [vmem:[#allocation13 + $0x190] sm:$0xff]
    %v4602 = vld [vmem:[#allocation13 + $0x198] sm:$0xff]
    %v4603 = vld [vmem:[#allocation13 + $0x1a0] sm:$0xff]
    %v4604 = vld [vmem:[#allocation13 + $0x1a8] sm:$0xff]
    %v4605 = vld [vmem:[#allocation13 + $0x1b0] sm:$0xff]
    %v4606 = vld [vmem:[#allocation13 + $0x1b8] sm:$0xff]
    %v4607 = vld [vmem:[#allocation13 + $0x1c0] sm:$0xff]
    %v4608 = vld [vmem:[#allocation13 + $0x1c8] sm:$0xff]
    %v4609 = vld [vmem:[#allocation13 + $0x1d0] sm:$0xff]
    %v4610 = vld [vmem:[#allocation13 + $0x1d8] sm:$0xff]
    %v4611 = vld [vmem:[#allocation13 + $0x1e0] sm:$0xff]
    %v4612 = vld [vmem:[#allocation13 + $0x1e8] sm:$0xff]
    %v4613 = vld [vmem:[#allocation13 + $0x1f0] sm:$0xff]
    %v4614 = vld [vmem:[#allocation13 + $0x1f8] sm:$0xff]
    %v4615 = vld [vmem:[#allocation13 + $0x200] sm:$0xff]
    %v4616 = vld [vmem:[#allocation13 + $0x208] sm:$0xff]
    %v4617 = vld [vmem:[#allocation13 + $0x210] sm:$0xff]
    %v4618 = vld [vmem:[#allocation13 + $0x218] sm:$0xff]
    %v4619 = vld [vmem:[#allocation13 + $0x220] sm:$0xff]
    %v4620 = vld [vmem:[#allocation13 + $0x228] sm:$0xff]
    %v4621 = vld [vmem:[#allocation13 + $0x230] sm:$0xff]
    %v4622 = vld [vmem:[#allocation13 + $0x238] sm:$0xff]
    %v4623 = vld [vmem:[#allocation13 + $0x240] sm:$0xff]
    %v4624 = vld [vmem:[#allocation13 + $0x248] sm:$0xff]
    %v4625 = vld [vmem:[#allocation13 + $0x250] sm:$0xff]
    %v4626 = vld [vmem:[#allocation13 + $0x258] sm:$0xff]
    %v4627 = vld [vmem:[#allocation13 + $0x260] sm:$0xff]
    %v4628 = vld [vmem:[#allocation13 + $0x268] sm:$0xff]
    %v4629 = vld [vmem:[#allocation13 + $0x270] sm:$0xff]
    %v4630 = vld [vmem:[#allocation13 + $0x278] sm:$0xff]
    %v4631 = vld [vmem:[#allocation13 + $0x280] sm:$0xff]
    %v4632 = vld [vmem:[#allocation13 + $0x288] sm:$0xff]
    %v4633 = vld [vmem:[#allocation13 + $0x290] sm:$0xff]
    %v4634 = vld [vmem:[#allocation13 + $0x298] sm:$0xff]
    %v4635 = vld [vmem:[#allocation13 + $0x2a0] sm:$0xff]
    %v4636 = vld [vmem:[#allocation13 + $0x2a8] sm:$0xff]
    %v4637 = vld [vmem:[#allocation13 + $0x2b0] sm:$0xff]
    %v4638 = vld [vmem:[#allocation13 + $0x2b8] sm:$0xff]
    %v4639 = vld [vmem:[#allocation13 + $0x2c0] sm:$0xff]
    %v4640 = vld [vmem:[#allocation13 + $0x2c8] sm:$0xff]
    %v4641 = vld [vmem:[#allocation13 + $0x2d0] sm:$0xff]
    %v4642 = vld [vmem:[#allocation13 + $0x2d8] sm:$0xff]
    %v4643 = vld [vmem:[#allocation13 + $0x2e0] sm:$0xff]
    %v4644 = vld [vmem:[#allocation13 + $0x2e8] sm:$0xff]
    %v4645 = vld [vmem:[#allocation13 + $0x2f0] sm:$0xff]
    %v4646 = vld [vmem:[#allocation13 + $0x2f8] sm:$0xff]
    %v4647 = vld [vmem:[#allocation13 + $0x300] sm:$0xff]
    %v4648 = vld [vmem:[#allocation13 + $0x308] sm:$0xff]
    %v4649 = vld [vmem:[#allocation13 + $0x310] sm:$0xff]
    %v4650 = vld [vmem:[#allocation13 + $0x318] sm:$0xff]
    %v4651 = vld [vmem:[#allocation13 + $0x320] sm:$0xff]
    %v4652 = vld [vmem:[#allocation13 + $0x328] sm:$0xff]
    %v4653 = vld [vmem:[#allocation13 + $0x330] sm:$0xff]
    %v4654 = vld [vmem:[#allocation13 + $0x338] sm:$0xff]
    %v4655 = vld [vmem:[#allocation13 + $0x340] sm:$0xff]
    %v4656 = vld [vmem:[#allocation13 + $0x348] sm:$0xff]
    %v4657 = vld [vmem:[#allocation13 + $0x350] sm:$0xff]
    %v4658 = vld [vmem:[#allocation13 + $0x358] sm:$0xff]
    %v4659 = vld [vmem:[#allocation13 + $0x360] sm:$0xff]
    %v4660 = vld [vmem:[#allocation13 + $0x368] sm:$0xff]
    %v4661 = vld [vmem:[#allocation13 + $0x370] sm:$0xff]
    %v4662 = vld [vmem:[#allocation13 + $0x378] sm:$0xff]
    %v4663 = vld [vmem:[#allocation13 + $0x380] sm:$0xff]
    %v4664 = vld [vmem:[#allocation13 + $0x388] sm:$0xff]
    %v4665 = vld [vmem:[#allocation13 + $0x390] sm:$0xff]
    %v4666 = vld [vmem:[#allocation13 + $0x398] sm:$0xff]
    %v4667 = vld [vmem:[#allocation13 + $0x3a0] sm:$0xff]
    %v4668 = vld [vmem:[#allocation13 + $0x3a8] sm:$0xff]
    %v4669 = vld [vmem:[#allocation13 + $0x3b0] sm:$0xff]
    %v4670 = vld [vmem:[#allocation13 + $0x3b8] sm:$0xff]
    %v4671 = vld [vmem:[#allocation13 + $0x3c0] sm:$0xff]
    %v4672 = vld [vmem:[#allocation13 + $0x3c8] sm:$0xff]
    %v4673 = vld [vmem:[#allocation13 + $0x3d0] sm:$0xff]
    %v4674 = vld [vmem:[#allocation13 + $0x3d8] sm:$0xff]
    %v4675 = vld [vmem:[#allocation13 + $0x3e0] sm:$0xff]
    %v4676 = vld [vmem:[#allocation13 + $0x3e8] sm:$0xff]
    %v4677 = vld [vmem:[#allocation13 + $0x3f0] sm:$0xff]
    %v4678 = vld [vmem:[#allocation13 + $0x3f8] sm:$0xff]
    %v4807 = vunpack.c.l.b16 %v4551
    %v4808 = vunpack.c.h.b16 %v4551
    %v4809 = vunpack.c.l.b16 %v4552
    %v4810 = vunpack.c.h.b16 %v4552
    %v4811 = vunpack.c.l.b16 %v4553
    %v4812 = vunpack.c.h.b16 %v4553
    %v4813 = vunpack.c.l.b16 %v4554
    %v4814 = vunpack.c.h.b16 %v4554
    %v4815 = vunpack.c.l.b16 %v4555
    %v4816 = vunpack.c.h.b16 %v4555
    %v4817 = vunpack.c.l.b16 %v4556
    %v4818 = vunpack.c.h.b16 %v4556
    %v4819 = vunpack.c.l.b16 %v4557
    %v4820 = vunpack.c.h.b16 %v4557
    %v4821 = vunpack.c.l.b16 %v4558
    %v4822 = vunpack.c.h.b16 %v4558
    %v4823 = vunpack.c.l.b16 %v4559
    %v4824 = vunpack.c.h.b16 %v4559
    %v4825 = vunpack.c.l.b16 %v4560
    %v4826 = vunpack.c.h.b16 %v4560
    %v4827 = vunpack.c.l.b16 %v4561
    %v4828 = vunpack.c.h.b16 %v4561
    %v4829 = vunpack.c.l.b16 %v4562
    %v4830 = vunpack.c.h.b16 %v4562
    %v4831 = vunpack.c.l.b16 %v4563
    %v4832 = vunpack.c.h.b16 %v4563
    %v4833 = vunpack.c.l.b16 %v4564
    %v4834 = vunpack.c.h.b16 %v4564
    %v4835 = vunpack.c.l.b16 %v4565
    %v4836 = vunpack.c.h.b16 %v4565
    %v4837 = vunpack.c.l.b16 %v4566
    %v4838 = vunpack.c.h.b16 %v4566
    %v4839 = vunpack.c.l.b16 %v4567
    %v4840 = vunpack.c.h.b16 %v4567
    %v4841 = vunpack.c.l.b16 %v4568
    %v4842 = vunpack.c.h.b16 %v4568
    %v4843 = vunpack.c.l.b16 %v4569
    %v4844 = vunpack.c.h.b16 %v4569
    %v4845 = vunpack.c.l.b16 %v4570
    %v4846 = vunpack.c.h.b16 %v4570
    %v4847 = vunpack.c.l.b16 %v4571
    %v4848 = vunpack.c.h.b16 %v4571
    %v4849 = vunpack.c.l.b16 %v4572
    %v4850 = vunpack.c.h.b16 %v4572
    %v4851 = vunpack.c.l.b16 %v4573
    %v4852 = vunpack.c.h.b16 %v4573
    %v4853 = vunpack.c.l.b16 %v4574
    %v4854 = vunpack.c.h.b16 %v4574
    %v4855 = vunpack.c.l.b16 %v4575
    %v4856 = vunpack.c.h.b16 %v4575
    %v4857 = vunpack.c.l.b16 %v4576
    %v4858 = vunpack.c.h.b16 %v4576
    %v4859 = vunpack.c.l.b16 %v4577
    %v4860 = vunpack.c.h.b16 %v4577
    %v4861 = vunpack.c.l.b16 %v4578
    %v4862 = vunpack.c.h.b16 %v4578
    %v4863 = vunpack.c.l.b16 %v4579
    %v4864 = vunpack.c.h.b16 %v4579
    %v4865 = vunpack.c.l.b16 %v4580
    %v4866 = vunpack.c.h.b16 %v4580
    %v4867 = vunpack.c.l.b16 %v4581
    %v4868 = vunpack.c.h.b16 %v4581
    %v4869 = vunpack.c.l.b16 %v4582
    %v4870 = vunpack.c.h.b16 %v4582
    %v4871 = vunpack.c.l.b16 %v4583
    %v4872 = vunpack.c.h.b16 %v4583
    %v4873 = vunpack.c.l.b16 %v4584
    %v4874 = vunpack.c.h.b16 %v4584
    %v4875 = vunpack.c.l.b16 %v4585
    %v4876 = vunpack.c.h.b16 %v4585
    %v4877 = vunpack.c.l.b16 %v4586
    %v4878 = vunpack.c.h.b16 %v4586
    %v4879 = vunpack.c.l.b16 %v4587
    %v4880 = vunpack.c.h.b16 %v4587
    %v4881 = vunpack.c.l.b16 %v4588
    %v4882 = vunpack.c.h.b16 %v4588
    %v4883 = vunpack.c.l.b16 %v4589
    %v4884 = vunpack.c.h.b16 %v4589
    %v4885 = vunpack.c.l.b16 %v4590
    %v4886 = vunpack.c.h.b16 %v4590
    %v4887 = vunpack.c.l.b16 %v4591
    %v4888 = vunpack.c.h.b16 %v4591
    %v4889 = vunpack.c.l.b16 %v4592
    %v4890 = vunpack.c.h.b16 %v4592
    %v4891 = vunpack.c.l.b16 %v4593
    %v4892 = vunpack.c.h.b16 %v4593
    %v4893 = vunpack.c.l.b16 %v4594
    %v4894 = vunpack.c.h.b16 %v4594
    %v4895 = vunpack.c.l.b16 %v4595
    %v4896 = vunpack.c.h.b16 %v4595
    %v4897 = vunpack.c.l.b16 %v4596
    %v4898 = vunpack.c.h.b16 %v4596
    %v4899 = vunpack.c.l.b16 %v4597
    %v4900 = vunpack.c.h.b16 %v4597
    %v4901 = vunpack.c.l.b16 %v4598
    %v4902 = vunpack.c.h.b16 %v4598
    %v4903 = vunpack.c.l.b16 %v4599
    %v4904 = vunpack.c.h.b16 %v4599
    %v4905 = vunpack.c.l.b16 %v4600
    %v4906 = vunpack.c.h.b16 %v4600
    %v4907 = vunpack.c.l.b16 %v4601
    %v4908 = vunpack.c.h.b16 %v4601
    %v4909 = vunpack.c.l.b16 %v4602
    %v4910 = vunpack.c.h.b16 %v4602
    %v4911 = vunpack.c.l.b16 %v4603
    %v4912 = vunpack.c.h.b16 %v4603
    %v4913 = vunpack.c.l.b16 %v4604
    %v4914 = vunpack.c.h.b16 %v4604
    %v4915 = vunpack.c.l.b16 %v4605
    %v4916 = vunpack.c.h.b16 %v4605
    %v4917 = vunpack.c.l.b16 %v4606
    %v4918 = vunpack.c.h.b16 %v4606
    %v4919 = vunpack.c.l.b16 %v4607
    %v4920 = vunpack.c.h.b16 %v4607
    %v4921 = vunpack.c.l.b16 %v4608
    %v4922 = vunpack.c.h.b16 %v4608
    %v4923 = vunpack.c.l.b16 %v4609
    %v4924 = vunpack.c.h.b16 %v4609
    %v4925 = vunpack.c.l.b16 %v4610
    %v4926 = vunpack.c.h.b16 %v4610
    %v4927 = vunpack.c.l.b16 %v4611
    %v4928 = vunpack.c.h.b16 %v4611
    %v4929 = vunpack.c.l.b16 %v4612
    %v4930 = vunpack.c.h.b16 %v4612
    %v4931 = vunpack.c.l.b16 %v4613
    %v4932 = vunpack.c.h.b16 %v4613
    %v4933 = vunpack.c.l.b16 %v4614
    %v4934 = vunpack.c.h.b16 %v4614
    %v4935 = vunpack.c.l.b16 %v4615
    %v4936 = vunpack.c.h.b16 %v4615
    %v4937 = vunpack.c.l.b16 %v4616
    %v4938 = vunpack.c.h.b16 %v4616
    %v4939 = vunpack.c.l.b16 %v4617
    %v4940 = vunpack.c.h.b16 %v4617
    %v4941 = vunpack.c.l.b16 %v4618
    %v4942 = vunpack.c.h.b16 %v4618
    %v4943 = vunpack.c.l.b16 %v4619
    %v4944 = vunpack.c.h.b16 %v4619
    %v4945 = vunpack.c.l.b16 %v4620
    %v4946 = vunpack.c.h.b16 %v4620
    %v4947 = vunpack.c.l.b16 %v4621
    %v4948 = vunpack.c.h.b16 %v4621
    %v4949 = vunpack.c.l.b16 %v4622
    %v4950 = vunpack.c.h.b16 %v4622
    %v4951 = vunpack.c.l.b16 %v4623
    %v4952 = vunpack.c.h.b16 %v4623
    %v4953 = vunpack.c.l.b16 %v4624
    %v4954 = vunpack.c.h.b16 %v4624
    %v4955 = vunpack.c.l.b16 %v4625
    %v4956 = vunpack.c.h.b16 %v4625
    %v4957 = vunpack.c.l.b16 %v4626
    %v4958 = vunpack.c.h.b16 %v4626
    %v4959 = vunpack.c.l.b16 %v4627
    %v4960 = vunpack.c.h.b16 %v4627
    %v4961 = vunpack.c.l.b16 %v4628
    %v4962 = vunpack.c.h.b16 %v4628
    %v4963 = vunpack.c.l.b16 %v4629
    %v4964 = vunpack.c.h.b16 %v4629
    %v4965 = vunpack.c.l.b16 %v4630
    %v4966 = vunpack.c.h.b16 %v4630
    %v4967 = vunpack.c.l.b16 %v4631
    %v4968 = vunpack.c.h.b16 %v4631
    %v4969 = vunpack.c.l.b16 %v4632
    %v4970 = vunpack.c.h.b16 %v4632
    %v4971 = vunpack.c.l.b16 %v4633
    %v4972 = vunpack.c.h.b16 %v4633
    %v4973 = vunpack.c.l.b16 %v4634
    %v4974 = vunpack.c.h.b16 %v4634
    %v4975 = vunpack.c.l.b16 %v4635
    %v4976 = vunpack.c.h.b16 %v4635
    %v4977 = vunpack.c.l.b16 %v4636
    %v4978 = vunpack.c.h.b16 %v4636
    %v4979 = vunpack.c.l.b16 %v4637
    %v4980 = vunpack.c.h.b16 %v4637
    %v4981 = vunpack.c.l.b16 %v4638
    %v4982 = vunpack.c.h.b16 %v4638
    %v4983 = vunpack.c.l.b16 %v4639
    %v4984 = vunpack.c.h.b16 %v4639
    %v4985 = vunpack.c.l.b16 %v4640
    %v4986 = vunpack.c.h.b16 %v4640
    %v4987 = vunpack.c.l.b16 %v4641
    %v4988 = vunpack.c.h.b16 %v4641
    %v4989 = vunpack.c.l.b16 %v4642
    %v4990 = vunpack.c.h.b16 %v4642
    %v4991 = vunpack.c.l.b16 %v4643
    %v4992 = vunpack.c.h.b16 %v4643
    %v4993 = vunpack.c.l.b16 %v4644
    %v4994 = vunpack.c.h.b16 %v4644
    %v4995 = vunpack.c.l.b16 %v4645
    %v4996 = vunpack.c.h.b16 %v4645
    %v4997 = vunpack.c.l.b16 %v4646
    %v4998 = vunpack.c.h.b16 %v4646
    %v4999 = vunpack.c.l.b16 %v4647
    %v5000 = vunpack.c.h.b16 %v4647
    %v5001 = vunpack.c.l.b16 %v4648
    %v5002 = vunpack.c.h.b16 %v4648
    %v5003 = vunpack.c.l.b16 %v4649
    %v5004 = vunpack.c.h.b16 %v4649
    %v5005 = vunpack.c.l.b16 %v4650
    %v5006 = vunpack.c.h.b16 %v4650
    %v5007 = vunpack.c.l.b16 %v4651
    %v5008 = vunpack.c.h.b16 %v4651
    %v5009 = vunpack.c.l.b16 %v4652
    %v5010 = vunpack.c.h.b16 %v4652
    %v5011 = vunpack.c.l.b16 %v4653
    %v5012 = vunpack.c.h.b16 %v4653
    %v5013 = vunpack.c.l.b16 %v4654
    %v5014 = vunpack.c.h.b16 %v4654
    %v5015 = vunpack.c.l.b16 %v4655
    %v5016 = vunpack.c.h.b16 %v4655
    %v5017 = vunpack.c.l.b16 %v4656
    %v5018 = vunpack.c.h.b16 %v4656
    %v5019 = vunpack.c.l.b16 %v4657
    %v5020 = vunpack.c.h.b16 %v4657
    %v5021 = vunpack.c.l.b16 %v4658
    %v5022 = vunpack.c.h.b16 %v4658
    %v5023 = vunpack.c.l.b16 %v4659
    %v5024 = vunpack.c.h.b16 %v4659
    %v5025 = vunpack.c.l.b16 %v4660
    %v5026 = vunpack.c.h.b16 %v4660
    %v5027 = vunpack.c.l.b16 %v4661
    %v5028 = vunpack.c.h.b16 %v4661
    %v5029 = vunpack.c.l.b16 %v4662
    %v5030 = vunpack.c.h.b16 %v4662
    %v5031 = vunpack.c.l.b16 %v4663
    %v5032 = vunpack.c.h.b16 %v4663
    %v5033 = vunpack.c.l.b16 %v4664
    %v5034 = vunpack.c.h.b16 %v4664
    %v5035 = vunpack.c.l.b16 %v4665
    %v5036 = vunpack.c.h.b16 %v4665
    %v5037 = vunpack.c.l.b16 %v4666
    %v5038 = vunpack.c.h.b16 %v4666
    %v5039 = vunpack.c.l.b16 %v4667
    %v5040 = vunpack.c.h.b16 %v4667
    %v5041 = vunpack.c.l.b16 %v4668
    %v5042 = vunpack.c.h.b16 %v4668
    %v5043 = vunpack.c.l.b16 %v4669
    %v5044 = vunpack.c.h.b16 %v4669
    %v5045 = vunpack.c.l.b16 %v4670
    %v5046 = vunpack.c.h.b16 %v4670
    %v5047 = vunpack.c.l.b16 %v4671
    %v5048 = vunpack.c.h.b16 %v4671
    %v5049 = vunpack.c.l.b16 %v4672
    %v5050 = vunpack.c.h.b16 %v4672
    %v5051 = vunpack.c.l.b16 %v4673
    %v5052 = vunpack.c.h.b16 %v4673
    %v5053 = vunpack.c.l.b16 %v4674
    %v5054 = vunpack.c.h.b16 %v4674
    %v5055 = vunpack.c.l.b16 %v4675
    %v5056 = vunpack.c.h.b16 %v4675
    %v5057 = vunpack.c.l.b16 %v4676
    %v5058 = vunpack.c.h.b16 %v4676
    %v5059 = vunpack.c.l.b16 %v4677
    %v5060 = vunpack.c.h.b16 %v4677
    %v5061 = vunpack.c.l.b16 %v4678
    %v5062 = vunpack.c.h.b16 %v4678
    %v5063 = vpack.c.b16 %v4815, %v4807
    %v5064 = vpack.c.b16 %v4816, %v4808
    %v5065 = vpack.c.b16 %v4817, %v4809
    %v5066 = vpack.c.b16 %v4818, %v4810
    %v5067 = vpack.c.b16 %v4819, %v4811
    %v5068 = vpack.c.b16 %v4820, %v4812
    %v5069 = vpack.c.b16 %v4821, %v4813
    %v5070 = vpack.c.b16 %v4822, %v4814
    %v5071 = vpack.c.b16 %v4831, %v4823
    %v5072 = vpack.c.b16 %v4832, %v4824
    %v5073 = vpack.c.b16 %v4833, %v4825
    %v5074 = vpack.c.b16 %v4834, %v4826
    %v5075 = vpack.c.b16 %v4835, %v4827
    %v5076 = vpack.c.b16 %v4836, %v4828
    %v5077 = vpack.c.b16 %v4837, %v4829
    %v5078 = vpack.c.b16 %v4838, %v4830
    %v5079 = vpack.c.b16 %v4847, %v4839
    %v5080 = vpack.c.b16 %v4848, %v4840
    %v5081 = vpack.c.b16 %v4849, %v4841
    %v5082 = vpack.c.b16 %v4850, %v4842
    %v5083 = vpack.c.b16 %v4851, %v4843
    %v5084 = vpack.c.b16 %v4852, %v4844
    %v5085 = vpack.c.b16 %v4853, %v4845
    %v5086 = vpack.c.b16 %v4854, %v4846
    %v5087 = vpack.c.b16 %v4863, %v4855
    %v5088 = vpack.c.b16 %v4864, %v4856
    %v5089 = vpack.c.b16 %v4865, %v4857
    %v5090 = vpack.c.b16 %v4866, %v4858
    %v5091 = vpack.c.b16 %v4867, %v4859
    %v5092 = vpack.c.b16 %v4868, %v4860
    %v5093 = vpack.c.b16 %v4869, %v4861
    %v5094 = vpack.c.b16 %v4870, %v4862
    %v5095 = vpack.c.b16 %v4879, %v4871
    %v5096 = vpack.c.b16 %v4880, %v4872
    %v5097 = vpack.c.b16 %v4881, %v4873
    %v5098 = vpack.c.b16 %v4882, %v4874
    %v5099 = vpack.c.b16 %v4883, %v4875
    %v5100 = vpack.c.b16 %v4884, %v4876
    %v5101 = vpack.c.b16 %v4885, %v4877
    %v5102 = vpack.c.b16 %v4886, %v4878
    %v5103 = vpack.c.b16 %v4895, %v4887
    %v5104 = vpack.c.b16 %v4896, %v4888
    %v5105 = vpack.c.b16 %v4897, %v4889
    %v5106 = vpack.c.b16 %v4898, %v4890
    %v5107 = vpack.c.b16 %v4899, %v4891
    %v5108 = vpack.c.b16 %v4900, %v4892
    %v5109 = vpack.c.b16 %v4901, %v4893
    %v5110 = vpack.c.b16 %v4902, %v4894
    %v5111 = vpack.c.b16 %v4911, %v4903
    %v5112 = vpack.c.b16 %v4912, %v4904
    %v5113 = vpack.c.b16 %v4913, %v4905
    %v5114 = vpack.c.b16 %v4914, %v4906
    %v5115 = vpack.c.b16 %v4915, %v4907
    %v5116 = vpack.c.b16 %v4916, %v4908
    %v5117 = vpack.c.b16 %v4917, %v4909
    %v5118 = vpack.c.b16 %v4918, %v4910
    %v5119 = vpack.c.b16 %v4927, %v4919
    %v5120 = vpack.c.b16 %v4928, %v4920
    %v5121 = vpack.c.b16 %v4929, %v4921
    %v5122 = vpack.c.b16 %v4930, %v4922
    %v5123 = vpack.c.b16 %v4931, %v4923
    %v5124 = vpack.c.b16 %v4932, %v4924
    %v5125 = vpack.c.b16 %v4933, %v4925
    %v5126 = vpack.c.b16 %v4934, %v4926
    %v5127 = vpack.c.b16 %v4943, %v4935
    %v5128 = vpack.c.b16 %v4944, %v4936
    %v5129 = vpack.c.b16 %v4945, %v4937
    %v5130 = vpack.c.b16 %v4946, %v4938
    %v5131 = vpack.c.b16 %v4947, %v4939
    %v5132 = vpack.c.b16 %v4948, %v4940
    %v5133 = vpack.c.b16 %v4949, %v4941
    %v5134 = vpack.c.b16 %v4950, %v4942
    %v5135 = vpack.c.b16 %v4959, %v4951
    %v5136 = vpack.c.b16 %v4960, %v4952
    %v5137 = vpack.c.b16 %v4961, %v4953
    %v5138 = vpack.c.b16 %v4962, %v4954
    %v5139 = vpack.c.b16 %v4963, %v4955
    %v5140 = vpack.c.b16 %v4964, %v4956
    %v5141 = vpack.c.b16 %v4965, %v4957
    %v5142 = vpack.c.b16 %v4966, %v4958
    %v5143 = vpack.c.b16 %v4975, %v4967
    %v5144 = vpack.c.b16 %v4976, %v4968
    %v5145 = vpack.c.b16 %v4977, %v4969
    %v5146 = vpack.c.b16 %v4978, %v4970
    %v5147 = vpack.c.b16 %v4979, %v4971
    %v5148 = vpack.c.b16 %v4980, %v4972
    %v5149 = vpack.c.b16 %v4981, %v4973
    %v5150 = vpack.c.b16 %v4982, %v4974
    %v5151 = vpack.c.b16 %v4991, %v4983
    %v5152 = vpack.c.b16 %v4992, %v4984
    %v5153 = vpack.c.b16 %v4993, %v4985
    %v5154 = vpack.c.b16 %v4994, %v4986
    %v5155 = vpack.c.b16 %v4995, %v4987
    %v5156 = vpack.c.b16 %v4996, %v4988
    %v5157 = vpack.c.b16 %v4997, %v4989
    %v5158 = vpack.c.b16 %v4998, %v4990
    %v5159 = vpack.c.b16 %v5007, %v4999
    %v5160 = vpack.c.b16 %v5008, %v5000
    %v5161 = vpack.c.b16 %v5009, %v5001
    %v5162 = vpack.c.b16 %v5010, %v5002
    %v5163 = vpack.c.b16 %v5011, %v5003
    %v5164 = vpack.c.b16 %v5012, %v5004
    %v5165 = vpack.c.b16 %v5013, %v5005
    %v5166 = vpack.c.b16 %v5014, %v5006
    %v5167 = vpack.c.b16 %v5023, %v5015
    %v5168 = vpack.c.b16 %v5024, %v5016
    %v5169 = vpack.c.b16 %v5025, %v5017
    %v5170 = vpack.c.b16 %v5026, %v5018
    %v5171 = vpack.c.b16 %v5027, %v5019
    %v5172 = vpack.c.b16 %v5028, %v5020
    %v5173 = vpack.c.b16 %v5029, %v5021
    %v5174 = vpack.c.b16 %v5030, %v5022
    %v5175 = vpack.c.b16 %v5039, %v5031
    %v5176 = vpack.c.b16 %v5040, %v5032
    %v5177 = vpack.c.b16 %v5041, %v5033
    %v5178 = vpack.c.b16 %v5042, %v5034
    %v5179 = vpack.c.b16 %v5043, %v5035
    %v5180 = vpack.c.b16 %v5044, %v5036
    %v5181 = vpack.c.b16 %v5045, %v5037
    %v5182 = vpack.c.b16 %v5046, %v5038
    %v5183 = vpack.c.b16 %v5055, %v5047
    %v5184 = vpack.c.b16 %v5056, %v5048
    %v5185 = vpack.c.b16 %v5057, %v5049
    %v5186 = vpack.c.b16 %v5058, %v5050
    %v5187 = vpack.c.b16 %v5059, %v5051
    %v5188 = vpack.c.b16 %v5060, %v5052
    %v5189 = vpack.c.b16 %v5061, %v5053
    %v5190 = vpack.c.b16 %v5062, %v5054
    %5319 = vmatprep.subr.bf16.mxu0 %v5120
    %5320 = vmatpush1.bf16.msra.mxu0 %v5119
    %5321 = vmatprep.subr.bf16.mxu0 %v5112
    %5322 = vmatpush1.bf16.msra.mxu0 %v5111
    %5323 = vmatprep.subr.bf16.mxu0 %v5104
    %5324 = vmatpush1.bf16.msra.mxu0 %v5103
    %5325 = vmatprep.subr.bf16.mxu0 %v5096
    %5326 = vmatpush1.bf16.msra.mxu0 %v5095
    %5327 = vmatprep.subr.bf16.mxu0 %v5088
    %5328 = vmatpush1.bf16.msra.mxu0 %v5087
    %5329 = vmatprep.subr.bf16.mxu0 %v5080
    %5330 = vmatpush1.bf16.msra.mxu0 %v5079
    %5331 = vmatprep.subr.bf16.mxu0 %v5072
    %5332 = vmatpush1.bf16.msra.mxu0 %v5071
    %5333 = vmatprep.subr.bf16.mxu0 %v5064
    %5334 = vmatpush1.bf16.msra.mxu0 %v5063
    %5335 = vmatprep.subr.bf16.mxu0 %v5184
    %5336 = vmatpush2.bf16.msra.mxu0 %v5183
    %5337 = vmatprep.subr.bf16.mxu0 %v5176
    %5338 = vmatpush2.bf16.msra.mxu0 %v5175
    %5339 = vmatprep.subr.bf16.mxu0 %v5168
    %5340 = vmatpush2.bf16.msra.mxu0 %v5167
    %5341 = vmatprep.subr.bf16.mxu0 %v5160
    %5342 = vmatpush2.bf16.msra.mxu0 %v5159
    %5343 = vmatprep.subr.bf16.mxu0 %v5152
    %5344 = vmatpush2.bf16.msra.mxu0 %v5151
    %5345 = vmatprep.subr.bf16.mxu0 %v5144
    %5346 = vmatpush2.bf16.msra.mxu0 %v5143
    %5347 = vmatprep.subr.bf16.mxu0 %v5136
    %5348 = vmatpush2.bf16.msra.mxu0 %v5135
    %5349 = vmatprep.subr.bf16.mxu0 %v5128
    %5350 = vmatpush2.bf16.msra.mxu0 %v5127
    %5351 = vmatprep.mubr.bf16.mxu0 %v4550
    %5352 = vmatmul.mubr.bf16.gmra.mxu0 %v4549
    %v5353 = vpop.f32.mrf.mxu0
    %v5354 = vadd.f32 0.0, %v5353
    %v5355 = vpop.f32.mrf.mxu0
    %v5356 = vadd.f32 0.0, %v5355
    %v5357 = vpop.f32.mrf.mxu0
    %v5358 = vpop.f32.mrf.mxu0
    %5359 = vdwg.mxu0
    %5360 = vmatprep.subr.bf16.mxu0 %v5122
    %5361 = vmatpush1.bf16.msra.mxu0 %v5121
    %5362 = vmatprep.subr.bf16.mxu0 %v5114
    %5363 = vmatpush1.bf16.msra.mxu0 %v5113
    %5364 = vmatprep.subr.bf16.mxu0 %v5106
    %5365 = vmatpush1.bf16.msra.mxu0 %v5105
    %5366 = vmatprep.subr.bf16.mxu0 %v5098
    %5367 = vmatpush1.bf16.msra.mxu0 %v5097
    %5368 = vmatprep.subr.bf16.mxu0 %v5090
    %5369 = vmatpush1.bf16.msra.mxu0 %v5089
    %5370 = vmatprep.subr.bf16.mxu0 %v5082
    %5371 = vmatpush1.bf16.msra.mxu0 %v5081
    %5372 = vmatprep.subr.bf16.mxu0 %v5074
    %5373 = vmatpush1.bf16.msra.mxu0 %v5073
    %5374 = vmatprep.subr.bf16.mxu0 %v5066
    %5375 = vmatpush1.bf16.msra.mxu0 %v5065
    %5376 = vmatprep.subr.bf16.mxu0 %v5186
    %5377 = vmatpush2.bf16.msra.mxu0 %v5185
    %5378 = vmatprep.subr.bf16.mxu0 %v5178
    %5379 = vmatpush2.bf16.msra.mxu0 %v5177
    %5380 = vmatprep.subr.bf16.mxu0 %v5170
    %5381 = vmatpush2.bf16.msra.mxu0 %v5169
    %5382 = vmatprep.subr.bf16.mxu0 %v5162
    %5383 = vmatpush2.bf16.msra.mxu0 %v5161
    %5384 = vmatprep.subr.bf16.mxu0 %v5154
    %5385 = vmatpush2.bf16.msra.mxu0 %v5153
    %5386 = vmatprep.subr.bf16.mxu0 %v5146
    %5387 = vmatpush2.bf16.msra.mxu0 %v5145
    %5388 = vmatprep.subr.bf16.mxu0 %v5138
    %5389 = vmatpush2.bf16.msra.mxu0 %v5137
    %5390 = vmatprep.subr.bf16.mxu0 %v5130
    %5391 = vmatpush2.bf16.msra.mxu0 %v5129
    %5392 = vmatprep.mubr.bf16.mxu0 %v4550
    %5393 = vmatmul.mubr.bf16.gmra.mxu0 %v4549
    %v5394 = vpop.f32.mrf.mxu0
    %v5395 = vadd.f32 0.0, %v5394
    %v5396 = vpop.f32.mrf.mxu0
    %v5397 = vadd.f32 0.0, %v5396
    %v5398 = vpop.f32.mrf.mxu0
    %v5399 = vpop.f32.mrf.mxu0
    %5400 = vdwg.mxu0
    %5401 = vmatprep.subr.bf16.mxu0 %v5124
    %5402 = vmatpush1.bf16.msra.mxu0 %v5123
    %5403 = vmatprep.subr.bf16.mxu0 %v5116
    %5404 = vmatpush1.bf16.msra.mxu0 %v5115
    %5405 = vmatprep.subr.bf16.mxu0 %v5108
    %5406 = vmatpush1.bf16.msra.mxu0 %v5107
    %5407 = vmatprep.subr.bf16.mxu0 %v5100
    %5408 = vmatpush1.bf16.msra.mxu0 %v5099
    %5409 = vmatprep.subr.bf16.mxu0 %v5092
    %5410 = vmatpush1.bf16.msra.mxu0 %v5091
    %5411 = vmatprep.subr.bf16.mxu0 %v5084
    %5412 = vmatpush1.bf16.msra.mxu0 %v5083
    %5413 = vmatprep.subr.bf16.mxu0 %v5076
    %5414 = vmatpush1.bf16.msra.mxu0 %v5075
    %5415 = vmatprep.subr.bf16.mxu0 %v5068
    %5416 = vmatpush1.bf16.msra.mxu0 %v5067
    %5417 = vmatprep.subr.bf16.mxu0 %v5188
    %5418 = vmatpush2.bf16.msra.mxu0 %v5187
    %5419 = vmatprep.subr.bf16.mxu0 %v5180
    %5420 = vmatpush2.bf16.msra.mxu0 %v5179
    %5421 = vmatprep.subr.bf16.mxu0 %v5172
    %5422 = vmatpush2.bf16.msra.mxu0 %v5171
    %5423 = vmatprep.subr.bf16.mxu0 %v5164
    %5424 = vmatpush2.bf16.msra.mxu0 %v5163
    %5425 = vmatprep.subr.bf16.mxu0 %v5156
    %5426 = vmatpush2.bf16.msra.mxu0 %v5155
    %5427 = vmatprep.subr.bf16.mxu0 %v5148
    %5428 = vmatpush2.bf16.msra.mxu0 %v5147
    %5429 = vmatprep.subr.bf16.mxu0 %v5140
    %5430 = vmatpush2.bf16.msra.mxu0 %v5139
    %5431 = vmatprep.subr.bf16.mxu0 %v5132
    %5432 = vmatpush2.bf16.msra.mxu0 %v5131
    %5433 = vmatprep.mubr.bf16.mxu0 %v4550
    %5434 = vmatmul.mubr.bf16.gmra.mxu0 %v4549
    %v5435 = vpop.f32.mrf.mxu0
    %v5436 = vadd.f32 0.0, %v5435
    %v5437 = vpop.f32.mrf.mxu0
    %v5438 = vadd.f32 0.0, %v5437
    %v5439 = vpop.f32.mrf.mxu0
    %v5440 = vpop.f32.mrf.mxu0
    %5441 = vdwg.mxu0
    %5442 = vmatprep.subr.bf16.mxu0 %v5126
    %5443 = vmatpush1.bf16.msra.mxu0 %v5125
    %5444 = vmatprep.subr.bf16.mxu0 %v5118
    %5445 = vmatpush1.bf16.msra.mxu0 %v5117
    %5446 = vmatprep.subr.bf16.mxu0 %v5110
    %5447 = vmatpush1.bf16.msra.mxu0 %v5109
    %5448 = vmatprep.subr.bf16.mxu0 %v5102
    %5449 = vmatpush1.bf16.msra.mxu0 %v5101
    %5450 = vmatprep.subr.bf16.mxu0 %v5094
    %5451 = vmatpush1.bf16.msra.mxu0 %v5093
    %5452 = vmatprep.subr.bf16.mxu0 %v5086
    %5453 = vmatpush1.bf16.msra.mxu0 %v5085
    %5454 = vmatprep.subr.bf16.mxu0 %v5078
    %5455 = vmatpush1.bf16.msra.mxu0 %v5077
    %5456 = vmatprep.subr.bf16.mxu0 %v5070
    %5457 = vmatpush1.bf16.msra.mxu0 %v5069
    %5458 = vmatprep.subr.bf16.mxu0 %v5190
    %5459 = vmatpush2.bf16.msra.mxu0 %v5189
    %5460 = vmatprep.subr.bf16.mxu0 %v5182
    %5461 = vmatpush2.bf16.msra.mxu0 %v5181
    %5462 = vmatprep.subr.bf16.mxu0 %v5174
    %5463 = vmatpush2.bf16.msra.mxu0 %v5173
    %5464 = vmatprep.subr.bf16.mxu0 %v5166
    %5465 = vmatpush2.bf16.msra.mxu0 %v5165
    %5466 = vmatprep.subr.bf16.mxu0 %v5158
    %5467 = vmatpush2.bf16.msra.mxu0 %v5157
    %5468 = vmatprep.subr.bf16.mxu0 %v5150
    %5469 = vmatpush2.bf16.msra.mxu0 %v5149
    %5470 = vmatprep.subr.bf16.mxu0 %v5142
    %5471 = vmatpush2.bf16.msra.mxu0 %v5141
    %5472 = vmatprep.subr.bf16.mxu0 %v5134
    %5473 = vmatpush2.bf16.msra.mxu0 %v5133
    %5474 = vmatprep.mubr.bf16.mxu0 %v4550
    %5475 = vmatmul.mubr.bf16.gmra.mxu0 %v4549
    %v5476 = vpop.f32.mrf.mxu0
    %v5477 = vadd.f32 0.0, %v5476
    %v5478 = vpop.f32.mrf.mxu0
    %v5479 = vadd.f32 0.0, %v5478
    %v5480 = vpop.f32.mrf.mxu0
    %v5481 = vpop.f32.mrf.mxu0
    %5482 = vdwg.mxu0
    %v5483 = vld [vmem:[#allocation15] sm:$0xff]
    %v5484 = vld [vmem:[#allocation15 + $0x8] sm:$0xff]
    %v5485 = vld [vmem:[#allocation15 + $0x10] sm:$0xff]
    %v5486 = vld [vmem:[#allocation15 + $0x18] sm:$0xff]
    %v5487 = vld [vmem:[#allocation15 + $0x20] sm:$0xff]
    %v5488 = vld [vmem:[#allocation15 + $0x28] sm:$0xff]
    %v5489 = vld [vmem:[#allocation15 + $0x30] sm:$0xff]
    %v5490 = vld [vmem:[#allocation15 + $0x38] sm:$0xff]
    %v5491 = vld [vmem:[#allocation15 + $0x40] sm:$0xff]
    %v5492 = vld [vmem:[#allocation15 + $0x48] sm:$0xff]
    %v5493 = vld [vmem:[#allocation15 + $0x50] sm:$0xff]
    %v5494 = vld [vmem:[#allocation15 + $0x58] sm:$0xff]
    %v5495 = vld [vmem:[#allocation15 + $0x60] sm:$0xff]
    %v5496 = vld [vmem:[#allocation15 + $0x68] sm:$0xff]
    %v5497 = vld [vmem:[#allocation15 + $0x70] sm:$0xff]
    %v5498 = vld [vmem:[#allocation15 + $0x78] sm:$0xff]
    %v5499 = vld [vmem:[#allocation15 + $0x80] sm:$0xff]
    %v5500 = vld [vmem:[#allocation15 + $0x88] sm:$0xff]
    %v5501 = vld [vmem:[#allocation15 + $0x90] sm:$0xff]
    %v5502 = vld [vmem:[#allocation15 + $0x98] sm:$0xff]
    %v5503 = vld [vmem:[#allocation15 + $0xa0] sm:$0xff]
    %v5504 = vld [vmem:[#allocation15 + $0xa8] sm:$0xff]
    %v5505 = vld [vmem:[#allocation15 + $0xb0] sm:$0xff]
    %v5506 = vld [vmem:[#allocation15 + $0xb8] sm:$0xff]
    %v5507 = vld [vmem:[#allocation15 + $0xc0] sm:$0xff]
    %v5508 = vld [vmem:[#allocation15 + $0xc8] sm:$0xff]
    %v5509 = vld [vmem:[#allocation15 + $0xd0] sm:$0xff]
    %v5510 = vld [vmem:[#allocation15 + $0xd8] sm:$0xff]
    %v5511 = vld [vmem:[#allocation15 + $0xe0] sm:$0xff]
    %v5512 = vld [vmem:[#allocation15 + $0xe8] sm:$0xff]
    %v5513 = vld [vmem:[#allocation15 + $0xf0] sm:$0xff]
    %v5514 = vld [vmem:[#allocation15 + $0xf8] sm:$0xff]
    %v5515 = vld [vmem:[#allocation15 + $0x100] sm:$0xff]
    %v5516 = vld [vmem:[#allocation15 + $0x108] sm:$0xff]
    %v5517 = vld [vmem:[#allocation15 + $0x110] sm:$0xff]
    %v5518 = vld [vmem:[#allocation15 + $0x118] sm:$0xff]
    %v5519 = vld [vmem:[#allocation15 + $0x120] sm:$0xff]
    %v5520 = vld [vmem:[#allocation15 + $0x128] sm:$0xff]
    %v5521 = vld [vmem:[#allocation15 + $0x130] sm:$0xff]
    %v5522 = vld [vmem:[#allocation15 + $0x138] sm:$0xff]
    %v5523 = vld [vmem:[#allocation15 + $0x140] sm:$0xff]
    %v5524 = vld [vmem:[#allocation15 + $0x148] sm:$0xff]
    %v5525 = vld [vmem:[#allocation15 + $0x150] sm:$0xff]
    %v5526 = vld [vmem:[#allocation15 + $0x158] sm:$0xff]
    %v5527 = vld [vmem:[#allocation15 + $0x160] sm:$0xff]
    %v5528 = vld [vmem:[#allocation15 + $0x168] sm:$0xff]
    %v5529 = vld [vmem:[#allocation15 + $0x170] sm:$0xff]
    %v5530 = vld [vmem:[#allocation15 + $0x178] sm:$0xff]
    %v5531 = vld [vmem:[#allocation15 + $0x180] sm:$0xff]
    %v5532 = vld [vmem:[#allocation15 + $0x188] sm:$0xff]
    %v5533 = vld [vmem:[#allocation15 + $0x190] sm:$0xff]
    %v5534 = vld [vmem:[#allocation15 + $0x198] sm:$0xff]
    %v5535 = vld [vmem:[#allocation15 + $0x1a0] sm:$0xff]
    %v5536 = vld [vmem:[#allocation15 + $0x1a8] sm:$0xff]
    %v5537 = vld [vmem:[#allocation15 + $0x1b0] sm:$0xff]
    %v5538 = vld [vmem:[#allocation15 + $0x1b8] sm:$0xff]
    %v5539 = vld [vmem:[#allocation15 + $0x1c0] sm:$0xff]
    %v5540 = vld [vmem:[#allocation15 + $0x1c8] sm:$0xff]
    %v5541 = vld [vmem:[#allocation15 + $0x1d0] sm:$0xff]
    %v5542 = vld [vmem:[#allocation15 + $0x1d8] sm:$0xff]
    %v5543 = vld [vmem:[#allocation15 + $0x1e0] sm:$0xff]
    %v5544 = vld [vmem:[#allocation15 + $0x1e8] sm:$0xff]
    %v5545 = vld [vmem:[#allocation15 + $0x1f0] sm:$0xff]
    %v5546 = vld [vmem:[#allocation15 + $0x1f8] sm:$0xff]
    %v5547 = vld [vmem:[#allocation15 + $0x200] sm:$0xff]
    %v5548 = vld [vmem:[#allocation15 + $0x208] sm:$0xff]
    %v5549 = vld [vmem:[#allocation15 + $0x210] sm:$0xff]
    %v5550 = vld [vmem:[#allocation15 + $0x218] sm:$0xff]
    %v5551 = vld [vmem:[#allocation15 + $0x220] sm:$0xff]
    %v5552 = vld [vmem:[#allocation15 + $0x228] sm:$0xff]
    %v5553 = vld [vmem:[#allocation15 + $0x230] sm:$0xff]
    %v5554 = vld [vmem:[#allocation15 + $0x238] sm:$0xff]
    %v5555 = vld [vmem:[#allocation15 + $0x240] sm:$0xff]
    %v5556 = vld [vmem:[#allocation15 + $0x248] sm:$0xff]
    %v5557 = vld [vmem:[#allocation15 + $0x250] sm:$0xff]
    %v5558 = vld [vmem:[#allocation15 + $0x258] sm:$0xff]
    %v5559 = vld [vmem:[#allocation15 + $0x260] sm:$0xff]
    %v5560 = vld [vmem:[#allocation15 + $0x268] sm:$0xff]
    %v5561 = vld [vmem:[#allocation15 + $0x270] sm:$0xff]
    %v5562 = vld [vmem:[#allocation15 + $0x278] sm:$0xff]
    %v5563 = vld [vmem:[#allocation15 + $0x280] sm:$0xff]
    %v5564 = vld [vmem:[#allocation15 + $0x288] sm:$0xff]
    %v5565 = vld [vmem:[#allocation15 + $0x290] sm:$0xff]
    %v5566 = vld [vmem:[#allocation15 + $0x298] sm:$0xff]
    %v5567 = vld [vmem:[#allocation15 + $0x2a0] sm:$0xff]
    %v5568 = vld [vmem:[#allocation15 + $0x2a8] sm:$0xff]
    %v5569 = vld [vmem:[#allocation15 + $0x2b0] sm:$0xff]
    %v5570 = vld [vmem:[#allocation15 + $0x2b8] sm:$0xff]
    %v5571 = vld [vmem:[#allocation15 + $0x2c0] sm:$0xff]
    %v5572 = vld [vmem:[#allocation15 + $0x2c8] sm:$0xff]
    %v5573 = vld [vmem:[#allocation15 + $0x2d0] sm:$0xff]
    %v5574 = vld [vmem:[#allocation15 + $0x2d8] sm:$0xff]
    %v5575 = vld [vmem:[#allocation15 + $0x2e0] sm:$0xff]
    %v5576 = vld [vmem:[#allocation15 + $0x2e8] sm:$0xff]
    %v5577 = vld [vmem:[#allocation15 + $0x2f0] sm:$0xff]
    %v5578 = vld [vmem:[#allocation15 + $0x2f8] sm:$0xff]
    %v5579 = vld [vmem:[#allocation15 + $0x300] sm:$0xff]
    %v5580 = vld [vmem:[#allocation15 + $0x308] sm:$0xff]
    %v5581 = vld [vmem:[#allocation15 + $0x310] sm:$0xff]
    %v5582 = vld [vmem:[#allocation15 + $0x318] sm:$0xff]
    %v5583 = vld [vmem:[#allocation15 + $0x320] sm:$0xff]
    %v5584 = vld [vmem:[#allocation15 + $0x328] sm:$0xff]
    %v5585 = vld [vmem:[#allocation15 + $0x330] sm:$0xff]
    %v5586 = vld [vmem:[#allocation15 + $0x338] sm:$0xff]
    %v5587 = vld [vmem:[#allocation15 + $0x340] sm:$0xff]
    %v5588 = vld [vmem:[#allocation15 + $0x348] sm:$0xff]
    %v5589 = vld [vmem:[#allocation15 + $0x350] sm:$0xff]
    %v5590 = vld [vmem:[#allocation15 + $0x358] sm:$0xff]
    %v5591 = vld [vmem:[#allocation15 + $0x360] sm:$0xff]
    %v5592 = vld [vmem:[#allocation15 + $0x368] sm:$0xff]
    %v5593 = vld [vmem:[#allocation15 + $0x370] sm:$0xff]
    %v5594 = vld [vmem:[#allocation15 + $0x378] sm:$0xff]
    %v5595 = vld [vmem:[#allocation15 + $0x380] sm:$0xff]
    %v5596 = vld [vmem:[#allocation15 + $0x388] sm:$0xff]
    %v5597 = vld [vmem:[#allocation15 + $0x390] sm:$0xff]
    %v5598 = vld [vmem:[#allocation15 + $0x398] sm:$0xff]
    %v5599 = vld [vmem:[#allocation15 + $0x3a0] sm:$0xff]
    %v5600 = vld [vmem:[#allocation15 + $0x3a8] sm:$0xff]
    %v5601 = vld [vmem:[#allocation15 + $0x3b0] sm:$0xff]
    %v5602 = vld [vmem:[#allocation15 + $0x3b8] sm:$0xff]
    %v5603 = vld [vmem:[#allocation15 + $0x3c0] sm:$0xff]
    %v5604 = vld [vmem:[#allocation15 + $0x3c8] sm:$0xff]
    %v5605 = vld [vmem:[#allocation15 + $0x3d0] sm:$0xff]
    %v5606 = vld [vmem:[#allocation15 + $0x3d8] sm:$0xff]
    %v5607 = vld [vmem:[#allocation15 + $0x3e0] sm:$0xff]
    %v5608 = vld [vmem:[#allocation15 + $0x3e8] sm:$0xff]
    %v5609 = vld [vmem:[#allocation15 + $0x3f0] sm:$0xff]
    %v5610 = vld [vmem:[#allocation15 + $0x3f8] sm:$0xff]
    %v5613 = vrot.slane %v4549, 1
    %v5614 = vrot.slane %v4550, 1
    %v5745 = vunpack.c.l.b16 %v5483
    %v5746 = vunpack.c.h.b16 %v5483
    %v5747 = vunpack.c.l.b16 %v5484
    %v5748 = vunpack.c.h.b16 %v5484
    %v5749 = vunpack.c.l.b16 %v5485
    %v5750 = vunpack.c.h.b16 %v5485
    %v5751 = vunpack.c.l.b16 %v5486
    %v5752 = vunpack.c.h.b16 %v5486
    %v5753 = vunpack.c.l.b16 %v5487
    %v5754 = vunpack.c.h.b16 %v5487
    %v5755 = vunpack.c.l.b16 %v5488
    %v5756 = vunpack.c.h.b16 %v5488
    %v5757 = vunpack.c.l.b16 %v5489
    %v5758 = vunpack.c.h.b16 %v5489
    %v5759 = vunpack.c.l.b16 %v5490
    %v5760 = vunpack.c.h.b16 %v5490
    %v5761 = vunpack.c.l.b16 %v5491
    %v5762 = vunpack.c.h.b16 %v5491
    %v5763 = vunpack.c.l.b16 %v5492
    %v5764 = vunpack.c.h.b16 %v5492
    %v5765 = vunpack.c.l.b16 %v5493
    %v5766 = vunpack.c.h.b16 %v5493
    %v5767 = vunpack.c.l.b16 %v5494
    %v5768 = vunpack.c.h.b16 %v5494
    %v5769 = vunpack.c.l.b16 %v5495
    %v5770 = vunpack.c.h.b16 %v5495
    %v5771 = vunpack.c.l.b16 %v5496
    %v5772 = vunpack.c.h.b16 %v5496
    %v5773 = vunpack.c.l.b16 %v5497
    %v5774 = vunpack.c.h.b16 %v5497
    %v5775 = vunpack.c.l.b16 %v5498
    %v5776 = vunpack.c.h.b16 %v5498
    %v5777 = vunpack.c.l.b16 %v5499
    %v5778 = vunpack.c.h.b16 %v5499
    %v5779 = vunpack.c.l.b16 %v5500
    %v5780 = vunpack.c.h.b16 %v5500
    %v5781 = vunpack.c.l.b16 %v5501
    %v5782 = vunpack.c.h.b16 %v5501
    %v5783 = vunpack.c.l.b16 %v5502
    %v5784 = vunpack.c.h.b16 %v5502
    %v5785 = vunpack.c.l.b16 %v5503
    %v5786 = vunpack.c.h.b16 %v5503
    %v5787 = vunpack.c.l.b16 %v5504
    %v5788 = vunpack.c.h.b16 %v5504
    %v5789 = vunpack.c.l.b16 %v5505
    %v5790 = vunpack.c.h.b16 %v5505
    %v5791 = vunpack.c.l.b16 %v5506
    %v5792 = vunpack.c.h.b16 %v5506
    %v5793 = vunpack.c.l.b16 %v5507
    %v5794 = vunpack.c.h.b16 %v5507
    %v5795 = vunpack.c.l.b16 %v5508
    %v5796 = vunpack.c.h.b16 %v5508
    %v5797 = vunpack.c.l.b16 %v5509
    %v5798 = vunpack.c.h.b16 %v5509
    %v5799 = vunpack.c.l.b16 %v5510
    %v5800 = vunpack.c.h.b16 %v5510
    %v5801 = vunpack.c.l.b16 %v5511
    %v5802 = vunpack.c.h.b16 %v5511
    %v5803 = vunpack.c.l.b16 %v5512
    %v5804 = vunpack.c.h.b16 %v5512
    %v5805 = vunpack.c.l.b16 %v5513
    %v5806 = vunpack.c.h.b16 %v5513
    %v5807 = vunpack.c.l.b16 %v5514
    %v5808 = vunpack.c.h.b16 %v5514
    %v5809 = vunpack.c.l.b16 %v5515
    %v5810 = vunpack.c.h.b16 %v5515
    %v5811 = vunpack.c.l.b16 %v5516
    %v5812 = vunpack.c.h.b16 %v5516
    %v5813 = vunpack.c.l.b16 %v5517
    %v5814 = vunpack.c.h.b16 %v5517
    %v5815 = vunpack.c.l.b16 %v5518
    %v5816 = vunpack.c.h.b16 %v5518
    %v5817 = vunpack.c.l.b16 %v5519
    %v5818 = vunpack.c.h.b16 %v5519
    %v5819 = vunpack.c.l.b16 %v5520
    %v5820 = vunpack.c.h.b16 %v5520
    %v5821 = vunpack.c.l.b16 %v5521
    %v5822 = vunpack.c.h.b16 %v5521
    %v5823 = vunpack.c.l.b16 %v5522
    %v5824 = vunpack.c.h.b16 %v5522
    %v5825 = vunpack.c.l.b16 %v5523
    %v5826 = vunpack.c.h.b16 %v5523
    %v5827 = vunpack.c.l.b16 %v5524
    %v5828 = vunpack.c.h.b16 %v5524
    %v5829 = vunpack.c.l.b16 %v5525
    %v5830 = vunpack.c.h.b16 %v5525
    %v5831 = vunpack.c.l.b16 %v5526
    %v5832 = vunpack.c.h.b16 %v5526
    %v5833 = vunpack.c.l.b16 %v5527
    %v5834 = vunpack.c.h.b16 %v5527
    %v5835 = vunpack.c.l.b16 %v5528
    %v5836 = vunpack.c.h.b16 %v5528
    %v5837 = vunpack.c.l.b16 %v5529
    %v5838 = vunpack.c.h.b16 %v5529
    %v5839 = vunpack.c.l.b16 %v5530
    %v5840 = vunpack.c.h.b16 %v5530
    %v5841 = vunpack.c.l.b16 %v5531
    %v5842 = vunpack.c.h.b16 %v5531
    %v5843 = vunpack.c.l.b16 %v5532
    %v5844 = vunpack.c.h.b16 %v5532
    %v5845 = vunpack.c.l.b16 %v5533
    %v5846 = vunpack.c.h.b16 %v5533
    %v5847 = vunpack.c.l.b16 %v5534
    %v5848 = vunpack.c.h.b16 %v5534
    %v5849 = vunpack.c.l.b16 %v5535
    %v5850 = vunpack.c.h.b16 %v5535
    %v5851 = vunpack.c.l.b16 %v5536
    %v5852 = vunpack.c.h.b16 %v5536
    %v5853 = vunpack.c.l.b16 %v5537
    %v5854 = vunpack.c.h.b16 %v5537
    %v5855 = vunpack.c.l.b16 %v5538
    %v5856 = vunpack.c.h.b16 %v5538
    %v5857 = vunpack.c.l.b16 %v5539
    %v5858 = vunpack.c.h.b16 %v5539
    %v5859 = vunpack.c.l.b16 %v5540
    %v5860 = vunpack.c.h.b16 %v5540
    %v5861 = vunpack.c.l.b16 %v5541
    %v5862 = vunpack.c.h.b16 %v5541
    %v5863 = vunpack.c.l.b16 %v5542
    %v5864 = vunpack.c.h.b16 %v5542
    %v5865 = vunpack.c.l.b16 %v5543
    %v5866 = vunpack.c.h.b16 %v5543
    %v5867 = vunpack.c.l.b16 %v5544
    %v5868 = vunpack.c.h.b16 %v5544
    %v5869 = vunpack.c.l.b16 %v5545
    %v5870 = vunpack.c.h.b16 %v5545
    %v5871 = vunpack.c.l.b16 %v5546
    %v5872 = vunpack.c.h.b16 %v5546
    %v5873 = vunpack.c.l.b16 %v5547
    %v5874 = vunpack.c.h.b16 %v5547
    %v5875 = vunpack.c.l.b16 %v5548
    %v5876 = vunpack.c.h.b16 %v5548
    %v5877 = vunpack.c.l.b16 %v5549
    %v5878 = vunpack.c.h.b16 %v5549
    %v5879 = vunpack.c.l.b16 %v5550
    %v5880 = vunpack.c.h.b16 %v5550
    %v5881 = vunpack.c.l.b16 %v5551
    %v5882 = vunpack.c.h.b16 %v5551
    %v5883 = vunpack.c.l.b16 %v5552
    %v5884 = vunpack.c.h.b16 %v5552
    %v5885 = vunpack.c.l.b16 %v5553
    %v5886 = vunpack.c.h.b16 %v5553
    %v5887 = vunpack.c.l.b16 %v5554
    %v5888 = vunpack.c.h.b16 %v5554
    %v5889 = vunpack.c.l.b16 %v5555
    %v5890 = vunpack.c.h.b16 %v5555
    %v5891 = vunpack.c.l.b16 %v5556
    %v5892 = vunpack.c.h.b16 %v5556
    %v5893 = vunpack.c.l.b16 %v5557
    %v5894 = vunpack.c.h.b16 %v5557
    %v5895 = vunpack.c.l.b16 %v5558
    %v5896 = vunpack.c.h.b16 %v5558
    %v5897 = vunpack.c.l.b16 %v5559
    %v5898 = vunpack.c.h.b16 %v5559
    %v5899 = vunpack.c.l.b16 %v5560
    %v5900 = vunpack.c.h.b16 %v5560
    %v5901 = vunpack.c.l.b16 %v5561
    %v5902 = vunpack.c.h.b16 %v5561
    %v5903 = vunpack.c.l.b16 %v5562
    %v5904 = vunpack.c.h.b16 %v5562
    %v5905 = vunpack.c.l.b16 %v5563
    %v5906 = vunpack.c.h.b16 %v5563
    %v5907 = vunpack.c.l.b16 %v5564
    %v5908 = vunpack.c.h.b16 %v5564
    %v5909 = vunpack.c.l.b16 %v5565
    %v5910 = vunpack.c.h.b16 %v5565
    %v5911 = vunpack.c.l.b16 %v5566
    %v5912 = vunpack.c.h.b16 %v5566
    %v5913 = vunpack.c.l.b16 %v5567
    %v5914 = vunpack.c.h.b16 %v5567
    %v5915 = vunpack.c.l.b16 %v5568
    %v5916 = vunpack.c.h.b16 %v5568
    %v5917 = vunpack.c.l.b16 %v5569
    %v5918 = vunpack.c.h.b16 %v5569
    %v5919 = vunpack.c.l.b16 %v5570
    %v5920 = vunpack.c.h.b16 %v5570
    %v5921 = vunpack.c.l.b16 %v5571
    %v5922 = vunpack.c.h.b16 %v5571
    %v5923 = vunpack.c.l.b16 %v5572
    %v5924 = vunpack.c.h.b16 %v5572
    %v5925 = vunpack.c.l.b16 %v5573
    %v5926 = vunpack.c.h.b16 %v5573
    %v5927 = vunpack.c.l.b16 %v5574
    %v5928 = vunpack.c.h.b16 %v5574
    %v5929 = vunpack.c.l.b16 %v5575
    %v5930 = vunpack.c.h.b16 %v5575
    %v5931 = vunpack.c.l.b16 %v5576
    %v5932 = vunpack.c.h.b16 %v5576
    %v5933 = vunpack.c.l.b16 %v5577
    %v5934 = vunpack.c.h.b16 %v5577
    %v5935 = vunpack.c.l.b16 %v5578
    %v5936 = vunpack.c.h.b16 %v5578
    %v5937 = vunpack.c.l.b16 %v5579
    %v5938 = vunpack.c.h.b16 %v5579
    %v5939 = vunpack.c.l.b16 %v5580
    %v5940 = vunpack.c.h.b16 %v5580
    %v5941 = vunpack.c.l.b16 %v5581
    %v5942 = vunpack.c.h.b16 %v5581
    %v5943 = vunpack.c.l.b16 %v5582
    %v5944 = vunpack.c.h.b16 %v5582
    %v5945 = vunpack.c.l.b16 %v5583
    %v5946 = vunpack.c.h.b16 %v5583
    %v5947 = vunpack.c.l.b16 %v5584
    %v5948 = vunpack.c.h.b16 %v5584
    %v5949 = vunpack.c.l.b16 %v5585
    %v5950 = vunpack.c.h.b16 %v5585
    %v5951 = vunpack.c.l.b16 %v5586
    %v5952 = vunpack.c.h.b16 %v5586
    %v5953 = vunpack.c.l.b16 %v5587
    %v5954 = vunpack.c.h.b16 %v5587
    %v5955 = vunpack.c.l.b16 %v5588
    %v5956 = vunpack.c.h.b16 %v5588
    %v5957 = vunpack.c.l.b16 %v5589
    %v5958 = vunpack.c.h.b16 %v5589
    %v5959 = vunpack.c.l.b16 %v5590
    %v5960 = vunpack.c.h.b16 %v5590
    %v5961 = vunpack.c.l.b16 %v5591
    %v5962 = vunpack.c.h.b16 %v5591
    %v5963 = vunpack.c.l.b16 %v5592
    %v5964 = vunpack.c.h.b16 %v5592
    %v5965 = vunpack.c.l.b16 %v5593
    %v5966 = vunpack.c.h.b16 %v5593
    %v5967 = vunpack.c.l.b16 %v5594
    %v5968 = vunpack.c.h.b16 %v5594
    %v5969 = vunpack.c.l.b16 %v5595
    %v5970 = vunpack.c.h.b16 %v5595
    %v5971 = vunpack.c.l.b16 %v5596
    %v5972 = vunpack.c.h.b16 %v5596
    %v5973 = vunpack.c.l.b16 %v5597
    %v5974 = vunpack.c.h.b16 %v5597
    %v5975 = vunpack.c.l.b16 %v5598
    %v5976 = vunpack.c.h.b16 %v5598
    %v5977 = vunpack.c.l.b16 %v5599
    %v5978 = vunpack.c.h.b16 %v5599
    %v5979 = vunpack.c.l.b16 %v5600
    %v5980 = vunpack.c.h.b16 %v5600
    %v5981 = vunpack.c.l.b16 %v5601
    %v5982 = vunpack.c.h.b16 %v5601
    %v5983 = vunpack.c.l.b16 %v5602
    %v5984 = vunpack.c.h.b16 %v5602
    %v5985 = vunpack.c.l.b16 %v5603
    %v5986 = vunpack.c.h.b16 %v5603
    %v5987 = vunpack.c.l.b16 %v5604
    %v5988 = vunpack.c.h.b16 %v5604
    %v5989 = vunpack.c.l.b16 %v5605
    %v5990 = vunpack.c.h.b16 %v5605
    %v5991 = vunpack.c.l.b16 %v5606
    %v5992 = vunpack.c.h.b16 %v5606
    %v5993 = vunpack.c.l.b16 %v5607
    %v5994 = vunpack.c.h.b16 %v5607
    %v5995 = vunpack.c.l.b16 %v5608
    %v5996 = vunpack.c.h.b16 %v5608
    %v5997 = vunpack.c.l.b16 %v5609
    %v5998 = vunpack.c.h.b16 %v5609
    %v5999 = vunpack.c.l.b16 %v5610
    %v6000 = vunpack.c.h.b16 %v5610
    %v6001 = vpack.c.b16 %v5753, %v5745
    %v6002 = vpack.c.b16 %v5754, %v5746
    %v6003 = vpack.c.b16 %v5755, %v5747
    %v6004 = vpack.c.b16 %v5756, %v5748
    %v6005 = vpack.c.b16 %v5757, %v5749
    %v6006 = vpack.c.b16 %v5758, %v5750
    %v6007 = vpack.c.b16 %v5759, %v5751
    %v6008 = vpack.c.b16 %v5760, %v5752
    %v6009 = vpack.c.b16 %v5769, %v5761
    %v6010 = vpack.c.b16 %v5770, %v5762
    %v6011 = vpack.c.b16 %v5771, %v5763
    %v6012 = vpack.c.b16 %v5772, %v5764
    %v6013 = vpack.c.b16 %v5773, %v5765
    %v6014 = vpack.c.b16 %v5774, %v5766
    %v6015 = vpack.c.b16 %v5775, %v5767
    %v6016 = vpack.c.b16 %v5776, %v5768
    %v6017 = vpack.c.b16 %v5785, %v5777
    %v6018 = vpack.c.b16 %v5786, %v5778
    %v6019 = vpack.c.b16 %v5787, %v5779
    %v6020 = vpack.c.b16 %v5788, %v5780
    %v6021 = vpack.c.b16 %v5789, %v5781
    %v6022 = vpack.c.b16 %v5790, %v5782
    %v6023 = vpack.c.b16 %v5791, %v5783
    %v6024 = vpack.c.b16 %v5792, %v5784
    %v6025 = vpack.c.b16 %v5801, %v5793
    %v6026 = vpack.c.b16 %v5802, %v5794
    %v6027 = vpack.c.b16 %v5803, %v5795
    %v6028 = vpack.c.b16 %v5804, %v5796
    %v6029 = vpack.c.b16 %v5805, %v5797
    %v6030 = vpack.c.b16 %v5806, %v5798
    %v6031 = vpack.c.b16 %v5807, %v5799
    %v6032 = vpack.c.b16 %v5808, %v5800
    %v6033 = vpack.c.b16 %v5817, %v5809
    %v6034 = vpack.c.b16 %v5818, %v5810
    %v6035 = vpack.c.b16 %v5819, %v5811
    %v6036 = vpack.c.b16 %v5820, %v5812
    %v6037 = vpack.c.b16 %v5821, %v5813
    %v6038 = vpack.c.b16 %v5822, %v5814
    %v6039 = vpack.c.b16 %v5823, %v5815
    %v6040 = vpack.c.b16 %v5824, %v5816
    %v6041 = vpack.c.b16 %v5833, %v5825
    %v6042 = vpack.c.b16 %v5834, %v5826
    %v6043 = vpack.c.b16 %v5835, %v5827
    %v6044 = vpack.c.b16 %v5836, %v5828
    %v6045 = vpack.c.b16 %v5837, %v5829
    %v6046 = vpack.c.b16 %v5838, %v5830
    %v6047 = vpack.c.b16 %v5839, %v5831
    %v6048 = vpack.c.b16 %v5840, %v5832
    %v6049 = vpack.c.b16 %v5849, %v5841
    %v6050 = vpack.c.b16 %v5850, %v5842
    %v6051 = vpack.c.b16 %v5851, %v5843
    %v6052 = vpack.c.b16 %v5852, %v5844
    %v6053 = vpack.c.b16 %v5853, %v5845
    %v6054 = vpack.c.b16 %v5854, %v5846
    %v6055 = vpack.c.b16 %v5855, %v5847
    %v6056 = vpack.c.b16 %v5856, %v5848
    %v6057 = vpack.c.b16 %v5865, %v5857
    %v6058 = vpack.c.b16 %v5866, %v5858
    %v6059 = vpack.c.b16 %v5867, %v5859
    %v6060 = vpack.c.b16 %v5868, %v5860
    %v6061 = vpack.c.b16 %v5869, %v5861
    %v6062 = vpack.c.b16 %v5870, %v5862
    %v6063 = vpack.c.b16 %v5871, %v5863
    %v6064 = vpack.c.b16 %v5872, %v5864
    %v6065 = vpack.c.b16 %v5881, %v5873
    %v6066 = vpack.c.b16 %v5882, %v5874
    %v6067 = vpack.c.b16 %v5883, %v5875
    %v6068 = vpack.c.b16 %v5884, %v5876
    %v6069 = vpack.c.b16 %v5885, %v5877
    %v6070 = vpack.c.b16 %v5886, %v5878
    %v6071 = vpack.c.b16 %v5887, %v5879
    %v6072 = vpack.c.b16 %v5888, %v5880
    %v6073 = vpack.c.b16 %v5897, %v5889
    %v6074 = vpack.c.b16 %v5898, %v5890
    %v6075 = vpack.c.b16 %v5899, %v5891
    %v6076 = vpack.c.b16 %v5900, %v5892
    %v6077 = vpack.c.b16 %v5901, %v5893
    %v6078 = vpack.c.b16 %v5902, %v5894
    %v6079 = vpack.c.b16 %v5903, %v5895
    %v6080 = vpack.c.b16 %v5904, %v5896
    %v6081 = vpack.c.b16 %v5913, %v5905
    %v6082 = vpack.c.b16 %v5914, %v5906
    %v6083 = vpack.c.b16 %v5915, %v5907
    %v6084 = vpack.c.b16 %v5916, %v5908
    %v6085 = vpack.c.b16 %v5917, %v5909
    %v6086 = vpack.c.b16 %v5918, %v5910
    %v6087 = vpack.c.b16 %v5919, %v5911
    %v6088 = vpack.c.b16 %v5920, %v5912
    %v6089 = vpack.c.b16 %v5929, %v5921
    %v6090 = vpack.c.b16 %v5930, %v5922
    %v6091 = vpack.c.b16 %v5931, %v5923
    %v6092 = vpack.c.b16 %v5932, %v5924
    %v6093 = vpack.c.b16 %v5933, %v5925
    %v6094 = vpack.c.b16 %v5934, %v5926
    %v6095 = vpack.c.b16 %v5935, %v5927
    %v6096 = vpack.c.b16 %v5936, %v5928
    %v6097 = vpack.c.b16 %v5945, %v5937
    %v6098 = vpack.c.b16 %v5946, %v5938
    %v6099 = vpack.c.b16 %v5947, %v5939
    %v6100 = vpack.c.b16 %v5948, %v5940
    %v6101 = vpack.c.b16 %v5949, %v5941
    %v6102 = vpack.c.b16 %v5950, %v5942
    %v6103 = vpack.c.b16 %v5951, %v5943
    %v6104 = vpack.c.b16 %v5952, %v5944
    %v6105 = vpack.c.b16 %v5961, %v5953
    %v6106 = vpack.c.b16 %v5962, %v5954
    %v6107 = vpack.c.b16 %v5963, %v5955
    %v6108 = vpack.c.b16 %v5964, %v5956
    %v6109 = vpack.c.b16 %v5965, %v5957
    %v6110 = vpack.c.b16 %v5966, %v5958
    %v6111 = vpack.c.b16 %v5967, %v5959
    %v6112 = vpack.c.b16 %v5968, %v5960
    %v6113 = vpack.c.b16 %v5977, %v5969
    %v6114 = vpack.c.b16 %v5978, %v5970
    %v6115 = vpack.c.b16 %v5979, %v5971
    %v6116 = vpack.c.b16 %v5980, %v5972
    %v6117 = vpack.c.b16 %v5981, %v5973
    %v6118 = vpack.c.b16 %v5982, %v5974
    %v6119 = vpack.c.b16 %v5983, %v5975
    %v6120 = vpack.c.b16 %v5984, %v5976
    %v6121 = vpack.c.b16 %v5993, %v5985
    %v6122 = vpack.c.b16 %v5994, %v5986
    %v6123 = vpack.c.b16 %v5995, %v5987
    %v6124 = vpack.c.b16 %v5996, %v5988
    %v6125 = vpack.c.b16 %v5997, %v5989
    %v6126 = vpack.c.b16 %v5998, %v5990
    %v6127 = vpack.c.b16 %v5999, %v5991
    %v6128 = vpack.c.b16 %v6000, %v5992
    %6257 = vmatprep.subr.bf16.mxu0 %v6058
    %6258 = vmatpush1.bf16.msra.mxu0 %v6057
    %6259 = vmatprep.subr.bf16.mxu0 %v6050
    %6260 = vmatpush1.bf16.msra.mxu0 %v6049
    %6261 = vmatprep.subr.bf16.mxu0 %v6042
    %6262 = vmatpush1.bf16.msra.mxu0 %v6041
    %6263 = vmatprep.subr.bf16.mxu0 %v6034
    %6264 = vmatpush1.bf16.msra.mxu0 %v6033
    %6265 = vmatprep.subr.bf16.mxu0 %v6026
    %6266 = vmatpush1.bf16.msra.mxu0 %v6025
    %6267 = vmatprep.subr.bf16.mxu0 %v6018
    %6268 = vmatpush1.bf16.msra.mxu0 %v6017
    %6269 = vmatprep.subr.bf16.mxu0 %v6010
    %6270 = vmatpush1.bf16.msra.mxu0 %v6009
    %6271 = vmatprep.subr.bf16.mxu0 %v6002
    %6272 = vmatpush1.bf16.msra.mxu0 %v6001
    %6273 = vmatprep.subr.bf16.mxu0 %v6122
    %6274 = vmatpush2.bf16.msra.mxu0 %v6121
    %6275 = vmatprep.subr.bf16.mxu0 %v6114
    %6276 = vmatpush2.bf16.msra.mxu0 %v6113
    %6277 = vmatprep.subr.bf16.mxu0 %v6106
    %6278 = vmatpush2.bf16.msra.mxu0 %v6105
    %6279 = vmatprep.subr.bf16.mxu0 %v6098
    %6280 = vmatpush2.bf16.msra.mxu0 %v6097
    %6281 = vmatprep.subr.bf16.mxu0 %v6090
    %6282 = vmatpush2.bf16.msra.mxu0 %v6089
    %6283 = vmatprep.subr.bf16.mxu0 %v6082
    %6284 = vmatpush2.bf16.msra.mxu0 %v6081
    %6285 = vmatprep.subr.bf16.mxu0 %v6074
    %6286 = vmatpush2.bf16.msra.mxu0 %v6073
    %6287 = vmatprep.subr.bf16.mxu0 %v6066
    %6288 = vmatpush2.bf16.msra.mxu0 %v6065
    %6289 = vmatprep.mubr.bf16.mxu0 %v5614
    %6290 = vmatmul.mubr.bf16.gmra.mxu0 %v5613
    %v6291 = vpop.f32.mrf.mxu0
    %v6292 = vadd.f32 0.0, %v6291
    %v6293 = vpop.f32.mrf.mxu0
    %v6294 = vadd.f32 0.0, %v6293
    %v6295 = vpop.f32.mrf.mxu0
    %v6296 = vpop.f32.mrf.mxu0
    %6297 = vdwg.mxu0
    %6298 = vmatprep.subr.bf16.mxu0 %v6060
    %6299 = vmatpush1.bf16.msra.mxu0 %v6059
    %6300 = vmatprep.subr.bf16.mxu0 %v6052
    %6301 = vmatpush1.bf16.msra.mxu0 %v6051
    %6302 = vmatprep.subr.bf16.mxu0 %v6044
    %6303 = vmatpush1.bf16.msra.mxu0 %v6043
    %6304 = vmatprep.subr.bf16.mxu0 %v6036
    %6305 = vmatpush1.bf16.msra.mxu0 %v6035
    %6306 = vmatprep.subr.bf16.mxu0 %v6028
    %6307 = vmatpush1.bf16.msra.mxu0 %v6027
    %6308 = vmatprep.subr.bf16.mxu0 %v6020
    %6309 = vmatpush1.bf16.msra.mxu0 %v6019
    %6310 = vmatprep.subr.bf16.mxu0 %v6012
    %6311 = vmatpush1.bf16.msra.mxu0 %v6011
    %6312 = vmatprep.subr.bf16.mxu0 %v6004
    %6313 = vmatpush1.bf16.msra.mxu0 %v6003
    %6314 = vmatprep.subr.bf16.mxu0 %v6124
    %6315 = vmatpush2.bf16.msra.mxu0 %v6123
    %6316 = vmatprep.subr.bf16.mxu0 %v6116
    %6317 = vmatpush2.bf16.msra.mxu0 %v6115
    %6318 = vmatprep.subr.bf16.mxu0 %v6108
    %6319 = vmatpush2.bf16.msra.mxu0 %v6107
    %6320 = vmatprep.subr.bf16.mxu0 %v6100
    %6321 = vmatpush2.bf16.msra.mxu0 %v6099
    %6322 = vmatprep.subr.bf16.mxu0 %v6092
    %6323 = vmatpush2.bf16.msra.mxu0 %v6091
    %6324 = vmatprep.subr.bf16.mxu0 %v6084
    %6325 = vmatpush2.bf16.msra.mxu0 %v6083
    %6326 = vmatprep.subr.bf16.mxu0 %v6076
    %6327 = vmatpush2.bf16.msra.mxu0 %v6075
    %6328 = vmatprep.subr.bf16.mxu0 %v6068
    %6329 = vmatpush2.bf16.msra.mxu0 %v6067
    %6330 = vmatprep.mubr.bf16.mxu0 %v5614
    %6331 = vmatmul.mubr.bf16.gmra.mxu0 %v5613
    %v6332 = vpop.f32.mrf.mxu0
    %v6333 = vadd.f32 0.0, %v6332
    %v6334 = vpop.f32.mrf.mxu0
    %v6335 = vadd.f32 0.0, %v6334
    %v6336 = vpop.f32.mrf.mxu0
    %v6337 = vpop.f32.mrf.mxu0
    %6338 = vdwg.mxu0
    %6339 = vmatprep.subr.bf16.mxu0 %v6062
    %6340 = vmatpush1.bf16.msra.mxu0 %v6061
    %6341 = vmatprep.subr.bf16.mxu0 %v6054
    %6342 = vmatpush1.bf16.msra.mxu0 %v6053
    %6343 = vmatprep.subr.bf16.mxu0 %v6046
    %6344 = vmatpush1.bf16.msra.mxu0 %v6045
    %6345 = vmatprep.subr.bf16.mxu0 %v6038
    %6346 = vmatpush1.bf16.msra.mxu0 %v6037
    %6347 = vmatprep.subr.bf16.mxu0 %v6030
    %6348 = vmatpush1.bf16.msra.mxu0 %v6029
    %6349 = vmatprep.subr.bf16.mxu0 %v6022
    %6350 = vmatpush1.bf16.msra.mxu0 %v6021
    %6351 = vmatprep.subr.bf16.mxu0 %v6014
    %6352 = vmatpush1.bf16.msra.mxu0 %v6013
    %6353 = vmatprep.subr.bf16.mxu0 %v6006
    %6354 = vmatpush1.bf16.msra.mxu0 %v6005
    %6355 = vmatprep.subr.bf16.mxu0 %v6126
    %6356 = vmatpush2.bf16.msra.mxu0 %v6125
    %6357 = vmatprep.subr.bf16.mxu0 %v6118
    %6358 = vmatpush2.bf16.msra.mxu0 %v6117
    %6359 = vmatprep.subr.bf16.mxu0 %v6110
    %6360 = vmatpush2.bf16.msra.mxu0 %v6109
    %6361 = vmatprep.subr.bf16.mxu0 %v6102
    %6362 = vmatpush2.bf16.msra.mxu0 %v6101
    %6363 = vmatprep.subr.bf16.mxu0 %v6094
    %6364 = vmatpush2.bf16.msra.mxu0 %v6093
    %6365 = vmatprep.subr.bf16.mxu0 %v6086
    %6366 = vmatpush2.bf16.msra.mxu0 %v6085
    %6367 = vmatprep.subr.bf16.mxu0 %v6078
    %6368 = vmatpush2.bf16.msra.mxu0 %v6077
    %6369 = vmatprep.subr.bf16.mxu0 %v6070
    %6370 = vmatpush2.bf16.msra.mxu0 %v6069
    %6371 = vmatprep.mubr.bf16.mxu0 %v5614
    %6372 = vmatmul.mubr.bf16.gmra.mxu0 %v5613
    %v6373 = vpop.f32.mrf.mxu0
    %v6374 = vadd.f32 0.0, %v6373
    %v6375 = vpop.f32.mrf.mxu0
    %v6376 = vadd.f32 0.0, %v6375
    %v6377 = vpop.f32.mrf.mxu0
    %v6378 = vpop.f32.mrf.mxu0
    %6379 = vdwg.mxu0
    %6380 = vmatprep.subr.bf16.mxu0 %v6064
    %6381 = vmatpush1.bf16.msra.mxu0 %v6063
    %6382 = vmatprep.subr.bf16.mxu0 %v6056
    %6383 = vmatpush1.bf16.msra.mxu0 %v6055
    %6384 = vmatprep.subr.bf16.mxu0 %v6048
    %6385 = vmatpush1.bf16.msra.mxu0 %v6047
    %6386 = vmatprep.subr.bf16.mxu0 %v6040
    %6387 = vmatpush1.bf16.msra.mxu0 %v6039
    %6388 = vmatprep.subr.bf16.mxu0 %v6032
    %6389 = vmatpush1.bf16.msra.mxu0 %v6031
    %6390 = vmatprep.subr.bf16.mxu0 %v6024
    %6391 = vmatpush1.bf16.msra.mxu0 %v6023
    %6392 = vmatprep.subr.bf16.mxu0 %v6016
    %6393 = vmatpush1.bf16.msra.mxu0 %v6015
    %6394 = vmatprep.subr.bf16.mxu0 %v6008
    %6395 = vmatpush1.bf16.msra.mxu0 %v6007
    %6396 = vmatprep.subr.bf16.mxu0 %v6128
    %6397 = vmatpush2.bf16.msra.mxu0 %v6127
    %6398 = vmatprep.subr.bf16.mxu0 %v6120
    %6399 = vmatpush2.bf16.msra.mxu0 %v6119
    %6400 = vmatprep.subr.bf16.mxu0 %v6112
    %6401 = vmatpush2.bf16.msra.mxu0 %v6111
    %6402 = vmatprep.subr.bf16.mxu0 %v6104
    %6403 = vmatpush2.bf16.msra.mxu0 %v6103
    %6404 = vmatprep.subr.bf16.mxu0 %v6096
    %6405 = vmatpush2.bf16.msra.mxu0 %v6095
    %6406 = vmatprep.subr.bf16.mxu0 %v6088
    %6407 = vmatpush2.bf16.msra.mxu0 %v6087
    %6408 = vmatprep.subr.bf16.mxu0 %v6080
    %6409 = vmatpush2.bf16.msra.mxu0 %v6079
    %6410 = vmatprep.subr.bf16.mxu0 %v6072
    %6411 = vmatpush2.bf16.msra.mxu0 %v6071
    %6412 = vmatprep.mubr.bf16.mxu0 %v5614
    %6413 = vmatmul.mubr.bf16.gmra.mxu0 %v5613
    %v6414 = vpop.f32.mrf.mxu0
    %v6415 = vadd.f32 0.0, %v6414
    %v6416 = vpop.f32.mrf.mxu0
    %v6417 = vadd.f32 0.0, %v6416
    %v6418 = vpop.f32.mrf.mxu0
    %v6419 = vpop.f32.mrf.mxu0
    %6420 = vdwg.mxu0
    %v6421 = vadd.f32 %v4533, %v5354
    %v6422 = vadd.f32 %v4534, %v5356
    %v6423 = vadd.f32 %v4535, %v5395
    %v6424 = vadd.f32 %v4536, %v5397
    %v6425 = vadd.f32 %v4537, %v5436
    %v6426 = vadd.f32 %v4538, %v5438
    %v6427 = vadd.f32 %v4539, %v5477
    %v6428 = vadd.f32 %v4540, %v5479
    %v6437 = vrot.slane %v6292, 2
    %v6438 = vrot.slane %v6294, 2
    %v6439 = vrot.slane %v6333, 2
    %v6440 = vrot.slane %v6335, 2
    %v6441 = vrot.slane %v6374, 2
    %v6442 = vrot.slane %v6376, 2
    %v6443 = vrot.slane %v6415, 2
    %v6444 = vrot.slane %v6417, 2
    %v6453 = vadd.f32 %v4541, %v6437
    %v6454 = vadd.f32 %v4542, %v6438
    %v6455 = vadd.f32 %v4543, %v6439
    %v6456 = vadd.f32 %v4544, %v6440
    %v6457 = vadd.f32 %v4545, %v6441
    %v6458 = vadd.f32 %v4546, %v6442
    %v6459 = vadd.f32 %v4547, %v6443
    %v6460 = vadd.f32 %v4548, %v6444
    %v6469 = vrot.slane %v6453, 4
    %v6470 = vrot.slane %v6454, 4
    %v6471 = vrot.slane %v6455, 4
    %v6472 = vrot.slane %v6456, 4
    %v6473 = vrot.slane %v6457, 4
    %v6474 = vrot.slane %v6458, 4
    %v6475 = vrot.slane %v6459, 4
    %v6476 = vrot.slane %v6460, 4
    %v6485 = vsel %vm1386, %v6421, %v6469
    %v6486 = vsel %vm1386, %v6422, %v6470
    %v6487 = vsel %vm1386, %v6423, %v6471
    %v6488 = vsel %vm1386, %v6424, %v6472
    %v6489 = vsel %vm1386, %v6425, %v6473
    %v6490 = vsel %vm1386, %v6426, %v6474
    %v6491 = vsel %vm1386, %v6427, %v6475
    %v6492 = vsel %vm1386, %v6428, %v6476
    %v6493 = vxor.u32 %v6485, 2147483648
    %v6494 = vxor.u32 %v6486, 2147483648
    %v6495 = vmul.f32 %v6493, 1.442695
    %v6496 = vpow.pop %v6495
    %v6497 = vmul.f32 %v6494, 1.442695
    %v6498 = vpow.pop %v6497
    %v6499 = vadd.f32 %v6496, 1.0
    %v6500 = vadd.f32 %v6498, 1.0
    %v6501 = vrcp.pop %v6499
    %v6502 = vmul.f32 1.0, %v6501
    %v6503 = vrcp.pop %v6500
    %v6504 = vmul.f32 1.0, %v6503
    %v6505 = vxor.u32 %v6487, 2147483648
    %v6506 = vxor.u32 %v6488, 2147483648
    %v6507 = vmul.f32 %v6505, 1.442695
    %v6508 = vpow.pop %v6507
    %v6509 = vmul.f32 %v6506, 1.442695
    %v6510 = vpow.pop %v6509
    %v6511 = vadd.f32 %v6508, 1.0
    %v6512 = vadd.f32 %v6510, 1.0
    %v6513 = vrcp.pop %v6511
    %v6514 = vmul.f32 1.0, %v6513
    %v6515 = vrcp.pop %v6512
    %v6516 = vmul.f32 1.0, %v6515
    %v6517 = vtanh.pop %v6489
    %v6518 = vtanh.pop %v6490
    %v6519 = vxor.u32 %v6491, 2147483648
    %v6520 = vxor.u32 %v6492, 2147483648
    %v6521 = vmul.f32 %v6519, 1.442695
    %v6522 = vpow.pop %v6521
    %v6523 = vmul.f32 %v6520, 1.442695
    %v6524 = vpow.pop %v6523
    %v6525 = vadd.f32 %v6522, 1.0
    %v6526 = vadd.f32 %v6524, 1.0
    %v6527 = vrcp.pop %v6525
    %v6528 = vmul.f32 1.0, %v6527
    %v6529 = vrcp.pop %v6526
    %v6530 = vmul.f32 1.0, %v6529
    %v6531 = vmul.f32 %v6514, %v4485
    %v6532 = vmul.f32 %v6516, %v4486
    %v6533 = vmul.f32 %v6502, %v6517
    %v6534 = vmul.f32 %v6504, %v6518
    %v6535 = vadd.f32 %v6531, %v6533
    %v6536 = vadd.f32 %v6532, %v6534
    %v6537 = vtanh.pop %v6535
    %v6538 = vtanh.pop %v6536
    %v6539 = vmul.f32 %v6528, %v6537
    %v6540 = vmul.f32 %v6530, %v6538
    %v6541 = vld [vmem:[#allocation2 + $0x80] sm:$0xc]
    %v6542 = vld [vmem:[#allocation2 + $0x88] sm:$0xc]
    %v6543 = vld [vmem:[#allocation2 + $0x90] sm:$0xc]
    %v6544 = vld [vmem:[#allocation2 + $0x98] sm:$0xc]
    %v6545 = vld [vmem:[#allocation2 + $0xa0] sm:$0xc]
    %v6546 = vld [vmem:[#allocation2 + $0xa8] sm:$0xc]
    %v6547 = vld [vmem:[#allocation2 + $0xb0] sm:$0xc]
    %v6548 = vld [vmem:[#allocation2 + $0xb8] sm:$0xc]
    %v6549 = vld [vmem:[#allocation2 + $0x40] sm:$0x30]
    %v6550 = vld [vmem:[#allocation2 + $0x48] sm:$0x30]
    %v6551 = vld [vmem:[#allocation2 + $0x50] sm:$0x30]
    %v6552 = vld [vmem:[#allocation2 + $0x58] sm:$0x30]
    %v6553 = vld [vmem:[#allocation2 + $0x60] sm:$0x30]
    %v6554 = vld [vmem:[#allocation2 + $0x68] sm:$0x30]
    %v6555 = vld [vmem:[#allocation2 + $0x70] sm:$0x30]
    %v6556 = vld [vmem:[#allocation2 + $0x78] sm:$0x30]
    %v6557 = vpack.c.bf16 %v6539, %v6539
    %v6558 = vpack.c.bf16 %v6540, %v6540
    %6559 = vmatprep.subr.bf16.mxu0 %v5120
    %6560 = vmatpush1.bf16.msra.mxu0 %v5119
    %6561 = vmatprep.subr.bf16.mxu0 %v5112
    %6562 = vmatpush1.bf16.msra.mxu0 %v5111
    %6563 = vmatprep.subr.bf16.mxu0 %v5104
    %6564 = vmatpush1.bf16.msra.mxu0 %v5103
    %6565 = vmatprep.subr.bf16.mxu0 %v5096
    %6566 = vmatpush1.bf16.msra.mxu0 %v5095
    %6567 = vmatprep.subr.bf16.mxu0 %v5088
    %6568 = vmatpush1.bf16.msra.mxu0 %v5087
    %6569 = vmatprep.subr.bf16.mxu0 %v5080
    %6570 = vmatpush1.bf16.msra.mxu0 %v5079
    %6571 = vmatprep.subr.bf16.mxu0 %v5072
    %6572 = vmatpush1.bf16.msra.mxu0 %v5071
    %6573 = vmatprep.subr.bf16.mxu0 %v5064
    %6574 = vmatpush1.bf16.msra.mxu0 %v5063
    %6575 = vmatprep.subr.bf16.mxu0 %v5184
    %6576 = vmatpush2.bf16.msra.mxu0 %v5183
    %6577 = vmatprep.subr.bf16.mxu0 %v5176
    %6578 = vmatpush2.bf16.msra.mxu0 %v5175
    %6579 = vmatprep.subr.bf16.mxu0 %v5168
    %6580 = vmatpush2.bf16.msra.mxu0 %v5167
    %6581 = vmatprep.subr.bf16.mxu0 %v5160
    %6582 = vmatpush2.bf16.msra.mxu0 %v5159
    %6583 = vmatprep.subr.bf16.mxu0 %v5152
    %6584 = vmatpush2.bf16.msra.mxu0 %v5151
    %6585 = vmatprep.subr.bf16.mxu0 %v5144
    %6586 = vmatpush2.bf16.msra.mxu0 %v5143
    %6587 = vmatprep.subr.bf16.mxu0 %v5136
    %6588 = vmatpush2.bf16.msra.mxu0 %v5135
    %6589 = vmatprep.subr.bf16.mxu0 %v5128
    %6590 = vmatpush2.bf16.msra.mxu0 %v5127
    %6591 = vmatprep.mubr.bf16.mxu0 %v6558
    %6592 = vmatmul.mubr.bf16.gmra.mxu0 %v6557
    %v6593 = vpop.f32.mrf.mxu0
    %v6594 = vadd.f32 0.0, %v6593
    %v6595 = vpop.f32.mrf.mxu0
    %v6596 = vadd.f32 0.0, %v6595
    %v6597 = vpop.f32.mrf.mxu0
    %v6598 = vpop.f32.mrf.mxu0
    %6599 = vdwg.mxu0
    %6600 = vmatprep.subr.bf16.mxu0 %v5122
    %6601 = vmatpush1.bf16.msra.mxu0 %v5121
    %6602 = vmatprep.subr.bf16.mxu0 %v5114
    %6603 = vmatpush1.bf16.msra.mxu0 %v5113
    %6604 = vmatprep.subr.bf16.mxu0 %v5106
    %6605 = vmatpush1.bf16.msra.mxu0 %v5105
    %6606 = vmatprep.subr.bf16.mxu0 %v5098
    %6607 = vmatpush1.bf16.msra.mxu0 %v5097
    %6608 = vmatprep.subr.bf16.mxu0 %v5090
    %6609 = vmatpush1.bf16.msra.mxu0 %v5089
    %6610 = vmatprep.subr.bf16.mxu0 %v5082
    %6611 = vmatpush1.bf16.msra.mxu0 %v5081
    %6612 = vmatprep.subr.bf16.mxu0 %v5074
    %6613 = vmatpush1.bf16.msra.mxu0 %v5073
    %6614 = vmatprep.subr.bf16.mxu0 %v5066
    %6615 = vmatpush1.bf16.msra.mxu0 %v5065
    %6616 = vmatprep.subr.bf16.mxu0 %v5186
    %6617 = vmatpush2.bf16.msra.mxu0 %v5185
    %6618 = vmatprep.subr.bf16.mxu0 %v5178
    %6619 = vmatpush2.bf16.msra.mxu0 %v5177
    %6620 = vmatprep.subr.bf16.mxu0 %v5170
    %6621 = vmatpush2.bf16.msra.mxu0 %v5169
    %6622 = vmatprep.subr.bf16.mxu0 %v5162
    %6623 = vmatpush2.bf16.msra.mxu0 %v5161
    %6624 = vmatprep.subr.bf16.mxu0 %v5154
    %6625 = vmatpush2.bf16.msra.mxu0 %v5153
    %6626 = vmatprep.subr.bf16.mxu0 %v5146
    %6627 = vmatpush2.bf16.msra.mxu0 %v5145
    %6628 = vmatprep.subr.bf16.mxu0 %v5138
    %6629 = vmatpush2.bf16.msra.mxu0 %v5137
    %6630 = vmatprep.subr.bf16.mxu0 %v5130
    %6631 = vmatpush2.bf16.msra.mxu0 %v5129
    %6632 = vmatprep.mubr.bf16.mxu0 %v6558
    %6633 = vmatmul.mubr.bf16.gmra.mxu0 %v6557
    %v6634 = vpop.f32.mrf.mxu0
    %v6635 = vadd.f32 0.0, %v6634
    %v6636 = vpop.f32.mrf.mxu0
    %v6637 = vadd.f32 0.0, %v6636
    %v6638 = vpop.f32.mrf.mxu0
    %v6639 = vpop.f32.mrf.mxu0
    %6640 = vdwg.mxu0
    %6641 = vmatprep.subr.bf16.mxu0 %v5124
    %6642 = vmatpush1.bf16.msra.mxu0 %v5123
    %6643 = vmatprep.subr.bf16.mxu0 %v5116
    %6644 = vmatpush1.bf16.msra.mxu0 %v5115
    %6645 = vmatprep.subr.bf16.mxu0 %v5108
    %6646 = vmatpush1.bf16.msra.mxu0 %v5107
    %6647 = vmatprep.subr.bf16.mxu0 %v5100
    %6648 = vmatpush1.bf16.msra.mxu0 %v5099
    %6649 = vmatprep.subr.bf16.mxu0 %v5092
    %6650 = vmatpush1.bf16.msra.mxu0 %v5091
    %6651 = vmatprep.subr.bf16.mxu0 %v5084
    %6652 = vmatpush1.bf16.msra.mxu0 %v5083
    %6653 = vmatprep.subr.bf16.mxu0 %v5076
    %6654 = vmatpush1.bf16.msra.mxu0 %v5075
    %6655 = vmatprep.subr.bf16.mxu0 %v5068
    %6656 = vmatpush1.bf16.msra.mxu0 %v5067
    %6657 = vmatprep.subr.bf16.mxu0 %v5188
    %6658 = vmatpush2.bf16.msra.mxu0 %v5187
    %6659 = vmatprep.subr.bf16.mxu0 %v5180
    %6660 = vmatpush2.bf16.msra.mxu0 %v5179
    %6661 = vmatprep.subr.bf16.mxu0 %v5172
    %6662 = vmatpush2.bf16.msra.mxu0 %v5171
    %6663 = vmatprep.subr.bf16.mxu0 %v5164
    %6664 = vmatpush2.bf16.msra.mxu0 %v5163
    %6665 = vmatprep.subr.bf16.mxu0 %v5156
    %6666 = vmatpush2.bf16.msra.mxu0 %v5155
    %6667 = vmatprep.subr.bf16.mxu0 %v5148
    %6668 = vmatpush2.bf16.msra.mxu0 %v5147
    %6669 = vmatprep.subr.bf16.mxu0 %v5140
    %6670 = vmatpush2.bf16.msra.mxu0 %v5139
    %6671 = vmatprep.subr.bf16.mxu0 %v5132
    %6672 = vmatpush2.bf16.msra.mxu0 %v5131
    %6673 = vmatprep.mubr.bf16.mxu0 %v6558
    %6674 = vmatmul.mubr.bf16.gmra.mxu0 %v6557
    %v6675 = vpop.f32.mrf.mxu0
    %v6676 = vadd.f32 0.0, %v6675
    %v6677 = vpop.f32.mrf.mxu0
    %v6678 = vadd.f32 0.0, %v6677
    %v6679 = vpop.f32.mrf.mxu0
    %v6680 = vpop.f32.mrf.mxu0
    %6681 = vdwg.mxu0
    %6682 = vmatprep.subr.bf16.mxu0 %v5126
    %6683 = vmatpush1.bf16.msra.mxu0 %v5125
    %6684 = vmatprep.subr.bf16.mxu0 %v5118
    %6685 = vmatpush1.bf16.msra.mxu0 %v5117
    %6686 = vmatprep.subr.bf16.mxu0 %v5110
    %6687 = vmatpush1.bf16.msra.mxu0 %v5109
    %6688 = vmatprep.subr.bf16.mxu0 %v5102
    %6689 = vmatpush1.bf16.msra.mxu0 %v5101
    %6690 = vmatprep.subr.bf16.mxu0 %v5094
    %6691 = vmatpush1.bf16.msra.mxu0 %v5093
    %6692 = vmatprep.subr.bf16.mxu0 %v5086
    %6693 = vmatpush1.bf16.msra.mxu0 %v5085
    %6694 = vmatprep.subr.bf16.mxu0 %v5078
    %6695 = vmatpush1.bf16.msra.mxu0 %v5077
    %6696 = vmatprep.subr.bf16.mxu0 %v5070
    %6697 = vmatpush1.bf16.msra.mxu0 %v5069
    %6698 = vmatprep.subr.bf16.mxu0 %v5190
    %6699 = vmatpush2.bf16.msra.mxu0 %v5189
    %6700 = vmatprep.subr.bf16.mxu0 %v5182
    %6701 = vmatpush2.bf16.msra.mxu0 %v5181
    %6702 = vmatprep.subr.bf16.mxu0 %v5174
    %6703 = vmatpush2.bf16.msra.mxu0 %v5173
    %6704 = vmatprep.subr.bf16.mxu0 %v5166
    %6705 = vmatpush2.bf16.msra.mxu0 %v5165
    %6706 = vmatprep.subr.bf16.mxu0 %v5158
    %6707 = vmatpush2.bf16.msra.mxu0 %v5157
    %6708 = vmatprep.subr.bf16.mxu0 %v5150
    %6709 = vmatpush2.bf16.msra.mxu0 %v5149
    %6710 = vmatprep.subr.bf16.mxu0 %v5142
    %6711 = vmatpush2.bf16.msra.mxu0 %v5141
    %6712 = vmatprep.subr.bf16.mxu0 %v5134
    %6713 = vmatpush2.bf16.msra.mxu0 %v5133
    %6714 = vmatprep.mubr.bf16.mxu0 %v6558
    %6715 = vmatmul.mubr.bf16.gmra.mxu0 %v6557
    %v6716 = vpop.f32.mrf.mxu0
    %v6717 = vadd.f32 0.0, %v6716
    %v6718 = vpop.f32.mrf.mxu0
    %v6719 = vadd.f32 0.0, %v6718
    %v6720 = vpop.f32.mrf.mxu0
    %v6721 = vpop.f32.mrf.mxu0
    %6722 = vdwg.mxu0
    %v6725 = vrot.slane %v6557, 1
    %v6726 = vrot.slane %v6558, 1
    %6729 = vmatprep.subr.bf16.mxu0 %v6058
    %6730 = vmatpush1.bf16.msra.mxu0 %v6057
    %6731 = vmatprep.subr.bf16.mxu0 %v6050
    %6732 = vmatpush1.bf16.msra.mxu0 %v6049
    %6733 = vmatprep.subr.bf16.mxu0 %v6042
    %6734 = vmatpush1.bf16.msra.mxu0 %v6041
    %6735 = vmatprep.subr.bf16.mxu0 %v6034
    %6736 = vmatpush1.bf16.msra.mxu0 %v6033
    %6737 = vmatprep.subr.bf16.mxu0 %v6026
    %6738 = vmatpush1.bf16.msra.mxu0 %v6025
    %6739 = vmatprep.subr.bf16.mxu0 %v6018
    %6740 = vmatpush1.bf16.msra.mxu0 %v6017
    %6741 = vmatprep.subr.bf16.mxu0 %v6010
    %6742 = vmatpush1.bf16.msra.mxu0 %v6009
    %6743 = vmatprep.subr.bf16.mxu0 %v6002
    %6744 = vmatpush1.bf16.msra.mxu0 %v6001
    %6745 = vmatprep.subr.bf16.mxu0 %v6122
    %6746 = vmatpush2.bf16.msra.mxu0 %v6121
    %6747 = vmatprep.subr.bf16.mxu0 %v6114
    %6748 = vmatpush2.bf16.msra.mxu0 %v6113
    %6749 = vmatprep.subr.bf16.mxu0 %v6106
    %6750 = vmatpush2.bf16.msra.mxu0 %v6105
    %6751 = vmatprep.subr.bf16.mxu0 %v6098
    %6752 = vmatpush2.bf16.msra.mxu0 %v6097
    %6753 = vmatprep.subr.bf16.mxu0 %v6090
    %6754 = vmatpush2.bf16.msra.mxu0 %v6089
    %6755 = vmatprep.subr.bf16.mxu0 %v6082
    %6756 = vmatpush2.bf16.msra.mxu0 %v6081
    %6757 = vmatprep.subr.bf16.mxu0 %v6074
    %6758 = vmatpush2.bf16.msra.mxu0 %v6073
    %6759 = vmatprep.subr.bf16.mxu0 %v6066
    %6760 = vmatpush2.bf16.msra.mxu0 %v6065
    %6761 = vmatprep.mubr.bf16.mxu0 %v6726
    %6762 = vmatmul.mubr.bf16.gmra.mxu0 %v6725
    %v6763 = vpop.f32.mrf.mxu0
    %v6764 = vadd.f32 0.0, %v6763
    %v6765 = vpop.f32.mrf.mxu0
    %v6766 = vadd.f32 0.0, %v6765
    %v6767 = vpop.f32.mrf.mxu0
    %v6768 = vpop.f32.mrf.mxu0
    %6769 = vdwg.mxu0
    %6770 = vmatprep.subr.bf16.mxu0 %v6060
    %6771 = vmatpush1.bf16.msra.mxu0 %v6059
    %6772 = vmatprep.subr.bf16.mxu0 %v6052
    %6773 = vmatpush1.bf16.msra.mxu0 %v6051
    %6774 = vmatprep.subr.bf16.mxu0 %v6044
    %6775 = vmatpush1.bf16.msra.mxu0 %v6043
    %6776 = vmatprep.subr.bf16.mxu0 %v6036
    %6777 = vmatpush1.bf16.msra.mxu0 %v6035
    %6778 = vmatprep.subr.bf16.mxu0 %v6028
    %6779 = vmatpush1.bf16.msra.mxu0 %v6027
    %6780 = vmatprep.subr.bf16.mxu0 %v6020
    %6781 = vmatpush1.bf16.msra.mxu0 %v6019
    %6782 = vmatprep.subr.bf16.mxu0 %v6012
    %6783 = vmatpush1.bf16.msra.mxu0 %v6011
    %6784 = vmatprep.subr.bf16.mxu0 %v6004
    %6785 = vmatpush1.bf16.msra.mxu0 %v6003
    %6786 = vmatprep.subr.bf16.mxu0 %v6124
    %6787 = vmatpush2.bf16.msra.mxu0 %v6123
    %6788 = vmatprep.subr.bf16.mxu0 %v6116
    %6789 = vmatpush2.bf16.msra.mxu0 %v6115
    %6790 = vmatprep.subr.bf16.mxu0 %v6108
    %6791 = vmatpush2.bf16.msra.mxu0 %v6107
    %6792 = vmatprep.subr.bf16.mxu0 %v6100
    %6793 = vmatpush2.bf16.msra.mxu0 %v6099
    %6794 = vmatprep.subr.bf16.mxu0 %v6092
    %6795 = vmatpush2.bf16.msra.mxu0 %v6091
    %6796 = vmatprep.subr.bf16.mxu0 %v6084
    %6797 = vmatpush2.bf16.msra.mxu0 %v6083
    %6798 = vmatprep.subr.bf16.mxu0 %v6076
    %6799 = vmatpush2.bf16.msra.mxu0 %v6075
    %6800 = vmatprep.subr.bf16.mxu0 %v6068
    %6801 = vmatpush2.bf16.msra.mxu0 %v6067
    %6802 = vmatprep.mubr.bf16.mxu0 %v6726
    %6803 = vmatmul.mubr.bf16.gmra.mxu0 %v6725
    %v6804 = vpop.f32.mrf.mxu0
    %v6805 = vadd.f32 0.0, %v6804
    %v6806 = vpop.f32.mrf.mxu0
    %v6807 = vadd.f32 0.0, %v6806
    %v6808 = vpop.f32.mrf.mxu0
    %v6809 = vpop.f32.mrf.mxu0
    %6810 = vdwg.mxu0
    %6811 = vmatprep.subr.bf16.mxu0 %v6062
    %6812 = vmatpush1.bf16.msra.mxu0 %v6061
    %6813 = vmatprep.subr.bf16.mxu0 %v6054
    %6814 = vmatpush1.bf16.msra.mxu0 %v6053
    %6815 = vmatprep.subr.bf16.mxu0 %v6046
    %6816 = vmatpush1.bf16.msra.mxu0 %v6045
    %6817 = vmatprep.subr.bf16.mxu0 %v6038
    %6818 = vmatpush1.bf16.msra.mxu0 %v6037
    %6819 = vmatprep.subr.bf16.mxu0 %v6030
    %6820 = vmatpush1.bf16.msra.mxu0 %v6029
    %6821 = vmatprep.subr.bf16.mxu0 %v6022
    %6822 = vmatpush1.bf16.msra.mxu0 %v6021
    %6823 = vmatprep.subr.bf16.mxu0 %v6014
    %6824 = vmatpush1.bf16.msra.mxu0 %v6013
    %6825 = vmatprep.subr.bf16.mxu0 %v6006
    %6826 = vmatpush1.bf16.msra.mxu0 %v6005
    %6827 = vmatprep.subr.bf16.mxu0 %v6126
    %6828 = vmatpush2.bf16.msra.mxu0 %v6125
    %6829 = vmatprep.subr.bf16.mxu0 %v6118
    %6830 = vmatpush2.bf16.msra.mxu0 %v6117
    %6831 = vmatprep.subr.bf16.mxu0 %v6110
    %6832 = vmatpush2.bf16.msra.mxu0 %v6109
    %6833 = vmatprep.subr.bf16.mxu0 %v6102
    %6834 = vmatpush2.bf16.msra.mxu0 %v6101
    %6835 = vmatprep.subr.bf16.mxu0 %v6094
    %6836 = vmatpush2.bf16.msra.mxu0 %v6093
    %6837 = vmatprep.subr.bf16.mxu0 %v6086
    %6838 = vmatpush2.bf16.msra.mxu0 %v6085
    %6839 = vmatprep.subr.bf16.mxu0 %v6078
    %6840 = vmatpush2.bf16.msra.mxu0 %v6077
    %6841 = vmatprep.subr.bf16.mxu0 %v6070
    %6842 = vmatpush2.bf16.msra.mxu0 %v6069
    %6843 = vmatprep.mubr.bf16.mxu0 %v6726
    %6844 = vmatmul.mubr.bf16.gmra.mxu0 %v6725
    %v6845 = vpop.f32.mrf.mxu0
    %v6846 = vadd.f32 0.0, %v6845
    %v6847 = vpop.f32.mrf.mxu0
    %v6848 = vadd.f32 0.0, %v6847
    %v6849 = vpop.f32.mrf.mxu0
    %v6850 = vpop.f32.mrf.mxu0
    %6851 = vdwg.mxu0
    %6852 = vmatprep.subr.bf16.mxu0 %v6064
    %6853 = vmatpush1.bf16.msra.mxu0 %v6063
    %6854 = vmatprep.subr.bf16.mxu0 %v6056
    %6855 = vmatpush1.bf16.msra.mxu0 %v6055
    %6856 = vmatprep.subr.bf16.mxu0 %v6048
    %6857 = vmatpush1.bf16.msra.mxu0 %v6047
    %6858 = vmatprep.subr.bf16.mxu0 %v6040
    %6859 = vmatpush1.bf16.msra.mxu0 %v6039
    %6860 = vmatprep.subr.bf16.mxu0 %v6032
    %6861 = vmatpush1.bf16.msra.mxu0 %v6031
    %6862 = vmatprep.subr.bf16.mxu0 %v6024
    %6863 = vmatpush1.bf16.msra.mxu0 %v6023
    %6864 = vmatprep.subr.bf16.mxu0 %v6016
    %6865 = vmatpush1.bf16.msra.mxu0 %v6015
    %6866 = vmatprep.subr.bf16.mxu0 %v6008
    %6867 = vmatpush1.bf16.msra.mxu0 %v6007
    %6868 = vmatprep.subr.bf16.mxu0 %v6128
    %6869 = vmatpush2.bf16.msra.mxu0 %v6127
    %6870 = vmatprep.subr.bf16.mxu0 %v6120
    %6871 = vmatpush2.bf16.msra.mxu0 %v6119
    %6872 = vmatprep.subr.bf16.mxu0 %v6112
    %6873 = vmatpush2.bf16.msra.mxu0 %v6111
    %6874 = vmatprep.subr.bf16.mxu0 %v6104
    %6875 = vmatpush2.bf16.msra.mxu0 %v6103
    %6876 = vmatprep.subr.bf16.mxu0 %v6096
    %6877 = vmatpush2.bf16.msra.mxu0 %v6095
    %6878 = vmatprep.subr.bf16.mxu0 %v6088
    %6879 = vmatpush2.bf16.msra.mxu0 %v6087
    %6880 = vmatprep.subr.bf16.mxu0 %v6080
    %6881 = vmatpush2.bf16.msra.mxu0 %v6079
    %6882 = vmatprep.subr.bf16.mxu0 %v6072
    %6883 = vmatpush2.bf16.msra.mxu0 %v6071
    %6884 = vmatprep.mubr.bf16.mxu0 %v6726
    %6885 = vmatmul.mubr.bf16.gmra.mxu0 %v6725
    %v6886 = vpop.f32.mrf.mxu0
    %v6887 = vadd.f32 0.0, %v6886
    %v6888 = vpop.f32.mrf.mxu0
    %v6889 = vadd.f32 0.0, %v6888
    %v6890 = vpop.f32.mrf.mxu0
    %v6891 = vpop.f32.mrf.mxu0
    %6892 = vdwg.mxu0
    %v6901 = vrot.slane %v6594, 6
    %v6902 = vrot.slane %v6596, 6
    %v6903 = vrot.slane %v6635, 6
    %v6904 = vrot.slane %v6637, 6
    %v6905 = vrot.slane %v6676, 6
    %v6906 = vrot.slane %v6678, 6
    %v6907 = vrot.slane %v6717, 6
    %v6908 = vrot.slane %v6719, 6
    %v6917 = vadd.f32 %v6541, %v6901
    %v6918 = vadd.f32 %v6542, %v6902
    %v6919 = vadd.f32 %v6543, %v6903
    %v6920 = vadd.f32 %v6544, %v6904
    %v6921 = vadd.f32 %v6545, %v6905
    %v6922 = vadd.f32 %v6546, %v6906
    %v6923 = vadd.f32 %v6547, %v6907
    %v6924 = vadd.f32 %v6548, %v6908
    %v6933 = vrot.slane %v6764, 4
    %v6934 = vrot.slane %v6766, 4
    %v6935 = vrot.slane %v6805, 4
    %v6936 = vrot.slane %v6807, 4
    %v6937 = vrot.slane %v6846, 4
    %v6938 = vrot.slane %v6848, 4
    %v6939 = vrot.slane %v6887, 4
    %v6940 = vrot.slane %v6889, 4
    %v6949 = vadd.f32 %v6549, %v6933
    %v6950 = vadd.f32 %v6550, %v6934
    %v6951 = vadd.f32 %v6551, %v6935
    %v6952 = vadd.f32 %v6552, %v6936
    %v6953 = vadd.f32 %v6553, %v6937
    %v6954 = vadd.f32 %v6554, %v6938
    %v6955 = vadd.f32 %v6555, %v6939
    %v6956 = vadd.f32 %v6556, %v6940
    %v6965 = vrot.slane %v6917, 2
    %v6966 = vrot.slane %v6918, 2
    %v6967 = vrot.slane %v6919, 2
    %v6968 = vrot.slane %v6920, 2
    %v6969 = vrot.slane %v6921, 2
    %v6970 = vrot.slane %v6922, 2
    %v6971 = vrot.slane %v6923, 2
    %v6972 = vrot.slane %v6924, 2
    %v6989 = vrot.slane %v6949, 2
    %v6990 = vrot.slane %v6950, 2
    %v6991 = vrot.slane %v6951, 2
    %v6992 = vrot.slane %v6952, 2
    %v6993 = vrot.slane %v6953, 2
    %v6994 = vrot.slane %v6954, 2
    %v6995 = vrot.slane %v6955, 2
    %v6996 = vrot.slane %v6956, 2
    %v7005 = vsel %vm1386, %v6965, %v6989
    %v7006 = vsel %vm1386, %v6966, %v6990
    %v7007 = vsel %vm1386, %v6967, %v6991
    %v7008 = vsel %vm1386, %v6968, %v6992
    %v7009 = vsel %vm1386, %v6969, %v6993
    %v7010 = vsel %vm1386, %v6970, %v6994
    %v7011 = vsel %vm1386, %v6971, %v6995
    %v7012 = vsel %vm1386, %v6972, %v6996
    %v7013 = vxor.u32 %v7005, 2147483648
    %v7014 = vxor.u32 %v7006, 2147483648
    %v7015 = vmul.f32 %v7013, 1.442695
    %v7016 = vpow.pop %v7015
    %v7017 = vmul.f32 %v7014, 1.442695
    %v7018 = vpow.pop %v7017
    %v7019 = vadd.f32 %v7016, 1.0
    %v7020 = vadd.f32 %v7018, 1.0
    %v7021 = vrcp.pop %v7019
    %v7022 = vmul.f32 1.0, %v7021
    %v7023 = vrcp.pop %v7020
    %v7024 = vmul.f32 1.0, %v7023
    %v7025 = vxor.u32 %v7007, 2147483648
    %v7026 = vxor.u32 %v7008, 2147483648
    %v7027 = vmul.f32 %v7025, 1.442695
    %v7028 = vpow.pop %v7027
    %v7029 = vmul.f32 %v7026, 1.442695
    %v7030 = vpow.pop %v7029
    %v7031 = vadd.f32 %v7028, 1.0
    %v7032 = vadd.f32 %v7030, 1.0
    %v7033 = vrcp.pop %v7031
    %v7034 = vmul.f32 1.0, %v7033
    %v7035 = vrcp.pop %v7032
    %v7036 = vmul.f32 1.0, %v7035
    %v7037 = vtanh.pop %v7009
    %v7038 = vtanh.pop %v7010
    %v7039 = vxor.u32 %v7011, 2147483648
    %v7040 = vxor.u32 %v7012, 2147483648
    %v7041 = vmul.f32 %v7039, 1.442695
    %v7042 = vpow.pop %v7041
    %v7043 = vmul.f32 %v7040, 1.442695
    %v7044 = vpow.pop %v7043
    %v7045 = vadd.f32 %v7042, 1.0
    %v7046 = vadd.f32 %v7044, 1.0
    %v7047 = vrcp.pop %v7045
    %v7048 = vmul.f32 1.0, %v7047
    %v7049 = vrcp.pop %v7046
    %v7050 = vmul.f32 1.0, %v7049
    %v7051 = vmul.f32 %v7034, %v6535
    %v7052 = vmul.f32 %v7036, %v6536
    %v7053 = vmul.f32 %v7022, %v7037
    %v7054 = vmul.f32 %v7024, %v7038
    %v7055 = vadd.f32 %v7051, %v7053
    %v7056 = vadd.f32 %v7052, %v7054
    %v7057 = vtanh.pop %v7055
    %v7058 = vtanh.pop %v7056
    %v7059 = vmul.f32 %v7048, %v7057
    %v7060 = vmul.f32 %v7050, %v7058
    %v7061 = vld [vmem:[#allocation2 + $0x80] sm:$0x30]
    %v7062 = vld [vmem:[#allocation2 + $0x88] sm:$0x30]
    %v7063 = vld [vmem:[#allocation2 + $0x90] sm:$0x30]
    %v7064 = vld [vmem:[#allocation2 + $0x98] sm:$0x30]
    %v7065 = vld [vmem:[#allocation2 + $0xa0] sm:$0x30]
    %v7066 = vld [vmem:[#allocation2 + $0xa8] sm:$0x30]
    %v7067 = vld [vmem:[#allocation2 + $0xb0] sm:$0x30]
    %v7068 = vld [vmem:[#allocation2 + $0xb8] sm:$0x30]
    %v7069 = vld [vmem:[#allocation2 + $0x40] sm:$0xc]
    %v7070 = vld [vmem:[#allocation2 + $0x48] sm:$0xc]
    %v7071 = vld [vmem:[#allocation2 + $0x50] sm:$0xc]
    %v7072 = vld [vmem:[#allocation2 + $0x58] sm:$0xc]
    %v7073 = vld [vmem:[#allocation2 + $0x60] sm:$0xc]
    %v7074 = vld [vmem:[#allocation2 + $0x68] sm:$0xc]
    %v7075 = vld [vmem:[#allocation2 + $0x70] sm:$0xc]
    %v7076 = vld [vmem:[#allocation2 + $0x78] sm:$0xc]
    %v7077 = vpack.c.bf16 %v7059, %v7059
    %v7078 = vpack.c.bf16 %v7060, %v7060
    %7079 = vmatprep.subr.bf16.mxu0 %v5120
    %7080 = vmatpush1.bf16.msra.mxu0 %v5119
    %7081 = vmatprep.subr.bf16.mxu0 %v5112
    %7082 = vmatpush1.bf16.msra.mxu0 %v5111
    %7083 = vmatprep.subr.bf16.mxu0 %v5104
    %7084 = vmatpush1.bf16.msra.mxu0 %v5103
    %7085 = vmatprep.subr.bf16.mxu0 %v5096
    %7086 = vmatpush1.bf16.msra.mxu0 %v5095
    %7087 = vmatprep.subr.bf16.mxu0 %v5088
    %7088 = vmatpush1.bf16.msra.mxu0 %v5087
    %7089 = vmatprep.subr.bf16.mxu0 %v5080
    %7090 = vmatpush1.bf16.msra.mxu0 %v5079
    %7091 = vmatprep.subr.bf16.mxu0 %v5072
    %7092 = vmatpush1.bf16.msra.mxu0 %v5071
    %7093 = vmatprep.subr.bf16.mxu0 %v5064
    %7094 = vmatpush1.bf16.msra.mxu0 %v5063
    %7095 = vmatprep.subr.bf16.mxu0 %v5184
    %7096 = vmatpush2.bf16.msra.mxu0 %v5183
    %7097 = vmatprep.subr.bf16.mxu0 %v5176
    %7098 = vmatpush2.bf16.msra.mxu0 %v5175
    %7099 = vmatprep.subr.bf16.mxu0 %v5168
    %7100 = vmatpush2.bf16.msra.mxu0 %v5167
    %7101 = vmatprep.subr.bf16.mxu0 %v5160
    %7102 = vmatpush2.bf16.msra.mxu0 %v5159
    %7103 = vmatprep.subr.bf16.mxu0 %v5152
    %7104 = vmatpush2.bf16.msra.mxu0 %v5151
    %7105 = vmatprep.subr.bf16.mxu0 %v5144
    %7106 = vmatpush2.bf16.msra.mxu0 %v5143
    %7107 = vmatprep.subr.bf16.mxu0 %v5136
    %7108 = vmatpush2.bf16.msra.mxu0 %v5135
    %7109 = vmatprep.subr.bf16.mxu0 %v5128
    %7110 = vmatpush2.bf16.msra.mxu0 %v5127
    %7111 = vmatprep.mubr.bf16.mxu0 %v7078
    %7112 = vmatmul.mubr.bf16.gmra.mxu0 %v7077
    %v7113 = vpop.f32.mrf.mxu0
    %v7114 = vadd.f32 0.0, %v7113
    %v7115 = vpop.f32.mrf.mxu0
    %v7116 = vadd.f32 0.0, %v7115
    %v7117 = vpop.f32.mrf.mxu0
    %v7118 = vpop.f32.mrf.mxu0
    %7119 = vdwg.mxu0
    %7120 = vmatprep.subr.bf16.mxu0 %v5122
    %7121 = vmatpush1.bf16.msra.mxu0 %v5121
    %7122 = vmatprep.subr.bf16.mxu0 %v5114
    %7123 = vmatpush1.bf16.msra.mxu0 %v5113
    %7124 = vmatprep.subr.bf16.mxu0 %v5106
    %7125 = vmatpush1.bf16.msra.mxu0 %v5105
    %7126 = vmatprep.subr.bf16.mxu0 %v5098
    %7127 = vmatpush1.bf16.msra.mxu0 %v5097
    %7128 = vmatprep.subr.bf16.mxu0 %v5090
    %7129 = vmatpush1.bf16.msra.mxu0 %v5089
    %7130 = vmatprep.subr.bf16.mxu0 %v5082
    %7131 = vmatpush1.bf16.msra.mxu0 %v5081
    %7132 = vmatprep.subr.bf16.mxu0 %v5074
    %7133 = vmatpush1.bf16.msra.mxu0 %v5073
    %7134 = vmatprep.subr.bf16.mxu0 %v5066
    %7135 = vmatpush1.bf16.msra.mxu0 %v5065
    %7136 = vmatprep.subr.bf16.mxu0 %v5186
    %7137 = vmatpush2.bf16.msra.mxu0 %v5185
    %7138 = vmatprep.subr.bf16.mxu0 %v5178
    %7139 = vmatpush2.bf16.msra.mxu0 %v5177
    %7140 = vmatprep.subr.bf16.mxu0 %v5170
    %7141 = vmatpush2.bf16.msra.mxu0 %v5169
    %7142 = vmatprep.subr.bf16.mxu0 %v5162
    %7143 = vmatpush2.bf16.msra.mxu0 %v5161
    %7144 = vmatprep.subr.bf16.mxu0 %v5154
    %7145 = vmatpush2.bf16.msra.mxu0 %v5153
    %7146 = vmatprep.subr.bf16.mxu0 %v5146
    %7147 = vmatpush2.bf16.msra.mxu0 %v5145
    %7148 = vmatprep.subr.bf16.mxu0 %v5138
    %7149 = vmatpush2.bf16.msra.mxu0 %v5137
    %7150 = vmatprep.subr.bf16.mxu0 %v5130
    %7151 = vmatpush2.bf16.msra.mxu0 %v5129
    %7152 = vmatprep.mubr.bf16.mxu0 %v7078
    %7153 = vmatmul.mubr.bf16.gmra.mxu0 %v7077
    %v7154 = vpop.f32.mrf.mxu0
    %v7155 = vadd.f32 0.0, %v7154
    %v7156 = vpop.f32.mrf.mxu0
    %v7157 = vadd.f32 0.0, %v7156
    %v7158 = vpop.f32.mrf.mxu0
    %v7159 = vpop.f32.mrf.mxu0
    %7160 = vdwg.mxu0
    %7161 = vmatprep.subr.bf16.mxu0 %v5124
    %7162 = vmatpush1.bf16.msra.mxu0 %v5123
    %7163 = vmatprep.subr.bf16.mxu0 %v5116
    %7164 = vmatpush1.bf16.msra.mxu0 %v5115
    %7165 = vmatprep.subr.bf16.mxu0 %v5108
    %7166 = vmatpush1.bf16.msra.mxu0 %v5107
    %7167 = vmatprep.subr.bf16.mxu0 %v5100
    %7168 = vmatpush1.bf16.msra.mxu0 %v5099
    %7169 = vmatprep.subr.bf16.mxu0 %v5092
    %7170 = vmatpush1.bf16.msra.mxu0 %v5091
    %7171 = vmatprep.subr.bf16.mxu0 %v5084
    %7172 = vmatpush1.bf16.msra.mxu0 %v5083
    %7173 = vmatprep.subr.bf16.mxu0 %v5076
    %7174 = vmatpush1.bf16.msra.mxu0 %v5075
    %7175 = vmatprep.subr.bf16.mxu0 %v5068
    %7176 = vmatpush1.bf16.msra.mxu0 %v5067
    %7177 = vmatprep.subr.bf16.mxu0 %v5188
    %7178 = vmatpush2.bf16.msra.mxu0 %v5187
    %7179 = vmatprep.subr.bf16.mxu0 %v5180
    %7180 = vmatpush2.bf16.msra.mxu0 %v5179
    %7181 = vmatprep.subr.bf16.mxu0 %v5172
    %7182 = vmatpush2.bf16.msra.mxu0 %v5171
    %7183 = vmatprep.subr.bf16.mxu0 %v5164
    %7184 = vmatpush2.bf16.msra.mxu0 %v5163
    %7185 = vmatprep.subr.bf16.mxu0 %v5156
    %7186 = vmatpush2.bf16.msra.mxu0 %v5155
    %7187 = vmatprep.subr.bf16.mxu0 %v5148
    %7188 = vmatpush2.bf16.msra.mxu0 %v5147
    %7189 = vmatprep.subr.bf16.mxu0 %v5140
    %7190 = vmatpush2.bf16.msra.mxu0 %v5139
    %7191 = vmatprep.subr.bf16.mxu0 %v5132
    %7192 = vmatpush2.bf16.msra.mxu0 %v5131
    %7193 = vmatprep.mubr.bf16.mxu0 %v7078
    %7194 = vmatmul.mubr.bf16.gmra.mxu0 %v7077
    %v7195 = vpop.f32.mrf.mxu0
    %v7196 = vadd.f32 0.0, %v7195
    %v7197 = vpop.f32.mrf.mxu0
    %v7198 = vadd.f32 0.0, %v7197
    %v7199 = vpop.f32.mrf.mxu0
    %v7200 = vpop.f32.mrf.mxu0
    %7201 = vdwg.mxu0
    %7202 = vmatprep.subr.bf16.mxu0 %v5126
    %7203 = vmatpush1.bf16.msra.mxu0 %v5125
    %7204 = vmatprep.subr.bf16.mxu0 %v5118
    %7205 = vmatpush1.bf16.msra.mxu0 %v5117
    %7206 = vmatprep.subr.bf16.mxu0 %v5110
    %7207 = vmatpush1.bf16.msra.mxu0 %v5109
    %7208 = vmatprep.subr.bf16.mxu0 %v5102
    %7209 = vmatpush1.bf16.msra.mxu0 %v5101
    %7210 = vmatprep.subr.bf16.mxu0 %v5094
    %7211 = vmatpush1.bf16.msra.mxu0 %v5093
    %7212 = vmatprep.subr.bf16.mxu0 %v5086
    %7213 = vmatpush1.bf16.msra.mxu0 %v5085
    %7214 = vmatprep.subr.bf16.mxu0 %v5078
    %7215 = vmatpush1.bf16.msra.mxu0 %v5077
    %7216 = vmatprep.subr.bf16.mxu0 %v5070
    %7217 = vmatpush1.bf16.msra.mxu0 %v5069
    %7218 = vmatprep.subr.bf16.mxu0 %v5190
    %7219 = vmatpush2.bf16.msra.mxu0 %v5189
    %7220 = vmatprep.subr.bf16.mxu0 %v5182
    %7221 = vmatpush2.bf16.msra.mxu0 %v5181
    %7222 = vmatprep.subr.bf16.mxu0 %v5174
    %7223 = vmatpush2.bf16.msra.mxu0 %v5173
    %7224 = vmatprep.subr.bf16.mxu0 %v5166
    %7225 = vmatpush2.bf16.msra.mxu0 %v5165
    %7226 = vmatprep.subr.bf16.mxu0 %v5158
    %7227 = vmatpush2.bf16.msra.mxu0 %v5157
    %7228 = vmatprep.subr.bf16.mxu0 %v5150
    %7229 = vmatpush2.bf16.msra.mxu0 %v5149
    %7230 = vmatprep.subr.bf16.mxu0 %v5142
    %7231 = vmatpush2.bf16.msra.mxu0 %v5141
    %7232 = vmatprep.subr.bf16.mxu0 %v5134
    %7233 = vmatpush2.bf16.msra.mxu0 %v5133
    %7234 = vmatprep.mubr.bf16.mxu0 %v7078
    %7235 = vmatmul.mubr.bf16.gmra.mxu0 %v7077
    %v7236 = vpop.f32.mrf.mxu0
    %v7237 = vadd.f32 0.0, %v7236
    %v7238 = vpop.f32.mrf.mxu0
    %v7239 = vadd.f32 0.0, %v7238
    %v7240 = vpop.f32.mrf.mxu0
    %v7241 = vpop.f32.mrf.mxu0
    %7242 = vdwg.mxu0
    %v7245 = vrot.slane %v7077, 1
    %v7246 = vrot.slane %v7078, 1
    %7249 = vmatprep.subr.bf16.mxu0 %v6058
    %7250 = vmatpush1.bf16.msra.mxu0 %v6057
    %7251 = vmatprep.subr.bf16.mxu0 %v6050
    %7252 = vmatpush1.bf16.msra.mxu0 %v6049
    %7253 = vmatprep.subr.bf16.mxu0 %v6042
    %7254 = vmatpush1.bf16.msra.mxu0 %v6041
    %7255 = vmatprep.subr.bf16.mxu0 %v6034
    %7256 = vmatpush1.bf16.msra.mxu0 %v6033
    %7257 = vmatprep.subr.bf16.mxu0 %v6026
    %7258 = vmatpush1.bf16.msra.mxu0 %v6025
    %7259 = vmatprep.subr.bf16.mxu0 %v6018
    %7260 = vmatpush1.bf16.msra.mxu0 %v6017
    %7261 = vmatprep.subr.bf16.mxu0 %v6010
    %7262 = vmatpush1.bf16.msra.mxu0 %v6009
    %7263 = vmatprep.subr.bf16.mxu0 %v6002
    %7264 = vmatpush1.bf16.msra.mxu0 %v6001
    %7265 = vmatprep.subr.bf16.mxu0 %v6122
    %7266 = vmatpush2.bf16.msra.mxu0 %v6121
    %7267 = vmatprep.subr.bf16.mxu0 %v6114
    %7268 = vmatpush2.bf16.msra.mxu0 %v6113
    %7269 = vmatprep.subr.bf16.mxu0 %v6106
    %7270 = vmatpush2.bf16.msra.mxu0 %v6105
    %7271 = vmatprep.subr.bf16.mxu0 %v6098
    %7272 = vmatpush2.bf16.msra.mxu0 %v6097
    %7273 = vmatprep.subr.bf16.mxu0 %v6090
    %7274 = vmatpush2.bf16.msra.mxu0 %v6089
    %7275 = vmatprep.subr.bf16.mxu0 %v6082
    %7276 = vmatpush2.bf16.msra.mxu0 %v6081
    %7277 = vmatprep.subr.bf16.mxu0 %v6074
    %7278 = vmatpush2.bf16.msra.mxu0 %v6073
    %7279 = vmatprep.subr.bf16.mxu0 %v6066
    %7280 = vmatpush2.bf16.msra.mxu0 %v6065
    %7281 = vmatprep.mubr.bf16.mxu0 %v7246
    %7282 = vmatmul.mubr.bf16.gmra.mxu0 %v7245
    %v7283 = vpop.f32.mrf.mxu0
    %v7284 = vadd.f32 0.0, %v7283
    %v7285 = vpop.f32.mrf.mxu0
    %v7286 = vadd.f32 0.0, %v7285
    %v7287 = vpop.f32.mrf.mxu0
    %v7288 = vpop.f32.mrf.mxu0
    %7289 = vdwg.mxu0
    %7290 = vmatprep.subr.bf16.mxu0 %v6060
    %7291 = vmatpush1.bf16.msra.mxu0 %v6059
    %7292 = vmatprep.subr.bf16.mxu0 %v6052
    %7293 = vmatpush1.bf16.msra.mxu0 %v6051
    %7294 = vmatprep.subr.bf16.mxu0 %v6044
    %7295 = vmatpush1.bf16.msra.mxu0 %v6043
    %7296 = vmatprep.subr.bf16.mxu0 %v6036
    %7297 = vmatpush1.bf16.msra.mxu0 %v6035
    %7298 = vmatprep.subr.bf16.mxu0 %v6028
    %7299 = vmatpush1.bf16.msra.mxu0 %v6027
    %7300 = vmatprep.subr.bf16.mxu0 %v6020
    %7301 = vmatpush1.bf16.msra.mxu0 %v6019
    %7302 = vmatprep.subr.bf16.mxu0 %v6012
    %7303 = vmatpush1.bf16.msra.mxu0 %v6011
    %7304 = vmatprep.subr.bf16.mxu0 %v6004
    %7305 = vmatpush1.bf16.msra.mxu0 %v6003
    %7306 = vmatprep.subr.bf16.mxu0 %v6124
    %7307 = vmatpush2.bf16.msra.mxu0 %v6123
    %7308 = vmatprep.subr.bf16.mxu0 %v6116
    %7309 = vmatpush2.bf16.msra.mxu0 %v6115
    %7310 = vmatprep.subr.bf16.mxu0 %v6108
    %7311 = vmatpush2.bf16.msra.mxu0 %v6107
    %7312 = vmatprep.subr.bf16.mxu0 %v6100
    %7313 = vmatpush2.bf16.msra.mxu0 %v6099
    %7314 = vmatprep.subr.bf16.mxu0 %v6092
    %7315 = vmatpush2.bf16.msra.mxu0 %v6091
    %7316 = vmatprep.subr.bf16.mxu0 %v6084
    %7317 = vmatpush2.bf16.msra.mxu0 %v6083
    %7318 = vmatprep.subr.bf16.mxu0 %v6076
    %7319 = vmatpush2.bf16.msra.mxu0 %v6075
    %7320 = vmatprep.subr.bf16.mxu0 %v6068
    %7321 = vmatpush2.bf16.msra.mxu0 %v6067
    %7322 = vmatprep.mubr.bf16.mxu0 %v7246
    %7323 = vmatmul.mubr.bf16.gmra.mxu0 %v7245
    %v7324 = vpop.f32.mrf.mxu0
    %v7325 = vadd.f32 0.0, %v7324
    %v7326 = vpop.f32.mrf.mxu0
    %v7327 = vadd.f32 0.0, %v7326
    %v7328 = vpop.f32.mrf.mxu0
    %v7329 = vpop.f32.mrf.mxu0
    %7330 = vdwg.mxu0
    %7331 = vmatprep.subr.bf16.mxu0 %v6062
    %7332 = vmatpush1.bf16.msra.mxu0 %v6061
    %7333 = vmatprep.subr.bf16.mxu0 %v6054
    %7334 = vmatpush1.bf16.msra.mxu0 %v6053
    %7335 = vmatprep.subr.bf16.mxu0 %v6046
    %7336 = vmatpush1.bf16.msra.mxu0 %v6045
    %7337 = vmatprep.subr.bf16.mxu0 %v6038
    %7338 = vmatpush1.bf16.msra.mxu0 %v6037
    %7339 = vmatprep.subr.bf16.mxu0 %v6030
    %7340 = vmatpush1.bf16.msra.mxu0 %v6029
    %7341 = vmatprep.subr.bf16.mxu0 %v6022
    %7342 = vmatpush1.bf16.msra.mxu0 %v6021
    %7343 = vmatprep.subr.bf16.mxu0 %v6014
    %7344 = vmatpush1.bf16.msra.mxu0 %v6013
    %7345 = vmatprep.subr.bf16.mxu0 %v6006
    %7346 = vmatpush1.bf16.msra.mxu0 %v6005
    %7347 = vmatprep.subr.bf16.mxu0 %v6126
    %7348 = vmatpush2.bf16.msra.mxu0 %v6125
    %7349 = vmatprep.subr.bf16.mxu0 %v6118
    %7350 = vmatpush2.bf16.msra.mxu0 %v6117
    %7351 = vmatprep.subr.bf16.mxu0 %v6110
    %7352 = vmatpush2.bf16.msra.mxu0 %v6109
    %7353 = vmatprep.subr.bf16.mxu0 %v6102
    %7354 = vmatpush2.bf16.msra.mxu0 %v6101
    %7355 = vmatprep.subr.bf16.mxu0 %v6094
    %7356 = vmatpush2.bf16.msra.mxu0 %v6093
    %7357 = vmatprep.subr.bf16.mxu0 %v6086
    %7358 = vmatpush2.bf16.msra.mxu0 %v6085
    %7359 = vmatprep.subr.bf16.mxu0 %v6078
    %7360 = vmatpush2.bf16.msra.mxu0 %v6077
    %7361 = vmatprep.subr.bf16.mxu0 %v6070
    %7362 = vmatpush2.bf16.msra.mxu0 %v6069
    %7363 = vmatprep.mubr.bf16.mxu0 %v7246
    %7364 = vmatmul.mubr.bf16.gmra.mxu0 %v7245
    %v7365 = vpop.f32.mrf.mxu0
    %v7366 = vadd.f32 0.0, %v7365
    %v7367 = vpop.f32.mrf.mxu0
    %v7368 = vadd.f32 0.0, %v7367
    %v7369 = vpop.f32.mrf.mxu0
    %v7370 = vpop.f32.mrf.mxu0
    %7371 = vdwg.mxu0
    %7372 = vmatprep.subr.bf16.mxu0 %v6064
    %7373 = vmatpush1.bf16.msra.mxu0 %v6063
    %7374 = vmatprep.subr.bf16.mxu0 %v6056
    %7375 = vmatpush1.bf16.msra.mxu0 %v6055
    %7376 = vmatprep.subr.bf16.mxu0 %v6048
    %7377 = vmatpush1.bf16.msra.mxu0 %v6047
    %7378 = vmatprep.subr.bf16.mxu0 %v6040
    %7379 = vmatpush1.bf16.msra.mxu0 %v6039
    %7380 = vmatprep.subr.bf16.mxu0 %v6032
    %7381 = vmatpush1.bf16.msra.mxu0 %v6031
    %7382 = vmatprep.subr.bf16.mxu0 %v6024
    %7383 = vmatpush1.bf16.msra.mxu0 %v6023
    %7384 = vmatprep.subr.bf16.mxu0 %v6016
    %7385 = vmatpush1.bf16.msra.mxu0 %v6015
    %7386 = vmatprep.subr.bf16.mxu0 %v6008
    %7387 = vmatpush1.bf16.msra.mxu0 %v6007
    %7388 = vmatprep.subr.bf16.mxu0 %v6128
    %7389 = vmatpush2.bf16.msra.mxu0 %v6127
    %7390 = vmatprep.subr.bf16.mxu0 %v6120
    %7391 = vmatpush2.bf16.msra.mxu0 %v6119
    %7392 = vmatprep.subr.bf16.mxu0 %v6112
    %7393 = vmatpush2.bf16.msra.mxu0 %v6111
    %7394 = vmatprep.subr.bf16.mxu0 %v6104
    %7395 = vmatpush2.bf16.msra.mxu0 %v6103
    %7396 = vmatprep.subr.bf16.mxu0 %v6096
    %7397 = vmatpush2.bf16.msra.mxu0 %v6095
    %7398 = vmatprep.subr.bf16.mxu0 %v6088
    %7399 = vmatpush2.bf16.msra.mxu0 %v6087
    %7400 = vmatprep.subr.bf16.mxu0 %v6080
    %7401 = vmatpush2.bf16.msra.mxu0 %v6079
    %7402 = vmatprep.subr.bf16.mxu0 %v6072
    %7403 = vmatpush2.bf16.msra.mxu0 %v6071
    %7404 = vmatprep.mubr.bf16.mxu0 %v7246
    %7405 = vmatmul.mubr.bf16.gmra.mxu0 %v7245
    %v7406 = vpop.f32.mrf.mxu0
    %v7407 = vadd.f32 0.0, %v7406
    %v7408 = vpop.f32.mrf.mxu0
    %v7409 = vadd.f32 0.0, %v7408
    %v7410 = vpop.f32.mrf.mxu0
    %v7411 = vpop.f32.mrf.mxu0
    %7412 = vdwg.mxu0
    %v7421 = vrot.slane %v7114, 4
    %v7422 = vrot.slane %v7116, 4
    %v7423 = vrot.slane %v7155, 4
    %v7424 = vrot.slane %v7157, 4
    %v7425 = vrot.slane %v7196, 4
    %v7426 = vrot.slane %v7198, 4
    %v7427 = vrot.slane %v7237, 4
    %v7428 = vrot.slane %v7239, 4
    %v7437 = vadd.f32 %v7061, %v7421
    %v7438 = vadd.f32 %v7062, %v7422
    %v7439 = vadd.f32 %v7063, %v7423
    %v7440 = vadd.f32 %v7064, %v7424
    %v7441 = vadd.f32 %v7065, %v7425
    %v7442 = vadd.f32 %v7066, %v7426
    %v7443 = vadd.f32 %v7067, %v7427
    %v7444 = vadd.f32 %v7068, %v7428
    %v7453 = vrot.slane %v7284, 6
    %v7454 = vrot.slane %v7286, 6
    %v7455 = vrot.slane %v7325, 6
    %v7456 = vrot.slane %v7327, 6
    %v7457 = vrot.slane %v7366, 6
    %v7458 = vrot.slane %v7368, 6
    %v7459 = vrot.slane %v7407, 6
    %v7460 = vrot.slane %v7409, 6
    %v7469 = vadd.f32 %v7069, %v7453
    %v7470 = vadd.f32 %v7070, %v7454
    %v7471 = vadd.f32 %v7071, %v7455
    %v7472 = vadd.f32 %v7072, %v7456
    %v7473 = vadd.f32 %v7073, %v7457
    %v7474 = vadd.f32 %v7074, %v7458
    %v7475 = vadd.f32 %v7075, %v7459
    %v7476 = vadd.f32 %v7076, %v7460
    %v7485 = vrot.slane %v7437, 4
    %v7486 = vrot.slane %v7438, 4
    %v7487 = vrot.slane %v7439, 4
    %v7488 = vrot.slane %v7440, 4
    %v7489 = vrot.slane %v7441, 4
    %v7490 = vrot.slane %v7442, 4
    %v7491 = vrot.slane %v7443, 4
    %v7492 = vrot.slane %v7444, 4
    %v7501 = vsel %vm1386, %v7485, %v7469
    %v7502 = vsel %vm1386, %v7486, %v7470
    %v7503 = vsel %vm1386, %v7487, %v7471
    %v7504 = vsel %vm1386, %v7488, %v7472
    %v7505 = vsel %vm1386, %v7489, %v7473
    %v7506 = vsel %vm1386, %v7490, %v7474
    %v7507 = vsel %vm1386, %v7491, %v7475
    %v7508 = vsel %vm1386, %v7492, %v7476
    %v7509 = vxor.u32 %v7501, 2147483648
    %v7510 = vxor.u32 %v7502, 2147483648
    %v7511 = vmul.f32 %v7509, 1.442695
    %v7512 = vpow.pop %v7511
    %v7513 = vmul.f32 %v7510, 1.442695
    %v7514 = vpow.pop %v7513
    %v7515 = vadd.f32 %v7512, 1.0
    %v7516 = vadd.f32 %v7514, 1.0
    %v7517 = vrcp.pop %v7515
    %v7518 = vmul.f32 1.0, %v7517
    %v7519 = vrcp.pop %v7516
    %v7520 = vmul.f32 1.0, %v7519
    %v7521 = vxor.u32 %v7503, 2147483648
    %v7522 = vxor.u32 %v7504, 2147483648
    %v7523 = vmul.f32 %v7521, 1.442695
    %v7524 = vpow.pop %v7523
    %v7525 = vmul.f32 %v7522, 1.442695
    %v7526 = vpow.pop %v7525
    %v7527 = vadd.f32 %v7524, 1.0
    %v7528 = vadd.f32 %v7526, 1.0
    %v7529 = vrcp.pop %v7527
    %v7530 = vmul.f32 1.0, %v7529
    %v7531 = vrcp.pop %v7528
    %v7532 = vmul.f32 1.0, %v7531
    %v7533 = vtanh.pop %v7505
    %v7534 = vtanh.pop %v7506
    %v7535 = vxor.u32 %v7507, 2147483648
    %v7536 = vxor.u32 %v7508, 2147483648
    %v7537 = vmul.f32 %v7535, 1.442695
    %v7538 = vpow.pop %v7537
    %v7539 = vmul.f32 %v7536, 1.442695
    %v7540 = vpow.pop %v7539
    %v7541 = vadd.f32 %v7538, 1.0
    %v7542 = vadd.f32 %v7540, 1.0
    %v7543 = vrcp.pop %v7541
    %v7544 = vmul.f32 1.0, %v7543
    %v7545 = vrcp.pop %v7542
    %v7546 = vmul.f32 1.0, %v7545
    %v7547 = vmul.f32 %v7530, %v7055
    %v7548 = vmul.f32 %v7532, %v7056
    %v7549 = vmul.f32 %v7518, %v7533
    %v7550 = vmul.f32 %v7520, %v7534
    %v7551 = vadd.f32 %v7547, %v7549
    %v7552 = vadd.f32 %v7548, %v7550
    %v7553 = vtanh.pop %v7551
    %v7554 = vtanh.pop %v7552
    %v7555 = vmul.f32 %v7544, %v7553
    %v7556 = vmul.f32 %v7546, %v7554
    %v7557 = vld [vmem:[#allocation2 + $0x80] sm:$0xc0]
    %v7558 = vld [vmem:[#allocation2 + $0x88] sm:$0xc0]
    %v7559 = vld [vmem:[#allocation2 + $0x90] sm:$0xc0]
    %v7560 = vld [vmem:[#allocation2 + $0x98] sm:$0xc0]
    %v7561 = vld [vmem:[#allocation2 + $0xa0] sm:$0xc0]
    %v7562 = vld [vmem:[#allocation2 + $0xa8] sm:$0xc0]
    %v7563 = vld [vmem:[#allocation2 + $0xb0] sm:$0xc0]
    %v7564 = vld [vmem:[#allocation2 + $0xb8] sm:$0xc0]
    %v7565 = vld [vmem:[#allocation2 + $0x40] sm:$0x3]
    %v7566 = vld [vmem:[#allocation2 + $0x48] sm:$0x3]
    %v7567 = vld [vmem:[#allocation2 + $0x50] sm:$0x3]
    %v7568 = vld [vmem:[#allocation2 + $0x58] sm:$0x3]
    %v7569 = vld [vmem:[#allocation2 + $0x60] sm:$0x3]
    %v7570 = vld [vmem:[#allocation2 + $0x68] sm:$0x3]
    %v7571 = vld [vmem:[#allocation2 + $0x70] sm:$0x3]
    %v7572 = vld [vmem:[#allocation2 + $0x78] sm:$0x3]
    %v7573 = vpack.c.bf16 %v7555, %v7555
    %v7574 = vpack.c.bf16 %v7556, %v7556
    %7575 = vmatprep.subr.bf16.mxu0 %v5120
    %7576 = vmatpush1.bf16.msra.mxu0 %v5119
    %7577 = vmatprep.subr.bf16.mxu0 %v5112
    %7578 = vmatpush1.bf16.msra.mxu0 %v5111
    %7579 = vmatprep.subr.bf16.mxu0 %v5104
    %7580 = vmatpush1.bf16.msra.mxu0 %v5103
    %7581 = vmatprep.subr.bf16.mxu0 %v5096
    %7582 = vmatpush1.bf16.msra.mxu0 %v5095
    %7583 = vmatprep.subr.bf16.mxu0 %v5088
    %7584 = vmatpush1.bf16.msra.mxu0 %v5087
    %7585 = vmatprep.subr.bf16.mxu0 %v5080
    %7586 = vmatpush1.bf16.msra.mxu0 %v5079
    %7587 = vmatprep.subr.bf16.mxu0 %v5072
    %7588 = vmatpush1.bf16.msra.mxu0 %v5071
    %7589 = vmatprep.subr.bf16.mxu0 %v5064
    %7590 = vmatpush1.bf16.msra.mxu0 %v5063
    %7591 = vmatprep.subr.bf16.mxu0 %v5184
    %7592 = vmatpush2.bf16.msra.mxu0 %v5183
    %7593 = vmatprep.subr.bf16.mxu0 %v5176
    %7594 = vmatpush2.bf16.msra.mxu0 %v5175
    %7595 = vmatprep.subr.bf16.mxu0 %v5168
    %7596 = vmatpush2.bf16.msra.mxu0 %v5167
    %7597 = vmatprep.subr.bf16.mxu0 %v5160
    %7598 = vmatpush2.bf16.msra.mxu0 %v5159
    %7599 = vmatprep.subr.bf16.mxu0 %v5152
    %7600 = vmatpush2.bf16.msra.mxu0 %v5151
    %7601 = vmatprep.subr.bf16.mxu0 %v5144
    %7602 = vmatpush2.bf16.msra.mxu0 %v5143
    %7603 = vmatprep.subr.bf16.mxu0 %v5136
    %7604 = vmatpush2.bf16.msra.mxu0 %v5135
    %7605 = vmatprep.subr.bf16.mxu0 %v5128
    %7606 = vmatpush2.bf16.msra.mxu0 %v5127
    %7607 = vmatprep.mubr.bf16.mxu0 %v7574
    %7608 = vmatmul.mubr.bf16.gmra.mxu0 %v7573
    %v7609 = vpop.f32.mrf.mxu0
    %v7610 = vadd.f32 0.0, %v7609
    %v7611 = vpop.f32.mrf.mxu0
    %v7612 = vadd.f32 0.0, %v7611
    %v7613 = vpop.f32.mrf.mxu0
    %v7614 = vpop.f32.mrf.mxu0
    %7615 = vdwg.mxu0
    %7616 = vmatprep.subr.bf16.mxu0 %v5122
    %7617 = vmatpush1.bf16.msra.mxu0 %v5121
    %7618 = vmatprep.subr.bf16.mxu0 %v5114
    %7619 = vmatpush1.bf16.msra.mxu0 %v5113
    %7620 = vmatprep.subr.bf16.mxu0 %v5106
    %7621 = vmatpush1.bf16.msra.mxu0 %v5105
    %7622 = vmatprep.subr.bf16.mxu0 %v5098
    %7623 = vmatpush1.bf16.msra.mxu0 %v5097
    %7624 = vmatprep.subr.bf16.mxu0 %v5090
    %7625 = vmatpush1.bf16.msra.mxu0 %v5089
    %7626 = vmatprep.subr.bf16.mxu0 %v5082
    %7627 = vmatpush1.bf16.msra.mxu0 %v5081
    %7628 = vmatprep.subr.bf16.mxu0 %v5074
    %7629 = vmatpush1.bf16.msra.mxu0 %v5073
    %7630 = vmatprep.subr.bf16.mxu0 %v5066
    %7631 = vmatpush1.bf16.msra.mxu0 %v5065
    %7632 = vmatprep.subr.bf16.mxu0 %v5186
    %7633 = vmatpush2.bf16.msra.mxu0 %v5185
    %7634 = vmatprep.subr.bf16.mxu0 %v5178
    %7635 = vmatpush2.bf16.msra.mxu0 %v5177
    %7636 = vmatprep.subr.bf16.mxu0 %v5170
    %7637 = vmatpush2.bf16.msra.mxu0 %v5169
    %7638 = vmatprep.subr.bf16.mxu0 %v5162
    %7639 = vmatpush2.bf16.msra.mxu0 %v5161
    %7640 = vmatprep.subr.bf16.mxu0 %v5154
    %7641 = vmatpush2.bf16.msra.mxu0 %v5153
    %7642 = vmatprep.subr.bf16.mxu0 %v5146
    %7643 = vmatpush2.bf16.msra.mxu0 %v5145
    %7644 = vmatprep.subr.bf16.mxu0 %v5138
    %7645 = vmatpush2.bf16.msra.mxu0 %v5137
    %7646 = vmatprep.subr.bf16.mxu0 %v5130
    %7647 = vmatpush2.bf16.msra.mxu0 %v5129
    %7648 = vmatprep.mubr.bf16.mxu0 %v7574
    %7649 = vmatmul.mubr.bf16.gmra.mxu0 %v7573
    %v7650 = vpop.f32.mrf.mxu0
    %v7651 = vadd.f32 0.0, %v7650
    %v7652 = vpop.f32.mrf.mxu0
    %v7653 = vadd.f32 0.0, %v7652
    %v7654 = vpop.f32.mrf.mxu0
    %v7655 = vpop.f32.mrf.mxu0
    %7656 = vdwg.mxu0
    %7657 = vmatprep.subr.bf16.mxu0 %v5124
    %7658 = vmatpush1.bf16.msra.mxu0 %v5123
    %7659 = vmatprep.subr.bf16.mxu0 %v5116
    %7660 = vmatpush1.bf16.msra.mxu0 %v5115
    %7661 = vmatprep.subr.bf16.mxu0 %v5108
    %7662 = vmatpush1.bf16.msra.mxu0 %v5107
    %7663 = vmatprep.subr.bf16.mxu0 %v5100
    %7664 = vmatpush1.bf16.msra.mxu0 %v5099
    %7665 = vmatprep.subr.bf16.mxu0 %v5092
    %7666 = vmatpush1.bf16.msra.mxu0 %v5091
    %7667 = vmatprep.subr.bf16.mxu0 %v5084
    %7668 = vmatpush1.bf16.msra.mxu0 %v5083
    %7669 = vmatprep.subr.bf16.mxu0 %v5076
    %7670 = vmatpush1.bf16.msra.mxu0 %v5075
    %7671 = vmatprep.subr.bf16.mxu0 %v5068
    %7672 = vmatpush1.bf16.msra.mxu0 %v5067
    %7673 = vmatprep.subr.bf16.mxu0 %v5188
    %7674 = vmatpush2.bf16.msra.mxu0 %v5187
    %7675 = vmatprep.subr.bf16.mxu0 %v5180
    %7676 = vmatpush2.bf16.msra.mxu0 %v5179
    %7677 = vmatprep.subr.bf16.mxu0 %v5172
    %7678 = vmatpush2.bf16.msra.mxu0 %v5171
    %7679 = vmatprep.subr.bf16.mxu0 %v5164
    %7680 = vmatpush2.bf16.msra.mxu0 %v5163
    %7681 = vmatprep.subr.bf16.mxu0 %v5156
    %7682 = vmatpush2.bf16.msra.mxu0 %v5155
    %7683 = vmatprep.subr.bf16.mxu0 %v5148
    %7684 = vmatpush2.bf16.msra.mxu0 %v5147
    %7685 = vmatprep.subr.bf16.mxu0 %v5140
    %7686 = vmatpush2.bf16.msra.mxu0 %v5139
    %7687 = vmatprep.subr.bf16.mxu0 %v5132
    %7688 = vmatpush2.bf16.msra.mxu0 %v5131
    %7689 = vmatprep.mubr.bf16.mxu0 %v7574
    %7690 = vmatmul.mubr.bf16.gmra.mxu0 %v7573
    %v7691 = vpop.f32.mrf.mxu0
    %v7692 = vadd.f32 0.0, %v7691
    %v7693 = vpop.f32.mrf.mxu0
    %v7694 = vadd.f32 0.0, %v7693
    %v7695 = vpop.f32.mrf.mxu0
    %v7696 = vpop.f32.mrf.mxu0
    %7697 = vdwg.mxu0
    %7698 = vmatprep.subr.bf16.mxu0 %v5126
    %7699 = vmatpush1.bf16.msra.mxu0 %v5125
    %7700 = vmatprep.subr.bf16.mxu0 %v5118
    %7701 = vmatpush1.bf16.msra.mxu0 %v5117
    %7702 = vmatprep.subr.bf16.mxu0 %v5110
    %7703 = vmatpush1.bf16.msra.mxu0 %v5109
    %7704 = vmatprep.subr.bf16.mxu0 %v5102
    %7705 = vmatpush1.bf16.msra.mxu0 %v5101
    %7706 = vmatprep.subr.bf16.mxu0 %v5094
    %7707 = vmatpush1.bf16.msra.mxu0 %v5093
    %7708 = vmatprep.subr.bf16.mxu0 %v5086
    %7709 = vmatpush1.bf16.msra.mxu0 %v5085
    %7710 = vmatprep.subr.bf16.mxu0 %v5078
    %7711 = vmatpush1.bf16.msra.mxu0 %v5077
    %7712 = vmatprep.subr.bf16.mxu0 %v5070
    %7713 = vmatpush1.bf16.msra.mxu0 %v5069
    %7714 = vmatprep.subr.bf16.mxu0 %v5190
    %7715 = vmatpush2.bf16.msra.mxu0 %v5189
    %7716 = vmatprep.subr.bf16.mxu0 %v5182
    %7717 = vmatpush2.bf16.msra.mxu0 %v5181
    %7718 = vmatprep.subr.bf16.mxu0 %v5174
    %7719 = vmatpush2.bf16.msra.mxu0 %v5173
    %7720 = vmatprep.subr.bf16.mxu0 %v5166
    %7721 = vmatpush2.bf16.msra.mxu0 %v5165
    %7722 = vmatprep.subr.bf16.mxu0 %v5158
    %7723 = vmatpush2.bf16.msra.mxu0 %v5157
    %7724 = vmatprep.subr.bf16.mxu0 %v5150
    %7725 = vmatpush2.bf16.msra.mxu0 %v5149
    %7726 = vmatprep.subr.bf16.mxu0 %v5142
    %7727 = vmatpush2.bf16.msra.mxu0 %v5141
    %7728 = vmatprep.subr.bf16.mxu0 %v5134
    %7729 = vmatpush2.bf16.msra.mxu0 %v5133
    %7730 = vmatprep.mubr.bf16.mxu0 %v7574
    %7731 = vmatmul.mubr.bf16.gmra.mxu0 %v7573
    %v7732 = vpop.f32.mrf.mxu0
    %v7733 = vadd.f32 0.0, %v7732
    %v7734 = vpop.f32.mrf.mxu0
    %v7735 = vadd.f32 0.0, %v7734
    %v7736 = vpop.f32.mrf.mxu0
    %v7737 = vpop.f32.mrf.mxu0
    %7738 = vdwg.mxu0
    %v7741 = vrot.slane %v7573, 1
    %v7742 = vrot.slane %v7574, 1
    %7745 = vmatprep.subr.bf16.mxu0 %v6058
    %7746 = vmatpush1.bf16.msra.mxu0 %v6057
    %7747 = vmatprep.subr.bf16.mxu0 %v6050
    %7748 = vmatpush1.bf16.msra.mxu0 %v6049
    %7749 = vmatprep.subr.bf16.mxu0 %v6042
    %7750 = vmatpush1.bf16.msra.mxu0 %v6041
    %7751 = vmatprep.subr.bf16.mxu0 %v6034
    %7752 = vmatpush1.bf16.msra.mxu0 %v6033
    %7753 = vmatprep.subr.bf16.mxu0 %v6026
    %7754 = vmatpush1.bf16.msra.mxu0 %v6025
    %7755 = vmatprep.subr.bf16.mxu0 %v6018
    %7756 = vmatpush1.bf16.msra.mxu0 %v6017
    %7757 = vmatprep.subr.bf16.mxu0 %v6010
    %7758 = vmatpush1.bf16.msra.mxu0 %v6009
    %7759 = vmatprep.subr.bf16.mxu0 %v6002
    %7760 = vmatpush1.bf16.msra.mxu0 %v6001
    %7761 = vmatprep.subr.bf16.mxu0 %v6122
    %7762 = vmatpush2.bf16.msra.mxu0 %v6121
    %7763 = vmatprep.subr.bf16.mxu0 %v6114
    %7764 = vmatpush2.bf16.msra.mxu0 %v6113
    %7765 = vmatprep.subr.bf16.mxu0 %v6106
    %7766 = vmatpush2.bf16.msra.mxu0 %v6105
    %7767 = vmatprep.subr.bf16.mxu0 %v6098
    %7768 = vmatpush2.bf16.msra.mxu0 %v6097
    %7769 = vmatprep.subr.bf16.mxu0 %v6090
    %7770 = vmatpush2.bf16.msra.mxu0 %v6089
    %7771 = vmatprep.subr.bf16.mxu0 %v6082
    %7772 = vmatpush2.bf16.msra.mxu0 %v6081
    %7773 = vmatprep.subr.bf16.mxu0 %v6074
    %7774 = vmatpush2.bf16.msra.mxu0 %v6073
    %7775 = vmatprep.subr.bf16.mxu0 %v6066
    %7776 = vmatpush2.bf16.msra.mxu0 %v6065
    %7777 = vmatprep.mubr.bf16.mxu0 %v7742
    %7778 = vmatmul.mubr.bf16.gmra.mxu0 %v7741
    %v7779 = vpop.f32.mrf.mxu0
    %v7780 = vadd.f32 0.0, %v7779
    %v7781 = vpop.f32.mrf.mxu0
    %v7782 = vadd.f32 0.0, %v7781
    %v7783 = vpop.f32.mrf.mxu0
    %v7784 = vpop.f32.mrf.mxu0
    %7785 = vdwg.mxu0
    %7786 = vmatprep.subr.bf16.mxu0 %v6060
    %7787 = vmatpush1.bf16.msra.mxu0 %v6059
    %7788 = vmatprep.subr.bf16.mxu0 %v6052
    %7789 = vmatpush1.bf16.msra.mxu0 %v6051
    %7790 = vmatprep.subr.bf16.mxu0 %v6044
    %7791 = vmatpush1.bf16.msra.mxu0 %v6043
    %7792 = vmatprep.subr.bf16.mxu0 %v6036
    %7793 = vmatpush1.bf16.msra.mxu0 %v6035
    %7794 = vmatprep.subr.bf16.mxu0 %v6028
    %7795 = vmatpush1.bf16.msra.mxu0 %v6027
    %7796 = vmatprep.subr.bf16.mxu0 %v6020
    %7797 = vmatpush1.bf16.msra.mxu0 %v6019
    %7798 = vmatprep.subr.bf16.mxu0 %v6012
    %7799 = vmatpush1.bf16.msra.mxu0 %v6011
    %7800 = vmatprep.subr.bf16.mxu0 %v6004
    %7801 = vmatpush1.bf16.msra.mxu0 %v6003
    %7802 = vmatprep.subr.bf16.mxu0 %v6124
    %7803 = vmatpush2.bf16.msra.mxu0 %v6123
    %7804 = vmatprep.subr.bf16.mxu0 %v6116
    %7805 = vmatpush2.bf16.msra.mxu0 %v6115
    %7806 = vmatprep.subr.bf16.mxu0 %v6108
    %7807 = vmatpush2.bf16.msra.mxu0 %v6107
    %7808 = vmatprep.subr.bf16.mxu0 %v6100
    %7809 = vmatpush2.bf16.msra.mxu0 %v6099
    %7810 = vmatprep.subr.bf16.mxu0 %v6092
    %7811 = vmatpush2.bf16.msra.mxu0 %v6091
    %7812 = vmatprep.subr.bf16.mxu0 %v6084
    %7813 = vmatpush2.bf16.msra.mxu0 %v6083
    %7814 = vmatprep.subr.bf16.mxu0 %v6076
    %7815 = vmatpush2.bf16.msra.mxu0 %v6075
    %7816 = vmatprep.subr.bf16.mxu0 %v6068
    %7817 = vmatpush2.bf16.msra.mxu0 %v6067
    %7818 = vmatprep.mubr.bf16.mxu0 %v7742
    %7819 = vmatmul.mubr.bf16.gmra.mxu0 %v7741
    %v7820 = vpop.f32.mrf.mxu0
    %v7821 = vadd.f32 0.0, %v7820
    %v7822 = vpop.f32.mrf.mxu0
    %v7823 = vadd.f32 0.0, %v7822
    %v7824 = vpop.f32.mrf.mxu0
    %v7825 = vpop.f32.mrf.mxu0
    %7826 = vdwg.mxu0
    %7827 = vmatprep.subr.bf16.mxu0 %v6062
    %7828 = vmatpush1.bf16.msra.mxu0 %v6061
    %7829 = vmatprep.subr.bf16.mxu0 %v6054
    %7830 = vmatpush1.bf16.msra.mxu0 %v6053
    %7831 = vmatprep.subr.bf16.mxu0 %v6046
    %7832 = vmatpush1.bf16.msra.mxu0 %v6045
    %7833 = vmatprep.subr.bf16.mxu0 %v6038
    %7834 = vmatpush1.bf16.msra.mxu0 %v6037
    %7835 = vmatprep.subr.bf16.mxu0 %v6030
    %7836 = vmatpush1.bf16.msra.mxu0 %v6029
    %7837 = vmatprep.subr.bf16.mxu0 %v6022
    %7838 = vmatpush1.bf16.msra.mxu0 %v6021
    %7839 = vmatprep.subr.bf16.mxu0 %v6014
    %7840 = vmatpush1.bf16.msra.mxu0 %v6013
    %7841 = vmatprep.subr.bf16.mxu0 %v6006
    %7842 = vmatpush1.bf16.msra.mxu0 %v6005
    %7843 = vmatprep.subr.bf16.mxu0 %v6126
    %7844 = vmatpush2.bf16.msra.mxu0 %v6125
    %7845 = vmatprep.subr.bf16.mxu0 %v6118
    %7846 = vmatpush2.bf16.msra.mxu0 %v6117
    %7847 = vmatprep.subr.bf16.mxu0 %v6110
    %7848 = vmatpush2.bf16.msra.mxu0 %v6109
    %7849 = vmatprep.subr.bf16.mxu0 %v6102
    %7850 = vmatpush2.bf16.msra.mxu0 %v6101
    %7851 = vmatprep.subr.bf16.mxu0 %v6094
    %7852 = vmatpush2.bf16.msra.mxu0 %v6093
    %7853 = vmatprep.subr.bf16.mxu0 %v6086
    %7854 = vmatpush2.bf16.msra.mxu0 %v6085
    %7855 = vmatprep.subr.bf16.mxu0 %v6078
    %7856 = vmatpush2.bf16.msra.mxu0 %v6077
    %7857 = vmatprep.subr.bf16.mxu0 %v6070
    %7858 = vmatpush2.bf16.msra.mxu0 %v6069
    %7859 = vmatprep.mubr.bf16.mxu0 %v7742
    %7860 = vmatmul.mubr.bf16.gmra.mxu0 %v7741
    %v7861 = vpop.f32.mrf.mxu0
    %v7862 = vadd.f32 0.0, %v7861
    %v7863 = vpop.f32.mrf.mxu0
    %v7864 = vadd.f32 0.0, %v7863
    %v7865 = vpop.f32.mrf.mxu0
    %v7866 = vpop.f32.mrf.mxu0
    %7867 = vdwg.mxu0
    %7868 = vmatprep.subr.bf16.mxu0 %v6064
    %7869 = vmatpush1.bf16.msra.mxu0 %v6063
    %7870 = vmatprep.subr.bf16.mxu0 %v6056
    %7871 = vmatpush1.bf16.msra.mxu0 %v6055
    %7872 = vmatprep.subr.bf16.mxu0 %v6048
    %7873 = vmatpush1.bf16.msra.mxu0 %v6047
    %7874 = vmatprep.subr.bf16.mxu0 %v6040
    %7875 = vmatpush1.bf16.msra.mxu0 %v6039
    %7876 = vmatprep.subr.bf16.mxu0 %v6032
    %7877 = vmatpush1.bf16.msra.mxu0 %v6031
    %7878 = vmatprep.subr.bf16.mxu0 %v6024
    %7879 = vmatpush1.bf16.msra.mxu0 %v6023
    %7880 = vmatprep.subr.bf16.mxu0 %v6016
    %7881 = vmatpush1.bf16.msra.mxu0 %v6015
    %7882 = vmatprep.subr.bf16.mxu0 %v6008
    %7883 = vmatpush1.bf16.msra.mxu0 %v6007
    %7884 = vmatprep.subr.bf16.mxu0 %v6128
    %7885 = vmatpush2.bf16.msra.mxu0 %v6127
    %7886 = vmatprep.subr.bf16.mxu0 %v6120
    %7887 = vmatpush2.bf16.msra.mxu0 %v6119
    %7888 = vmatprep.subr.bf16.mxu0 %v6112
    %7889 = vmatpush2.bf16.msra.mxu0 %v6111
    %7890 = vmatprep.subr.bf16.mxu0 %v6104
    %7891 = vmatpush2.bf16.msra.mxu0 %v6103
    %7892 = vmatprep.subr.bf16.mxu0 %v6096
    %7893 = vmatpush2.bf16.msra.mxu0 %v6095
    %7894 = vmatprep.subr.bf16.mxu0 %v6088
    %7895 = vmatpush2.bf16.msra.mxu0 %v6087
    %7896 = vmatprep.subr.bf16.mxu0 %v6080
    %7897 = vmatpush2.bf16.msra.mxu0 %v6079
    %7898 = vmatprep.subr.bf16.mxu0 %v6072
    %7899 = vmatpush2.bf16.msra.mxu0 %v6071
    %7900 = vmatprep.mubr.bf16.mxu0 %v7742
    %7901 = vmatmul.mubr.bf16.gmra.mxu0 %v7741
    %v7902 = vpop.f32.mrf.mxu0
    %v7903 = vadd.f32 0.0, %v7902
    %v7904 = vpop.f32.mrf.mxu0
    %v7905 = vadd.f32 0.0, %v7904
    %v7906 = vpop.f32.mrf.mxu0
    %v7907 = vpop.f32.mrf.mxu0
    %7908 = vdwg.mxu0
    %v7917 = vrot.slane %v7610, 2
    %v7918 = vrot.slane %v7612, 2
    %v7919 = vrot.slane %v7651, 2
    %v7920 = vrot.slane %v7653, 2
    %v7921 = vrot.slane %v7692, 2
    %v7922 = vrot.slane %v7694, 2
    %v7923 = vrot.slane %v7733, 2
    %v7924 = vrot.slane %v7735, 2
    %v7933 = vadd.f32 %v7557, %v7917
    %v7934 = vadd.f32 %v7558, %v7918
    %v7935 = vadd.f32 %v7559, %v7919
    %v7936 = vadd.f32 %v7560, %v7920
    %v7937 = vadd.f32 %v7561, %v7921
    %v7938 = vadd.f32 %v7562, %v7922
    %v7939 = vadd.f32 %v7563, %v7923
    %v7940 = vadd.f32 %v7564, %v7924
    %v7941 = vadd.f32 %v7565, %v7780
    %v7942 = vadd.f32 %v7566, %v7782
    %v7943 = vadd.f32 %v7567, %v7821
    %v7944 = vadd.f32 %v7568, %v7823
    %v7945 = vadd.f32 %v7569, %v7862
    %v7946 = vadd.f32 %v7570, %v7864
    %v7947 = vadd.f32 %v7571, %v7903
    %v7948 = vadd.f32 %v7572, %v7905
    %v7957 = vrot.slane %v7933, 6
    %v7958 = vrot.slane %v7934, 6
    %v7959 = vrot.slane %v7935, 6
    %v7960 = vrot.slane %v7936, 6
    %v7961 = vrot.slane %v7937, 6
    %v7962 = vrot.slane %v7938, 6
    %v7963 = vrot.slane %v7939, 6
    %v7964 = vrot.slane %v7940, 6
    %v7981 = vrot.slane %v7941, 6
    %v7982 = vrot.slane %v7942, 6
    %v7983 = vrot.slane %v7943, 6
    %v7984 = vrot.slane %v7944, 6
    %v7985 = vrot.slane %v7945, 6
    %v7986 = vrot.slane %v7946, 6
    %v7987 = vrot.slane %v7947, 6
    %v7988 = vrot.slane %v7948, 6
    %v7997 = vsel %vm1386, %v7957, %v7981
    %v7998 = vsel %vm1386, %v7958, %v7982
    %v7999 = vsel %vm1386, %v7959, %v7983
    %v8000 = vsel %vm1386, %v7960, %v7984
    %v8001 = vsel %vm1386, %v7961, %v7985
    %v8002 = vsel %vm1386, %v7962, %v7986
    %v8003 = vsel %vm1386, %v7963, %v7987
    %v8004 = vsel %vm1386, %v7964, %v7988
    %v8005 = vxor.u32 %v7997, 2147483648
    %v8006 = vxor.u32 %v7998, 2147483648
    %v8007 = vmul.f32 %v8005, 1.442695
    %v8008 = vpow.pop %v8007
    %v8009 = vmul.f32 %v8006, 1.442695
    %v8010 = vpow.pop %v8009
    %v8011 = vadd.f32 %v8008, 1.0
    %v8012 = vadd.f32 %v8010, 1.0
    %v8013 = vrcp.pop %v8011
    %v8014 = vmul.f32 1.0, %v8013
    %v8015 = vrcp.pop %v8012
    %v8016 = vmul.f32 1.0, %v8015
    %v8017 = vxor.u32 %v7999, 2147483648
    %v8018 = vxor.u32 %v8000, 2147483648
    %v8019 = vmul.f32 %v8017, 1.442695
    %v8020 = vpow.pop %v8019
    %v8021 = vmul.f32 %v8018, 1.442695
    %v8022 = vpow.pop %v8021
    %v8023 = vadd.f32 %v8020, 1.0
    %v8024 = vadd.f32 %v8022, 1.0
    %v8025 = vrcp.pop %v8023
    %v8026 = vmul.f32 1.0, %v8025
    %v8027 = vrcp.pop %v8024
    %v8028 = vmul.f32 1.0, %v8027
    %v8029 = vtanh.pop %v8001
    %v8030 = vtanh.pop %v8002
    %v8031 = vxor.u32 %v8003, 2147483648
    %v8032 = vxor.u32 %v8004, 2147483648
    %v8033 = vmul.f32 %v8031, 1.442695
    %v8034 = vpow.pop %v8033
    %v8035 = vmul.f32 %v8032, 1.442695
    %v8036 = vpow.pop %v8035
    %v8037 = vadd.f32 %v8034, 1.0
    %v8038 = vadd.f32 %v8036, 1.0
    %v8039 = vrcp.pop %v8037
    %v8040 = vmul.f32 1.0, %v8039
    %v8041 = vrcp.pop %v8038
    %v8042 = vmul.f32 1.0, %v8041
    %v8043 = vmul.f32 %v8026, %v7551
    %v8044 = vmul.f32 %v8028, %v7552
    %v8045 = vmul.f32 %v8014, %v8029
    %v8046 = vmul.f32 %v8016, %v8030
    %v8047 = vadd.f32 %v8043, %v8045
    %v8048 = vadd.f32 %v8044, %v8046
    %v8049 = vtanh.pop %v8047
    %v8050 = vtanh.pop %v8048
    %v8051 = vmul.f32 %v8040, %v8049
    %v8052 = vmul.f32 %v8042, %v8050
    %v8055 = vrot.slane %v7059, 6
    %v8056 = vrot.slane %v7060, 6
    %v8061 = vrot.slane %v7555, 4
    %v8062 = vrot.slane %v7556, 4
    %v8067 = vrot.slane %v8051, 2
    %v8068 = vrot.slane %v8052, 2
    %v8071 = vsel %vm1386, %v6539, %v8055
    %v8072 = vsel %vm1386, %v6540, %v8056
    %v8073 = vsel %vm4511, %v8071, %v8061
    %v8074 = vsel %vm4511, %v8072, %v8062
    %v8075 = vsel %vm4514, %v8073, %v8067
    %v8076 = vsel %vm4514, %v8074, %v8068
    %8077 = vst [vmem:[#allocation3 + $0x20] sm:$0xff] %v8075
    %8078 = vst [vmem:[#allocation3 + $0x28] sm:$0xff] %v8076
    %v8081 = vrot.slane %v6539, 4
    %v8082 = vrot.slane %v6540, 4
    %v8085 = vsel %vm1386, %v8067, %v7555
    %v8086 = vsel %vm1386, %v8068, %v7556
    %v8087 = vsel %vm4511, %v8085, %v8055
    %v8088 = vsel %vm4511, %v8086, %v8056
    %v8089 = vsel %vm4514, %v8087, %v8081
    %v8090 = vsel %vm4514, %v8088, %v8082
    %8091 = vst [vmem:[#allocation3 + $0x10] sm:$0xff] %v8089
    %8092 = vst [vmem:[#allocation3 + $0x18] sm:$0xff] %v8090
    %s8093 = smul.u32 4, 64
    %s8094 = smul.u32 %s8093, 8
    %s8095 = sshll.u32 %s8094, 4
    %8096 = dma.done [#allocation8], %s8095
    %s8097 = smul.u32 4, 16
    %s8098 = smul.u32 %s8097, 4
    %s8099 = sshll.u32 %s8098, 4
    %8100 = dma.done %s91, %s8099
    %v8101 = vld [vmem:[#allocation3] sm:$0xff]
    %v8102 = vld [vmem:[#allocation3 + $0x8] sm:$0xff]
    %v8103 = vld [vmem:[#allocation3 + $0x10] sm:$0xff]
    %v8104 = vld [vmem:[#allocation3 + $0x18] sm:$0xff]
    %v8105 = vld [vmem:[#allocation3 + $0x20] sm:$0xff]
    %v8106 = vld [vmem:[#allocation3 + $0x28] sm:$0xff]
    %v8107 = vld [vmem:[#allocation3 + $0x30] sm:$0xff]
    %v8108 = vld [vmem:[#allocation3 + $0x38] sm:$0xff]
    %v8109 = vpack.c.bf16 %v8105, %v8101
    %v8110 = vpack.c.bf16 %v8106, %v8102
    %v8111 = vpack.c.bf16 %v8107, %v8103
    %v8112 = vpack.c.bf16 %v8108, %v8104
    %v8113 = vld [vmem:[#allocation5] sm:$0xff]
    %v8114 = vld [vmem:[#allocation5 + $0x8] sm:$0xff]
    %v8115 = vld [vmem:[#allocation5 + $0x10] sm:$0xff]
    %v8116 = vld [vmem:[#allocation5 + $0x18] sm:$0xff]
    %v8117 = vld [vmem:[#allocation5 + $0x20] sm:$0xff]
    %v8118 = vld [vmem:[#allocation5 + $0x28] sm:$0xff]
    %v8119 = vld [vmem:[#allocation5 + $0x30] sm:$0xff]
    %v8120 = vld [vmem:[#allocation5 + $0x38] sm:$0xff]
    %v8121 = vld [vmem:[#allocation5 + $0x40] sm:$0xff]
    %v8122 = vld [vmem:[#allocation5 + $0x48] sm:$0xff]
    %v8123 = vld [vmem:[#allocation5 + $0x50] sm:$0xff]
    %v8124 = vld [vmem:[#allocation5 + $0x58] sm:$0xff]
    %v8125 = vld [vmem:[#allocation5 + $0x60] sm:$0xff]
    %v8126 = vld [vmem:[#allocation5 + $0x68] sm:$0xff]
    %v8127 = vld [vmem:[#allocation5 + $0x70] sm:$0xff]
    %v8128 = vld [vmem:[#allocation5 + $0x78] sm:$0xff]
    %v8129 = vld [vmem:[#allocation5 + $0x80] sm:$0xff]
    %v8130 = vld [vmem:[#allocation5 + $0x88] sm:$0xff]
    %v8131 = vld [vmem:[#allocation5 + $0x90] sm:$0xff]
    %v8132 = vld [vmem:[#allocation5 + $0x98] sm:$0xff]
    %v8133 = vld [vmem:[#allocation5 + $0xa0] sm:$0xff]
    %v8134 = vld [vmem:[#allocation5 + $0xa8] sm:$0xff]
    %v8135 = vld [vmem:[#allocation5 + $0xb0] sm:$0xff]
    %v8136 = vld [vmem:[#allocation5 + $0xb8] sm:$0xff]
    %v8137 = vld [vmem:[#allocation5 + $0xc0] sm:$0xff]
    %v8138 = vld [vmem:[#allocation5 + $0xc8] sm:$0xff]
    %v8139 = vld [vmem:[#allocation5 + $0xd0] sm:$0xff]
    %v8140 = vld [vmem:[#allocation5 + $0xd8] sm:$0xff]
    %v8141 = vld [vmem:[#allocation5 + $0xe0] sm:$0xff]
    %v8142 = vld [vmem:[#allocation5 + $0xe8] sm:$0xff]
    %v8143 = vld [vmem:[#allocation5 + $0xf0] sm:$0xff]
    %v8144 = vld [vmem:[#allocation5 + $0xf8] sm:$0xff]
    %v8145 = vld [vmem:[#allocation5 + $0x100] sm:$0xff]
    %v8146 = vld [vmem:[#allocation5 + $0x108] sm:$0xff]
    %v8147 = vld [vmem:[#allocation5 + $0x110] sm:$0xff]
    %v8148 = vld [vmem:[#allocation5 + $0x118] sm:$0xff]
    %v8149 = vld [vmem:[#allocation5 + $0x120] sm:$0xff]
    %v8150 = vld [vmem:[#allocation5 + $0x128] sm:$0xff]
    %v8151 = vld [vmem:[#allocation5 + $0x130] sm:$0xff]
    %v8152 = vld [vmem:[#allocation5 + $0x138] sm:$0xff]
    %v8153 = vld [vmem:[#allocation5 + $0x140] sm:$0xff]
    %v8154 = vld [vmem:[#allocation5 + $0x148] sm:$0xff]
    %v8155 = vld [vmem:[#allocation5 + $0x150] sm:$0xff]
    %v8156 = vld [vmem:[#allocation5 + $0x158] sm:$0xff]
    %v8157 = vld [vmem:[#allocation5 + $0x160] sm:$0xff]
    %v8158 = vld [vmem:[#allocation5 + $0x168] sm:$0xff]
    %v8159 = vld [vmem:[#allocation5 + $0x170] sm:$0xff]
    %v8160 = vld [vmem:[#allocation5 + $0x178] sm:$0xff]
    %v8161 = vld [vmem:[#allocation5 + $0x180] sm:$0xff]
    %v8162 = vld [vmem:[#allocation5 + $0x188] sm:$0xff]
    %v8163 = vld [vmem:[#allocation5 + $0x190] sm:$0xff]
    %v8164 = vld [vmem:[#allocation5 + $0x198] sm:$0xff]
    %v8165 = vld [vmem:[#allocation5 + $0x1a0] sm:$0xff]
    %v8166 = vld [vmem:[#allocation5 + $0x1a8] sm:$0xff]
    %v8167 = vld [vmem:[#allocation5 + $0x1b0] sm:$0xff]
    %v8168 = vld [vmem:[#allocation5 + $0x1b8] sm:$0xff]
    %v8169 = vld [vmem:[#allocation5 + $0x1c0] sm:$0xff]
    %v8170 = vld [vmem:[#allocation5 + $0x1c8] sm:$0xff]
    %v8171 = vld [vmem:[#allocation5 + $0x1d0] sm:$0xff]
    %v8172 = vld [vmem:[#allocation5 + $0x1d8] sm:$0xff]
    %v8173 = vld [vmem:[#allocation5 + $0x1e0] sm:$0xff]
    %v8174 = vld [vmem:[#allocation5 + $0x1e8] sm:$0xff]
    %v8175 = vld [vmem:[#allocation5 + $0x1f0] sm:$0xff]
    %v8176 = vld [vmem:[#allocation5 + $0x1f8] sm:$0xff]
    %v8177 = vld [vmem:[#allocation5 + $0x200] sm:$0xff]
    %v8178 = vld [vmem:[#allocation5 + $0x208] sm:$0xff]
    %v8179 = vld [vmem:[#allocation5 + $0x210] sm:$0xff]
    %v8180 = vld [vmem:[#allocation5 + $0x218] sm:$0xff]
    %v8181 = vld [vmem:[#allocation5 + $0x220] sm:$0xff]
    %v8182 = vld [vmem:[#allocation5 + $0x228] sm:$0xff]
    %v8183 = vld [vmem:[#allocation5 + $0x230] sm:$0xff]
    %v8184 = vld [vmem:[#allocation5 + $0x238] sm:$0xff]
    %v8185 = vld [vmem:[#allocation5 + $0x240] sm:$0xff]
    %v8186 = vld [vmem:[#allocation5 + $0x248] sm:$0xff]
    %v8187 = vld [vmem:[#allocation5 + $0x250] sm:$0xff]
    %v8188 = vld [vmem:[#allocation5 + $0x258] sm:$0xff]
    %v8189 = vld [vmem:[#allocation5 + $0x260] sm:$0xff]
    %v8190 = vld [vmem:[#allocation5 + $0x268] sm:$0xff]
    %v8191 = vld [vmem:[#allocation5 + $0x270] sm:$0xff]
    %v8192 = vld [vmem:[#allocation5 + $0x278] sm:$0xff]
    %v8193 = vld [vmem:[#allocation5 + $0x280] sm:$0xff]
    %v8194 = vld [vmem:[#allocation5 + $0x288] sm:$0xff]
    %v8195 = vld [vmem:[#allocation5 + $0x290] sm:$0xff]
    %v8196 = vld [vmem:[#allocation5 + $0x298] sm:$0xff]
    %v8197 = vld [vmem:[#allocation5 + $0x2a0] sm:$0xff]
    %v8198 = vld [vmem:[#allocation5 + $0x2a8] sm:$0xff]
    %v8199 = vld [vmem:[#allocation5 + $0x2b0] sm:$0xff]
    %v8200 = vld [vmem:[#allocation5 + $0x2b8] sm:$0xff]
    %v8201 = vld [vmem:[#allocation5 + $0x2c0] sm:$0xff]
    %v8202 = vld [vmem:[#allocation5 + $0x2c8] sm:$0xff]
    %v8203 = vld [vmem:[#allocation5 + $0x2d0] sm:$0xff]
    %v8204 = vld [vmem:[#allocation5 + $0x2d8] sm:$0xff]
    %v8205 = vld [vmem:[#allocation5 + $0x2e0] sm:$0xff]
    %v8206 = vld [vmem:[#allocation5 + $0x2e8] sm:$0xff]
    %v8207 = vld [vmem:[#allocation5 + $0x2f0] sm:$0xff]
    %v8208 = vld [vmem:[#allocation5 + $0x2f8] sm:$0xff]
    %v8209 = vld [vmem:[#allocation5 + $0x300] sm:$0xff]
    %v8210 = vld [vmem:[#allocation5 + $0x308] sm:$0xff]
    %v8211 = vld [vmem:[#allocation5 + $0x310] sm:$0xff]
    %v8212 = vld [vmem:[#allocation5 + $0x318] sm:$0xff]
    %v8213 = vld [vmem:[#allocation5 + $0x320] sm:$0xff]
    %v8214 = vld [vmem:[#allocation5 + $0x328] sm:$0xff]
    %v8215 = vld [vmem:[#allocation5 + $0x330] sm:$0xff]
    %v8216 = vld [vmem:[#allocation5 + $0x338] sm:$0xff]
    %v8217 = vld [vmem:[#allocation5 + $0x340] sm:$0xff]
    %v8218 = vld [vmem:[#allocation5 + $0x348] sm:$0xff]
    %v8219 = vld [vmem:[#allocation5 + $0x350] sm:$0xff]
    %v8220 = vld [vmem:[#allocation5 + $0x358] sm:$0xff]
    %v8221 = vld [vmem:[#allocation5 + $0x360] sm:$0xff]
    %v8222 = vld [vmem:[#allocation5 + $0x368] sm:$0xff]
    %v8223 = vld [vmem:[#allocation5 + $0x370] sm:$0xff]
    %v8224 = vld [vmem:[#allocation5 + $0x378] sm:$0xff]
    %v8225 = vld [vmem:[#allocation5 + $0x380] sm:$0xff]
    %v8226 = vld [vmem:[#allocation5 + $0x388] sm:$0xff]
    %v8227 = vld [vmem:[#allocation5 + $0x390] sm:$0xff]
    %v8228 = vld [vmem:[#allocation5 + $0x398] sm:$0xff]
    %v8229 = vld [vmem:[#allocation5 + $0x3a0] sm:$0xff]
    %v8230 = vld [vmem:[#allocation5 + $0x3a8] sm:$0xff]
    %v8231 = vld [vmem:[#allocation5 + $0x3b0] sm:$0xff]
    %v8232 = vld [vmem:[#allocation5 + $0x3b8] sm:$0xff]
    %v8233 = vld [vmem:[#allocation5 + $0x3c0] sm:$0xff]
    %v8234 = vld [vmem:[#allocation5 + $0x3c8] sm:$0xff]
    %v8235 = vld [vmem:[#allocation5 + $0x3d0] sm:$0xff]
    %v8236 = vld [vmem:[#allocation5 + $0x3d8] sm:$0xff]
    %v8237 = vld [vmem:[#allocation5 + $0x3e0] sm:$0xff]
    %v8238 = vld [vmem:[#allocation5 + $0x3e8] sm:$0xff]
    %v8239 = vld [vmem:[#allocation5 + $0x3f0] sm:$0xff]
    %v8240 = vld [vmem:[#allocation5 + $0x3f8] sm:$0xff]
    %v8241 = vld [vmem:[#allocation5 + $0x400] sm:$0xff]
    %v8242 = vld [vmem:[#allocation5 + $0x408] sm:$0xff]
    %v8243 = vld [vmem:[#allocation5 + $0x410] sm:$0xff]
    %v8244 = vld [vmem:[#allocation5 + $0x418] sm:$0xff]
    %v8245 = vld [vmem:[#allocation5 + $0x420] sm:$0xff]
    %v8246 = vld [vmem:[#allocation5 + $0x428] sm:$0xff]
    %v8247 = vld [vmem:[#allocation5 + $0x430] sm:$0xff]
    %v8248 = vld [vmem:[#allocation5 + $0x438] sm:$0xff]
    %v8249 = vld [vmem:[#allocation5 + $0x440] sm:$0xff]
    %v8250 = vld [vmem:[#allocation5 + $0x448] sm:$0xff]
    %v8251 = vld [vmem:[#allocation5 + $0x450] sm:$0xff]
    %v8252 = vld [vmem:[#allocation5 + $0x458] sm:$0xff]
    %v8253 = vld [vmem:[#allocation5 + $0x460] sm:$0xff]
    %v8254 = vld [vmem:[#allocation5 + $0x468] sm:$0xff]
    %v8255 = vld [vmem:[#allocation5 + $0x470] sm:$0xff]
    %v8256 = vld [vmem:[#allocation5 + $0x478] sm:$0xff]
    %v8257 = vld [vmem:[#allocation5 + $0x480] sm:$0xff]
    %v8258 = vld [vmem:[#allocation5 + $0x488] sm:$0xff]
    %v8259 = vld [vmem:[#allocation5 + $0x490] sm:$0xff]
    %v8260 = vld [vmem:[#allocation5 + $0x498] sm:$0xff]
    %v8261 = vld [vmem:[#allocation5 + $0x4a0] sm:$0xff]
    %v8262 = vld [vmem:[#allocation5 + $0x4a8] sm:$0xff]
    %v8263 = vld [vmem:[#allocation5 + $0x4b0] sm:$0xff]
    %v8264 = vld [vmem:[#allocation5 + $0x4b8] sm:$0xff]
    %v8265 = vld [vmem:[#allocation5 + $0x4c0] sm:$0xff]
    %v8266 = vld [vmem:[#allocation5 + $0x4c8] sm:$0xff]
    %v8267 = vld [vmem:[#allocation5 + $0x4d0] sm:$0xff]
    %v8268 = vld [vmem:[#allocation5 + $0x4d8] sm:$0xff]
    %v8269 = vld [vmem:[#allocation5 + $0x4e0] sm:$0xff]
    %v8270 = vld [vmem:[#allocation5 + $0x4e8] sm:$0xff]
    %v8271 = vld [vmem:[#allocation5 + $0x4f0] sm:$0xff]
    %v8272 = vld [vmem:[#allocation5 + $0x4f8] sm:$0xff]
    %v8273 = vld [vmem:[#allocation5 + $0x500] sm:$0xff]
    %v8274 = vld [vmem:[#allocation5 + $0x508] sm:$0xff]
    %v8275 = vld [vmem:[#allocation5 + $0x510] sm:$0xff]
    %v8276 = vld [vmem:[#allocation5 + $0x518] sm:$0xff]
    %v8277 = vld [vmem:[#allocation5 + $0x520] sm:$0xff]
    %v8278 = vld [vmem:[#allocation5 + $0x528] sm:$0xff]
    %v8279 = vld [vmem:[#allocation5 + $0x530] sm:$0xff]
    %v8280 = vld [vmem:[#allocation5 + $0x538] sm:$0xff]
    %v8281 = vld [vmem:[#allocation5 + $0x540] sm:$0xff]
    %v8282 = vld [vmem:[#allocation5 + $0x548] sm:$0xff]
    %v8283 = vld [vmem:[#allocation5 + $0x550] sm:$0xff]
    %v8284 = vld [vmem:[#allocation5 + $0x558] sm:$0xff]
    %v8285 = vld [vmem:[#allocation5 + $0x560] sm:$0xff]
    %v8286 = vld [vmem:[#allocation5 + $0x568] sm:$0xff]
    %v8287 = vld [vmem:[#allocation5 + $0x570] sm:$0xff]
    %v8288 = vld [vmem:[#allocation5 + $0x578] sm:$0xff]
    %v8289 = vld [vmem:[#allocation5 + $0x580] sm:$0xff]
    %v8290 = vld [vmem:[#allocation5 + $0x588] sm:$0xff]
    %v8291 = vld [vmem:[#allocation5 + $0x590] sm:$0xff]
    %v8292 = vld [vmem:[#allocation5 + $0x598] sm:$0xff]
    %v8293 = vld [vmem:[#allocation5 + $0x5a0] sm:$0xff]
    %v8294 = vld [vmem:[#allocation5 + $0x5a8] sm:$0xff]
    %v8295 = vld [vmem:[#allocation5 + $0x5b0] sm:$0xff]
    %v8296 = vld [vmem:[#allocation5 + $0x5b8] sm:$0xff]
    %v8297 = vld [vmem:[#allocation5 + $0x5c0] sm:$0xff]
    %v8298 = vld [vmem:[#allocation5 + $0x5c8] sm:$0xff]
    %v8299 = vld [vmem:[#allocation5 + $0x5d0] sm:$0xff]
    %v8300 = vld [vmem:[#allocation5 + $0x5d8] sm:$0xff]
    %v8301 = vld [vmem:[#allocation5 + $0x5e0] sm:$0xff]
    %v8302 = vld [vmem:[#allocation5 + $0x5e8] sm:$0xff]
    %v8303 = vld [vmem:[#allocation5 + $0x5f0] sm:$0xff]
    %v8304 = vld [vmem:[#allocation5 + $0x5f8] sm:$0xff]
    %v8305 = vld [vmem:[#allocation5 + $0x600] sm:$0xff]
    %v8306 = vld [vmem:[#allocation5 + $0x608] sm:$0xff]
    %v8307 = vld [vmem:[#allocation5 + $0x610] sm:$0xff]
    %v8308 = vld [vmem:[#allocation5 + $0x618] sm:$0xff]
    %v8309 = vld [vmem:[#allocation5 + $0x620] sm:$0xff]
    %v8310 = vld [vmem:[#allocation5 + $0x628] sm:$0xff]
    %v8311 = vld [vmem:[#allocation5 + $0x630] sm:$0xff]
    %v8312 = vld [vmem:[#allocation5 + $0x638] sm:$0xff]
    %v8313 = vld [vmem:[#allocation5 + $0x640] sm:$0xff]
    %v8314 = vld [vmem:[#allocation5 + $0x648] sm:$0xff]
    %v8315 = vld [vmem:[#allocation5 + $0x650] sm:$0xff]
    %v8316 = vld [vmem:[#allocation5 + $0x658] sm:$0xff]
    %v8317 = vld [vmem:[#allocation5 + $0x660] sm:$0xff]
    %v8318 = vld [vmem:[#allocation5 + $0x668] sm:$0xff]
    %v8319 = vld [vmem:[#allocation5 + $0x670] sm:$0xff]
    %v8320 = vld [vmem:[#allocation5 + $0x678] sm:$0xff]
    %v8321 = vld [vmem:[#allocation5 + $0x680] sm:$0xff]
    %v8322 = vld [vmem:[#allocation5 + $0x688] sm:$0xff]
    %v8323 = vld [vmem:[#allocation5 + $0x690] sm:$0xff]
    %v8324 = vld [vmem:[#allocation5 + $0x698] sm:$0xff]
    %v8325 = vld [vmem:[#allocation5 + $0x6a0] sm:$0xff]
    %v8326 = vld [vmem:[#allocation5 + $0x6a8] sm:$0xff]
    %v8327 = vld [vmem:[#allocation5 + $0x6b0] sm:$0xff]
    %v8328 = vld [vmem:[#allocation5 + $0x6b8] sm:$0xff]
    %v8329 = vld [vmem:[#allocation5 + $0x6c0] sm:$0xff]
    %v8330 = vld [vmem:[#allocation5 + $0x6c8] sm:$0xff]
    %v8331 = vld [vmem:[#allocation5 + $0x6d0] sm:$0xff]
    %v8332 = vld [vmem:[#allocation5 + $0x6d8] sm:$0xff]
    %v8333 = vld [vmem:[#allocation5 + $0x6e0] sm:$0xff]
    %v8334 = vld [vmem:[#allocation5 + $0x6e8] sm:$0xff]
    %v8335 = vld [vmem:[#allocation5 + $0x6f0] sm:$0xff]
    %v8336 = vld [vmem:[#allocation5 + $0x6f8] sm:$0xff]
    %v8337 = vld [vmem:[#allocation5 + $0x700] sm:$0xff]
    %v8338 = vld [vmem:[#allocation5 + $0x708] sm:$0xff]
    %v8339 = vld [vmem:[#allocation5 + $0x710] sm:$0xff]
    %v8340 = vld [vmem:[#allocation5 + $0x718] sm:$0xff]
    %v8341 = vld [vmem:[#allocation5 + $0x720] sm:$0xff]
    %v8342 = vld [vmem:[#allocation5 + $0x728] sm:$0xff]
    %v8343 = vld [vmem:[#allocation5 + $0x730] sm:$0xff]
    %v8344 = vld [vmem:[#allocation5 + $0x738] sm:$0xff]
    %v8345 = vld [vmem:[#allocation5 + $0x740] sm:$0xff]
    %v8346 = vld [vmem:[#allocation5 + $0x748] sm:$0xff]
    %v8347 = vld [vmem:[#allocation5 + $0x750] sm:$0xff]
    %v8348 = vld [vmem:[#allocation5 + $0x758] sm:$0xff]
    %v8349 = vld [vmem:[#allocation5 + $0x760] sm:$0xff]
    %v8350 = vld [vmem:[#allocation5 + $0x768] sm:$0xff]
    %v8351 = vld [vmem:[#allocation5 + $0x770] sm:$0xff]
    %v8352 = vld [vmem:[#allocation5 + $0x778] sm:$0xff]
    %v8353 = vld [vmem:[#allocation5 + $0x780] sm:$0xff]
    %v8354 = vld [vmem:[#allocation5 + $0x788] sm:$0xff]
    %v8355 = vld [vmem:[#allocation5 + $0x790] sm:$0xff]
    %v8356 = vld [vmem:[#allocation5 + $0x798] sm:$0xff]
    %v8357 = vld [vmem:[#allocation5 + $0x7a0] sm:$0xff]
    %v8358 = vld [vmem:[#allocation5 + $0x7a8] sm:$0xff]
    %v8359 = vld [vmem:[#allocation5 + $0x7b0] sm:$0xff]
    %v8360 = vld [vmem:[#allocation5 + $0x7b8] sm:$0xff]
    %v8361 = vld [vmem:[#allocation5 + $0x7c0] sm:$0xff]
    %v8362 = vld [vmem:[#allocation5 + $0x7c8] sm:$0xff]
    %v8363 = vld [vmem:[#allocation5 + $0x7d0] sm:$0xff]
    %v8364 = vld [vmem:[#allocation5 + $0x7d8] sm:$0xff]
    %v8365 = vld [vmem:[#allocation5 + $0x7e0] sm:$0xff]
    %v8366 = vld [vmem:[#allocation5 + $0x7e8] sm:$0xff]
    %v8367 = vld [vmem:[#allocation5 + $0x7f0] sm:$0xff]
    %v8368 = vld [vmem:[#allocation5 + $0x7f8] sm:$0xff]
    %v8369 = vld [vmem:[%s7] sm:$0xff]
    %v8371 = vlaneseq
    %v8372 = vshrl.u32 %v8371, 7
    %v8373 = vsub.s32 0, %v8372
    %v8374 = vrot.slane %v8369, %v8373
    %v8375 = vlaneseq
    %v8376 = vshrl.u32 %v8375, 7
    %v8377 = vsub.s32 1, %v8376
    %v8378 = vrot.slane %v8369, %v8377
    %v8379 = vlaneseq
    %v8380 = vshrl.u32 %v8379, 7
    %v8381 = vsub.s32 2, %v8380
    %v8382 = vrot.slane %v8369, %v8381
    %v8383 = vlaneseq
    %v8384 = vshrl.u32 %v8383, 7
    %v8385 = vsub.s32 3, %v8384
    %v8386 = vrot.slane %v8369, %v8385
    %v8387 = vlaneseq
    %v8388 = vshrl.u32 %v8387, 7
    %v8389 = vsub.s32 4, %v8388
    %v8390 = vrot.slane %v8369, %v8389
    %v8391 = vlaneseq
    %v8392 = vshrl.u32 %v8391, 7
    %v8393 = vsub.s32 5, %v8392
    %v8394 = vrot.slane %v8369, %v8393
    %v8395 = vlaneseq
    %v8396 = vshrl.u32 %v8395, 7
    %v8397 = vsub.s32 6, %v8396
    %v8398 = vrot.slane %v8369, %v8397
    %v8399 = vlaneseq
    %v8400 = vshrl.u32 %v8399, 7
    %v8401 = vsub.s32 7, %v8400
    %v8402 = vrot.slane %v8369, %v8401
    %v8667 = vunpack.c.l.b16 %v8113
    %v8668 = vunpack.c.h.b16 %v8113
    %v8669 = vunpack.c.l.b16 %v8114
    %v8670 = vunpack.c.h.b16 %v8114
    %v8671 = vunpack.c.l.b16 %v8115
    %v8672 = vunpack.c.h.b16 %v8115
    %v8673 = vunpack.c.l.b16 %v8116
    %v8674 = vunpack.c.h.b16 %v8116
    %v8675 = vunpack.c.l.b16 %v8117
    %v8676 = vunpack.c.h.b16 %v8117
    %v8677 = vunpack.c.l.b16 %v8118
    %v8678 = vunpack.c.h.b16 %v8118
    %v8679 = vunpack.c.l.b16 %v8119
    %v8680 = vunpack.c.h.b16 %v8119
    %v8681 = vunpack.c.l.b16 %v8120
    %v8682 = vunpack.c.h.b16 %v8120
    %v8683 = vunpack.c.l.b16 %v8121
    %v8684 = vunpack.c.h.b16 %v8121
    %v8685 = vunpack.c.l.b16 %v8122
    %v8686 = vunpack.c.h.b16 %v8122
    %v8687 = vunpack.c.l.b16 %v8123
    %v8688 = vunpack.c.h.b16 %v8123
    %v8689 = vunpack.c.l.b16 %v8124
    %v8690 = vunpack.c.h.b16 %v8124
    %v8691 = vunpack.c.l.b16 %v8125
    %v8692 = vunpack.c.h.b16 %v8125
    %v8693 = vunpack.c.l.b16 %v8126
    %v8694 = vunpack.c.h.b16 %v8126
    %v8695 = vunpack.c.l.b16 %v8127
    %v8696 = vunpack.c.h.b16 %v8127
    %v8697 = vunpack.c.l.b16 %v8128
    %v8698 = vunpack.c.h.b16 %v8128
    %v8699 = vunpack.c.l.b16 %v8129
    %v8700 = vunpack.c.h.b16 %v8129
    %v8701 = vunpack.c.l.b16 %v8130
    %v8702 = vunpack.c.h.b16 %v8130
    %v8703 = vunpack.c.l.b16 %v8131
    %v8704 = vunpack.c.h.b16 %v8131
    %v8705 = vunpack.c.l.b16 %v8132
    %v8706 = vunpack.c.h.b16 %v8132
    %v8707 = vunpack.c.l.b16 %v8133
    %v8708 = vunpack.c.h.b16 %v8133
    %v8709 = vunpack.c.l.b16 %v8134
    %v8710 = vunpack.c.h.b16 %v8134
    %v8711 = vunpack.c.l.b16 %v8135
    %v8712 = vunpack.c.h.b16 %v8135
    %v8713 = vunpack.c.l.b16 %v8136
    %v8714 = vunpack.c.h.b16 %v8136
    %v8715 = vunpack.c.l.b16 %v8137
    %v8716 = vunpack.c.h.b16 %v8137
    %v8717 = vunpack.c.l.b16 %v8138
    %v8718 = vunpack.c.h.b16 %v8138
    %v8719 = vunpack.c.l.b16 %v8139
    %v8720 = vunpack.c.h.b16 %v8139
    %v8721 = vunpack.c.l.b16 %v8140
    %v8722 = vunpack.c.h.b16 %v8140
    %v8723 = vunpack.c.l.b16 %v8141
    %v8724 = vunpack.c.h.b16 %v8141
    %v8725 = vunpack.c.l.b16 %v8142
    %v8726 = vunpack.c.h.b16 %v8142
    %v8727 = vunpack.c.l.b16 %v8143
    %v8728 = vunpack.c.h.b16 %v8143
    %v8729 = vunpack.c.l.b16 %v8144
    %v8730 = vunpack.c.h.b16 %v8144
    %v8731 = vunpack.c.l.b16 %v8145
    %v8732 = vunpack.c.h.b16 %v8145
    %v8733 = vunpack.c.l.b16 %v8146
    %v8734 = vunpack.c.h.b16 %v8146
    %v8735 = vunpack.c.l.b16 %v8147
    %v8736 = vunpack.c.h.b16 %v8147
    %v8737 = vunpack.c.l.b16 %v8148
    %v8738 = vunpack.c.h.b16 %v8148
    %v8739 = vunpack.c.l.b16 %v8149
    %v8740 = vunpack.c.h.b16 %v8149
    %v8741 = vunpack.c.l.b16 %v8150
    %v8742 = vunpack.c.h.b16 %v8150
    %v8743 = vunpack.c.l.b16 %v8151
    %v8744 = vunpack.c.h.b16 %v8151
    %v8745 = vunpack.c.l.b16 %v8152
    %v8746 = vunpack.c.h.b16 %v8152
    %v8747 = vunpack.c.l.b16 %v8153
    %v8748 = vunpack.c.h.b16 %v8153
    %v8749 = vunpack.c.l.b16 %v8154
    %v8750 = vunpack.c.h.b16 %v8154
    %v8751 = vunpack.c.l.b16 %v8155
    %v8752 = vunpack.c.h.b16 %v8155
    %v8753 = vunpack.c.l.b16 %v8156
    %v8754 = vunpack.c.h.b16 %v8156
    %v8755 = vunpack.c.l.b16 %v8157
    %v8756 = vunpack.c.h.b16 %v8157
    %v8757 = vunpack.c.l.b16 %v8158
    %v8758 = vunpack.c.h.b16 %v8158
    %v8759 = vunpack.c.l.b16 %v8159
    %v8760 = vunpack.c.h.b16 %v8159
    %v8761 = vunpack.c.l.b16 %v8160
    %v8762 = vunpack.c.h.b16 %v8160
    %v8763 = vunpack.c.l.b16 %v8161
    %v8764 = vunpack.c.h.b16 %v8161
    %v8765 = vunpack.c.l.b16 %v8162
    %v8766 = vunpack.c.h.b16 %v8162
    %v8767 = vunpack.c.l.b16 %v8163
    %v8768 = vunpack.c.h.b16 %v8163
    %v8769 = vunpack.c.l.b16 %v8164
    %v8770 = vunpack.c.h.b16 %v8164
    %v8771 = vunpack.c.l.b16 %v8165
    %v8772 = vunpack.c.h.b16 %v8165
    %v8773 = vunpack.c.l.b16 %v8166
    %v8774 = vunpack.c.h.b16 %v8166
    %v8775 = vunpack.c.l.b16 %v8167
    %v8776 = vunpack.c.h.b16 %v8167
    %v8777 = vunpack.c.l.b16 %v8168
    %v8778 = vunpack.c.h.b16 %v8168
    %v8779 = vunpack.c.l.b16 %v8169
    %v8780 = vunpack.c.h.b16 %v8169
    %v8781 = vunpack.c.l.b16 %v8170
    %v8782 = vunpack.c.h.b16 %v8170
    %v8783 = vunpack.c.l.b16 %v8171
    %v8784 = vunpack.c.h.b16 %v8171
    %v8785 = vunpack.c.l.b16 %v8172
    %v8786 = vunpack.c.h.b16 %v8172
    %v8787 = vunpack.c.l.b16 %v8173
    %v8788 = vunpack.c.h.b16 %v8173
    %v8789 = vunpack.c.l.b16 %v8174
    %v8790 = vunpack.c.h.b16 %v8174
    %v8791 = vunpack.c.l.b16 %v8175
    %v8792 = vunpack.c.h.b16 %v8175
    %v8793 = vunpack.c.l.b16 %v8176
    %v8794 = vunpack.c.h.b16 %v8176
    %v8795 = vunpack.c.l.b16 %v8177
    %v8796 = vunpack.c.h.b16 %v8177
    %v8797 = vunpack.c.l.b16 %v8178
    %v8798 = vunpack.c.h.b16 %v8178
    %v8799 = vunpack.c.l.b16 %v8179
    %v8800 = vunpack.c.h.b16 %v8179
    %v8801 = vunpack.c.l.b16 %v8180
    %v8802 = vunpack.c.h.b16 %v8180
    %v8803 = vunpack.c.l.b16 %v8181
    %v8804 = vunpack.c.h.b16 %v8181
    %v8805 = vunpack.c.l.b16 %v8182
    %v8806 = vunpack.c.h.b16 %v8182
    %v8807 = vunpack.c.l.b16 %v8183
    %v8808 = vunpack.c.h.b16 %v8183
    %v8809 = vunpack.c.l.b16 %v8184
    %v8810 = vunpack.c.h.b16 %v8184
    %v8811 = vunpack.c.l.b16 %v8185
    %v8812 = vunpack.c.h.b16 %v8185
    %v8813 = vunpack.c.l.b16 %v8186
    %v8814 = vunpack.c.h.b16 %v8186
    %v8815 = vunpack.c.l.b16 %v8187
    %v8816 = vunpack.c.h.b16 %v8187
    %v8817 = vunpack.c.l.b16 %v8188
    %v8818 = vunpack.c.h.b16 %v8188
    %v8819 = vunpack.c.l.b16 %v8189
    %v8820 = vunpack.c.h.b16 %v8189
    %v8821 = vunpack.c.l.b16 %v8190
    %v8822 = vunpack.c.h.b16 %v8190
    %v8823 = vunpack.c.l.b16 %v8191
    %v8824 = vunpack.c.h.b16 %v8191
    %v8825 = vunpack.c.l.b16 %v8192
    %v8826 = vunpack.c.h.b16 %v8192
    %v8827 = vunpack.c.l.b16 %v8193
    %v8828 = vunpack.c.h.b16 %v8193
    %v8829 = vunpack.c.l.b16 %v8194
    %v8830 = vunpack.c.h.b16 %v8194
    %v8831 = vunpack.c.l.b16 %v8195
    %v8832 = vunpack.c.h.b16 %v8195
    %v8833 = vunpack.c.l.b16 %v8196
    %v8834 = vunpack.c.h.b16 %v8196
    %v8835 = vunpack.c.l.b16 %v8197
    %v8836 = vunpack.c.h.b16 %v8197
    %v8837 = vunpack.c.l.b16 %v8198
    %v8838 = vunpack.c.h.b16 %v8198
    %v8839 = vunpack.c.l.b16 %v8199
    %v8840 = vunpack.c.h.b16 %v8199
    %v8841 = vunpack.c.l.b16 %v8200
    %v8842 = vunpack.c.h.b16 %v8200
    %v8843 = vunpack.c.l.b16 %v8201
    %v8844 = vunpack.c.h.b16 %v8201
    %v8845 = vunpack.c.l.b16 %v8202
    %v8846 = vunpack.c.h.b16 %v8202
    %v8847 = vunpack.c.l.b16 %v8203
    %v8848 = vunpack.c.h.b16 %v8203
    %v8849 = vunpack.c.l.b16 %v8204
    %v8850 = vunpack.c.h.b16 %v8204
    %v8851 = vunpack.c.l.b16 %v8205
    %v8852 = vunpack.c.h.b16 %v8205
    %v8853 = vunpack.c.l.b16 %v8206
    %v8854 = vunpack.c.h.b16 %v8206
    %v8855 = vunpack.c.l.b16 %v8207
    %v8856 = vunpack.c.h.b16 %v8207
    %v8857 = vunpack.c.l.b16 %v8208
    %v8858 = vunpack.c.h.b16 %v8208
    %v8859 = vunpack.c.l.b16 %v8209
    %v8860 = vunpack.c.h.b16 %v8209
    %v8861 = vunpack.c.l.b16 %v8210
    %v8862 = vunpack.c.h.b16 %v8210
    %v8863 = vunpack.c.l.b16 %v8211
    %v8864 = vunpack.c.h.b16 %v8211
    %v8865 = vunpack.c.l.b16 %v8212
    %v8866 = vunpack.c.h.b16 %v8212
    %v8867 = vunpack.c.l.b16 %v8213
    %v8868 = vunpack.c.h.b16 %v8213
    %v8869 = vunpack.c.l.b16 %v8214
    %v8870 = vunpack.c.h.b16 %v8214
    %v8871 = vunpack.c.l.b16 %v8215
    %v8872 = vunpack.c.h.b16 %v8215
    %v8873 = vunpack.c.l.b16 %v8216
    %v8874 = vunpack.c.h.b16 %v8216
    %v8875 = vunpack.c.l.b16 %v8217
    %v8876 = vunpack.c.h.b16 %v8217
    %v8877 = vunpack.c.l.b16 %v8218
    %v8878 = vunpack.c.h.b16 %v8218
    %v8879 = vunpack.c.l.b16 %v8219
    %v8880 = vunpack.c.h.b16 %v8219
    %v8881 = vunpack.c.l.b16 %v8220
    %v8882 = vunpack.c.h.b16 %v8220
    %v8883 = vunpack.c.l.b16 %v8221
    %v8884 = vunpack.c.h.b16 %v8221
    %v8885 = vunpack.c.l.b16 %v8222
    %v8886 = vunpack.c.h.b16 %v8222
    %v8887 = vunpack.c.l.b16 %v8223
    %v8888 = vunpack.c.h.b16 %v8223
    %v8889 = vunpack.c.l.b16 %v8224
    %v8890 = vunpack.c.h.b16 %v8224
    %v8891 = vunpack.c.l.b16 %v8225
    %v8892 = vunpack.c.h.b16 %v8225
    %v8893 = vunpack.c.l.b16 %v8226
    %v8894 = vunpack.c.h.b16 %v8226
    %v8895 = vunpack.c.l.b16 %v8227
    %v8896 = vunpack.c.h.b16 %v8227
    %v8897 = vunpack.c.l.b16 %v8228
    %v8898 = vunpack.c.h.b16 %v8228
    %v8899 = vunpack.c.l.b16 %v8229
    %v8900 = vunpack.c.h.b16 %v8229
    %v8901 = vunpack.c.l.b16 %v8230
    %v8902 = vunpack.c.h.b16 %v8230
    %v8903 = vunpack.c.l.b16 %v8231
    %v8904 = vunpack.c.h.b16 %v8231
    %v8905 = vunpack.c.l.b16 %v8232
    %v8906 = vunpack.c.h.b16 %v8232
    %v8907 = vunpack.c.l.b16 %v8233
    %v8908 = vunpack.c.h.b16 %v8233
    %v8909 = vunpack.c.l.b16 %v8234
    %v8910 = vunpack.c.h.b16 %v8234
    %v8911 = vunpack.c.l.b16 %v8235
    %v8912 = vunpack.c.h.b16 %v8235
    %v8913 = vunpack.c.l.b16 %v8236
    %v8914 = vunpack.c.h.b16 %v8236
    %v8915 = vunpack.c.l.b16 %v8237
    %v8916 = vunpack.c.h.b16 %v8237
    %v8917 = vunpack.c.l.b16 %v8238
    %v8918 = vunpack.c.h.b16 %v8238
    %v8919 = vunpack.c.l.b16 %v8239
    %v8920 = vunpack.c.h.b16 %v8239
    %v8921 = vunpack.c.l.b16 %v8240
    %v8922 = vunpack.c.h.b16 %v8240
    %v8923 = vunpack.c.l.b16 %v8241
    %v8924 = vunpack.c.h.b16 %v8241
    %v8925 = vunpack.c.l.b16 %v8242
    %v8926 = vunpack.c.h.b16 %v8242
    %v8927 = vunpack.c.l.b16 %v8243
    %v8928 = vunpack.c.h.b16 %v8243
    %v8929 = vunpack.c.l.b16 %v8244
    %v8930 = vunpack.c.h.b16 %v8244
    %v8931 = vunpack.c.l.b16 %v8245
    %v8932 = vunpack.c.h.b16 %v8245
    %v8933 = vunpack.c.l.b16 %v8246
    %v8934 = vunpack.c.h.b16 %v8246
    %v8935 = vunpack.c.l.b16 %v8247
    %v8936 = vunpack.c.h.b16 %v8247
    %v8937 = vunpack.c.l.b16 %v8248
    %v8938 = vunpack.c.h.b16 %v8248
    %v8939 = vunpack.c.l.b16 %v8249
    %v8940 = vunpack.c.h.b16 %v8249
    %v8941 = vunpack.c.l.b16 %v8250
    %v8942 = vunpack.c.h.b16 %v8250
    %v8943 = vunpack.c.l.b16 %v8251
    %v8944 = vunpack.c.h.b16 %v8251
    %v8945 = vunpack.c.l.b16 %v8252
    %v8946 = vunpack.c.h.b16 %v8252
    %v8947 = vunpack.c.l.b16 %v8253
    %v8948 = vunpack.c.h.b16 %v8253
    %v8949 = vunpack.c.l.b16 %v8254
    %v8950 = vunpack.c.h.b16 %v8254
    %v8951 = vunpack.c.l.b16 %v8255
    %v8952 = vunpack.c.h.b16 %v8255
    %v8953 = vunpack.c.l.b16 %v8256
    %v8954 = vunpack.c.h.b16 %v8256
    %v8955 = vunpack.c.l.b16 %v8257
    %v8956 = vunpack.c.h.b16 %v8257
    %v8957 = vunpack.c.l.b16 %v8258
    %v8958 = vunpack.c.h.b16 %v8258
    %v8959 = vunpack.c.l.b16 %v8259
    %v8960 = vunpack.c.h.b16 %v8259
    %v8961 = vunpack.c.l.b16 %v8260
    %v8962 = vunpack.c.h.b16 %v8260
    %v8963 = vunpack.c.l.b16 %v8261
    %v8964 = vunpack.c.h.b16 %v8261
    %v8965 = vunpack.c.l.b16 %v8262
    %v8966 = vunpack.c.h.b16 %v8262
    %v8967 = vunpack.c.l.b16 %v8263
    %v8968 = vunpack.c.h.b16 %v8263
    %v8969 = vunpack.c.l.b16 %v8264
    %v8970 = vunpack.c.h.b16 %v8264
    %v8971 = vunpack.c.l.b16 %v8265
    %v8972 = vunpack.c.h.b16 %v8265
    %v8973 = vunpack.c.l.b16 %v8266
    %v8974 = vunpack.c.h.b16 %v8266
    %v8975 = vunpack.c.l.b16 %v8267
    %v8976 = vunpack.c.h.b16 %v8267
    %v8977 = vunpack.c.l.b16 %v8268
    %v8978 = vunpack.c.h.b16 %v8268
    %v8979 = vunpack.c.l.b16 %v8269
    %v8980 = vunpack.c.h.b16 %v8269
    %v8981 = vunpack.c.l.b16 %v8270
    %v8982 = vunpack.c.h.b16 %v8270
    %v8983 = vunpack.c.l.b16 %v8271
    %v8984 = vunpack.c.h.b16 %v8271
    %v8985 = vunpack.c.l.b16 %v8272
    %v8986 = vunpack.c.h.b16 %v8272
    %v8987 = vunpack.c.l.b16 %v8273
    %v8988 = vunpack.c.h.b16 %v8273
    %v8989 = vunpack.c.l.b16 %v8274
    %v8990 = vunpack.c.h.b16 %v8274
    %v8991 = vunpack.c.l.b16 %v8275
    %v8992 = vunpack.c.h.b16 %v8275
    %v8993 = vunpack.c.l.b16 %v8276
    %v8994 = vunpack.c.h.b16 %v8276
    %v8995 = vunpack.c.l.b16 %v8277
    %v8996 = vunpack.c.h.b16 %v8277
    %v8997 = vunpack.c.l.b16 %v8278
    %v8998 = vunpack.c.h.b16 %v8278
    %v8999 = vunpack.c.l.b16 %v8279
    %v9000 = vunpack.c.h.b16 %v8279
    %v9001 = vunpack.c.l.b16 %v8280
    %v9002 = vunpack.c.h.b16 %v8280
    %v9003 = vunpack.c.l.b16 %v8281
    %v9004 = vunpack.c.h.b16 %v8281
    %v9005 = vunpack.c.l.b16 %v8282
    %v9006 = vunpack.c.h.b16 %v8282
    %v9007 = vunpack.c.l.b16 %v8283
    %v9008 = vunpack.c.h.b16 %v8283
    %v9009 = vunpack.c.l.b16 %v8284
    %v9010 = vunpack.c.h.b16 %v8284
    %v9011 = vunpack.c.l.b16 %v8285
    %v9012 = vunpack.c.h.b16 %v8285
    %v9013 = vunpack.c.l.b16 %v8286
    %v9014 = vunpack.c.h.b16 %v8286
    %v9015 = vunpack.c.l.b16 %v8287
    %v9016 = vunpack.c.h.b16 %v8287
    %v9017 = vunpack.c.l.b16 %v8288
    %v9018 = vunpack.c.h.b16 %v8288
    %v9019 = vunpack.c.l.b16 %v8289
    %v9020 = vunpack.c.h.b16 %v8289
    %v9021 = vunpack.c.l.b16 %v8290
    %v9022 = vunpack.c.h.b16 %v8290
    %v9023 = vunpack.c.l.b16 %v8291
    %v9024 = vunpack.c.h.b16 %v8291
    %v9025 = vunpack.c.l.b16 %v8292
    %v9026 = vunpack.c.h.b16 %v8292
    %v9027 = vunpack.c.l.b16 %v8293
    %v9028 = vunpack.c.h.b16 %v8293
    %v9029 = vunpack.c.l.b16 %v8294
    %v9030 = vunpack.c.h.b16 %v8294
    %v9031 = vunpack.c.l.b16 %v8295
    %v9032 = vunpack.c.h.b16 %v8295
    %v9033 = vunpack.c.l.b16 %v8296
    %v9034 = vunpack.c.h.b16 %v8296
    %v9035 = vunpack.c.l.b16 %v8297
    %v9036 = vunpack.c.h.b16 %v8297
    %v9037 = vunpack.c.l.b16 %v8298
    %v9038 = vunpack.c.h.b16 %v8298
    %v9039 = vunpack.c.l.b16 %v8299
    %v9040 = vunpack.c.h.b16 %v8299
    %v9041 = vunpack.c.l.b16 %v8300
    %v9042 = vunpack.c.h.b16 %v8300
    %v9043 = vunpack.c.l.b16 %v8301
    %v9044 = vunpack.c.h.b16 %v8301
    %v9045 = vunpack.c.l.b16 %v8302
    %v9046 = vunpack.c.h.b16 %v8302
    %v9047 = vunpack.c.l.b16 %v8303
    %v9048 = vunpack.c.h.b16 %v8303
    %v9049 = vunpack.c.l.b16 %v8304
    %v9050 = vunpack.c.h.b16 %v8304
    %v9051 = vunpack.c.l.b16 %v8305
    %v9052 = vunpack.c.h.b16 %v8305
    %v9053 = vunpack.c.l.b16 %v8306
    %v9054 = vunpack.c.h.b16 %v8306
    %v9055 = vunpack.c.l.b16 %v8307
    %v9056 = vunpack.c.h.b16 %v8307
    %v9057 = vunpack.c.l.b16 %v8308
    %v9058 = vunpack.c.h.b16 %v8308
    %v9059 = vunpack.c.l.b16 %v8309
    %v9060 = vunpack.c.h.b16 %v8309
    %v9061 = vunpack.c.l.b16 %v8310
    %v9062 = vunpack.c.h.b16 %v8310
    %v9063 = vunpack.c.l.b16 %v8311
    %v9064 = vunpack.c.h.b16 %v8311
    %v9065 = vunpack.c.l.b16 %v8312
    %v9066 = vunpack.c.h.b16 %v8312
    %v9067 = vunpack.c.l.b16 %v8313
    %v9068 = vunpack.c.h.b16 %v8313
    %v9069 = vunpack.c.l.b16 %v8314
    %v9070 = vunpack.c.h.b16 %v8314
    %v9071 = vunpack.c.l.b16 %v8315
    %v9072 = vunpack.c.h.b16 %v8315
    %v9073 = vunpack.c.l.b16 %v8316
    %v9074 = vunpack.c.h.b16 %v8316
    %v9075 = vunpack.c.l.b16 %v8317
    %v9076 = vunpack.c.h.b16 %v8317
    %v9077 = vunpack.c.l.b16 %v8318
    %v9078 = vunpack.c.h.b16 %v8318
    %v9079 = vunpack.c.l.b16 %v8319
    %v9080 = vunpack.c.h.b16 %v8319
    %v9081 = vunpack.c.l.b16 %v8320
    %v9082 = vunpack.c.h.b16 %v8320
    %v9083 = vunpack.c.l.b16 %v8321
    %v9084 = vunpack.c.h.b16 %v8321
    %v9085 = vunpack.c.l.b16 %v8322
    %v9086 = vunpack.c.h.b16 %v8322
    %v9087 = vunpack.c.l.b16 %v8323
    %v9088 = vunpack.c.h.b16 %v8323
    %v9089 = vunpack.c.l.b16 %v8324
    %v9090 = vunpack.c.h.b16 %v8324
    %v9091 = vunpack.c.l.b16 %v8325
    %v9092 = vunpack.c.h.b16 %v8325
    %v9093 = vunpack.c.l.b16 %v8326
    %v9094 = vunpack.c.h.b16 %v8326
    %v9095 = vunpack.c.l.b16 %v8327
    %v9096 = vunpack.c.h.b16 %v8327
    %v9097 = vunpack.c.l.b16 %v8328
    %v9098 = vunpack.c.h.b16 %v8328
    %v9099 = vunpack.c.l.b16 %v8329
    %v9100 = vunpack.c.h.b16 %v8329
    %v9101 = vunpack.c.l.b16 %v8330
    %v9102 = vunpack.c.h.b16 %v8330
    %v9103 = vunpack.c.l.b16 %v8331
    %v9104 = vunpack.c.h.b16 %v8331
    %v9105 = vunpack.c.l.b16 %v8332
    %v9106 = vunpack.c.h.b16 %v8332
    %v9107 = vunpack.c.l.b16 %v8333
    %v9108 = vunpack.c.h.b16 %v8333
    %v9109 = vunpack.c.l.b16 %v8334
    %v9110 = vunpack.c.h.b16 %v8334
    %v9111 = vunpack.c.l.b16 %v8335
    %v9112 = vunpack.c.h.b16 %v8335
    %v9113 = vunpack.c.l.b16 %v8336
    %v9114 = vunpack.c.h.b16 %v8336
    %v9115 = vunpack.c.l.b16 %v8337
    %v9116 = vunpack.c.h.b16 %v8337
    %v9117 = vunpack.c.l.b16 %v8338
    %v9118 = vunpack.c.h.b16 %v8338
    %v9119 = vunpack.c.l.b16 %v8339
    %v9120 = vunpack.c.h.b16 %v8339
    %v9121 = vunpack.c.l.b16 %v8340
    %v9122 = vunpack.c.h.b16 %v8340
    %v9123 = vunpack.c.l.b16 %v8341
    %v9124 = vunpack.c.h.b16 %v8341
    %v9125 = vunpack.c.l.b16 %v8342
    %v9126 = vunpack.c.h.b16 %v8342
    %v9127 = vunpack.c.l.b16 %v8343
    %v9128 = vunpack.c.h.b16 %v8343
    %v9129 = vunpack.c.l.b16 %v8344
    %v9130 = vunpack.c.h.b16 %v8344
    %v9131 = vunpack.c.l.b16 %v8345
    %v9132 = vunpack.c.h.b16 %v8345
    %v9133 = vunpack.c.l.b16 %v8346
    %v9134 = vunpack.c.h.b16 %v8346
    %v9135 = vunpack.c.l.b16 %v8347
    %v9136 = vunpack.c.h.b16 %v8347
    %v9137 = vunpack.c.l.b16 %v8348
    %v9138 = vunpack.c.h.b16 %v8348
    %v9139 = vunpack.c.l.b16 %v8349
    %v9140 = vunpack.c.h.b16 %v8349
    %v9141 = vunpack.c.l.b16 %v8350
    %v9142 = vunpack.c.h.b16 %v8350
    %v9143 = vunpack.c.l.b16 %v8351
    %v9144 = vunpack.c.h.b16 %v8351
    %v9145 = vunpack.c.l.b16 %v8352
    %v9146 = vunpack.c.h.b16 %v8352
    %v9147 = vunpack.c.l.b16 %v8353
    %v9148 = vunpack.c.h.b16 %v8353
    %v9149 = vunpack.c.l.b16 %v8354
    %v9150 = vunpack.c.h.b16 %v8354
    %v9151 = vunpack.c.l.b16 %v8355
    %v9152 = vunpack.c.h.b16 %v8355
    %v9153 = vunpack.c.l.b16 %v8356
    %v9154 = vunpack.c.h.b16 %v8356
    %v9155 = vunpack.c.l.b16 %v8357
    %v9156 = vunpack.c.h.b16 %v8357
    %v9157 = vunpack.c.l.b16 %v8358
    %v9158 = vunpack.c.h.b16 %v8358
    %v9159 = vunpack.c.l.b16 %v8359
    %v9160 = vunpack.c.h.b16 %v8359
    %v9161 = vunpack.c.l.b16 %v8360
    %v9162 = vunpack.c.h.b16 %v8360
    %v9163 = vunpack.c.l.b16 %v8361
    %v9164 = vunpack.c.h.b16 %v8361
    %v9165 = vunpack.c.l.b16 %v8362
    %v9166 = vunpack.c.h.b16 %v8362
    %v9167 = vunpack.c.l.b16 %v8363
    %v9168 = vunpack.c.h.b16 %v8363
    %v9169 = vunpack.c.l.b16 %v8364
    %v9170 = vunpack.c.h.b16 %v8364
    %v9171 = vunpack.c.l.b16 %v8365
    %v9172 = vunpack.c.h.b16 %v8365
    %v9173 = vunpack.c.l.b16 %v8366
    %v9174 = vunpack.c.h.b16 %v8366
    %v9175 = vunpack.c.l.b16 %v8367
    %v9176 = vunpack.c.h.b16 %v8367
    %v9177 = vunpack.c.l.b16 %v8368
    %v9178 = vunpack.c.h.b16 %v8368
    %v9179 = vpack.c.b16 %v8675, %v8667
    %v9180 = vpack.c.b16 %v8676, %v8668
    %v9181 = vpack.c.b16 %v8677, %v8669
    %v9182 = vpack.c.b16 %v8678, %v8670
    %v9183 = vpack.c.b16 %v8679, %v8671
    %v9184 = vpack.c.b16 %v8680, %v8672
    %v9185 = vpack.c.b16 %v8681, %v8673
    %v9186 = vpack.c.b16 %v8682, %v8674
    %v9187 = vpack.c.b16 %v8691, %v8683
    %v9188 = vpack.c.b16 %v8692, %v8684
    %v9189 = vpack.c.b16 %v8693, %v8685
    %v9190 = vpack.c.b16 %v8694, %v8686
    %v9191 = vpack.c.b16 %v8695, %v8687
    %v9192 = vpack.c.b16 %v8696, %v8688
    %v9193 = vpack.c.b16 %v8697, %v8689
    %v9194 = vpack.c.b16 %v8698, %v8690
    %v9195 = vpack.c.b16 %v8707, %v8699
    %v9196 = vpack.c.b16 %v8708, %v8700
    %v9197 = vpack.c.b16 %v8709, %v8701
    %v9198 = vpack.c.b16 %v8710, %v8702
    %v9199 = vpack.c.b16 %v8711, %v8703
    %v9200 = vpack.c.b16 %v8712, %v8704
    %v9201 = vpack.c.b16 %v8713, %v8705
    %v9202 = vpack.c.b16 %v8714, %v8706
    %v9203 = vpack.c.b16 %v8723, %v8715
    %v9204 = vpack.c.b16 %v8724, %v8716
    %v9205 = vpack.c.b16 %v8725, %v8717
    %v9206 = vpack.c.b16 %v8726, %v8718
    %v9207 = vpack.c.b16 %v8727, %v8719
    %v9208 = vpack.c.b16 %v8728, %v8720
    %v9209 = vpack.c.b16 %v8729, %v8721
    %v9210 = vpack.c.b16 %v8730, %v8722
    %v9211 = vpack.c.b16 %v8739, %v8731
    %v9212 = vpack.c.b16 %v8740, %v8732
    %v9213 = vpack.c.b16 %v8741, %v8733
    %v9214 = vpack.c.b16 %v8742, %v8734
    %v9215 = vpack.c.b16 %v8743, %v8735
    %v9216 = vpack.c.b16 %v8744, %v8736
    %v9217 = vpack.c.b16 %v8745, %v8737
    %v9218 = vpack.c.b16 %v8746, %v8738
    %v9219 = vpack.c.b16 %v8755, %v8747
    %v9220 = vpack.c.b16 %v8756, %v8748
    %v9221 = vpack.c.b16 %v8757, %v8749
    %v9222 = vpack.c.b16 %v8758, %v8750
    %v9223 = vpack.c.b16 %v8759, %v8751
    %v9224 = vpack.c.b16 %v8760, %v8752
    %v9225 = vpack.c.b16 %v8761, %v8753
    %v9226 = vpack.c.b16 %v8762, %v8754
    %v9227 = vpack.c.b16 %v8771, %v8763
    %v9228 = vpack.c.b16 %v8772, %v8764
    %v9229 = vpack.c.b16 %v8773, %v8765
    %v9230 = vpack.c.b16 %v8774, %v8766
    %v9231 = vpack.c.b16 %v8775, %v8767
    %v9232 = vpack.c.b16 %v8776, %v8768
    %v9233 = vpack.c.b16 %v8777, %v8769
    %v9234 = vpack.c.b16 %v8778, %v8770
    %v9235 = vpack.c.b16 %v8787, %v8779
    %v9236 = vpack.c.b16 %v8788, %v8780
    %v9237 = vpack.c.b16 %v8789, %v8781
    %v9238 = vpack.c.b16 %v8790, %v8782
    %v9239 = vpack.c.b16 %v8791, %v8783
    %v9240 = vpack.c.b16 %v8792, %v8784
    %v9241 = vpack.c.b16 %v8793, %v8785
    %v9242 = vpack.c.b16 %v8794, %v8786
    %v9243 = vpack.c.b16 %v8803, %v8795
    %v9244 = vpack.c.b16 %v8804, %v8796
    %v9245 = vpack.c.b16 %v8805, %v8797
    %v9246 = vpack.c.b16 %v8806, %v8798
    %v9247 = vpack.c.b16 %v8807, %v8799
    %v9248 = vpack.c.b16 %v8808, %v8800
    %v9249 = vpack.c.b16 %v8809, %v8801
    %v9250 = vpack.c.b16 %v8810, %v8802
    %v9251 = vpack.c.b16 %v8819, %v8811
    %v9252 = vpack.c.b16 %v8820, %v8812
    %v9253 = vpack.c.b16 %v8821, %v8813
    %v9254 = vpack.c.b16 %v8822, %v8814
    %v9255 = vpack.c.b16 %v8823, %v8815
    %v9256 = vpack.c.b16 %v8824, %v8816
    %v9257 = vpack.c.b16 %v8825, %v8817
    %v9258 = vpack.c.b16 %v8826, %v8818
    %v9259 = vpack.c.b16 %v8835, %v8827
    %v9260 = vpack.c.b16 %v8836, %v8828
    %v9261 = vpack.c.b16 %v8837, %v8829
    %v9262 = vpack.c.b16 %v8838, %v8830
    %v9263 = vpack.c.b16 %v8839, %v8831
    %v9264 = vpack.c.b16 %v8840, %v8832
    %v9265 = vpack.c.b16 %v8841, %v8833
    %v9266 = vpack.c.b16 %v8842, %v8834
    %v9267 = vpack.c.b16 %v8851, %v8843
    %v9268 = vpack.c.b16 %v8852, %v8844
    %v9269 = vpack.c.b16 %v8853, %v8845
    %v9270 = vpack.c.b16 %v8854, %v8846
    %v9271 = vpack.c.b16 %v8855, %v8847
    %v9272 = vpack.c.b16 %v8856, %v8848
    %v9273 = vpack.c.b16 %v8857, %v8849
    %v9274 = vpack.c.b16 %v8858, %v8850
    %v9275 = vpack.c.b16 %v8867, %v8859
    %v9276 = vpack.c.b16 %v8868, %v8860
    %v9277 = vpack.c.b16 %v8869, %v8861
    %v9278 = vpack.c.b16 %v8870, %v8862
    %v9279 = vpack.c.b16 %v8871, %v8863
    %v9280 = vpack.c.b16 %v8872, %v8864
    %v9281 = vpack.c.b16 %v8873, %v8865
    %v9282 = vpack.c.b16 %v8874, %v8866
    %v9283 = vpack.c.b16 %v8883, %v8875
    %v9284 = vpack.c.b16 %v8884, %v8876
    %v9285 = vpack.c.b16 %v8885, %v8877
    %v9286 = vpack.c.b16 %v8886, %v8878
    %v9287 = vpack.c.b16 %v8887, %v8879
    %v9288 = vpack.c.b16 %v8888, %v8880
    %v9289 = vpack.c.b16 %v8889, %v8881
    %v9290 = vpack.c.b16 %v8890, %v8882
    %v9291 = vpack.c.b16 %v8899, %v8891
    %v9292 = vpack.c.b16 %v8900, %v8892
    %v9293 = vpack.c.b16 %v8901, %v8893
    %v9294 = vpack.c.b16 %v8902, %v8894
    %v9295 = vpack.c.b16 %v8903, %v8895
    %v9296 = vpack.c.b16 %v8904, %v8896
    %v9297 = vpack.c.b16 %v8905, %v8897
    %v9298 = vpack.c.b16 %v8906, %v8898
    %v9299 = vpack.c.b16 %v8915, %v8907
    %v9300 = vpack.c.b16 %v8916, %v8908
    %v9301 = vpack.c.b16 %v8917, %v8909
    %v9302 = vpack.c.b16 %v8918, %v8910
    %v9303 = vpack.c.b16 %v8919, %v8911
    %v9304 = vpack.c.b16 %v8920, %v8912
    %v9305 = vpack.c.b16 %v8921, %v8913
    %v9306 = vpack.c.b16 %v8922, %v8914
    %v9307 = vpack.c.b16 %v8931, %v8923
    %v9308 = vpack.c.b16 %v8932, %v8924
    %v9309 = vpack.c.b16 %v8933, %v8925
    %v9310 = vpack.c.b16 %v8934, %v8926
    %v9311 = vpack.c.b16 %v8935, %v8927
    %v9312 = vpack.c.b16 %v8936, %v8928
    %v9313 = vpack.c.b16 %v8937, %v8929
    %v9314 = vpack.c.b16 %v8938, %v8930
    %v9315 = vpack.c.b16 %v8947, %v8939
    %v9316 = vpack.c.b16 %v8948, %v8940
    %v9317 = vpack.c.b16 %v8949, %v8941
    %v9318 = vpack.c.b16 %v8950, %v8942
    %v9319 = vpack.c.b16 %v8951, %v8943
    %v9320 = vpack.c.b16 %v8952, %v8944
    %v9321 = vpack.c.b16 %v8953, %v8945
    %v9322 = vpack.c.b16 %v8954, %v8946
    %v9323 = vpack.c.b16 %v8963, %v8955
    %v9324 = vpack.c.b16 %v8964, %v8956
    %v9325 = vpack.c.b16 %v8965, %v8957
    %v9326 = vpack.c.b16 %v8966, %v8958
    %v9327 = vpack.c.b16 %v8967, %v8959
    %v9328 = vpack.c.b16 %v8968, %v8960
    %v9329 = vpack.c.b16 %v8969, %v8961
    %v9330 = vpack.c.b16 %v8970, %v8962
    %v9331 = vpack.c.b16 %v8979, %v8971
    %v9332 = vpack.c.b16 %v8980, %v8972
    %v9333 = vpack.c.b16 %v8981, %v8973
    %v9334 = vpack.c.b16 %v8982, %v8974
    %v9335 = vpack.c.b16 %v8983, %v8975
    %v9336 = vpack.c.b16 %v8984, %v8976
    %v9337 = vpack.c.b16 %v8985, %v8977
    %v9338 = vpack.c.b16 %v8986, %v8978
    %v9339 = vpack.c.b16 %v8995, %v8987
    %v9340 = vpack.c.b16 %v8996, %v8988
    %v9341 = vpack.c.b16 %v8997, %v8989
    %v9342 = vpack.c.b16 %v8998, %v8990
    %v9343 = vpack.c.b16 %v8999, %v8991
    %v9344 = vpack.c.b16 %v9000, %v8992
    %v9345 = vpack.c.b16 %v9001, %v8993
    %v9346 = vpack.c.b16 %v9002, %v8994
    %v9347 = vpack.c.b16 %v9011, %v9003
    %v9348 = vpack.c.b16 %v9012, %v9004
    %v9349 = vpack.c.b16 %v9013, %v9005
    %v9350 = vpack.c.b16 %v9014, %v9006
    %v9351 = vpack.c.b16 %v9015, %v9007
    %v9352 = vpack.c.b16 %v9016, %v9008
    %v9353 = vpack.c.b16 %v9017, %v9009
    %v9354 = vpack.c.b16 %v9018, %v9010
    %v9355 = vpack.c.b16 %v9027, %v9019
    %v9356 = vpack.c.b16 %v9028, %v9020
    %v9357 = vpack.c.b16 %v9029, %v9021
    %v9358 = vpack.c.b16 %v9030, %v9022
    %v9359 = vpack.c.b16 %v9031, %v9023
    %v9360 = vpack.c.b16 %v9032, %v9024
    %v9361 = vpack.c.b16 %v9033, %v9025
    %v9362 = vpack.c.b16 %v9034, %v9026
    %v9363 = vpack.c.b16 %v9043, %v9035
    %v9364 = vpack.c.b16 %v9044, %v9036
    %v9365 = vpack.c.b16 %v9045, %v9037
    %v9366 = vpack.c.b16 %v9046, %v9038
    %v9367 = vpack.c.b16 %v9047, %v9039
    %v9368 = vpack.c.b16 %v9048, %v9040
    %v9369 = vpack.c.b16 %v9049, %v9041
    %v9370 = vpack.c.b16 %v9050, %v9042
    %v9371 = vpack.c.b16 %v9059, %v9051
    %v9372 = vpack.c.b16 %v9060, %v9052
    %v9373 = vpack.c.b16 %v9061, %v9053
    %v9374 = vpack.c.b16 %v9062, %v9054
    %v9375 = vpack.c.b16 %v9063, %v9055
    %v9376 = vpack.c.b16 %v9064, %v9056
    %v9377 = vpack.c.b16 %v9065, %v9057
    %v9378 = vpack.c.b16 %v9066, %v9058
    %v9379 = vpack.c.b16 %v9075, %v9067
    %v9380 = vpack.c.b16 %v9076, %v9068
    %v9381 = vpack.c.b16 %v9077, %v9069
    %v9382 = vpack.c.b16 %v9078, %v9070
    %v9383 = vpack.c.b16 %v9079, %v9071
    %v9384 = vpack.c.b16 %v9080, %v9072
    %v9385 = vpack.c.b16 %v9081, %v9073
    %v9386 = vpack.c.b16 %v9082, %v9074
    %v9387 = vpack.c.b16 %v9091, %v9083
    %v9388 = vpack.c.b16 %v9092, %v9084
    %v9389 = vpack.c.b16 %v9093, %v9085
    %v9390 = vpack.c.b16 %v9094, %v9086
    %v9391 = vpack.c.b16 %v9095, %v9087
    %v9392 = vpack.c.b16 %v9096, %v9088
    %v9393 = vpack.c.b16 %v9097, %v9089
    %v9394 = vpack.c.b16 %v9098, %v9090
    %v9395 = vpack.c.b16 %v9107, %v9099
    %v9396 = vpack.c.b16 %v9108, %v9100
    %v9397 = vpack.c.b16 %v9109, %v9101
    %v9398 = vpack.c.b16 %v9110, %v9102
    %v9399 = vpack.c.b16 %v9111, %v9103
    %v9400 = vpack.c.b16 %v9112, %v9104
    %v9401 = vpack.c.b16 %v9113, %v9105
    %v9402 = vpack.c.b16 %v9114, %v9106
    %v9403 = vpack.c.b16 %v9123, %v9115
    %v9404 = vpack.c.b16 %v9124, %v9116
    %v9405 = vpack.c.b16 %v9125, %v9117
    %v9406 = vpack.c.b16 %v9126, %v9118
    %v9407 = vpack.c.b16 %v9127, %v9119
    %v9408 = vpack.c.b16 %v9128, %v9120
    %v9409 = vpack.c.b16 %v9129, %v9121
    %v9410 = vpack.c.b16 %v9130, %v9122
    %v9411 = vpack.c.b16 %v9139, %v9131
    %v9412 = vpack.c.b16 %v9140, %v9132
    %v9413 = vpack.c.b16 %v9141, %v9133
    %v9414 = vpack.c.b16 %v9142, %v9134
    %v9415 = vpack.c.b16 %v9143, %v9135
    %v9416 = vpack.c.b16 %v9144, %v9136
    %v9417 = vpack.c.b16 %v9145, %v9137
    %v9418 = vpack.c.b16 %v9146, %v9138
    %v9419 = vpack.c.b16 %v9155, %v9147
    %v9420 = vpack.c.b16 %v9156, %v9148
    %v9421 = vpack.c.b16 %v9157, %v9149
    %v9422 = vpack.c.b16 %v9158, %v9150
    %v9423 = vpack.c.b16 %v9159, %v9151
    %v9424 = vpack.c.b16 %v9160, %v9152
    %v9425 = vpack.c.b16 %v9161, %v9153
    %v9426 = vpack.c.b16 %v9162, %v9154
    %v9427 = vpack.c.b16 %v9171, %v9163
    %v9428 = vpack.c.b16 %v9172, %v9164
    %v9429 = vpack.c.b16 %v9173, %v9165
    %v9430 = vpack.c.b16 %v9174, %v9166
    %v9431 = vpack.c.b16 %v9175, %v9167
    %v9432 = vpack.c.b16 %v9176, %v9168
    %v9433 = vpack.c.b16 %v9177, %v9169
    %v9434 = vpack.c.b16 %v9178, %v9170
    %9691 = vmatprep.subr.bf16.mxu0 %v9236
    %9692 = vmatpush1.bf16.msra.mxu0 %v9235
    %9693 = vmatprep.subr.bf16.mxu0 %v9228
    %9694 = vmatpush1.bf16.msra.mxu0 %v9227
    %9695 = vmatprep.subr.bf16.mxu0 %v9220
    %9696 = vmatpush1.bf16.msra.mxu0 %v9219
    %9697 = vmatprep.subr.bf16.mxu0 %v9212
    %9698 = vmatpush1.bf16.msra.mxu0 %v9211
    %9699 = vmatprep.subr.bf16.mxu0 %v9204
    %9700 = vmatpush1.bf16.msra.mxu0 %v9203
    %9701 = vmatprep.subr.bf16.mxu0 %v9196
    %9702 = vmatpush1.bf16.msra.mxu0 %v9195
    %9703 = vmatprep.subr.bf16.mxu0 %v9188
    %9704 = vmatpush1.bf16.msra.mxu0 %v9187
    %9705 = vmatprep.subr.bf16.mxu0 %v9180
    %9706 = vmatpush1.bf16.msra.mxu0 %v9179
    %9707 = vmatprep.subr.bf16.mxu0 %v9300
    %9708 = vmatpush2.bf16.msra.mxu0 %v9299
    %9709 = vmatprep.subr.bf16.mxu0 %v9292
    %9710 = vmatpush2.bf16.msra.mxu0 %v9291
    %9711 = vmatprep.subr.bf16.mxu0 %v9284
    %9712 = vmatpush2.bf16.msra.mxu0 %v9283
    %9713 = vmatprep.subr.bf16.mxu0 %v9276
    %9714 = vmatpush2.bf16.msra.mxu0 %v9275
    %9715 = vmatprep.subr.bf16.mxu0 %v9268
    %9716 = vmatpush2.bf16.msra.mxu0 %v9267
    %9717 = vmatprep.subr.bf16.mxu0 %v9260
    %9718 = vmatpush2.bf16.msra.mxu0 %v9259
    %9719 = vmatprep.subr.bf16.mxu0 %v9252
    %9720 = vmatpush2.bf16.msra.mxu0 %v9251
    %9721 = vmatprep.subr.bf16.mxu0 %v9244
    %9722 = vmatpush2.bf16.msra.mxu0 %v9243
    %9723 = vmatprep.mubr.bf16.mxu0 %v8110
    %9724 = vmatmul.mubr.bf16.gmra.mxu0 %v8109
    %v9725 = vpop.f32.mrf.mxu0
    %v9726 = vadd.f32 %v8374, %v9725
    %v9727 = vpop.f32.mrf.mxu0
    %v9728 = vadd.f32 %v8378, %v9727
    %v9729 = vpop.f32.mrf.mxu0
    %v9730 = vadd.f32 %v8374, %v9729
    %v9731 = vpop.f32.mrf.mxu0
    %v9732 = vadd.f32 %v8378, %v9731
    %9733 = vdwg.mxu0
    %9734 = vmatprep.subr.bf16.mxu0 %v9364
    %9735 = vmatpush1.bf16.msra.mxu0 %v9363
    %9736 = vmatprep.subr.bf16.mxu0 %v9356
    %9737 = vmatpush1.bf16.msra.mxu0 %v9355
    %9738 = vmatprep.subr.bf16.mxu0 %v9348
    %9739 = vmatpush1.bf16.msra.mxu0 %v9347
    %9740 = vmatprep.subr.bf16.mxu0 %v9340
    %9741 = vmatpush1.bf16.msra.mxu0 %v9339
    %9742 = vmatprep.subr.bf16.mxu0 %v9332
    %9743 = vmatpush1.bf16.msra.mxu0 %v9331
    %9744 = vmatprep.subr.bf16.mxu0 %v9324
    %9745 = vmatpush1.bf16.msra.mxu0 %v9323
    %9746 = vmatprep.subr.bf16.mxu0 %v9316
    %9747 = vmatpush1.bf16.msra.mxu0 %v9315
    %9748 = vmatprep.subr.bf16.mxu0 %v9308
    %9749 = vmatpush1.bf16.msra.mxu0 %v9307
    %9750 = vmatprep.subr.bf16.mxu0 %v9428
    %9751 = vmatpush2.bf16.msra.mxu0 %v9427
    %9752 = vmatprep.subr.bf16.mxu0 %v9420
    %9753 = vmatpush2.bf16.msra.mxu0 %v9419
    %9754 = vmatprep.subr.bf16.mxu0 %v9412
    %9755 = vmatpush2.bf16.msra.mxu0 %v9411
    %9756 = vmatprep.subr.bf16.mxu0 %v9404
    %9757 = vmatpush2.bf16.msra.mxu0 %v9403
    %9758 = vmatprep.subr.bf16.mxu0 %v9396
    %9759 = vmatpush2.bf16.msra.mxu0 %v9395
    %9760 = vmatprep.subr.bf16.mxu0 %v9388
    %9761 = vmatpush2.bf16.msra.mxu0 %v9387
    %9762 = vmatprep.subr.bf16.mxu0 %v9380
    %9763 = vmatpush2.bf16.msra.mxu0 %v9379
    %9764 = vmatprep.subr.bf16.mxu0 %v9372
    %9765 = vmatpush2.bf16.msra.mxu0 %v9371
    %9766 = vmatprep.mubr.bf16.mxu0 %v8112
    %9767 = vmatmul.mubr.bf16.gmra.mxu0 %v8111
    %v9768 = vpop.f32.mrf.mxu0
    %v9769 = vadd.f32 %v9726, %v9768
    %v9770 = vpop.f32.mrf.mxu0
    %v9771 = vadd.f32 %v9728, %v9770
    %v9772 = vpop.f32.mrf.mxu0
    %v9773 = vadd.f32 %v9730, %v9772
    %v9774 = vpop.f32.mrf.mxu0
    %v9775 = vadd.f32 %v9732, %v9774
    %9776 = vdwg.mxu0
    %9777 = vmatprep.subr.bf16.mxu0 %v9238
    %9778 = vmatpush1.bf16.msra.mxu0 %v9237
    %9779 = vmatprep.subr.bf16.mxu0 %v9230
    %9780 = vmatpush1.bf16.msra.mxu0 %v9229
    %9781 = vmatprep.subr.bf16.mxu0 %v9222
    %9782 = vmatpush1.bf16.msra.mxu0 %v9221
    %9783 = vmatprep.subr.bf16.mxu0 %v9214
    %9784 = vmatpush1.bf16.msra.mxu0 %v9213
    %9785 = vmatprep.subr.bf16.mxu0 %v9206
    %9786 = vmatpush1.bf16.msra.mxu0 %v9205
    %9787 = vmatprep.subr.bf16.mxu0 %v9198
    %9788 = vmatpush1.bf16.msra.mxu0 %v9197
    %9789 = vmatprep.subr.bf16.mxu0 %v9190
    %9790 = vmatpush1.bf16.msra.mxu0 %v9189
    %9791 = vmatprep.subr.bf16.mxu0 %v9182
    %9792 = vmatpush1.bf16.msra.mxu0 %v9181
    %9793 = vmatprep.subr.bf16.mxu0 %v9302
    %9794 = vmatpush2.bf16.msra.mxu0 %v9301
    %9795 = vmatprep.subr.bf16.mxu0 %v9294
    %9796 = vmatpush2.bf16.msra.mxu0 %v9293
    %9797 = vmatprep.subr.bf16.mxu0 %v9286
    %9798 = vmatpush2.bf16.msra.mxu0 %v9285
    %9799 = vmatprep.subr.bf16.mxu0 %v9278
    %9800 = vmatpush2.bf16.msra.mxu0 %v9277
    %9801 = vmatprep.subr.bf16.mxu0 %v9270
    %9802 = vmatpush2.bf16.msra.mxu0 %v9269
    %9803 = vmatprep.subr.bf16.mxu0 %v9262
    %9804 = vmatpush2.bf16.msra.mxu0 %v9261
    %9805 = vmatprep.subr.bf16.mxu0 %v9254
    %9806 = vmatpush2.bf16.msra.mxu0 %v9253
    %9807 = vmatprep.subr.bf16.mxu0 %v9246
    %9808 = vmatpush2.bf16.msra.mxu0 %v9245
    %9809 = vmatprep.mubr.bf16.mxu0 %v8110
    %9810 = vmatmul.mubr.bf16.gmra.mxu0 %v8109
    %v9811 = vpop.f32.mrf.mxu0
    %v9812 = vadd.f32 %v8382, %v9811
    %v9813 = vpop.f32.mrf.mxu0
    %v9814 = vadd.f32 %v8386, %v9813
    %v9815 = vpop.f32.mrf.mxu0
    %v9816 = vadd.f32 %v8382, %v9815
    %v9817 = vpop.f32.mrf.mxu0
    %v9818 = vadd.f32 %v8386, %v9817
    %9819 = vdwg.mxu0
    %9820 = vmatprep.subr.bf16.mxu0 %v9366
    %9821 = vmatpush1.bf16.msra.mxu0 %v9365
    %9822 = vmatprep.subr.bf16.mxu0 %v9358
    %9823 = vmatpush1.bf16.msra.mxu0 %v9357
    %9824 = vmatprep.subr.bf16.mxu0 %v9350
    %9825 = vmatpush1.bf16.msra.mxu0 %v9349
    %9826 = vmatprep.subr.bf16.mxu0 %v9342
    %9827 = vmatpush1.bf16.msra.mxu0 %v9341
    %9828 = vmatprep.subr.bf16.mxu0 %v9334
    %9829 = vmatpush1.bf16.msra.mxu0 %v9333
    %9830 = vmatprep.subr.bf16.mxu0 %v9326
    %9831 = vmatpush1.bf16.msra.mxu0 %v9325
    %9832 = vmatprep.subr.bf16.mxu0 %v9318
    %9833 = vmatpush1.bf16.msra.mxu0 %v9317
    %9834 = vmatprep.subr.bf16.mxu0 %v9310
    %9835 = vmatpush1.bf16.msra.mxu0 %v9309
    %9836 = vmatprep.subr.bf16.mxu0 %v9430
    %9837 = vmatpush2.bf16.msra.mxu0 %v9429
    %9838 = vmatprep.subr.bf16.mxu0 %v9422
    %9839 = vmatpush2.bf16.msra.mxu0 %v9421
    %9840 = vmatprep.subr.bf16.mxu0 %v9414
    %9841 = vmatpush2.bf16.msra.mxu0 %v9413
    %9842 = vmatprep.subr.bf16.mxu0 %v9406
    %9843 = vmatpush2.bf16.msra.mxu0 %v9405
    %9844 = vmatprep.subr.bf16.mxu0 %v9398
    %9845 = vmatpush2.bf16.msra.mxu0 %v9397
    %9846 = vmatprep.subr.bf16.mxu0 %v9390
    %9847 = vmatpush2.bf16.msra.mxu0 %v9389
    %9848 = vmatprep.subr.bf16.mxu0 %v9382
    %9849 = vmatpush2.bf16.msra.mxu0 %v9381
    %9850 = vmatprep.subr.bf16.mxu0 %v9374
    %9851 = vmatpush2.bf16.msra.mxu0 %v9373
    %9852 = vmatprep.mubr.bf16.mxu0 %v8112
    %9853 = vmatmul.mubr.bf16.gmra.mxu0 %v8111
    %v9854 = vpop.f32.mrf.mxu0
    %v9855 = vadd.f32 %v9812, %v9854
    %v9856 = vpop.f32.mrf.mxu0
    %v9857 = vadd.f32 %v9814, %v9856
    %v9858 = vpop.f32.mrf.mxu0
    %v9859 = vadd.f32 %v9816, %v9858
    %v9860 = vpop.f32.mrf.mxu0
    %v9861 = vadd.f32 %v9818, %v9860
    %9862 = vdwg.mxu0
    %9863 = vmatprep.subr.bf16.mxu0 %v9240
    %9864 = vmatpush1.bf16.msra.mxu0 %v9239
    %9865 = vmatprep.subr.bf16.mxu0 %v9232
    %9866 = vmatpush1.bf16.msra.mxu0 %v9231
    %9867 = vmatprep.subr.bf16.mxu0 %v9224
    %9868 = vmatpush1.bf16.msra.mxu0 %v9223
    %9869 = vmatprep.subr.bf16.mxu0 %v9216
    %9870 = vmatpush1.bf16.msra.mxu0 %v9215
    %9871 = vmatprep.subr.bf16.mxu0 %v9208
    %9872 = vmatpush1.bf16.msra.mxu0 %v9207
    %9873 = vmatprep.subr.bf16.mxu0 %v9200
    %9874 = vmatpush1.bf16.msra.mxu0 %v9199
    %9875 = vmatprep.subr.bf16.mxu0 %v9192
    %9876 = vmatpush1.bf16.msra.mxu0 %v9191
    %9877 = vmatprep.subr.bf16.mxu0 %v9184
    %9878 = vmatpush1.bf16.msra.mxu0 %v9183
    %9879 = vmatprep.subr.bf16.mxu0 %v9304
    %9880 = vmatpush2.bf16.msra.mxu0 %v9303
    %9881 = vmatprep.subr.bf16.mxu0 %v9296
    %9882 = vmatpush2.bf16.msra.mxu0 %v9295
    %9883 = vmatprep.subr.bf16.mxu0 %v9288
    %9884 = vmatpush2.bf16.msra.mxu0 %v9287
    %9885 = vmatprep.subr.bf16.mxu0 %v9280
    %9886 = vmatpush2.bf16.msra.mxu0 %v9279
    %9887 = vmatprep.subr.bf16.mxu0 %v9272
    %9888 = vmatpush2.bf16.msra.mxu0 %v9271
    %9889 = vmatprep.subr.bf16.mxu0 %v9264
    %9890 = vmatpush2.bf16.msra.mxu0 %v9263
    %9891 = vmatprep.subr.bf16.mxu0 %v9256
    %9892 = vmatpush2.bf16.msra.mxu0 %v9255
    %9893 = vmatprep.subr.bf16.mxu0 %v9248
    %9894 = vmatpush2.bf16.msra.mxu0 %v9247
    %9895 = vmatprep.mubr.bf16.mxu0 %v8110
    %9896 = vmatmul.mubr.bf16.gmra.mxu0 %v8109
    %v9897 = vpop.f32.mrf.mxu0
    %v9898 = vadd.f32 %v8390, %v9897
    %v9899 = vpop.f32.mrf.mxu0
    %v9900 = vadd.f32 %v8394, %v9899
    %v9901 = vpop.f32.mrf.mxu0
    %v9902 = vadd.f32 %v8390, %v9901
    %v9903 = vpop.f32.mrf.mxu0
    %v9904 = vadd.f32 %v8394, %v9903
    %9905 = vdwg.mxu0
    %9906 = vmatprep.subr.bf16.mxu0 %v9368
    %9907 = vmatpush1.bf16.msra.mxu0 %v9367
    %9908 = vmatprep.subr.bf16.mxu0 %v9360
    %9909 = vmatpush1.bf16.msra.mxu0 %v9359
    %9910 = vmatprep.subr.bf16.mxu0 %v9352
    %9911 = vmatpush1.bf16.msra.mxu0 %v9351
    %9912 = vmatprep.subr.bf16.mxu0 %v9344
    %9913 = vmatpush1.bf16.msra.mxu0 %v9343
    %9914 = vmatprep.subr.bf16.mxu0 %v9336
    %9915 = vmatpush1.bf16.msra.mxu0 %v9335
    %9916 = vmatprep.subr.bf16.mxu0 %v9328
    %9917 = vmatpush1.bf16.msra.mxu0 %v9327
    %9918 = vmatprep.subr.bf16.mxu0 %v9320
    %9919 = vmatpush1.bf16.msra.mxu0 %v9319
    %9920 = vmatprep.subr.bf16.mxu0 %v9312
    %9921 = vmatpush1.bf16.msra.mxu0 %v9311
    %9922 = vmatprep.subr.bf16.mxu0 %v9432
    %9923 = vmatpush2.bf16.msra.mxu0 %v9431
    %9924 = vmatprep.subr.bf16.mxu0 %v9424
    %9925 = vmatpush2.bf16.msra.mxu0 %v9423
    %9926 = vmatprep.subr.bf16.mxu0 %v9416
    %9927 = vmatpush2.bf16.msra.mxu0 %v9415
    %9928 = vmatprep.subr.bf16.mxu0 %v9408
    %9929 = vmatpush2.bf16.msra.mxu0 %v9407
    %9930 = vmatprep.subr.bf16.mxu0 %v9400
    %9931 = vmatpush2.bf16.msra.mxu0 %v9399
    %9932 = vmatprep.subr.bf16.mxu0 %v9392
    %9933 = vmatpush2.bf16.msra.mxu0 %v9391
    %9934 = vmatprep.subr.bf16.mxu0 %v9384
    %9935 = vmatpush2.bf16.msra.mxu0 %v9383
    %9936 = vmatprep.subr.bf16.mxu0 %v9376
    %9937 = vmatpush2.bf16.msra.mxu0 %v9375
    %9938 = vmatprep.mubr.bf16.mxu0 %v8112
    %9939 = vmatmul.mubr.bf16.gmra.mxu0 %v8111
    %v9940 = vpop.f32.mrf.mxu0
    %v9941 = vadd.f32 %v9898, %v9940
    %v9942 = vpop.f32.mrf.mxu0
    %v9943 = vadd.f32 %v9900, %v9942
    %v9944 = vpop.f32.mrf.mxu0
    %v9945 = vadd.f32 %v9902, %v9944
    %v9946 = vpop.f32.mrf.mxu0
    %v9947 = vadd.f32 %v9904, %v9946
    %9948 = vdwg.mxu0
    %9949 = vmatprep.subr.bf16.mxu0 %v9242
    %9950 = vmatpush1.bf16.msra.mxu0 %v9241
    %9951 = vmatprep.subr.bf16.mxu0 %v9234
    %9952 = vmatpush1.bf16.msra.mxu0 %v9233
    %9953 = vmatprep.subr.bf16.mxu0 %v9226
    %9954 = vmatpush1.bf16.msra.mxu0 %v9225
    %9955 = vmatprep.subr.bf16.mxu0 %v9218
    %9956 = vmatpush1.bf16.msra.mxu0 %v9217
    %9957 = vmatprep.subr.bf16.mxu0 %v9210
    %9958 = vmatpush1.bf16.msra.mxu0 %v9209
    %9959 = vmatprep.subr.bf16.mxu0 %v9202
    %9960 = vmatpush1.bf16.msra.mxu0 %v9201
    %9961 = vmatprep.subr.bf16.mxu0 %v9194
    %9962 = vmatpush1.bf16.msra.mxu0 %v9193
    %9963 = vmatprep.subr.bf16.mxu0 %v9186
    %9964 = vmatpush1.bf16.msra.mxu0 %v9185
    %9965 = vmatprep.subr.bf16.mxu0 %v9306
    %9966 = vmatpush2.bf16.msra.mxu0 %v9305
    %9967 = vmatprep.subr.bf16.mxu0 %v9298
    %9968 = vmatpush2.bf16.msra.mxu0 %v9297
    %9969 = vmatprep.subr.bf16.mxu0 %v9290
    %9970 = vmatpush2.bf16.msra.mxu0 %v9289
    %9971 = vmatprep.subr.bf16.mxu0 %v9282
    %9972 = vmatpush2.bf16.msra.mxu0 %v9281
    %9973 = vmatprep.subr.bf16.mxu0 %v9274
    %9974 = vmatpush2.bf16.msra.mxu0 %v9273
    %9975 = vmatprep.subr.bf16.mxu0 %v9266
    %9976 = vmatpush2.bf16.msra.mxu0 %v9265
    %9977 = vmatprep.subr.bf16.mxu0 %v9258
    %9978 = vmatpush2.bf16.msra.mxu0 %v9257
    %9979 = vmatprep.subr.bf16.mxu0 %v9250
    %9980 = vmatpush2.bf16.msra.mxu0 %v9249
    %9981 = vmatprep.mubr.bf16.mxu0 %v8110
    %9982 = vmatmul.mubr.bf16.gmra.mxu0 %v8109
    %v9983 = vpop.f32.mrf.mxu0
    %v9984 = vadd.f32 %v8398, %v9983
    %v9985 = vpop.f32.mrf.mxu0
    %v9986 = vadd.f32 %v8402, %v9985
    %v9987 = vpop.f32.mrf.mxu0
    %v9988 = vadd.f32 %v8398, %v9987
    %v9989 = vpop.f32.mrf.mxu0
    %v9990 = vadd.f32 %v8402, %v9989
    %9991 = vdwg.mxu0
    %9992 = vmatprep.subr.bf16.mxu0 %v9370
    %9993 = vmatpush1.bf16.msra.mxu0 %v9369
    %9994 = vmatprep.subr.bf16.mxu0 %v9362
    %9995 = vmatpush1.bf16.msra.mxu0 %v9361
    %9996 = vmatprep.subr.bf16.mxu0 %v9354
    %9997 = vmatpush1.bf16.msra.mxu0 %v9353
    %9998 = vmatprep.subr.bf16.mxu0 %v9346
    %9999 = vmatpush1.bf16.msra.mxu0 %v9345
    %10000 = vmatprep.subr.bf16.mxu0 %v9338
    %10001 = vmatpush1.bf16.msra.mxu0 %v9337
    %10002 = vmatprep.subr.bf16.mxu0 %v9330
    %10003 = vmatpush1.bf16.msra.mxu0 %v9329
    %10004 = vmatprep.subr.bf16.mxu0 %v9322
    %10005 = vmatpush1.bf16.msra.mxu0 %v9321
    %10006 = vmatprep.subr.bf16.mxu0 %v9314
    %10007 = vmatpush1.bf16.msra.mxu0 %v9313
    %10008 = vmatprep.subr.bf16.mxu0 %v9434
    %10009 = vmatpush2.bf16.msra.mxu0 %v9433
    %10010 = vmatprep.subr.bf16.mxu0 %v9426
    %10011 = vmatpush2.bf16.msra.mxu0 %v9425
    %10012 = vmatprep.subr.bf16.mxu0 %v9418
    %10013 = vmatpush2.bf16.msra.mxu0 %v9417
    %10014 = vmatprep.subr.bf16.mxu0 %v9410
    %10015 = vmatpush2.bf16.msra.mxu0 %v9409
    %10016 = vmatprep.subr.bf16.mxu0 %v9402
    %10017 = vmatpush2.bf16.msra.mxu0 %v9401
    %10018 = vmatprep.subr.bf16.mxu0 %v9394
    %10019 = vmatpush2.bf16.msra.mxu0 %v9393
    %10020 = vmatprep.subr.bf16.mxu0 %v9386
    %10021 = vmatpush2.bf16.msra.mxu0 %v9385
    %10022 = vmatprep.subr.bf16.mxu0 %v9378
    %10023 = vmatpush2.bf16.msra.mxu0 %v9377
    %10024 = vmatprep.mubr.bf16.mxu0 %v8112
    %10025 = vmatmul.mubr.bf16.gmra.mxu0 %v8111
    %v10026 = vpop.f32.mrf.mxu0
    %v10027 = vadd.f32 %v9984, %v10026
    %v10028 = vpop.f32.mrf.mxu0
    %v10029 = vadd.f32 %v9986, %v10028
    %v10030 = vpop.f32.mrf.mxu0
    %v10031 = vadd.f32 %v9988, %v10030
    %v10032 = vpop.f32.mrf.mxu0
    %v10033 = vadd.f32 %v9990, %v10032
    %10034 = vdwg.mxu0
    %10035 = vst [vmem:[#allocation4] sm:$0xff] %v9769
    %10036 = vst [vmem:[#allocation4 + $0x8] sm:$0xff] %v9771
    %10037 = vst [vmem:[#allocation4 + $0x10] sm:$0xff] %v9855
    %10038 = vst [vmem:[#allocation4 + $0x18] sm:$0xff] %v9857
    %10039 = vst [vmem:[#allocation4 + $0x20] sm:$0xff] %v9941
    %10040 = vst [vmem:[#allocation4 + $0x28] sm:$0xff] %v9943
    %10041 = vst [vmem:[#allocation4 + $0x30] sm:$0xff] %v10027
    %10042 = vst [vmem:[#allocation4 + $0x38] sm:$0xff] %v10029
    %10043 = vst [vmem:[#allocation4 + $0x40] sm:$0xff] %v9773
    %10044 = vst [vmem:[#allocation4 + $0x48] sm:$0xff] %v9775
    %10045 = vst [vmem:[#allocation4 + $0x50] sm:$0xff] %v9859
    %10046 = vst [vmem:[#allocation4 + $0x58] sm:$0xff] %v9861
    %10047 = vst [vmem:[#allocation4 + $0x60] sm:$0xff] %v9945
    %10048 = vst [vmem:[#allocation4 + $0x68] sm:$0xff] %v9947
    %10049 = vst [vmem:[#allocation4 + $0x70] sm:$0xff] %v10031
    %10050 = vst [vmem:[#allocation4 + $0x78] sm:$0xff] %v10033
    %v10051 = vld [vmem:[#allocation4] sm:$0x3]
    %v10052 = vld [vmem:[#allocation4 + $0x8] sm:$0x3]
    %v10053 = vld [vmem:[#allocation4 + $0x10] sm:$0x3]
    %v10054 = vld [vmem:[#allocation4 + $0x18] sm:$0x3]
    %v10055 = vxor.u32 %v10051, 2147483648
    %v10056 = vmul.f32 %v10055, 1.442695
    %v10057 = vpow.pop %v10056
    %v10058 = vadd.f32 %v10057, 1.0
    %v10059 = vrcp.pop %v10058
    %v10060 = vmul.f32 1.0, %v10059
    %v10061 = vxor.u32 %v10052, 2147483648
    %v10062 = vmul.f32 %v10061, 1.442695
    %v10063 = vpow.pop %v10062
    %v10064 = vadd.f32 %v10063, 1.0
    %v10065 = vrcp.pop %v10064
    %v10066 = vmul.f32 1.0, %v10065
    %v10067 = vtanh.pop %v10053
    %v10068 = vxor.u32 %v10054, 2147483648
    %v10069 = vmul.f32 %v10068, 1.442695
    %v10070 = vpow.pop %v10069
    %v10071 = vadd.f32 %v10070, 1.0
    %v10072 = vrcp.pop %v10071
    %v10073 = vmul.f32 1.0, %v10072
    %v10074 = vmul.f32 %v10066, 0.0
    %v10075 = vmul.f32 %v10060, %v10067
    %v10076 = vadd.f32 %v10074, %v10075
    %v10077 = vtanh.pop %v10076
    %v10078 = vmul.f32 %v10073, %v10077
    %v10079 = vld [vmem:[#allocation4] sm:$0xc]
    %v10080 = vld [vmem:[#allocation4 + $0x8] sm:$0xc]
    %v10081 = vld [vmem:[#allocation4 + $0x10] sm:$0xc]
    %v10082 = vld [vmem:[#allocation4 + $0x18] sm:$0xc]
    %v10083 = vpack.c.bf16 %v10078, %v10078
    %v10084 = vld [vmem:[#allocation6] sm:$0xff]
    %v10085 = vld [vmem:[#allocation6 + $0x8] sm:$0xff]
    %v10086 = vld [vmem:[#allocation6 + $0x10] sm:$0xff]
    %v10087 = vld [vmem:[#allocation6 + $0x18] sm:$0xff]
    %v10088 = vld [vmem:[#allocation6 + $0x20] sm:$0xff]
    %v10089 = vld [vmem:[#allocation6 + $0x28] sm:$0xff]
    %v10090 = vld [vmem:[#allocation6 + $0x30] sm:$0xff]
    %v10091 = vld [vmem:[#allocation6 + $0x38] sm:$0xff]
    %v10092 = vld [vmem:[#allocation6 + $0x40] sm:$0xff]
    %v10093 = vld [vmem:[#allocation6 + $0x48] sm:$0xff]
    %v10094 = vld [vmem:[#allocation6 + $0x50] sm:$0xff]
    %v10095 = vld [vmem:[#allocation6 + $0x58] sm:$0xff]
    %v10096 = vld [vmem:[#allocation6 + $0x60] sm:$0xff]
    %v10097 = vld [vmem:[#allocation6 + $0x68] sm:$0xff]
    %v10098 = vld [vmem:[#allocation6 + $0x70] sm:$0xff]
    %v10099 = vld [vmem:[#allocation6 + $0x78] sm:$0xff]
    %v10100 = vld [vmem:[#allocation6 + $0x80] sm:$0xff]
    %v10101 = vld [vmem:[#allocation6 + $0x88] sm:$0xff]
    %v10102 = vld [vmem:[#allocation6 + $0x90] sm:$0xff]
    %v10103 = vld [vmem:[#allocation6 + $0x98] sm:$0xff]
    %v10104 = vld [vmem:[#allocation6 + $0xa0] sm:$0xff]
    %v10105 = vld [vmem:[#allocation6 + $0xa8] sm:$0xff]
    %v10106 = vld [vmem:[#allocation6 + $0xb0] sm:$0xff]
    %v10107 = vld [vmem:[#allocation6 + $0xb8] sm:$0xff]
    %v10108 = vld [vmem:[#allocation6 + $0xc0] sm:$0xff]
    %v10109 = vld [vmem:[#allocation6 + $0xc8] sm:$0xff]
    %v10110 = vld [vmem:[#allocation6 + $0xd0] sm:$0xff]
    %v10111 = vld [vmem:[#allocation6 + $0xd8] sm:$0xff]
    %v10112 = vld [vmem:[#allocation6 + $0xe0] sm:$0xff]
    %v10113 = vld [vmem:[#allocation6 + $0xe8] sm:$0xff]
    %v10114 = vld [vmem:[#allocation6 + $0xf0] sm:$0xff]
    %v10115 = vld [vmem:[#allocation6 + $0xf8] sm:$0xff]
    %v10148 = vunpack.c.l.b16 %v10084
    %v10149 = vunpack.c.h.b16 %v10084
    %v10150 = vunpack.c.l.b16 %v10085
    %v10151 = vunpack.c.h.b16 %v10085
    %v10152 = vunpack.c.l.b16 %v10086
    %v10153 = vunpack.c.h.b16 %v10086
    %v10154 = vunpack.c.l.b16 %v10087
    %v10155 = vunpack.c.h.b16 %v10087
    %v10156 = vunpack.c.l.b16 %v10088
    %v10157 = vunpack.c.h.b16 %v10088
    %v10158 = vunpack.c.l.b16 %v10089
    %v10159 = vunpack.c.h.b16 %v10089
    %v10160 = vunpack.c.l.b16 %v10090
    %v10161 = vunpack.c.h.b16 %v10090
    %v10162 = vunpack.c.l.b16 %v10091
    %v10163 = vunpack.c.h.b16 %v10091
    %v10164 = vunpack.c.l.b16 %v10092
    %v10165 = vunpack.c.h.b16 %v10092
    %v10166 = vunpack.c.l.b16 %v10093
    %v10167 = vunpack.c.h.b16 %v10093
    %v10168 = vunpack.c.l.b16 %v10094
    %v10169 = vunpack.c.h.b16 %v10094
    %v10170 = vunpack.c.l.b16 %v10095
    %v10171 = vunpack.c.h.b16 %v10095
    %v10172 = vunpack.c.l.b16 %v10096
    %v10173 = vunpack.c.h.b16 %v10096
    %v10174 = vunpack.c.l.b16 %v10097
    %v10175 = vunpack.c.h.b16 %v10097
    %v10176 = vunpack.c.l.b16 %v10098
    %v10177 = vunpack.c.h.b16 %v10098
    %v10178 = vunpack.c.l.b16 %v10099
    %v10179 = vunpack.c.h.b16 %v10099
    %v10180 = vunpack.c.l.b16 %v10100
    %v10181 = vunpack.c.h.b16 %v10100
    %v10182 = vunpack.c.l.b16 %v10101
    %v10183 = vunpack.c.h.b16 %v10101
    %v10184 = vunpack.c.l.b16 %v10102
    %v10185 = vunpack.c.h.b16 %v10102
    %v10186 = vunpack.c.l.b16 %v10103
    %v10187 = vunpack.c.h.b16 %v10103
    %v10188 = vunpack.c.l.b16 %v10104
    %v10189 = vunpack.c.h.b16 %v10104
    %v10190 = vunpack.c.l.b16 %v10105
    %v10191 = vunpack.c.h.b16 %v10105
    %v10192 = vunpack.c.l.b16 %v10106
    %v10193 = vunpack.c.h.b16 %v10106
    %v10194 = vunpack.c.l.b16 %v10107
    %v10195 = vunpack.c.h.b16 %v10107
    %v10196 = vunpack.c.l.b16 %v10108
    %v10197 = vunpack.c.h.b16 %v10108
    %v10198 = vunpack.c.l.b16 %v10109
    %v10199 = vunpack.c.h.b16 %v10109
    %v10200 = vunpack.c.l.b16 %v10110
    %v10201 = vunpack.c.h.b16 %v10110
    %v10202 = vunpack.c.l.b16 %v10111
    %v10203 = vunpack.c.h.b16 %v10111
    %v10204 = vunpack.c.l.b16 %v10112
    %v10205 = vunpack.c.h.b16 %v10112
    %v10206 = vunpack.c.l.b16 %v10113
    %v10207 = vunpack.c.h.b16 %v10113
    %v10208 = vunpack.c.l.b16 %v10114
    %v10209 = vunpack.c.h.b16 %v10114
    %v10210 = vunpack.c.l.b16 %v10115
    %v10211 = vunpack.c.h.b16 %v10115
    %v10212 = vpack.c.b16 %v10152, %v10148
    %v10213 = vpack.c.b16 %v10153, %v10149
    %v10214 = vpack.c.b16 %v10154, %v10150
    %v10215 = vpack.c.b16 %v10155, %v10151
    %v10216 = vpack.c.b16 %v10160, %v10156
    %v10217 = vpack.c.b16 %v10161, %v10157
    %v10218 = vpack.c.b16 %v10162, %v10158
    %v10219 = vpack.c.b16 %v10163, %v10159
    %v10220 = vpack.c.b16 %v10168, %v10164
    %v10221 = vpack.c.b16 %v10169, %v10165
    %v10222 = vpack.c.b16 %v10170, %v10166
    %v10223 = vpack.c.b16 %v10171, %v10167
    %v10224 = vpack.c.b16 %v10176, %v10172
    %v10225 = vpack.c.b16 %v10177, %v10173
    %v10226 = vpack.c.b16 %v10178, %v10174
    %v10227 = vpack.c.b16 %v10179, %v10175
    %v10228 = vpack.c.b16 %v10184, %v10180
    %v10229 = vpack.c.b16 %v10185, %v10181
    %v10230 = vpack.c.b16 %v10186, %v10182
    %v10231 = vpack.c.b16 %v10187, %v10183
    %v10232 = vpack.c.b16 %v10192, %v10188
    %v10233 = vpack.c.b16 %v10193, %v10189
    %v10234 = vpack.c.b16 %v10194, %v10190
    %v10235 = vpack.c.b16 %v10195, %v10191
    %v10236 = vpack.c.b16 %v10200, %v10196
    %v10237 = vpack.c.b16 %v10201, %v10197
    %v10238 = vpack.c.b16 %v10202, %v10198
    %v10239 = vpack.c.b16 %v10203, %v10199
    %v10240 = vpack.c.b16 %v10208, %v10204
    %v10241 = vpack.c.b16 %v10209, %v10205
    %v10242 = vpack.c.b16 %v10210, %v10206
    %v10243 = vpack.c.b16 %v10211, %v10207
    %10276 = vmatprep.subr.bf16.mxu0 %v10241
    %10277 = vmatpush1.bf16.msra.mxu0 %v10240
    %10278 = vmatprep.subr.bf16.mxu0 %v10237
    %10279 = vmatpush1.bf16.msra.mxu0 %v10236
    %10280 = vmatprep.subr.bf16.mxu0 %v10233
    %10281 = vmatpush1.bf16.msra.mxu0 %v10232
    %10282 = vmatprep.subr.bf16.mxu0 %v10229
    %10283 = vmatpush1.bf16.msra.mxu0 %v10228
    %10284 = vmatprep.subr.bf16.mxu0 %v10225
    %10285 = vmatpush1.bf16.msra.mxu0 %v10224
    %10286 = vmatprep.subr.bf16.mxu0 %v10221
    %10287 = vmatpush1.bf16.msra.mxu0 %v10220
    %10288 = vmatprep.subr.bf16.mxu0 %v10217
    %10289 = vmatpush1.bf16.msra.mxu0 %v10216
    %10290 = vmatprep.subr.bf16.mxu0 %v10213
    %10291 = vmatpush1.bf16.msra.mxu0 %v10212
    %10292 = vmatprep.subr.bf16.mxu0 0
    %10293 = vmatpush2.bf16.msra.mxu0 0
    %10294 = vmatprep.subr.bf16.mxu0 0
    %10295 = vmatpush2.bf16.msra.mxu0 0
    %10296 = vmatprep.subr.bf16.mxu0 0
    %10297 = vmatpush2.bf16.msra.mxu0 0
    %10298 = vmatprep.subr.bf16.mxu0 0
    %10299 = vmatpush2.bf16.msra.mxu0 0
    %10300 = vmatprep.subr.bf16.mxu0 0
    %10301 = vmatpush2.bf16.msra.mxu0 0
    %10302 = vmatprep.subr.bf16.mxu0 0
    %10303 = vmatpush2.bf16.msra.mxu0 0
    %10304 = vmatprep.subr.bf16.mxu0 0
    %10305 = vmatpush2.bf16.msra.mxu0 0
    %10306 = vmatprep.subr.bf16.mxu0 0
    %10307 = vmatpush2.bf16.msra.mxu0 0
    %10308 = vmatprep.mubr.bf16.mxu0 0
    %10309 = vmatmul.mubr.bf16.gmra.mxu0 %v10083
    %v10310 = vpop.f32.mrf.mxu0
    %v10311 = vadd.f32 0.0, %v10310
    %v10312 = vpop.f32.mrf.mxu0
    %v10313 = vadd.f32 0.0, %v10312
    %v10314 = vpop.f32.mrf.mxu0
    %v10315 = vpop.f32.mrf.mxu0
    %10316 = vdwg.mxu0
    %10317 = vmatprep.subr.bf16.mxu0 %v10243
    %10318 = vmatpush1.bf16.msra.mxu0 %v10242
    %10319 = vmatprep.subr.bf16.mxu0 %v10239
    %10320 = vmatpush1.bf16.msra.mxu0 %v10238
    %10321 = vmatprep.subr.bf16.mxu0 %v10235
    %10322 = vmatpush1.bf16.msra.mxu0 %v10234
    %10323 = vmatprep.subr.bf16.mxu0 %v10231
    %10324 = vmatpush1.bf16.msra.mxu0 %v10230
    %10325 = vmatprep.subr.bf16.mxu0 %v10227
    %10326 = vmatpush1.bf16.msra.mxu0 %v10226
    %10327 = vmatprep.subr.bf16.mxu0 %v10223
    %10328 = vmatpush1.bf16.msra.mxu0 %v10222
    %10329 = vmatprep.subr.bf16.mxu0 %v10219
    %10330 = vmatpush1.bf16.msra.mxu0 %v10218
    %10331 = vmatprep.subr.bf16.mxu0 %v10215
    %10332 = vmatpush1.bf16.msra.mxu0 %v10214
    %10333 = vmatprep.subr.bf16.mxu0 0
    %10334 = vmatpush2.bf16.msra.mxu0 0
    %10335 = vmatprep.subr.bf16.mxu0 0
    %10336 = vmatpush2.bf16.msra.mxu0 0
    %10337 = vmatprep.subr.bf16.mxu0 0
    %10338 = vmatpush2.bf16.msra.mxu0 0
    %10339 = vmatprep.subr.bf16.mxu0 0
    %10340 = vmatpush2.bf16.msra.mxu0 0
    %10341 = vmatprep.subr.bf16.mxu0 0
    %10342 = vmatpush2.bf16.msra.mxu0 0
    %10343 = vmatprep.subr.bf16.mxu0 0
    %10344 = vmatpush2.bf16.msra.mxu0 0
    %10345 = vmatprep.subr.bf16.mxu0 0
    %10346 = vmatpush2.bf16.msra.mxu0 0
    %10347 = vmatprep.subr.bf16.mxu0 0
    %10348 = vmatpush2.bf16.msra.mxu0 0
    %10349 = vmatprep.mubr.bf16.mxu0 0
    %10350 = vmatmul.mubr.bf16.gmra.mxu0 %v10083
    %v10351 = vpop.f32.mrf.mxu0
    %v10352 = vadd.f32 0.0, %v10351
    %v10353 = vpop.f32.mrf.mxu0
    %v10354 = vadd.f32 0.0, %v10353
    %v10355 = vpop.f32.mrf.mxu0
    %v10356 = vpop.f32.mrf.mxu0
    %10357 = vdwg.mxu0
    %v10362 = vrot.slane %v10311, 6
    %v10363 = vrot.slane %v10313, 6
    %v10364 = vrot.slane %v10352, 6
    %v10365 = vrot.slane %v10354, 6
    %v10370 = vadd.f32 %v10079, %v10362
    %v10371 = vadd.f32 %v10080, %v10363
    %v10372 = vadd.f32 %v10081, %v10364
    %v10373 = vadd.f32 %v10082, %v10365
    %v10374 = vxor.u32 %v10370, 2147483648
    %v10375 = vmul.f32 %v10374, 1.442695
    %v10376 = vpow.pop %v10375
    %v10377 = vadd.f32 %v10376, 1.0
    %v10378 = vrcp.pop %v10377
    %v10379 = vmul.f32 1.0, %v10378
    %v10380 = vxor.u32 %v10371, 2147483648
    %v10381 = vmul.f32 %v10380, 1.442695
    %v10382 = vpow.pop %v10381
    %v10383 = vadd.f32 %v10382, 1.0
    %v10384 = vrcp.pop %v10383
    %v10385 = vmul.f32 1.0, %v10384
    %v10386 = vtanh.pop %v10372
    %v10387 = vxor.u32 %v10373, 2147483648
    %v10388 = vmul.f32 %v10387, 1.442695
    %v10389 = vpow.pop %v10388
    %v10390 = vadd.f32 %v10389, 1.0
    %v10391 = vrcp.pop %v10390
    %v10392 = vmul.f32 1.0, %v10391
    %v10394 = vrot.slane %v10076, 6
    %v10396 = vmul.f32 %v10385, %v10394
    %v10397 = vmul.f32 %v10379, %v10386
    %v10398 = vadd.f32 %v10396, %v10397
    %v10399 = vtanh.pop %v10398
    %v10400 = vmul.f32 %v10392, %v10399
    %v10401 = vld [vmem:[#allocation4] sm:$0x30]
    %v10402 = vld [vmem:[#allocation4 + $0x8] sm:$0x30]
    %v10403 = vld [vmem:[#allocation4 + $0x10] sm:$0x30]
    %v10404 = vld [vmem:[#allocation4 + $0x18] sm:$0x30]
    %v10405 = vpack.c.bf16 %v10400, %v10400
    %v10407 = vrot.slane %v10405, 1
    %10409 = vmatprep.subr.bf16.mxu0 %v10241
    %10410 = vmatpush1.bf16.msra.mxu0 %v10240
    %10411 = vmatprep.subr.bf16.mxu0 %v10237
    %10412 = vmatpush1.bf16.msra.mxu0 %v10236
    %10413 = vmatprep.subr.bf16.mxu0 %v10233
    %10414 = vmatpush1.bf16.msra.mxu0 %v10232
    %10415 = vmatprep.subr.bf16.mxu0 %v10229
    %10416 = vmatpush1.bf16.msra.mxu0 %v10228
    %10417 = vmatprep.subr.bf16.mxu0 %v10225
    %10418 = vmatpush1.bf16.msra.mxu0 %v10224
    %10419 = vmatprep.subr.bf16.mxu0 %v10221
    %10420 = vmatpush1.bf16.msra.mxu0 %v10220
    %10421 = vmatprep.subr.bf16.mxu0 %v10217
    %10422 = vmatpush1.bf16.msra.mxu0 %v10216
    %10423 = vmatprep.subr.bf16.mxu0 %v10213
    %10424 = vmatpush1.bf16.msra.mxu0 %v10212
    %10425 = vmatprep.subr.bf16.mxu0 0
    %10426 = vmatpush2.bf16.msra.mxu0 0
    %10427 = vmatprep.subr.bf16.mxu0 0
    %10428 = vmatpush2.bf16.msra.mxu0 0
    %10429 = vmatprep.subr.bf16.mxu0 0
    %10430 = vmatpush2.bf16.msra.mxu0 0
    %10431 = vmatprep.subr.bf16.mxu0 0
    %10432 = vmatpush2.bf16.msra.mxu0 0
    %10433 = vmatprep.subr.bf16.mxu0 0
    %10434 = vmatpush2.bf16.msra.mxu0 0
    %10435 = vmatprep.subr.bf16.mxu0 0
    %10436 = vmatpush2.bf16.msra.mxu0 0
    %10437 = vmatprep.subr.bf16.mxu0 0
    %10438 = vmatpush2.bf16.msra.mxu0 0
    %10439 = vmatprep.subr.bf16.mxu0 0
    %10440 = vmatpush2.bf16.msra.mxu0 0
    %10441 = vmatprep.mubr.bf16.mxu0 0
    %10442 = vmatmul.mubr.bf16.gmra.mxu0 %v10407
    %v10443 = vpop.f32.mrf.mxu0
    %v10444 = vadd.f32 0.0, %v10443
    %v10445 = vpop.f32.mrf.mxu0
    %v10446 = vadd.f32 0.0, %v10445
    %v10447 = vpop.f32.mrf.mxu0
    %v10448 = vpop.f32.mrf.mxu0
    %10449 = vdwg.mxu0
    %10450 = vmatprep.subr.bf16.mxu0 %v10243
    %10451 = vmatpush1.bf16.msra.mxu0 %v10242
    %10452 = vmatprep.subr.bf16.mxu0 %v10239
    %10453 = vmatpush1.bf16.msra.mxu0 %v10238
    %10454 = vmatprep.subr.bf16.mxu0 %v10235
    %10455 = vmatpush1.bf16.msra.mxu0 %v10234
    %10456 = vmatprep.subr.bf16.mxu0 %v10231
    %10457 = vmatpush1.bf16.msra.mxu0 %v10230
    %10458 = vmatprep.subr.bf16.mxu0 %v10227
    %10459 = vmatpush1.bf16.msra.mxu0 %v10226
    %10460 = vmatprep.subr.bf16.mxu0 %v10223
    %10461 = vmatpush1.bf16.msra.mxu0 %v10222
    %10462 = vmatprep.subr.bf16.mxu0 %v10219
    %10463 = vmatpush1.bf16.msra.mxu0 %v10218
    %10464 = vmatprep.subr.bf16.mxu0 %v10215
    %10465 = vmatpush1.bf16.msra.mxu0 %v10214
    %10466 = vmatprep.subr.bf16.mxu0 0
    %10467 = vmatpush2.bf16.msra.mxu0 0
    %10468 = vmatprep.subr.bf16.mxu0 0
    %10469 = vmatpush2.bf16.msra.mxu0 0
    %10470 = vmatprep.subr.bf16.mxu0 0
    %10471 = vmatpush2.bf16.msra.mxu0 0
    %10472 = vmatprep.subr.bf16.mxu0 0
    %10473 = vmatpush2.bf16.msra.mxu0 0
    %10474 = vmatprep.subr.bf16.mxu0 0
    %10475 = vmatpush2.bf16.msra.mxu0 0
    %10476 = vmatprep.subr.bf16.mxu0 0
    %10477 = vmatpush2.bf16.msra.mxu0 0
    %10478 = vmatprep.subr.bf16.mxu0 0
    %10479 = vmatpush2.bf16.msra.mxu0 0
    %10480 = vmatprep.subr.bf16.mxu0 0
    %10481 = vmatpush2.bf16.msra.mxu0 0
    %10482 = vmatprep.mubr.bf16.mxu0 0
    %10483 = vmatmul.mubr.bf16.gmra.mxu0 %v10407
    %v10484 = vpop.f32.mrf.mxu0
    %v10485 = vadd.f32 0.0, %v10484
    %v10486 = vpop.f32.mrf.mxu0
    %v10487 = vadd.f32 0.0, %v10486
    %v10488 = vpop.f32.mrf.mxu0
    %v10489 = vpop.f32.mrf.mxu0
    %10490 = vdwg.mxu0
    %v10495 = vrot.slane %v10444, 4
    %v10496 = vrot.slane %v10446, 4
    %v10497 = vrot.slane %v10485, 4
    %v10498 = vrot.slane %v10487, 4
    %v10503 = vadd.f32 %v10401, %v10495
    %v10504 = vadd.f32 %v10402, %v10496
    %v10505 = vadd.f32 %v10403, %v10497
    %v10506 = vadd.f32 %v10404, %v10498
    %v10507 = vxor.u32 %v10503, 2147483648
    %v10508 = vmul.f32 %v10507, 1.442695
    %v10509 = vpow.pop %v10508
    %v10510 = vadd.f32 %v10509, 1.0
    %v10511 = vrcp.pop %v10510
    %v10512 = vmul.f32 1.0, %v10511
    %v10513 = vxor.u32 %v10504, 2147483648
    %v10514 = vmul.f32 %v10513, 1.442695
    %v10515 = vpow.pop %v10514
    %v10516 = vadd.f32 %v10515, 1.0
    %v10517 = vrcp.pop %v10516
    %v10518 = vmul.f32 1.0, %v10517
    %v10519 = vtanh.pop %v10505
    %v10520 = vxor.u32 %v10506, 2147483648
    %v10521 = vmul.f32 %v10520, 1.442695
    %v10522 = vpow.pop %v10521
    %v10523 = vadd.f32 %v10522, 1.0
    %v10524 = vrcp.pop %v10523
    %v10525 = vmul.f32 1.0, %v10524
    %v10527 = vrot.slane %v10398, 6
    %v10529 = vmul.f32 %v10518, %v10527
    %v10530 = vmul.f32 %v10512, %v10519
    %v10531 = vadd.f32 %v10529, %v10530
    %v10532 = vtanh.pop %v10531
    %v10533 = vmul.f32 %v10525, %v10532
    %v10534 = vld [vmem:[#allocation4] sm:$0xc0]
    %v10535 = vld [vmem:[#allocation4 + $0x8] sm:$0xc0]
    %v10536 = vld [vmem:[#allocation4 + $0x10] sm:$0xc0]
    %v10537 = vld [vmem:[#allocation4 + $0x18] sm:$0xc0]
    %v10538 = vpack.c.bf16 %v10533, %v10533
    %v10540 = vrot.slane %v10538, 2
    %10542 = vmatprep.subr.bf16.mxu0 %v10241
    %10543 = vmatpush1.bf16.msra.mxu0 %v10240
    %10544 = vmatprep.subr.bf16.mxu0 %v10237
    %10545 = vmatpush1.bf16.msra.mxu0 %v10236
    %10546 = vmatprep.subr.bf16.mxu0 %v10233
    %10547 = vmatpush1.bf16.msra.mxu0 %v10232
    %10548 = vmatprep.subr.bf16.mxu0 %v10229
    %10549 = vmatpush1.bf16.msra.mxu0 %v10228
    %10550 = vmatprep.subr.bf16.mxu0 %v10225
    %10551 = vmatpush1.bf16.msra.mxu0 %v10224
    %10552 = vmatprep.subr.bf16.mxu0 %v10221
    %10553 = vmatpush1.bf16.msra.mxu0 %v10220
    %10554 = vmatprep.subr.bf16.mxu0 %v10217
    %10555 = vmatpush1.bf16.msra.mxu0 %v10216
    %10556 = vmatprep.subr.bf16.mxu0 %v10213
    %10557 = vmatpush1.bf16.msra.mxu0 %v10212
    %10558 = vmatprep.subr.bf16.mxu0 0
    %10559 = vmatpush2.bf16.msra.mxu0 0
    %10560 = vmatprep.subr.bf16.mxu0 0
    %10561 = vmatpush2.bf16.msra.mxu0 0
    %10562 = vmatprep.subr.bf16.mxu0 0
    %10563 = vmatpush2.bf16.msra.mxu0 0
    %10564 = vmatprep.subr.bf16.mxu0 0
    %10565 = vmatpush2.bf16.msra.mxu0 0
    %10566 = vmatprep.subr.bf16.mxu0 0
    %10567 = vmatpush2.bf16.msra.mxu0 0
    %10568 = vmatprep.subr.bf16.mxu0 0
    %10569 = vmatpush2.bf16.msra.mxu0 0
    %10570 = vmatprep.subr.bf16.mxu0 0
    %10571 = vmatpush2.bf16.msra.mxu0 0
    %10572 = vmatprep.subr.bf16.mxu0 0
    %10573 = vmatpush2.bf16.msra.mxu0 0
    %10574 = vmatprep.mubr.bf16.mxu0 0
    %10575 = vmatmul.mubr.bf16.gmra.mxu0 %v10540
    %v10576 = vpop.f32.mrf.mxu0
    %v10577 = vadd.f32 0.0, %v10576
    %v10578 = vpop.f32.mrf.mxu0
    %v10579 = vadd.f32 0.0, %v10578
    %v10580 = vpop.f32.mrf.mxu0
    %v10581 = vpop.f32.mrf.mxu0
    %10582 = vdwg.mxu0
    %10583 = vmatprep.subr.bf16.mxu0 %v10243
    %10584 = vmatpush1.bf16.msra.mxu0 %v10242
    %10585 = vmatprep.subr.bf16.mxu0 %v10239
    %10586 = vmatpush1.bf16.msra.mxu0 %v10238
    %10587 = vmatprep.subr.bf16.mxu0 %v10235
    %10588 = vmatpush1.bf16.msra.mxu0 %v10234
    %10589 = vmatprep.subr.bf16.mxu0 %v10231
    %10590 = vmatpush1.bf16.msra.mxu0 %v10230
    %10591 = vmatprep.subr.bf16.mxu0 %v10227
    %10592 = vmatpush1.bf16.msra.mxu0 %v10226
    %10593 = vmatprep.subr.bf16.mxu0 %v10223
    %10594 = vmatpush1.bf16.msra.mxu0 %v10222
    %10595 = vmatprep.subr.bf16.mxu0 %v10219
    %10596 = vmatpush1.bf16.msra.mxu0 %v10218
    %10597 = vmatprep.subr.bf16.mxu0 %v10215
    %10598 = vmatpush1.bf16.msra.mxu0 %v10214
    %10599 = vmatprep.subr.bf16.mxu0 0
    %10600 = vmatpush2.bf16.msra.mxu0 0
    %10601 = vmatprep.subr.bf16.mxu0 0
    %10602 = vmatpush2.bf16.msra.mxu0 0
    %10603 = vmatprep.subr.bf16.mxu0 0
    %10604 = vmatpush2.bf16.msra.mxu0 0
    %10605 = vmatprep.subr.bf16.mxu0 0
    %10606 = vmatpush2.bf16.msra.mxu0 0
    %10607 = vmatprep.subr.bf16.mxu0 0
    %10608 = vmatpush2.bf16.msra.mxu0 0
    %10609 = vmatprep.subr.bf16.mxu0 0
    %10610 = vmatpush2.bf16.msra.mxu0 0
    %10611 = vmatprep.subr.bf16.mxu0 0
    %10612 = vmatpush2.bf16.msra.mxu0 0
    %10613 = vmatprep.subr.bf16.mxu0 0
    %10614 = vmatpush2.bf16.msra.mxu0 0
    %10615 = vmatprep.mubr.bf16.mxu0 0
    %10616 = vmatmul.mubr.bf16.gmra.mxu0 %v10540
    %v10617 = vpop.f32.mrf.mxu0
    %v10618 = vadd.f32 0.0, %v10617
    %v10619 = vpop.f32.mrf.mxu0
    %v10620 = vadd.f32 0.0, %v10619
    %v10621 = vpop.f32.mrf.mxu0
    %v10622 = vpop.f32.mrf.mxu0
    %10623 = vdwg.mxu0
    %v10628 = vrot.slane %v10577, 2
    %v10629 = vrot.slane %v10579, 2
    %v10630 = vrot.slane %v10618, 2
    %v10631 = vrot.slane %v10620, 2
    %v10636 = vadd.f32 %v10534, %v10628
    %v10637 = vadd.f32 %v10535, %v10629
    %v10638 = vadd.f32 %v10536, %v10630
    %v10639 = vadd.f32 %v10537, %v10631
    %v10640 = vxor.u32 %v10636, 2147483648
    %v10641 = vmul.f32 %v10640, 1.442695
    %v10642 = vpow.pop %v10641
    %v10643 = vadd.f32 %v10642, 1.0
    %v10644 = vrcp.pop %v10643
    %v10645 = vmul.f32 1.0, %v10644
    %v10646 = vxor.u32 %v10637, 2147483648
    %v10647 = vmul.f32 %v10646, 1.442695
    %v10648 = vpow.pop %v10647
    %v10649 = vadd.f32 %v10648, 1.0
    %v10650 = vrcp.pop %v10649
    %v10651 = vmul.f32 1.0, %v10650
    %v10652 = vtanh.pop %v10638
    %v10653 = vxor.u32 %v10639, 2147483648
    %v10654 = vmul.f32 %v10653, 1.442695
    %v10655 = vpow.pop %v10654
    %v10656 = vadd.f32 %v10655, 1.0
    %v10657 = vrcp.pop %v10656
    %v10658 = vmul.f32 1.0, %v10657
    %v10660 = vrot.slane %v10531, 6
    %v10662 = vmul.f32 %v10651, %v10660
    %v10663 = vmul.f32 %v10645, %v10652
    %v10664 = vadd.f32 %v10662, %v10663
    %v10665 = vtanh.pop %v10664
    %v10666 = vmul.f32 %v10658, %v10665
    %v10667 = vld [vmem:[#allocation4 + $0x40] sm:$0x3]
    %v10668 = vld [vmem:[#allocation4 + $0x48] sm:$0x3]
    %v10669 = vld [vmem:[#allocation4 + $0x50] sm:$0x3]
    %v10670 = vld [vmem:[#allocation4 + $0x58] sm:$0x3]
    %v10671 = vpack.c.bf16 %v10666, %v10666
    %v10673 = vrot.slane %v10671, 3
    %10675 = vmatprep.subr.bf16.mxu0 %v10241
    %10676 = vmatpush1.bf16.msra.mxu0 %v10240
    %10677 = vmatprep.subr.bf16.mxu0 %v10237
    %10678 = vmatpush1.bf16.msra.mxu0 %v10236
    %10679 = vmatprep.subr.bf16.mxu0 %v10233
    %10680 = vmatpush1.bf16.msra.mxu0 %v10232
    %10681 = vmatprep.subr.bf16.mxu0 %v10229
    %10682 = vmatpush1.bf16.msra.mxu0 %v10228
    %10683 = vmatprep.subr.bf16.mxu0 %v10225
    %10684 = vmatpush1.bf16.msra.mxu0 %v10224
    %10685 = vmatprep.subr.bf16.mxu0 %v10221
    %10686 = vmatpush1.bf16.msra.mxu0 %v10220
    %10687 = vmatprep.subr.bf16.mxu0 %v10217
    %10688 = vmatpush1.bf16.msra.mxu0 %v10216
    %10689 = vmatprep.subr.bf16.mxu0 %v10213
    %10690 = vmatpush1.bf16.msra.mxu0 %v10212
    %10691 = vmatprep.subr.bf16.mxu0 0
    %10692 = vmatpush2.bf16.msra.mxu0 0
    %10693 = vmatprep.subr.bf16.mxu0 0
    %10694 = vmatpush2.bf16.msra.mxu0 0
    %10695 = vmatprep.subr.bf16.mxu0 0
    %10696 = vmatpush2.bf16.msra.mxu0 0
    %10697 = vmatprep.subr.bf16.mxu0 0
    %10698 = vmatpush2.bf16.msra.mxu0 0
    %10699 = vmatprep.subr.bf16.mxu0 0
    %10700 = vmatpush2.bf16.msra.mxu0 0
    %10701 = vmatprep.subr.bf16.mxu0 0
    %10702 = vmatpush2.bf16.msra.mxu0 0
    %10703 = vmatprep.subr.bf16.mxu0 0
    %10704 = vmatpush2.bf16.msra.mxu0 0
    %10705 = vmatprep.subr.bf16.mxu0 0
    %10706 = vmatpush2.bf16.msra.mxu0 0
    %10707 = vmatprep.mubr.bf16.mxu0 0
    %10708 = vmatmul.mubr.bf16.gmra.mxu0 %v10673
    %v10709 = vpop.f32.mrf.mxu0
    %v10710 = vadd.f32 0.0, %v10709
    %v10711 = vpop.f32.mrf.mxu0
    %v10712 = vadd.f32 0.0, %v10711
    %v10713 = vpop.f32.mrf.mxu0
    %v10714 = vpop.f32.mrf.mxu0
    %10715 = vdwg.mxu0
    %10716 = vmatprep.subr.bf16.mxu0 %v10243
    %10717 = vmatpush1.bf16.msra.mxu0 %v10242
    %10718 = vmatprep.subr.bf16.mxu0 %v10239
    %10719 = vmatpush1.bf16.msra.mxu0 %v10238
    %10720 = vmatprep.subr.bf16.mxu0 %v10235
    %10721 = vmatpush1.bf16.msra.mxu0 %v10234
    %10722 = vmatprep.subr.bf16.mxu0 %v10231
    %10723 = vmatpush1.bf16.msra.mxu0 %v10230
    %10724 = vmatprep.subr.bf16.mxu0 %v10227
    %10725 = vmatpush1.bf16.msra.mxu0 %v10226
    %10726 = vmatprep.subr.bf16.mxu0 %v10223
    %10727 = vmatpush1.bf16.msra.mxu0 %v10222
    %10728 = vmatprep.subr.bf16.mxu0 %v10219
    %10729 = vmatpush1.bf16.msra.mxu0 %v10218
    %10730 = vmatprep.subr.bf16.mxu0 %v10215
    %10731 = vmatpush1.bf16.msra.mxu0 %v10214
    %10732 = vmatprep.subr.bf16.mxu0 0
    %10733 = vmatpush2.bf16.msra.mxu0 0
    %10734 = vmatprep.subr.bf16.mxu0 0
    %10735 = vmatpush2.bf16.msra.mxu0 0
    %10736 = vmatprep.subr.bf16.mxu0 0
    %10737 = vmatpush2.bf16.msra.mxu0 0
    %10738 = vmatprep.subr.bf16.mxu0 0
    %10739 = vmatpush2.bf16.msra.mxu0 0
    %10740 = vmatprep.subr.bf16.mxu0 0
    %10741 = vmatpush2.bf16.msra.mxu0 0
    %10742 = vmatprep.subr.bf16.mxu0 0
    %10743 = vmatpush2.bf16.msra.mxu0 0
    %10744 = vmatprep.subr.bf16.mxu0 0
    %10745 = vmatpush2.bf16.msra.mxu0 0
    %10746 = vmatprep.subr.bf16.mxu0 0
    %10747 = vmatpush2.bf16.msra.mxu0 0
    %10748 = vmatprep.mubr.bf16.mxu0 0
    %10749 = vmatmul.mubr.bf16.gmra.mxu0 %v10673
    %v10750 = vpop.f32.mrf.mxu0
    %v10751 = vadd.f32 0.0, %v10750
    %v10752 = vpop.f32.mrf.mxu0
    %v10753 = vadd.f32 0.0, %v10752
    %v10754 = vpop.f32.mrf.mxu0
    %v10755 = vpop.f32.mrf.mxu0
    %10756 = vdwg.mxu0
    %v10757 = vadd.f32 %v10667, %v10710
    %v10758 = vadd.f32 %v10668, %v10712
    %v10759 = vadd.f32 %v10669, %v10751
    %v10760 = vadd.f32 %v10670, %v10753
    %v10761 = vxor.u32 %v10757, 2147483648
    %v10762 = vmul.f32 %v10761, 1.442695
    %v10763 = vpow.pop %v10762
    %v10764 = vadd.f32 %v10763, 1.0
    %v10765 = vrcp.pop %v10764
    %v10766 = vmul.f32 1.0, %v10765
    %v10767 = vxor.u32 %v10758, 2147483648
    %v10768 = vmul.f32 %v10767, 1.442695
    %v10769 = vpow.pop %v10768
    %v10770 = vadd.f32 %v10769, 1.0
    %v10771 = vrcp.pop %v10770
    %v10772 = vmul.f32 1.0, %v10771
    %v10773 = vtanh.pop %v10759
    %v10774 = vxor.u32 %v10760, 2147483648
    %v10775 = vmul.f32 %v10774, 1.442695
    %v10776 = vpow.pop %v10775
    %v10777 = vadd.f32 %v10776, 1.0
    %v10778 = vrcp.pop %v10777
    %v10779 = vmul.f32 1.0, %v10778
    %v10781 = vrot.slane %v10664, 6
    %v10783 = vmul.f32 %v10772, %v10781
    %v10784 = vmul.f32 %v10766, %v10773
    %v10785 = vadd.f32 %v10783, %v10784
    %v10786 = vtanh.pop %v10785
    %v10787 = vmul.f32 %v10779, %v10786
    %v10788 = vld [vmem:[#allocation4 + $0x40] sm:$0xc]
    %v10789 = vld [vmem:[#allocation4 + $0x48] sm:$0xc]
    %v10790 = vld [vmem:[#allocation4 + $0x50] sm:$0xc]
    %v10791 = vld [vmem:[#allocation4 + $0x58] sm:$0xc]
    %v10792 = vpack.c.bf16 %v10787, %v10787
    %10793 = vmatprep.subr.bf16.mxu0 %v10241
    %10794 = vmatpush1.bf16.msra.mxu0 %v10240
    %10795 = vmatprep.subr.bf16.mxu0 %v10237
    %10796 = vmatpush1.bf16.msra.mxu0 %v10236
    %10797 = vmatprep.subr.bf16.mxu0 %v10233
    %10798 = vmatpush1.bf16.msra.mxu0 %v10232
    %10799 = vmatprep.subr.bf16.mxu0 %v10229
    %10800 = vmatpush1.bf16.msra.mxu0 %v10228
    %10801 = vmatprep.subr.bf16.mxu0 %v10225
    %10802 = vmatpush1.bf16.msra.mxu0 %v10224
    %10803 = vmatprep.subr.bf16.mxu0 %v10221
    %10804 = vmatpush1.bf16.msra.mxu0 %v10220
    %10805 = vmatprep.subr.bf16.mxu0 %v10217
    %10806 = vmatpush1.bf16.msra.mxu0 %v10216
    %10807 = vmatprep.subr.bf16.mxu0 %v10213
    %10808 = vmatpush1.bf16.msra.mxu0 %v10212
    %10809 = vmatprep.subr.bf16.mxu0 0
    %10810 = vmatpush2.bf16.msra.mxu0 0
    %10811 = vmatprep.subr.bf16.mxu0 0
    %10812 = vmatpush2.bf16.msra.mxu0 0
    %10813 = vmatprep.subr.bf16.mxu0 0
    %10814 = vmatpush2.bf16.msra.mxu0 0
    %10815 = vmatprep.subr.bf16.mxu0 0
    %10816 = vmatpush2.bf16.msra.mxu0 0
    %10817 = vmatprep.subr.bf16.mxu0 0
    %10818 = vmatpush2.bf16.msra.mxu0 0
    %10819 = vmatprep.subr.bf16.mxu0 0
    %10820 = vmatpush2.bf16.msra.mxu0 0
    %10821 = vmatprep.subr.bf16.mxu0 0
    %10822 = vmatpush2.bf16.msra.mxu0 0
    %10823 = vmatprep.subr.bf16.mxu0 0
    %10824 = vmatpush2.bf16.msra.mxu0 0
    %10825 = vmatprep.mubr.bf16.mxu0 0
    %10826 = vmatmul.mubr.bf16.gmra.mxu0 %v10792
    %v10827 = vpop.f32.mrf.mxu0
    %v10828 = vadd.f32 0.0, %v10827
    %v10829 = vpop.f32.mrf.mxu0
    %v10830 = vadd.f32 0.0, %v10829
    %v10831 = vpop.f32.mrf.mxu0
    %v10832 = vpop.f32.mrf.mxu0
    %10833 = vdwg.mxu0
    %10834 = vmatprep.subr.bf16.mxu0 %v10243
    %10835 = vmatpush1.bf16.msra.mxu0 %v10242
    %10836 = vmatprep.subr.bf16.mxu0 %v10239
    %10837 = vmatpush1.bf16.msra.mxu0 %v10238
    %10838 = vmatprep.subr.bf16.mxu0 %v10235
    %10839 = vmatpush1.bf16.msra.mxu0 %v10234
    %10840 = vmatprep.subr.bf16.mxu0 %v10231
    %10841 = vmatpush1.bf16.msra.mxu0 %v10230
    %10842 = vmatprep.subr.bf16.mxu0 %v10227
    %10843 = vmatpush1.bf16.msra.mxu0 %v10226
    %10844 = vmatprep.subr.bf16.mxu0 %v10223
    %10845 = vmatpush1.bf16.msra.mxu0 %v10222
    %10846 = vmatprep.subr.bf16.mxu0 %v10219
    %10847 = vmatpush1.bf16.msra.mxu0 %v10218
    %10848 = vmatprep.subr.bf16.mxu0 %v10215
    %10849 = vmatpush1.bf16.msra.mxu0 %v10214
    %10850 = vmatprep.subr.bf16.mxu0 0
    %10851 = vmatpush2.bf16.msra.mxu0 0
    %10852 = vmatprep.subr.bf16.mxu0 0
    %10853 = vmatpush2.bf16.msra.mxu0 0
    %10854 = vmatprep.subr.bf16.mxu0 0
    %10855 = vmatpush2.bf16.msra.mxu0 0
    %10856 = vmatprep.subr.bf16.mxu0 0
    %10857 = vmatpush2.bf16.msra.mxu0 0
    %10858 = vmatprep.subr.bf16.mxu0 0
    %10859 = vmatpush2.bf16.msra.mxu0 0
    %10860 = vmatprep.subr.bf16.mxu0 0
    %10861 = vmatpush2.bf16.msra.mxu0 0
    %10862 = vmatprep.subr.bf16.mxu0 0
    %10863 = vmatpush2.bf16.msra.mxu0 0
    %10864 = vmatprep.subr.bf16.mxu0 0
    %10865 = vmatpush2.bf16.msra.mxu0 0
    %10866 = vmatprep.mubr.bf16.mxu0 0
    %10867 = vmatmul.mubr.bf16.gmra.mxu0 %v10792
    %v10868 = vpop.f32.mrf.mxu0
    %v10869 = vadd.f32 0.0, %v10868
    %v10870 = vpop.f32.mrf.mxu0
    %v10871 = vadd.f32 0.0, %v10870
    %v10872 = vpop.f32.mrf.mxu0
    %v10873 = vpop.f32.mrf.mxu0
    %10874 = vdwg.mxu0
    %v10879 = vrot.slane %v10828, 6
    %v10880 = vrot.slane %v10830, 6
    %v10881 = vrot.slane %v10869, 6
    %v10882 = vrot.slane %v10871, 6
    %v10887 = vadd.f32 %v10788, %v10879
    %v10888 = vadd.f32 %v10789, %v10880
    %v10889 = vadd.f32 %v10790, %v10881
    %v10890 = vadd.f32 %v10791, %v10882
    %v10891 = vxor.u32 %v10887, 2147483648
    %v10892 = vmul.f32 %v10891, 1.442695
    %v10893 = vpow.pop %v10892
    %v10894 = vadd.f32 %v10893, 1.0
    %v10895 = vrcp.pop %v10894
    %v10896 = vmul.f32 1.0, %v10895
    %v10897 = vxor.u32 %v10888, 2147483648
    %v10898 = vmul.f32 %v10897, 1.442695
    %v10899 = vpow.pop %v10898
    %v10900 = vadd.f32 %v10899, 1.0
    %v10901 = vrcp.pop %v10900
    %v10902 = vmul.f32 1.0, %v10901
    %v10903 = vtanh.pop %v10889
    %v10904 = vxor.u32 %v10890, 2147483648
    %v10905 = vmul.f32 %v10904, 1.442695
    %v10906 = vpow.pop %v10905
    %v10907 = vadd.f32 %v10906, 1.0
    %v10908 = vrcp.pop %v10907
    %v10909 = vmul.f32 1.0, %v10908
    %v10911 = vrot.slane %v10785, 6
    %v10913 = vmul.f32 %v10902, %v10911
    %v10914 = vmul.f32 %v10896, %v10903
    %v10915 = vadd.f32 %v10913, %v10914
    %v10916 = vtanh.pop %v10915
    %v10917 = vmul.f32 %v10909, %v10916
    %v10918 = vld [vmem:[#allocation4 + $0x40] sm:$0x30]
    %v10919 = vld [vmem:[#allocation4 + $0x48] sm:$0x30]
    %v10920 = vld [vmem:[#allocation4 + $0x50] sm:$0x30]
    %v10921 = vld [vmem:[#allocation4 + $0x58] sm:$0x30]
    %v10922 = vpack.c.bf16 %v10917, %v10917
    %v10924 = vrot.slane %v10922, 1
    %10926 = vmatprep.subr.bf16.mxu0 %v10241
    %10927 = vmatpush1.bf16.msra.mxu0 %v10240
    %10928 = vmatprep.subr.bf16.mxu0 %v10237
    %10929 = vmatpush1.bf16.msra.mxu0 %v10236
    %10930 = vmatprep.subr.bf16.mxu0 %v10233
    %10931 = vmatpush1.bf16.msra.mxu0 %v10232
    %10932 = vmatprep.subr.bf16.mxu0 %v10229
    %10933 = vmatpush1.bf16.msra.mxu0 %v10228
    %10934 = vmatprep.subr.bf16.mxu0 %v10225
    %10935 = vmatpush1.bf16.msra.mxu0 %v10224
    %10936 = vmatprep.subr.bf16.mxu0 %v10221
    %10937 = vmatpush1.bf16.msra.mxu0 %v10220
    %10938 = vmatprep.subr.bf16.mxu0 %v10217
    %10939 = vmatpush1.bf16.msra.mxu0 %v10216
    %10940 = vmatprep.subr.bf16.mxu0 %v10213
    %10941 = vmatpush1.bf16.msra.mxu0 %v10212
    %10942 = vmatprep.subr.bf16.mxu0 0
    %10943 = vmatpush2.bf16.msra.mxu0 0
    %10944 = vmatprep.subr.bf16.mxu0 0
    %10945 = vmatpush2.bf16.msra.mxu0 0
    %10946 = vmatprep.subr.bf16.mxu0 0
    %10947 = vmatpush2.bf16.msra.mxu0 0
    %10948 = vmatprep.subr.bf16.mxu0 0
    %10949 = vmatpush2.bf16.msra.mxu0 0
    %10950 = vmatprep.subr.bf16.mxu0 0
    %10951 = vmatpush2.bf16.msra.mxu0 0
    %10952 = vmatprep.subr.bf16.mxu0 0
    %10953 = vmatpush2.bf16.msra.mxu0 0
    %10954 = vmatprep.subr.bf16.mxu0 0
    %10955 = vmatpush2.bf16.msra.mxu0 0
    %10956 = vmatprep.subr.bf16.mxu0 0
    %10957 = vmatpush2.bf16.msra.mxu0 0
    %10958 = vmatprep.mubr.bf16.mxu0 0
    %10959 = vmatmul.mubr.bf16.gmra.mxu0 %v10924
    %v10960 = vpop.f32.mrf.mxu0
    %v10961 = vadd.f32 0.0, %v10960
    %v10962 = vpop.f32.mrf.mxu0
    %v10963 = vadd.f32 0.0, %v10962
    %v10964 = vpop.f32.mrf.mxu0
    %v10965 = vpop.f32.mrf.mxu0
    %10966 = vdwg.mxu0
    %10967 = vmatprep.subr.bf16.mxu0 %v10243
    %10968 = vmatpush1.bf16.msra.mxu0 %v10242
    %10969 = vmatprep.subr.bf16.mxu0 %v10239
    %10970 = vmatpush1.bf16.msra.mxu0 %v10238
    %10971 = vmatprep.subr.bf16.mxu0 %v10235
    %10972 = vmatpush1.bf16.msra.mxu0 %v10234
    %10973 = vmatprep.subr.bf16.mxu0 %v10231
    %10974 = vmatpush1.bf16.msra.mxu0 %v10230
    %10975 = vmatprep.subr.bf16.mxu0 %v10227
    %10976 = vmatpush1.bf16.msra.mxu0 %v10226
    %10977 = vmatprep.subr.bf16.mxu0 %v10223
    %10978 = vmatpush1.bf16.msra.mxu0 %v10222
    %10979 = vmatprep.subr.bf16.mxu0 %v10219
    %10980 = vmatpush1.bf16.msra.mxu0 %v10218
    %10981 = vmatprep.subr.bf16.mxu0 %v10215
    %10982 = vmatpush1.bf16.msra.mxu0 %v10214
    %10983 = vmatprep.subr.bf16.mxu0 0
    %10984 = vmatpush2.bf16.msra.mxu0 0
    %10985 = vmatprep.subr.bf16.mxu0 0
    %10986 = vmatpush2.bf16.msra.mxu0 0
    %10987 = vmatprep.subr.bf16.mxu0 0
    %10988 = vmatpush2.bf16.msra.mxu0 0
    %10989 = vmatprep.subr.bf16.mxu0 0
    %10990 = vmatpush2.bf16.msra.mxu0 0
    %10991 = vmatprep.subr.bf16.mxu0 0
    %10992 = vmatpush2.bf16.msra.mxu0 0
    %10993 = vmatprep.subr.bf16.mxu0 0
    %10994 = vmatpush2.bf16.msra.mxu0 0
    %10995 = vmatprep.subr.bf16.mxu0 0
    %10996 = vmatpush2.bf16.msra.mxu0 0
    %10997 = vmatprep.subr.bf16.mxu0 0
    %10998 = vmatpush2.bf16.msra.mxu0 0
    %10999 = vmatprep.mubr.bf16.mxu0 0
    %11000 = vmatmul.mubr.bf16.gmra.mxu0 %v10924
    %v11001 = vpop.f32.mrf.mxu0
    %v11002 = vadd.f32 0.0, %v11001
    %v11003 = vpop.f32.mrf.mxu0
    %v11004 = vadd.f32 0.0, %v11003
    %v11005 = vpop.f32.mrf.mxu0
    %v11006 = vpop.f32.mrf.mxu0
    %11007 = vdwg.mxu0
    %v11012 = vrot.slane %v10961, 4
    %v11013 = vrot.slane %v10963, 4
    %v11014 = vrot.slane %v11002, 4
    %v11015 = vrot.slane %v11004, 4
    %v11020 = vadd.f32 %v10918, %v11012
    %v11021 = vadd.f32 %v10919, %v11013
    %v11022 = vadd.f32 %v10920, %v11014
    %v11023 = vadd.f32 %v10921, %v11015
    %v11024 = vxor.u32 %v11020, 2147483648
    %v11025 = vmul.f32 %v11024, 1.442695
    %v11026 = vpow.pop %v11025
    %v11027 = vadd.f32 %v11026, 1.0
    %v11028 = vrcp.pop %v11027
    %v11029 = vmul.f32 1.0, %v11028
    %v11030 = vxor.u32 %v11021, 2147483648
    %v11031 = vmul.f32 %v11030, 1.442695
    %v11032 = vpow.pop %v11031
    %v11033 = vadd.f32 %v11032, 1.0
    %v11034 = vrcp.pop %v11033
    %v11035 = vmul.f32 1.0, %v11034
    %v11036 = vtanh.pop %v11022
    %v11037 = vxor.u32 %v11023, 2147483648
    %v11038 = vmul.f32 %v11037, 1.442695
    %v11039 = vpow.pop %v11038
    %v11040 = vadd.f32 %v11039, 1.0
    %v11041 = vrcp.pop %v11040
    %v11042 = vmul.f32 1.0, %v11041
    %v11044 = vrot.slane %v10915, 6
    %v11046 = vmul.f32 %v11035, %v11044
    %v11047 = vmul.f32 %v11029, %v11036
    %v11048 = vadd.f32 %v11046, %v11047
    %v11049 = vtanh.pop %v11048
    %v11050 = vmul.f32 %v11042, %v11049
    %v11051 = vld [vmem:[#allocation4 + $0x40] sm:$0xc0]
    %v11052 = vld [vmem:[#allocation4 + $0x48] sm:$0xc0]
    %v11053 = vld [vmem:[#allocation4 + $0x50] sm:$0xc0]
    %v11054 = vld [vmem:[#allocation4 + $0x58] sm:$0xc0]
    %v11055 = vld [vmem:[#allocation4 + $0x60] sm:$0xc0]
    %v11056 = vld [vmem:[#allocation4 + $0x68] sm:$0xc0]
    %v11057 = vld [vmem:[#allocation4 + $0x70] sm:$0xc0]
    %v11058 = vld [vmem:[#allocation4 + $0x78] sm:$0xc0]
    %v11059 = vpack.c.bf16 %v11050, %v11050
    %v11061 = vrot.slane %v11059, 2
    %11063 = vmatprep.subr.bf16.mxu0 %v10241
    %11064 = vmatpush1.bf16.msra.mxu0 %v10240
    %11065 = vmatprep.subr.bf16.mxu0 %v10237
    %11066 = vmatpush1.bf16.msra.mxu0 %v10236
    %11067 = vmatprep.subr.bf16.mxu0 %v10233
    %11068 = vmatpush1.bf16.msra.mxu0 %v10232
    %11069 = vmatprep.subr.bf16.mxu0 %v10229
    %11070 = vmatpush1.bf16.msra.mxu0 %v10228
    %11071 = vmatprep.subr.bf16.mxu0 %v10225
    %11072 = vmatpush1.bf16.msra.mxu0 %v10224
    %11073 = vmatprep.subr.bf16.mxu0 %v10221
    %11074 = vmatpush1.bf16.msra.mxu0 %v10220
    %11075 = vmatprep.subr.bf16.mxu0 %v10217
    %11076 = vmatpush1.bf16.msra.mxu0 %v10216
    %11077 = vmatprep.subr.bf16.mxu0 %v10213
    %11078 = vmatpush1.bf16.msra.mxu0 %v10212
    %11079 = vmatprep.subr.bf16.mxu0 0
    %11080 = vmatpush2.bf16.msra.mxu0 0
    %11081 = vmatprep.subr.bf16.mxu0 0
    %11082 = vmatpush2.bf16.msra.mxu0 0
    %11083 = vmatprep.subr.bf16.mxu0 0
    %11084 = vmatpush2.bf16.msra.mxu0 0
    %11085 = vmatprep.subr.bf16.mxu0 0
    %11086 = vmatpush2.bf16.msra.mxu0 0
    %11087 = vmatprep.subr.bf16.mxu0 0
    %11088 = vmatpush2.bf16.msra.mxu0 0
    %11089 = vmatprep.subr.bf16.mxu0 0
    %11090 = vmatpush2.bf16.msra.mxu0 0
    %11091 = vmatprep.subr.bf16.mxu0 0
    %11092 = vmatpush2.bf16.msra.mxu0 0
    %11093 = vmatprep.subr.bf16.mxu0 0
    %11094 = vmatpush2.bf16.msra.mxu0 0
    %11095 = vmatprep.mubr.bf16.mxu0 0
    %11096 = vmatmul.mubr.bf16.gmra.mxu0 %v11061
    %v11097 = vpop.f32.mrf.mxu0
    %v11098 = vadd.f32 0.0, %v11097
    %v11099 = vpop.f32.mrf.mxu0
    %v11100 = vadd.f32 0.0, %v11099
    %v11101 = vpop.f32.mrf.mxu0
    %v11102 = vpop.f32.mrf.mxu0
    %11103 = vdwg.mxu0
    %11104 = vmatprep.subr.bf16.mxu0 %v10243
    %11105 = vmatpush1.bf16.msra.mxu0 %v10242
    %11106 = vmatprep.subr.bf16.mxu0 %v10239
    %11107 = vmatpush1.bf16.msra.mxu0 %v10238
    %11108 = vmatprep.subr.bf16.mxu0 %v10235
    %11109 = vmatpush1.bf16.msra.mxu0 %v10234
    %11110 = vmatprep.subr.bf16.mxu0 %v10231
    %11111 = vmatpush1.bf16.msra.mxu0 %v10230
    %11112 = vmatprep.subr.bf16.mxu0 %v10227
    %11113 = vmatpush1.bf16.msra.mxu0 %v10226
    %11114 = vmatprep.subr.bf16.mxu0 %v10223
    %11115 = vmatpush1.bf16.msra.mxu0 %v10222
    %11116 = vmatprep.subr.bf16.mxu0 %v10219
    %11117 = vmatpush1.bf16.msra.mxu0 %v10218
    %11118 = vmatprep.subr.bf16.mxu0 %v10215
    %11119 = vmatpush1.bf16.msra.mxu0 %v10214
    %11120 = vmatprep.subr.bf16.mxu0 0
    %11121 = vmatpush2.bf16.msra.mxu0 0
    %11122 = vmatprep.subr.bf16.mxu0 0
    %11123 = vmatpush2.bf16.msra.mxu0 0
    %11124 = vmatprep.subr.bf16.mxu0 0
    %11125 = vmatpush2.bf16.msra.mxu0 0
    %11126 = vmatprep.subr.bf16.mxu0 0
    %11127 = vmatpush2.bf16.msra.mxu0 0
    %11128 = vmatprep.subr.bf16.mxu0 0
    %11129 = vmatpush2.bf16.msra.mxu0 0
    %11130 = vmatprep.subr.bf16.mxu0 0
    %11131 = vmatpush2.bf16.msra.mxu0 0
    %11132 = vmatprep.subr.bf16.mxu0 0
    %11133 = vmatpush2.bf16.msra.mxu0 0
    %11134 = vmatprep.subr.bf16.mxu0 0
    %11135 = vmatpush2.bf16.msra.mxu0 0
    %11136 = vmatprep.mubr.bf16.mxu0 0
    %11137 = vmatmul.mubr.bf16.gmra.mxu0 %v11061
    %v11138 = vpop.f32.mrf.mxu0
    %v11139 = vadd.f32 0.0, %v11138
    %v11140 = vpop.f32.mrf.mxu0
    %v11141 = vadd.f32 0.0, %v11140
    %v11142 = vpop.f32.mrf.mxu0
    %v11143 = vpop.f32.mrf.mxu0
    %11144 = vdwg.mxu0
    %v11149 = vrot.slane %v11098, 2
    %v11150 = vrot.slane %v11100, 2
    %v11151 = vrot.slane %v11139, 2
    %v11152 = vrot.slane %v11141, 2
    %v11157 = vadd.f32 %v11051, %v11149
    %v11158 = vadd.f32 %v11052, %v11150
    %v11159 = vadd.f32 %v11053, %v11151
    %v11160 = vadd.f32 %v11054, %v11152
    %v11165 = vrot.slane %v11157, 6
    %v11166 = vrot.slane %v11158, 6
    %v11167 = vrot.slane %v11159, 6
    %v11168 = vrot.slane %v11160, 6
    %v11177 = vrot.slane %v11055, 4
    %v11178 = vrot.slane %v11056, 4
    %v11179 = vrot.slane %v11057, 4
    %v11180 = vrot.slane %v11058, 4
    %v11185 = vsel %vm1386, %v11165, %v11177
    %v11186 = vsel %vm1386, %v11166, %v11178
    %v11187 = vsel %vm1386, %v11167, %v11179
    %v11188 = vsel %vm1386, %v11168, %v11180
    %v11190 = vrot.slane %v11048, 4
    %v11192 = vsel %vm1386, %v11190, 0.0
    %v11193 = vxor.u32 %v11185, 2147483648
    %v11194 = vmul.f32 %v11193, 1.442695
    %v11195 = vpow.pop %v11194
    %v11196 = vadd.f32 %v11195, 1.0
    %v11197 = vrcp.pop %v11196
    %v11198 = vmul.f32 1.0, %v11197
    %v11199 = vxor.u32 %v11186, 2147483648
    %v11200 = vmul.f32 %v11199, 1.442695
    %v11201 = vpow.pop %v11200
    %v11202 = vadd.f32 %v11201, 1.0
    %v11203 = vrcp.pop %v11202
    %v11204 = vmul.f32 1.0, %v11203
    %v11205 = vtanh.pop %v11187
    %v11206 = vxor.u32 %v11188, 2147483648
    %v11207 = vmul.f32 %v11206, 1.442695
    %v11208 = vpow.pop %v11207
    %v11209 = vadd.f32 %v11208, 1.0
    %v11210 = vrcp.pop %v11209
    %v11211 = vmul.f32 1.0, %v11210
    %v11212 = vmul.f32 %v11204, %v11192
    %v11213 = vmul.f32 %v11198, %v11205
    %v11214 = vadd.f32 %v11212, %v11213
    %v11215 = vtanh.pop %v11214
    %v11216 = vmul.f32 %v11211, %v11215
    %v11218 = vrot.slane %v11216, 2
    %s11220 = smul.u32 4, 32
    %s11221 = smul.u32 %s11220, 1
    %s11222 = sshll.u32 %s11221, 4
    %11223 = dma.done %s103, %s11222
    %v11224 = vpack.c.bf16 %v11216, %v11216
    %v11225 = vpack.c.bf16 %v11218, %v11218
    %v11226 = vld [vmem:[#allocation7] sm:$0xf]
    %v11227 = vld [vmem:[#allocation7 + $0x4] sm:$0xf]
    %v11228 = vld [vmem:[#allocation7 + $0x8] sm:$0xf]
    %v11229 = vld [vmem:[#allocation7 + $0xc] sm:$0xf]
    %v11230 = vld [vmem:[#allocation7 + $0x10] sm:$0xf]
    %v11231 = vld [vmem:[#allocation7 + $0x14] sm:$0xf]
    %v11232 = vld [vmem:[#allocation7 + $0x18] sm:$0xf]
    %v11233 = vld [vmem:[#allocation7 + $0x1c] sm:$0xf]
    %v11234 = vld [vmem:[#allocation7 + $0x20] sm:$0xf]
    %v11235 = vld [vmem:[#allocation7 + $0x24] sm:$0xf]
    %v11236 = vld [vmem:[#allocation7 + $0x28] sm:$0xf]
    %v11237 = vld [vmem:[#allocation7 + $0x2c] sm:$0xf]
    %v11238 = vld [vmem:[#allocation7 + $0x30] sm:$0xf]
    %v11239 = vld [vmem:[#allocation7 + $0x34] sm:$0xf]
    %v11240 = vld [vmem:[#allocation7 + $0x38] sm:$0xf]
    %v11241 = vld [vmem:[#allocation7 + $0x3c] sm:$0xf]
    %v11242 = vld [vmem:[#allocation7 + $0x40] sm:$0xf]
    %v11243 = vld [vmem:[#allocation7 + $0x44] sm:$0xf]
    %v11244 = vld [vmem:[#allocation7 + $0x48] sm:$0xf]
    %v11245 = vld [vmem:[#allocation7 + $0x4c] sm:$0xf]
    %v11246 = vld [vmem:[#allocation7 + $0x50] sm:$0xf]
    %v11247 = vld [vmem:[#allocation7 + $0x54] sm:$0xf]
    %v11248 = vld [vmem:[#allocation7 + $0x58] sm:$0xf]
    %v11249 = vld [vmem:[#allocation7 + $0x5c] sm:$0xf]
    %v11250 = vld [vmem:[#allocation7 + $0x60] sm:$0xf]
    %v11251 = vld [vmem:[#allocation7 + $0x64] sm:$0xf]
    %v11252 = vld [vmem:[#allocation7 + $0x68] sm:$0xf]
    %v11253 = vld [vmem:[#allocation7 + $0x6c] sm:$0xf]
    %v11254 = vld [vmem:[#allocation7 + $0x70] sm:$0xf]
    %v11255 = vld [vmem:[#allocation7 + $0x74] sm:$0xf]
    %v11256 = vld [vmem:[#allocation7 + $0x78] sm:$0xf]
    %v11257 = vld [vmem:[#allocation7 + $0x7c] sm:$0xf]
    %v11258 = vld [vmem:[%s9] sm:$0x1]
    %v11260 = vlaneseq
    %v11261 = vshrl.u32 %v11260, 7
    %v11262 = vsub.s32 0, %v11261
    %v11263 = vrot.slane %v11258, %v11262
    %v11297 = vunpack.c.l.b16 %v11226
    %v11298 = vunpack.c.l.b16 %v11227
    %v11299 = vunpack.c.l.b16 %v11228
    %v11300 = vunpack.c.l.b16 %v11229
    %v11301 = vunpack.c.l.b16 %v11230
    %v11302 = vunpack.c.l.b16 %v11231
    %v11303 = vunpack.c.l.b16 %v11232
    %v11304 = vunpack.c.l.b16 %v11233
    %v11305 = vunpack.c.l.b16 %v11234
    %v11306 = vunpack.c.l.b16 %v11235
    %v11307 = vunpack.c.l.b16 %v11236
    %v11308 = vunpack.c.l.b16 %v11237
    %v11309 = vunpack.c.l.b16 %v11238
    %v11310 = vunpack.c.l.b16 %v11239
    %v11311 = vunpack.c.l.b16 %v11240
    %v11312 = vunpack.c.l.b16 %v11241
    %v11313 = vunpack.c.l.b16 %v11242
    %v11314 = vunpack.c.l.b16 %v11243
    %v11315 = vunpack.c.l.b16 %v11244
    %v11316 = vunpack.c.l.b16 %v11245
    %v11317 = vunpack.c.l.b16 %v11246
    %v11318 = vunpack.c.l.b16 %v11247
    %v11319 = vunpack.c.l.b16 %v11248
    %v11320 = vunpack.c.l.b16 %v11249
    %v11321 = vunpack.c.l.b16 %v11250
    %v11322 = vunpack.c.l.b16 %v11251
    %v11323 = vunpack.c.l.b16 %v11252
    %v11324 = vunpack.c.l.b16 %v11253
    %v11325 = vunpack.c.l.b16 %v11254
    %v11326 = vunpack.c.l.b16 %v11255
    %v11327 = vunpack.c.l.b16 %v11256
    %v11328 = vunpack.c.l.b16 %v11257
    %v11329 = vpack.c.b16 %v11298, %v11297
    %v11330 = vpack.c.b16 %v11300, %v11299
    %v11331 = vpack.c.b16 %v11302, %v11301
    %v11332 = vpack.c.b16 %v11304, %v11303
    %v11333 = vpack.c.b16 %v11306, %v11305
    %v11334 = vpack.c.b16 %v11308, %v11307
    %v11335 = vpack.c.b16 %v11310, %v11309
    %v11336 = vpack.c.b16 %v11312, %v11311
    %v11337 = vpack.c.b16 %v11314, %v11313
    %v11338 = vpack.c.b16 %v11316, %v11315
    %v11339 = vpack.c.b16 %v11318, %v11317
    %v11340 = vpack.c.b16 %v11320, %v11319
    %v11341 = vpack.c.b16 %v11322, %v11321
    %v11342 = vpack.c.b16 %v11324, %v11323
    %v11343 = vpack.c.b16 %v11326, %v11325
    %v11344 = vpack.c.b16 %v11328, %v11327
    %11361 = vmatprep.subr.bf16.mxu0 0
    %11362 = vmatpush1.bf16.msra.mxu0 %v11336
    %11363 = vmatprep.subr.bf16.mxu0 0
    %11364 = vmatpush1.bf16.msra.mxu0 %v11335
    %11365 = vmatprep.subr.bf16.mxu0 0
    %11366 = vmatpush1.bf16.msra.mxu0 %v11334
    %11367 = vmatprep.subr.bf16.mxu0 0
    %11368 = vmatpush1.bf16.msra.mxu0 %v11333
    %11369 = vmatprep.subr.bf16.mxu0 0
    %11370 = vmatpush1.bf16.msra.mxu0 %v11332
    %11371 = vmatprep.subr.bf16.mxu0 0
    %11372 = vmatpush1.bf16.msra.mxu0 %v11331
    %11373 = vmatprep.subr.bf16.mxu0 0
    %11374 = vmatpush1.bf16.msra.mxu0 %v11330
    %11375 = vmatprep.subr.bf16.mxu0 0
    %11376 = vmatpush1.bf16.msra.mxu0 %v11329
    %11377 = vmatprep.subr.bf16.mxu0 0
    %11378 = vmatpush2.bf16.msra.mxu0 %v11344
    %11379 = vmatprep.subr.bf16.mxu0 0
    %11380 = vmatpush2.bf16.msra.mxu0 %v11343
    %11381 = vmatprep.subr.bf16.mxu0 0
    %11382 = vmatpush2.bf16.msra.mxu0 %v11342
    %11383 = vmatprep.subr.bf16.mxu0 0
    %11384 = vmatpush2.bf16.msra.mxu0 %v11341
    %11385 = vmatprep.subr.bf16.mxu0 0
    %11386 = vmatpush2.bf16.msra.mxu0 %v11340
    %11387 = vmatprep.subr.bf16.mxu0 0
    %11388 = vmatpush2.bf16.msra.mxu0 %v11339
    %11389 = vmatprep.subr.bf16.mxu0 0
    %11390 = vmatpush2.bf16.msra.mxu0 %v11338
    %11391 = vmatprep.subr.bf16.mxu0 0
    %11392 = vmatpush2.bf16.msra.mxu0 %v11337
    %11393 = vmatprep.mubr.bf16.mxu0 %v11225
    %11394 = vmatmul.mubr.bf16.gmra.mxu0 %v11224
    %v11395 = vpop.f32.mrf.mxu0
    %v11396 = vadd.f32 %v11263, %v11395
    %v11397 = vpop.f32.mrf.mxu0
    %v11398 = vpop.f32.mrf.mxu0
    %v11399 = vpop.f32.mrf.mxu0
    %11400 = vdwg.mxu0
    %v11401 = vtanh.pop %v11396
    %v11402 = vld [vmem:[%s10] sm:$0x1]
    %v11404 = vlaneseq
    %v11405 = vshrl.u32 %v11404, 7
    %v11406 = vsub.s32 0, %v11405
    %v11407 = vrot.slane %v11402, %v11406
    %v11409 = vmul.f32 %v11401, %v11407
    %v11410 = vsel %vm1386, %v11409, 0.0
    %11411 = vadd.xlane.f32.xlu0 %v11410
    %v11412 = vpop.xlane.xlu0 %11411
    %v11413 = vld [vmem:[#allocation9] sm:$0x1]
    %v11415 = vlaneseq
    %v11416 = vshrl.u32 %v11415, 7
    %v11417 = vsub.s32 0, %v11416
    %v11418 = vrot.slane %v11413, %v11417
    %v11420 = vadd.f32 %v11412, %v11418
    %vm11421 = vcmask 1024
    %v11422 = vsel %vm11421, %v11420, -inf
    %v11423 = vrot.slane %v11422, 4
    %v11424 = vmax.f32 %v11422, %v11423
    %v11425 = vrot.slane %v11424, 2
    %v11426 = vmax.f32 %v11424, %v11425
    %v11427 = vrot.slane %v11426, 1
    %v11428 = vmax.f32 %v11426, %v11427
    %v11429 = vsub.f32 %v11420, %v11428
    %v11430 = vmul.f32 %v11429, 1.442695
    %v11431 = vpow.pop %v11430
    %v11432 = vsel %vm11421, %v11431, 0.0
    %v11433 = vrot.slane %v11432, 4
    %v11434 = vadd.f32 %v11432, %v11433
    %v11435 = vrot.slane %v11434, 2
    %v11436 = vadd.f32 %v11434, %v11435
    %v11437 = vrot.slane %v11436, 1
    %v11438 = vadd.f32 %v11436, %v11437
    %v11439 = vrcp.pop %v11438
    %v11440 = vmul.f32 %v11431, %v11439
    %11442 = vset.pattern.permute.xlu0 0
    %11443 = vperm.xlu0 %11442, %v11440
    %v11444 = vpop.permute.xlu0 %11443
    %v11446 = vmul.f32 %v11444, %v11216
    %v11447 = vmul.f32 %v11444, %v11218
    %v11448 = vsel %vm1386, %v11446, 0.0
    %v11449 = vrot.slane %v11448, 4
    %v11450 = vadd.f32 %v11448, %v11449
    %v11451 = vrot.slane %v11450, 2
    %v11452 = vadd.f32 %v11450, %v11451
    %v11453 = vrot.slane %v11452, 1
    %v11454 = vadd.f32 %v11452, %v11453
    %v11455 = vsel %vm1386, %v11447, 0.0
    %v11456 = vrot.slane %v11455, 4
    %v11457 = vadd.f32 %v11455, %v11456
    %v11458 = vrot.slane %v11457, 2
    %v11459 = vadd.f32 %v11457, %v11458
    %v11460 = vrot.slane %v11459, 1
    %v11461 = vadd.f32 %v11459, %v11460
    %v11464 = vcombine.low %v11454, %v11461
    %v11466 = vunpack.c.l.s4 1966171168
    %v11467 = vunpack.c.0.s8 %v11466
    %v11468 = vlaneseq
    %v11469 = vshrl.u32 %v11468, 7
    %v11470 = vsub.s32 %v11467, %v11469
    %v11471 = vrot.slane %v11464, %v11470
    %v11473 = vunpack.c.l.s4 1966171168
    %v11474 = vunpack.c.0.s8 %v11473
    %v11475 = vlaneseq
    %v11476 = vshrl.u32 %v11475, 7
    %v11477 = vsub.s32 %v11474, %v11476
    %v11478 = vrot.slane %v11471, %v11477
    %v11480 = vlaneseq
    %vm11481 = vcmp.ge.s32.totalorder %v11480, 0
    %vm11482 = vcmp.lt.s32.totalorder %v11480, 256
    %vm11483 = vmand %vm11481, %vm11482
    %11484 = vst.msk [vmem:[#allocation16] sm:$0x3] %vm11483, %v11478
    // Predicated region
    $region62: #{lstmnet_forward.1} parent=1 // pred_check
      _
    $region63: #{lstmnet_forward.1} parent=1 // pred_check_branch
      %11486 = sbr.rel (0) target = $region65
    $region64: #{lstmnet_forward.1} parent=1 // pred_region
      %s11488 = ssub.s32 32, 32
      %11489 = vsyncadd [#allocation12], %s11488
      %s11491 = sshll.u32 [#allocation16], 4
      %s11492 = int_to_ptr.vmem [resolvable:$true] %s11491
      %11494 = dma.vmem_to_hbm [thread:$0]  %s11492, 32, %s12, [#allocation12]
    $region65: #{lstmnet_forward.1} parent=1 // pred_fallthru
      _
    // Predicated region
    $region66: #{lstmnet_forward.1} parent=1 // pred_check
      _
    $region67: #{lstmnet_forward.1} parent=1 // pred_check_branch
      %11496 = sbr.rel (0) target = $region69
    $region68: #{lstmnet_forward.1} parent=1 // pred_region
      %11497 = dma.done [#allocation12], 32
    $region69: #{lstmnet_forward.1} parent=1 // pred_fallthru
      _
    %11498 = vsyncpa [#allocation11], 1
    %11499 = vsyncpa [#allocation14], 1
    %11500 = vsyncpa [#allocation12], 1
  %11501 = vsyncmov [#allocation8]
  %s11502 = vpop.sfrf %11501
  %p11503 = scmp.eq.s32.totalorder %s11502, 0
  %p11504 = pneg %p11503
  %11506 = shalt.err (%p11504)
  %s11507 = scalar_lea.sflag [#allocation8], 1
  %11508 = vsyncmov %s11507
  %s11509 = vpop.sfrf %11508
  %p11510 = scmp.eq.s32.totalorder %s11509, 0
  %p11511 = pneg %p11510
  %11513 = shalt.err (%p11511)
  %s11514 = scalar_lea.sflag [#allocation8], 2
  %11515 = vsyncmov %s11514
  %s11516 = vpop.sfrf %11515
  %p11517 = scmp.eq.s32.totalorder %s11516, 0
  %p11518 = pneg %p11517
  %11520 = shalt.err (%p11518)

</llo_original>
